<compile_context>
chip_gen: v5e
topology: v5e:2x2
jax: 0.10.0
libtpu: 0.0.40
codegen_flags: <defaults>
</compile_context>

<pallas_src>
import functools

import jax
import jax.numpy as jnp
from jax.experimental import pallas as pl
from jax.experimental.pallas import tpu as pltpu

_LANE = 128
_TB = 128            # batch-tile rows; f32 x tile at tb=128 fits every generation
D_ = 2 ** 13         # matches the PyTorch spec


# ----------------------------- Pallas kernel ------------------------------- #

def _mlp3_kernel(x_ref, w1_ref, b1_ref, w2_ref, b2_ref, w3_ref, b3_ref, o_ref):
    # x arrives f32 straight from HBM; cast to bf16 on the VPU (idle slots)
    # right before the MXU — avoids a separate host-side cast pass over x.
    x = x_ref[...].astype(w1_ref.dtype)
    # fc1 + ReLU : (tb, K) @ (K, 128), f32 accumulate, f32 epilogue.
    h = jnp.dot(x, w1_ref[...], preferred_element_type=jnp.float32)
    h = jnp.maximum(h + b1_ref[...], 0.0)
    # fc2 + ReLU : (tb, 128) @ (128, 128)
    h = jnp.dot(h.astype(w2_ref.dtype), w2_ref[...],
                preferred_element_type=jnp.float32)
    h = jnp.maximum(h + b2_ref[...], 0.0)
    # fc3 (no activation) : (tb, 128) @ (128, 128)
    h = jnp.dot(h.astype(w3_ref.dtype), w3_ref[...],
                preferred_element_type=jnp.float32)
    # Store the lane-padded result as bf16 (halves writeback; still full-lane).
    o_ref[...] = (h + b3_ref[...]).astype(o_ref.dtype)


# --------------------------- one-time weight prep --------------------------- #

def _prep_layer(w_oi, b_o, in_width, compute_dtype):
    """PyTorch (out, in) Linear -> lane-padded (in_width, out_pad) bf16 weight
    (forward is x @ W.T) plus a (1, out_pad) f32 bias row. Pads are exact zeros."""
    o, i = w_oi.shape
    o_pad = -(-o // _LANE) * _LANE
    w = jnp.transpose(w_oi)                                      # (in, out)
    w = jnp.pad(w, ((0, in_width - i), (0, o_pad - o))).astype(compute_dtype)
    b = jnp.pad(b_o, (0, o_pad - o)).astype(jnp.float32).reshape(1, o_pad)
    return w, b, o_pad


def prep_criteo_params(params, in_features, compute_dtype=jnp.bfloat16):
    """Call ONCE (outside the inference loop); returns kernel-ready weights."""
    w1, b1, n1 = _prep_layer(params["w1"], params["b1"], in_features, compute_dtype)
    w2, b2, n2 = _prep_layer(params["w2"], params["b2"], n1, compute_dtype)
    w3, b3, _ = _prep_layer(params["w3"], params["b3"], n2, compute_dtype)
    return (w1, b1, w2, b2, w3, b3)


# ------------------------------ fused forward ------------------------------- #

@functools.partial(jax.jit, static_argnames=("n_out", "tb"))
def criteo_bottom_forward(x, prepped, *, n_out=4, tb=_TB):
    """Fused Pallas forward for BottomModelForCriteo (fc1->relu->fc2->relu->fc3).

    `x` stays f32 (cast to bf16 inside the kernel); `prepped` comes from
    prep_criteo_params().
    """
    w1, b1, w2, b2, w3, b3 = prepped
    B, K = x.shape
    n1, n2, n3 = w1.shape[1], w2.shape[1], w3.shape[1]

    # Pad the batch up to a multiple of tb (padded rows are sliced off below);
    # if there is more than one grid step, make the step count even so the
    # "parallel" grid keeps both v7x TensorCores busy (costs <=1 extra tile on
    # single-TC v5e/v6e, only when the step count would have been odd).
    steps = -(-B // tb)
    if steps > 1 and steps % 2 == 1:
        steps += 1
    Bp = steps * tb
    xt = x if Bp == B else jnp.pad(x, ((0, Bp - B), (0, 0)))
    grid = (steps,)

    flops = 2 * Bp * (K * n1 + n1 * n2 + n2 * n3)
    bytes_accessed = int(
        Bp * K * 4                                   # x read as f32
        + (w1.size + w2.size + w3.size) * 2          # bf16 weights
        + (b1.size + b2.size + b3.size) * 4          # f32 biases
        + Bp * n3 * 2)                               # bf16 padded output

    out = pl.pallas_call(
        _mlp3_kernel,
        out_shape=jax.ShapeDtypeStruct((Bp, n3), jnp.bfloat16),
        grid=grid,
        in_specs=[
            pl.BlockSpec((tb, K), lambda i: (i, 0)),   # f32 activations, batch-tiled
            pl.BlockSpec((K, n1), lambda i: (0, 0)),   # fc1 weights (resident)
            pl.BlockSpec((1, n1), lambda i: (0, 0)),   # fc1 bias
            pl.BlockSpec((n1, n2), lambda i: (0, 0)),  # fc2 weights
            pl.BlockSpec((1, n2), lambda i: (0, 0)),   # fc2 bias
            pl.BlockSpec((n2, n3), lambda i: (0, 0)),  # fc3 weights
            pl.BlockSpec((1, n3), lambda i: (0, 0)),   # fc3 bias
        ],
        out_specs=pl.BlockSpec((tb, n3), lambda i: (i, 0)),
        compiler_params=pltpu.CompilerParams(
            dimension_semantics=("parallel",),
            vmem_limit_bytes=32 * 1024 * 1024),
        cost_estimate=pl.CostEstimate(flops=flops, transcendentals=0,
                                      bytes_accessed=bytes_accessed),
    )(xt, w1, b1, w2, b2, w3, b3)

    # Drop row/lane padding; return f32 like the PyTorch module.
    return out[:B, :n_out].astype(jnp.float32)


# --------------------------- reference (pure JAX) --------------------------- #

def _ref_forward(x, params, compute_dtype=jnp.bfloat16):
    """Pure-JAX reference with the same bf16-operand / f32-accumulate semantics."""
    def lin(h, w, b):
        return (jnp.dot(h.astype(compute_dtype),
                        jnp.transpose(w).astype(compute_dtype),
                        preferred_element_type=jnp.float32)
                + b.astype(jnp.float32))
    h = jax.nn.relu(lin(x, params["w1"], params["b1"]))
    h = jax.nn.relu(lin(h, params["w2"], params["b2"]))
    return lin(h, params["w3"], params["b3"])


# ---------------------------------- main ------------------------------------ #

def _init_linear(key, fan_in, fan_out):
    # Mimic PyTorch nn.Linear default init: U(-1/sqrt(fan_in), 1/sqrt(fan_in)).
    kw, kb = jax.random.split(key)
    bound = 1.0 / float(fan_in) ** 0.5
    w = jax.random.uniform(kw, (fan_out, fan_in), jnp.float32, -bound, bound)
    b = jax.random.uniform(kb, (fan_out,), jnp.float32, -bound, bound)
    return w, b


if __name__ == "__main__":
    # BottomModelForCriteo(half=14, is_adversary=False) -> in_features = D_ - 14.
    half = D_ - 14        # 8178
    batch = 256

    key = jax.random.PRNGKey(0)
    kx, k1, k2, k3 = jax.random.split(key, 4)

    x = jax.random.normal(kx, (batch, half), jnp.float32)
    w1, b1 = _init_linear(k1, half, 64)
    w2, b2 = _init_linear(k2, 64, 16)
    w3, b3 = _init_linear(k3, 16, 4)
    params = {"w1": w1, "b1": b1, "w2": w2, "b2": b2, "w3": w3, "b3": b3}

    # One-time weight prep (hoisted out of the per-call hot path).
    prepped = jax.block_until_ready(prep_criteo_params(params, half))

    out = jax.block_until_ready(criteo_bottom_forward(x, prepped))
    ref = jax.block_until_ready(_ref_forward(x, params))

    assert out.shape == (batch, 4), out.shape
    max_err = float(jnp.max(jnp.abs(out - ref)))
    assert jnp.allclose(out, ref, atol=2e-2, rtol=2e-2), max_err

    print("KERNEL_OK")
</pallas_src>

<mosaic_0001>
module attributes {stable_mosaic.version = 11 : i64} {
  func.func @_mlp3_kernel(%arg0: i32, %arg1: memref<128x8178xf32, #tpu.memory_space<vmem>>, %arg2: memref<8178x128xbf16, #tpu.memory_space<vmem>>, %arg3: memref<1x128xf32, #tpu.memory_space<vmem>>, %arg4: memref<128x128xbf16, #tpu.memory_space<vmem>>, %arg5: memref<1x128xf32, #tpu.memory_space<vmem>>, %arg6: memref<128x128xbf16, #tpu.memory_space<vmem>>, %arg7: memref<1x128xf32, #tpu.memory_space<vmem>>, %arg8: memref<128x128xbf16, #tpu.memory_space<vmem>>) attributes {dimension_semantics = [#tpu.dimension_semantics<parallel>], iteration_bounds = array<i64: 2>, scalar_prefetch = 0 : i64, scratch_operands = 0 : i64, tpu.core_type = #tpu.core_type<tc>, window_params = [{transform_indices = @transform_0, window_bounds = array<i64: 128, 8178>}, {pipeline_mode = #tpu.pipeline_mode<synchronous>, transform_indices = @transform_1, window_bounds = array<i64: 8178, 128>}, {pipeline_mode = #tpu.pipeline_mode<synchronous>, transform_indices = @transform_2, window_bounds = array<i64: 1, 128>}, {pipeline_mode = #tpu.pipeline_mode<synchronous>, transform_indices = @transform_3, window_bounds = array<i64: 128, 128>}, {pipeline_mode = #tpu.pipeline_mode<synchronous>, transform_indices = @transform_4, window_bounds = array<i64: 1, 128>}, {pipeline_mode = #tpu.pipeline_mode<synchronous>, transform_indices = @transform_5, window_bounds = array<i64: 128, 128>}, {pipeline_mode = #tpu.pipeline_mode<synchronous>, transform_indices = @transform_6, window_bounds = array<i64: 1, 128>}, {transform_indices = @transform_7, window_bounds = array<i64: 128, 128>}]} {
    %c0 = arith.constant 0 : index
    %c0_0 = arith.constant 0 : index
    %0 = vector.load %arg1[%c0, %c0_0] : memref<128x8178xf32, #tpu.memory_space<vmem>>, vector<128x8178xf32>
    %1 = arith.truncf %0 : vector<128x8178xf32> to vector<128x8178xbf16>
    %c0_1 = arith.constant 0 : index
    %c0_2 = arith.constant 0 : index
    %2 = vector.load %arg2[%c0_1, %c0_2] : memref<8178x128xbf16, #tpu.memory_space<vmem>>, vector<8178x128xbf16>
    %cst = arith.constant dense<0.000000e+00> : vector<128x128xf32>
    %3 = tpu.matmul %1, %2, %cst {dimension_numbers = #tpu.dot_dimension_numbers<[1], [0], [0], [1], [0, 0, 1, 1], [], []>} : vector<128x8178xbf16>, vector<8178x128xbf16>, vector<128x128xf32> -> vector<128x128xf32>
    %c0_3 = arith.constant 0 : index
    %c0_4 = arith.constant 0 : index
    %4 = vector.load %arg3[%c0_3, %c0_4] : memref<1x128xf32, #tpu.memory_space<vmem>>, vector<1x128xf32>
    %5 = vector.broadcast %4 : vector<1x128xf32> to vector<128x128xf32>
    %6 = arith.addf %3, %5 : vector<128x128xf32>
    %cst_5 = arith.constant 0.000000e+00 : f32
    %7 = vector.broadcast %cst_5 : f32 to vector<128x128xf32>
    %8 = arith.maximumf %6, %7 : vector<128x128xf32>
    %9 = arith.truncf %8 : vector<128x128xf32> to vector<128x128xbf16>
    %c0_6 = arith.constant 0 : index
    %c0_7 = arith.constant 0 : index
    %10 = vector.load %arg4[%c0_6, %c0_7] : memref<128x128xbf16, #tpu.memory_space<vmem>>, vector<128x128xbf16>
    %cst_8 = arith.constant dense<0.000000e+00> : vector<128x128xf32>
    %11 = tpu.matmul %9, %10, %cst_8 {dimension_numbers = #tpu.dot_dimension_numbers<[1], [0], [0], [1], [0, 0, 1, 1], [], []>} : vector<128x128xbf16>, vector<128x128xbf16>, vector<128x128xf32> -> vector<128x128xf32>
    %c0_9 = arith.constant 0 : index
    %c0_10 = arith.constant 0 : index
    %12 = vector.load %arg5[%c0_9, %c0_10] : memref<1x128xf32, #tpu.memory_space<vmem>>, vector<1x128xf32>
    %13 = vector.broadcast %12 : vector<1x128xf32> to vector<128x128xf32>
    %14 = arith.addf %11, %13 : vector<128x128xf32>
    %cst_11 = arith.constant 0.000000e+00 : f32
    %15 = vector.broadcast %cst_11 : f32 to vector<128x128xf32>
    %16 = arith.maximumf %14, %15 : vector<128x128xf32>
    %17 = arith.truncf %16 : vector<128x128xf32> to vector<128x128xbf16>
    %c0_12 = arith.constant 0 : index
    %c0_13 = arith.constant 0 : index
    %18 = vector.load %arg6[%c0_12, %c0_13] : memref<128x128xbf16, #tpu.memory_space<vmem>>, vector<128x128xbf16>
    %cst_14 = arith.constant dense<0.000000e+00> : vector<128x128xf32>
    %19 = tpu.matmul %17, %18, %cst_14 {dimension_numbers = #tpu.dot_dimension_numbers<[1], [0], [0], [1], [0, 0, 1, 1], [], []>} : vector<128x128xbf16>, vector<128x128xbf16>, vector<128x128xf32> -> vector<128x128xf32>
    %c0_15 = arith.constant 0 : index
    %c0_16 = arith.constant 0 : index
    %20 = vector.load %arg7[%c0_15, %c0_16] : memref<1x128xf32, #tpu.memory_space<vmem>>, vector<1x128xf32>
    %21 = vector.broadcast %20 : vector<1x128xf32> to vector<128x128xf32>
    %22 = arith.addf %19, %21 : vector<128x128xf32>
    %23 = arith.truncf %22 : vector<128x128xf32> to vector<128x128xbf16>
    %c0_17 = arith.constant 0 : index
    %c0_18 = arith.constant 0 : index
    %24 = vector.load %arg8[%c0_17, %c0_18] : memref<128x128xbf16, #tpu.memory_space<vmem>>, vector<128x128xbf16>
    tpu.vector_store %arg8[%c0_17, %c0_18], %23 {strides = array<i32>} : memref<128x128xbf16, #tpu.memory_space<vmem>>, vector<128x128xbf16>,
    return
  }
  func.func @transform_0(%arg0: i32) -> (i32, i32) {
    %c0_i32 = arith.constant 0 : i32
    %c0_i32_0 = arith.constant 0 : i32
    return %arg0, %c0_i32 : i32, i32
  }
  func.func @transform_1(%arg0: i32) -> (i32, i32) {
    %c0_i32 = arith.constant 0 : i32
    %c0_i32_0 = arith.constant 0 : i32
    %c0_i32_1 = arith.constant 0 : i32
    return %c0_i32, %c0_i32_0 : i32, i32
  }
  func.func @transform_2(%arg0: i32) -> (i32, i32) {
    %c0_i32 = arith.constant 0 : i32
    %c0_i32_0 = arith.constant 0 : i32
    %c0_i32_1 = arith.constant 0 : i32
    return %c0_i32, %c0_i32_0 : i32, i32
  }
  func.func @transform_3(%arg0: i32) -> (i32, i32) {
    %c0_i32 = arith.constant 0 : i32
    %c0_i32_0 = arith.constant 0 : i32
    %c0_i32_1 = arith.constant 0 : i32
    return %c0_i32, %c0_i32_0 : i32, i32
  }
  func.func @transform_4(%arg0: i32) -> (i32, i32) {
    %c0_i32 = arith.constant 0 : i32
    %c0_i32_0 = arith.constant 0 : i32
    %c0_i32_1 = arith.constant 0 : i32
    return %c0_i32, %c0_i32_0 : i32, i32
  }
  func.func @transform_5(%arg0: i32) -> (i32, i32) {
    %c0_i32 = arith.constant 0 : i32
    %c0_i32_0 = arith.constant 0 : i32
    %c0_i32_1 = arith.constant 0 : i32
    return %c0_i32, %c0_i32_0 : i32, i32
  }
  func.func @transform_6(%arg0: i32) -> (i32, i32) {
    %c0_i32 = arith.constant 0 : i32
    %c0_i32_0 = arith.constant 0 : i32
    %c0_i32_1 = arith.constant 0 : i32
    return %c0_i32, %c0_i32_0 : i32, i32
  }
  func.func @transform_7(%arg0: i32) -> (i32, i32) {
    %c0_i32 = arith.constant 0 : i32
    %c0_i32_0 = arith.constant 0 : i32
    return %arg0, %c0_i32 : i32, i32
  }
}

</mosaic_0001>

<llo_original>
// kernel: criteo_bottom_forward.1
$region0: #{criteo_bottom_forward.1}
  #allocation0 [shape = 'u32[]', space=smem, size = 0x4, offset = 0x4, fixed_abs, tag = 'smem constant byte address 0x4 - core index']
  #allocation1 [shape = 'u32[72,128]{1,0:T(1,128)}', space=vmem, size = 0x9000, scoped, tag = 'internal scratch']
  %s0 = inlined_call_operand.vmem [shape: f32[256,8178], index: 0, kind: input, shape index: {}]
  %s1 = inlined_call_operand.vmem [shape: bf16[8178,128], index: 1, kind: input, shape index: {}]
  %s2 = inlined_call_operand.vmem [shape: f32[1,128], index: 2, kind: input, shape index: {}]
  %s3 = inlined_call_operand.vmem [shape: bf16[128,128], index: 3, kind: input, shape index: {}]
  %s4 = inlined_call_operand.vmem [shape: f32[1,128], index: 4, kind: input, shape index: {}]
  %s5 = inlined_call_operand.vmem [shape: bf16[128,128], index: 5, kind: input, shape index: {}]
  %s6 = inlined_call_operand.vmem [shape: f32[1,128], index: 6, kind: input, shape index: {}]
  %s7 = inlined_call_operand.vmem [shape: bf16[256,128], index: 7, kind: output, shape index: {}]
  %s8 = sld [smem:[#allocation0]]
  $region61: #{criteo_bottom_forward.1} parent=0
    _
  %s10 = ssub.s32 1, %s8
  %s11 = scalar_select 0, %s10, %s8
  loop: start=0, step=1, limit=4
  $region2: #{criteo_bottom_forward.1} parent=0 // loop_pre_header
    _
  $region3: #{criteo_bottom_forward.1} parent=0 // loop_header
    %s13 = sphi 0, %s17
    %p14 = scmp.ge.s32.totalorder %s13, 4
    %s23 = sphi 0, %s25
    %s26 = sphi 0, %s23
    %s27 = sphi 0, %s26
    %s43 = sphi 0, %s27
    %s47 = sphi 0, %s47
    %s49 = sphi 0, %s47
    %s50 = sphi 0, %s49
    %s64 = sphi 0, %s50
    %s68 = sphi 0, %s68
    %s70 = sphi 0, %s68
    %s71 = sphi 0, %s70
    %s85 = sphi 0, %s71
    %s89 = sphi 0, %s89
    %s91 = sphi 0, %s89
    %s92 = sphi 0, %s91
    %s106 = sphi 0, %s92
    %s110 = sphi 0, %s110
    %s112 = sphi 0, %s110
    %s113 = sphi 0, %s112
    %s127 = sphi 0, %s113
    %s131 = sphi 0, %s131
    %s133 = sphi 0, %s131
    %s134 = sphi 0, %s133
    %s148 = sphi 0, %s134
    %s152 = sphi 0, %s152
    %s154 = sphi 0, %s152
    %s155 = sphi 0, %s154
    %s169 = sphi 0, %s155
    %s175 = sphi 0, %s177
    %s178 = sphi 0, %s175
    %s179 = sphi 0, %s178
    %s195 = sphi 0, %s179
  $region4: #{criteo_bottom_forward.1} parent=0 // loop_header_branch
    %16 = sbr.rel (%p14) target = $region8
  $region5: #{criteo_bottom_forward.1} parent=0 // loop_body
    %s18 = ssub.s32 %s13, 1
    %s19 = ssub.s32 %s13, 2
    %s20 = sadd.s32 %s13, 1
    %s21 = ssub.s32 %s13, %s20
    %p22 = scmp.eq.s32.totalorder %s21, 0
    %s24 = sadd.s32 %s23, 1
    %s25 = scalar_select %p22, %s23, %s24
    %p28 = pneg %p22
    %p29 = scmp.eq.s32.totalorder %s13, 1
    %p30 = por %p28, %p29
    %p31 = scmp.ne.s32.totalorder %s23, %s26
    %p32 = scmp.eq.s32.totalorder %s13, 0
    %p33 = por %p31, %p32
    %p34 = scmp.ne.s32.totalorder %s23, %s26
    %p35 = scmp.eq.s32.totalorder %s18, 1
    %p36 = por %p34, %p35
    %p37 = scmp.ne.s32.totalorder %s26, %s27
    %p38 = scmp.eq.s32.totalorder %s18, 0
    %p39 = por %p37, %p38
    %p40 = scmp.ne.s32.totalorder %s26, %s27
    %p41 = scmp.eq.s32.totalorder %s19, 1
    %p42 = por %p40, %p41
    %p44 = scmp.ne.s32.totalorder %s27, %s43
    %p45 = scmp.eq.s32.totalorder %s19, 0
    %p46 = por %p44, %p45
    %s48 = sadd.s32 %s47, 1
    %p51 = scmp.eq.s32.totalorder %s13, 1
    %p52 = scmp.ne.s32.totalorder %s47, %s49
    %p53 = scmp.eq.s32.totalorder %s13, 0
    %p54 = por %p52, %p53
    %p55 = scmp.ne.s32.totalorder %s47, %s49
    %p56 = scmp.eq.s32.totalorder %s18, 1
    %p57 = por %p55, %p56
    %p58 = scmp.ne.s32.totalorder %s49, %s50
    %p59 = scmp.eq.s32.totalorder %s18, 0
    %p60 = por %p58, %p59
    %p61 = scmp.ne.s32.totalorder %s49, %s50
    %p62 = scmp.eq.s32.totalorder %s19, 1
    %p63 = por %p61, %p62
    %p65 = scmp.ne.s32.totalorder %s50, %s64
    %p66 = scmp.eq.s32.totalorder %s19, 0
    %p67 = por %p65, %p66
    %s69 = sadd.s32 %s68, 1
    %p72 = scmp.eq.s32.totalorder %s13, 1
    %p73 = scmp.ne.s32.totalorder %s68, %s70
    %p74 = scmp.eq.s32.totalorder %s13, 0
    %p75 = por %p73, %p74
    %p76 = scmp.ne.s32.totalorder %s68, %s70
    %p77 = scmp.eq.s32.totalorder %s18, 1
    %p78 = por %p76, %p77
    %p79 = scmp.ne.s32.totalorder %s70, %s71
    %p80 = scmp.eq.s32.totalorder %s18, 0
    %p81 = por %p79, %p80
    %p82 = scmp.ne.s32.totalorder %s70, %s71
    %p83 = scmp.eq.s32.totalorder %s19, 1
    %p84 = por %p82, %p83
    %p86 = scmp.ne.s32.totalorder %s71, %s85
    %p87 = scmp.eq.s32.totalorder %s19, 0
    %p88 = por %p86, %p87
    %s90 = sadd.s32 %s89, 1
    %p93 = scmp.eq.s32.totalorder %s13, 1
    %p94 = scmp.ne.s32.totalorder %s89, %s91
    %p95 = scmp.eq.s32.totalorder %s13, 0
    %p96 = por %p94, %p95
    %p97 = scmp.ne.s32.totalorder %s89, %s91
    %p98 = scmp.eq.s32.totalorder %s18, 1
    %p99 = por %p97, %p98
    %p100 = scmp.ne.s32.totalorder %s91, %s92
    %p101 = scmp.eq.s32.totalorder %s18, 0
    %p102 = por %p100, %p101
    %p103 = scmp.ne.s32.totalorder %s91, %s92
    %p104 = scmp.eq.s32.totalorder %s19, 1
    %p105 = por %p103, %p104
    %p107 = scmp.ne.s32.totalorder %s92, %s106
    %p108 = scmp.eq.s32.totalorder %s19, 0
    %p109 = por %p107, %p108
    %s111 = sadd.s32 %s110, 1
    %p114 = scmp.eq.s32.totalorder %s13, 1
    %p115 = scmp.ne.s32.totalorder %s110, %s112
    %p116 = scmp.eq.s32.totalorder %s13, 0
    %p117 = por %p115, %p116
    %p118 = scmp.ne.s32.totalorder %s110, %s112
    %p119 = scmp.eq.s32.totalorder %s18, 1
    %p120 = por %p118, %p119
    %p121 = scmp.ne.s32.totalorder %s112, %s113
    %p122 = scmp.eq.s32.totalorder %s18, 0
    %p123 = por %p121, %p122
    %p124 = scmp.ne.s32.totalorder %s112, %s113
    %p125 = scmp.eq.s32.totalorder %s19, 1
    %p126 = por %p124, %p125
    %p128 = scmp.ne.s32.totalorder %s113, %s127
    %p129 = scmp.eq.s32.totalorder %s19, 0
    %p130 = por %p128, %p129
    %s132 = sadd.s32 %s131, 1
    %p135 = scmp.eq.s32.totalorder %s13, 1
    %p136 = scmp.ne.s32.totalorder %s131, %s133
    %p137 = scmp.eq.s32.totalorder %s13, 0
    %p138 = por %p136, %p137
    %p139 = scmp.ne.s32.totalorder %s131, %s133
    %p140 = scmp.eq.s32.totalorder %s18, 1
    %p141 = por %p139, %p140
    %p142 = scmp.ne.s32.totalorder %s133, %s134
    %p143 = scmp.eq.s32.totalorder %s18, 0
    %p144 = por %p142, %p143
    %p145 = scmp.ne.s32.totalorder %s133, %s134
    %p146 = scmp.eq.s32.totalorder %s19, 1
    %p147 = por %p145, %p146
    %p149 = scmp.ne.s32.totalorder %s134, %s148
    %p150 = scmp.eq.s32.totalorder %s19, 0
    %p151 = por %p149, %p150
    %s153 = sadd.s32 %s152, 1
    %p156 = scmp.eq.s32.totalorder %s13, 1
    %p157 = scmp.ne.s32.totalorder %s152, %s154
    %p158 = scmp.eq.s32.totalorder %s13, 0
    %p159 = por %p157, %p158
    %p160 = scmp.ne.s32.totalorder %s152, %s154
    %p161 = scmp.eq.s32.totalorder %s18, 1
    %p162 = por %p160, %p161
    %p163 = scmp.ne.s32.totalorder %s154, %s155
    %p164 = scmp.eq.s32.totalorder %s18, 0
    %p165 = por %p163, %p164
    %p166 = scmp.ne.s32.totalorder %s154, %s155
    %p167 = scmp.eq.s32.totalorder %s19, 1
    %p168 = por %p166, %p167
    %p170 = scmp.ne.s32.totalorder %s155, %s169
    %p171 = scmp.eq.s32.totalorder %s19, 0
    %p172 = por %p170, %p171
    %s173 = ssub.s32 %s13, %s20
    %p174 = scmp.eq.s32.totalorder %s173, 0
    %s176 = sadd.s32 %s175, 1
    %s177 = scalar_select %p174, %s175, %s176
    %p180 = pneg %p174
    %p181 = scmp.eq.s32.totalorder %s13, 1
    %p182 = por %p180, %p181
    %p183 = scmp.ne.s32.totalorder %s175, %s178
    %p184 = scmp.eq.s32.totalorder %s13, 0
    %p185 = por %p183, %p184
    %p186 = scmp.ne.s32.totalorder %s175, %s178
    %p187 = scmp.eq.s32.totalorder %s18, 1
    %p188 = por %p186, %p187
    %p189 = scmp.ne.s32.totalorder %s178, %s179
    %p190 = scmp.eq.s32.totalorder %s18, 0
    %p191 = por %p189, %p190
    %p192 = scmp.ne.s32.totalorder %s178, %s179
    %p193 = scmp.eq.s32.totalorder %s19, 1
    %p194 = por %p192, %p193
    %p196 = scmp.ne.s32.totalorder %s179, %s195
    %p197 = scmp.eq.s32.totalorder %s19, 0
    %p198 = por %p196, %p197
    %p199 = scmp.le.s32.totalorder 1, %s13
    %p200 = scmp.lt.s32.totalorder %s13, 3
    %p201 = pnand %p199, %p200
    %p202 = pneg %p201
    // Predicated region
    $region9: #{criteo_bottom_forward.1} parent=5 // pred_check
      _
    $region10: #{criteo_bottom_forward.1} parent=5 // pred_check_branch
      %204 = sbr.rel (%p201) target = $region12
    $region11: #{criteo_bottom_forward.1} parent=5 // pred_region
      %s205 = ssub.s32 %s13, 1
      // Predicated region
      $region13: #{criteo_bottom_forward.1} parent=11 // pred_check
        %p206 = pneg %p60
      $region14: #{criteo_bottom_forward.1} parent=11 // pred_check_branch
        %208 = sbr.rel (%p206) target = $region16
      $region15: #{criteo_bottom_forward.1} parent=11 // pred_region
        _
      $region16: #{criteo_bottom_forward.1} parent=11 // pred_fallthru
        _
      // Predicated region
      $region17: #{criteo_bottom_forward.1} parent=11 // pred_check
        %p209 = pneg %p81
      $region18: #{criteo_bottom_forward.1} parent=11 // pred_check_branch
        %211 = sbr.rel (%p209) target = $region20
      $region19: #{criteo_bottom_forward.1} parent=11 // pred_region
        _
      $region20: #{criteo_bottom_forward.1} parent=11 // pred_fallthru
        _
      // Predicated region
      $region21: #{criteo_bottom_forward.1} parent=11 // pred_check
        %p212 = pneg %p102
      $region22: #{criteo_bottom_forward.1} parent=11 // pred_check_branch
        %214 = sbr.rel (%p212) target = $region24
      $region23: #{criteo_bottom_forward.1} parent=11 // pred_region
        _
      $region24: #{criteo_bottom_forward.1} parent=11 // pred_fallthru
        _
      // Predicated region
      $region25: #{criteo_bottom_forward.1} parent=11 // pred_check
        %p215 = pneg %p123
      $region26: #{criteo_bottom_forward.1} parent=11 // pred_check_branch
        %217 = sbr.rel (%p215) target = $region28
      $region27: #{criteo_bottom_forward.1} parent=11 // pred_region
        _
      $region28: #{criteo_bottom_forward.1} parent=11 // pred_fallthru
        _
      // Predicated region
      $region29: #{criteo_bottom_forward.1} parent=11 // pred_check
        %p218 = pneg %p144
      $region30: #{criteo_bottom_forward.1} parent=11 // pred_check_branch
        %220 = sbr.rel (%p218) target = $region32
      $region31: #{criteo_bottom_forward.1} parent=11 // pred_region
        _
      $region32: #{criteo_bottom_forward.1} parent=11 // pred_fallthru
        _
      // Predicated region
      $region33: #{criteo_bottom_forward.1} parent=11 // pred_check
        %p221 = pneg %p165
      $region34: #{criteo_bottom_forward.1} parent=11 // pred_check_branch
        %223 = sbr.rel (%p221) target = $region36
      $region35: #{criteo_bottom_forward.1} parent=11 // pred_region
        _
      $region36: #{criteo_bottom_forward.1} parent=11 // pred_fallthru
        _
    $region12: #{criteo_bottom_forward.1} parent=5 // pred_fallthru
      _
    %p224 = scmp.lt.s32.totalorder %s13, 2
    // Predicated region
    $region37: #{criteo_bottom_forward.1} parent=5 // pred_check
      %p225 = pneg %p224
    $region38: #{criteo_bottom_forward.1} parent=5 // pred_check_branch
      %227 = sbr.rel (%p225) target = $region40
    $region39: #{criteo_bottom_forward.1} parent=5 // pred_region
      // Predicated region
      $region41: #{criteo_bottom_forward.1} parent=39 // pred_check
        %p228 = pneg %p33
      $region42: #{criteo_bottom_forward.1} parent=39 // pred_check_branch
        %230 = sbr.rel (%p228) target = $region44
      $region43: #{criteo_bottom_forward.1} parent=39 // pred_region
        %s231 = smul.u32 16, %s13
        %p232 = scmp.lt.s32.totalorder %s231, 31
        %s233 = scalar_select %p232, %s231, 31
        %s234 = smul.addr %s233, 64
        %s235 = smul.addr %s234, 8
        %s236 = scalar_lea.vmem %s0, %s235
        %s237 = smul.u32 16, %s13
      $region44: #{criteo_bottom_forward.1} parent=39 // pred_fallthru
        _
    $region40: #{criteo_bottom_forward.1} parent=5 // pred_fallthru
      _
    %p238 = scmp.le.s32.totalorder 1, %s13
    %p239 = scmp.lt.s32.totalorder %s13, 3
    %p240 = pnand %p238, %p239
    %p241 = pneg %p240
    // Predicated region
    $region45: #{criteo_bottom_forward.1} parent=5 // pred_check
      _
    $region46: #{criteo_bottom_forward.1} parent=5 // pred_check_branch
      %243 = sbr.rel (%p240) target = $region48
    $region47: #{criteo_bottom_forward.1} parent=5 // pred_region
      %s244 = ssub.s32 %s13, 1
      %s245 = smul.u32 16, %s18
      %p246 = scmp.lt.s32.totalorder %s245, 31
      %s247 = scalar_select %p246, %s245, 31
      %s248 = smul.addr %s247, 64
      %s249 = smul.addr %s248, 8
      %s250 = scalar_lea.vmem %s0, %s249
      %p251 = pneg %p39
      %p252 = pneg %p36
      %p253 = pneg %p60
      %p254 = pneg %p57
      %p255 = pneg %p81
      %p256 = pneg %p78
      %p257 = pneg %p102
      %p258 = pneg %p99
      %p259 = pneg %p123
      %p260 = pneg %p120
      %p261 = pneg %p144
      %p262 = pneg %p141
      %p263 = pneg %p165
      %p264 = pneg %p162
      %p265 = pneg %p191
      %p266 = pneg %p188
      %s267 = smul.u32 16, %s18
      %p268 = scmp.lt.s32.totalorder %s267, 31
      %s269 = scalar_select %p268, %s267, 31
      %s270 = smul.addr %s269, 4
      %s271 = scalar_lea.vmem %s7, %s270
      %s272 = smul.u32 16, %s18
      %p273 = scmp.lt.s32.totalorder %s272, 31
      %s274 = scalar_select %p273, %s272, 31
      %s275 = smul.addr %s274, 64
      %s276 = smul.addr %s275, 8
      %s277 = scalar_lea.vmem %s0, %s276
      %s278 = smul.u32 16, %s18
      %s279 = smul.u32 16, %s18
      %p280 = scmp.lt.s32.totalorder %s279, 31
      %s281 = scalar_select %p280, %s279, 31
      %s282 = smul.addr %s281, 4
      %s283 = scalar_lea.vmem %s7, %s282
      %s284 = smul.u32 16, %s18
      %v285 = vld [vmem:[%s277] sm:$0xff]
      %v286 = vld [vmem:[%s277 + $0x8] sm:$0xff]
      %v287 = vld [vmem:[%s277 + $0x10] sm:$0xff]
      %v288 = vld [vmem:[%s277 + $0x18] sm:$0xff]
      %v289 = vld [vmem:[%s277 + $0x20] sm:$0xff]
      %v290 = vld [vmem:[%s277 + $0x28] sm:$0xff]
      %v291 = vld [vmem:[%s277 + $0x30] sm:$0xff]
      %v292 = vld [vmem:[%s277 + $0x38] sm:$0xff]
      %v293 = vld [vmem:[%s277 + $0x40] sm:$0xff]
      %v294 = vld [vmem:[%s277 + $0x48] sm:$0xff]
      %v295 = vld [vmem:[%s277 + $0x50] sm:$0xff]
      %v296 = vld [vmem:[%s277 + $0x58] sm:$0xff]
      %v297 = vld [vmem:[%s277 + $0x60] sm:$0xff]
      %v298 = vld [vmem:[%s277 + $0x68] sm:$0xff]
      %v299 = vld [vmem:[%s277 + $0x70] sm:$0xff]
      %v300 = vld [vmem:[%s277 + $0x78] sm:$0xff]
      %v301 = vld [vmem:[%s277 + $0x80] sm:$0xff]
      %v302 = vld [vmem:[%s277 + $0x88] sm:$0xff]
      %v303 = vld [vmem:[%s277 + $0x90] sm:$0xff]
      %v304 = vld [vmem:[%s277 + $0x98] sm:$0xff]
      %v305 = vld [vmem:[%s277 + $0xa0] sm:$0xff]
      %v306 = vld [vmem:[%s277 + $0xa8] sm:$0xff]
      %v307 = vld [vmem:[%s277 + $0xb0] sm:$0xff]
      %v308 = vld [vmem:[%s277 + $0xb8] sm:$0xff]
      %v309 = vld [vmem:[%s277 + $0xc0] sm:$0xff]
      %v310 = vld [vmem:[%s277 + $0xc8] sm:$0xff]
      %v311 = vld [vmem:[%s277 + $0xd0] sm:$0xff]
      %v312 = vld [vmem:[%s277 + $0xd8] sm:$0xff]
      %v313 = vld [vmem:[%s277 + $0xe0] sm:$0xff]
      %v314 = vld [vmem:[%s277 + $0xe8] sm:$0xff]
      %v315 = vld [vmem:[%s277 + $0xf0] sm:$0xff]
      %v316 = vld [vmem:[%s277 + $0xf8] sm:$0xff]
      %v317 = vld [vmem:[%s277 + $0x100] sm:$0xff]
      %v318 = vld [vmem:[%s277 + $0x108] sm:$0xff]
      %v319 = vld [vmem:[%s277 + $0x110] sm:$0xff]
      %v320 = vld [vmem:[%s277 + $0x118] sm:$0xff]
      %v321 = vld [vmem:[%s277 + $0x120] sm:$0xff]
      %v322 = vld [vmem:[%s277 + $0x128] sm:$0xff]
      %v323 = vld [vmem:[%s277 + $0x130] sm:$0xff]
      %v324 = vld [vmem:[%s277 + $0x138] sm:$0xff]
      %v325 = vld [vmem:[%s277 + $0x140] sm:$0xff]
      %v326 = vld [vmem:[%s277 + $0x148] sm:$0xff]
      %v327 = vld [vmem:[%s277 + $0x150] sm:$0xff]
      %v328 = vld [vmem:[%s277 + $0x158] sm:$0xff]
      %v329 = vld [vmem:[%s277 + $0x160] sm:$0xff]
      %v330 = vld [vmem:[%s277 + $0x168] sm:$0xff]
      %v331 = vld [vmem:[%s277 + $0x170] sm:$0xff]
      %v332 = vld [vmem:[%s277 + $0x178] sm:$0xff]
      %v333 = vld [vmem:[%s277 + $0x180] sm:$0xff]
      %v334 = vld [vmem:[%s277 + $0x188] sm:$0xff]
      %v335 = vld [vmem:[%s277 + $0x190] sm:$0xff]
      %v336 = vld [vmem:[%s277 + $0x198] sm:$0xff]
      %v337 = vld [vmem:[%s277 + $0x1a0] sm:$0xff]
      %v338 = vld [vmem:[%s277 + $0x1a8] sm:$0xff]
      %v339 = vld [vmem:[%s277 + $0x1b0] sm:$0xff]
      %v340 = vld [vmem:[%s277 + $0x1b8] sm:$0xff]
      %v341 = vld [vmem:[%s277 + $0x1c0] sm:$0xff]
      %v342 = vld [vmem:[%s277 + $0x1c8] sm:$0xff]
      %v343 = vld [vmem:[%s277 + $0x1d0] sm:$0xff]
      %v344 = vld [vmem:[%s277 + $0x1d8] sm:$0xff]
      %v345 = vld [vmem:[%s277 + $0x1e0] sm:$0xff]
      %v346 = vld [vmem:[%s277 + $0x1e8] sm:$0xff]
      %v347 = vld [vmem:[%s277 + $0x1f0] sm:$0xff]
      %v348 = vld [vmem:[%s277 + $0x1f8] sm:$0xff]
      %v349 = vld [vmem:[%s277 + $0x200] sm:$0xff]
      %v350 = vld [vmem:[%s277 + $0x208] sm:$0xff]
      %v351 = vld [vmem:[%s277 + $0x210] sm:$0xff]
      %v352 = vld [vmem:[%s277 + $0x218] sm:$0xff]
      %v353 = vld [vmem:[%s277 + $0x220] sm:$0xff]
      %v354 = vld [vmem:[%s277 + $0x228] sm:$0xff]
      %v355 = vld [vmem:[%s277 + $0x230] sm:$0xff]
      %v356 = vld [vmem:[%s277 + $0x238] sm:$0xff]
      %v357 = vld [vmem:[%s277 + $0x240] sm:$0xff]
      %v358 = vld [vmem:[%s277 + $0x248] sm:$0xff]
      %v359 = vld [vmem:[%s277 + $0x250] sm:$0xff]
      %v360 = vld [vmem:[%s277 + $0x258] sm:$0xff]
      %v361 = vld [vmem:[%s277 + $0x260] sm:$0xff]
      %v362 = vld [vmem:[%s277 + $0x268] sm:$0xff]
      %v363 = vld [vmem:[%s277 + $0x270] sm:$0xff]
      %v364 = vld [vmem:[%s277 + $0x278] sm:$0xff]
      %v365 = vld [vmem:[%s277 + $0x280] sm:$0xff]
      %v366 = vld [vmem:[%s277 + $0x288] sm:$0xff]
      %v367 = vld [vmem:[%s277 + $0x290] sm:$0xff]
      %v368 = vld [vmem:[%s277 + $0x298] sm:$0xff]
      %v369 = vld [vmem:[%s277 + $0x2a0] sm:$0xff]
      %v370 = vld [vmem:[%s277 + $0x2a8] sm:$0xff]
      %v371 = vld [vmem:[%s277 + $0x2b0] sm:$0xff]
      %v372 = vld [vmem:[%s277 + $0x2b8] sm:$0xff]
      %v373 = vld [vmem:[%s277 + $0x2c0] sm:$0xff]
      %v374 = vld [vmem:[%s277 + $0x2c8] sm:$0xff]
      %v375 = vld [vmem:[%s277 + $0x2d0] sm:$0xff]
      %v376 = vld [vmem:[%s277 + $0x2d8] sm:$0xff]
      %v377 = vld [vmem:[%s277 + $0x2e0] sm:$0xff]
      %v378 = vld [vmem:[%s277 + $0x2e8] sm:$0xff]
      %v379 = vld [vmem:[%s277 + $0x2f0] sm:$0xff]
      %v380 = vld [vmem:[%s277 + $0x2f8] sm:$0xff]
      %v381 = vld [vmem:[%s277 + $0x300] sm:$0xff]
      %v382 = vld [vmem:[%s277 + $0x308] sm:$0xff]
      %v383 = vld [vmem:[%s277 + $0x310] sm:$0xff]
      %v384 = vld [vmem:[%s277 + $0x318] sm:$0xff]
      %v385 = vld [vmem:[%s277 + $0x320] sm:$0xff]
      %v386 = vld [vmem:[%s277 + $0x328] sm:$0xff]
      %v387 = vld [vmem:[%s277 + $0x330] sm:$0xff]
      %v388 = vld [vmem:[%s277 + $0x338] sm:$0xff]
      %v389 = vld [vmem:[%s277 + $0x340] sm:$0xff]
      %v390 = vld [vmem:[%s277 + $0x348] sm:$0xff]
      %v391 = vld [vmem:[%s277 + $0x350] sm:$0xff]
      %v392 = vld [vmem:[%s277 + $0x358] sm:$0xff]
      %v393 = vld [vmem:[%s277 + $0x360] sm:$0xff]
      %v394 = vld [vmem:[%s277 + $0x368] sm:$0xff]
      %v395 = vld [vmem:[%s277 + $0x370] sm:$0xff]
      %v396 = vld [vmem:[%s277 + $0x378] sm:$0xff]
      %v397 = vld [vmem:[%s277 + $0x380] sm:$0xff]
      %v398 = vld [vmem:[%s277 + $0x388] sm:$0xff]
      %v399 = vld [vmem:[%s277 + $0x390] sm:$0xff]
      %v400 = vld [vmem:[%s277 + $0x398] sm:$0xff]
      %v401 = vld [vmem:[%s277 + $0x3a0] sm:$0xff]
      %v402 = vld [vmem:[%s277 + $0x3a8] sm:$0xff]
      %v403 = vld [vmem:[%s277 + $0x3b0] sm:$0xff]
      %v404 = vld [vmem:[%s277 + $0x3b8] sm:$0xff]
      %v405 = vld [vmem:[%s277 + $0x3c0] sm:$0xff]
      %v406 = vld [vmem:[%s277 + $0x3c8] sm:$0xff]
      %v407 = vld [vmem:[%s277 + $0x3d0] sm:$0xff]
      %v408 = vld [vmem:[%s277 + $0x3d8] sm:$0xff]
      %v409 = vld [vmem:[%s277 + $0x3e0] sm:$0xff]
      %v410 = vld [vmem:[%s277 + $0x3e8] sm:$0xff]
      %v411 = vld [vmem:[%s277 + $0x3f0] sm:$0xff]
      %v412 = vld [vmem:[%s277 + $0x3f8] sm:$0xff]
      %v413 = vld [vmem:[%s277 + $0x400] sm:$0xff]
      %v414 = vld [vmem:[%s277 + $0x408] sm:$0xff]
      %v415 = vld [vmem:[%s277 + $0x410] sm:$0xff]
      %v416 = vld [vmem:[%s277 + $0x418] sm:$0xff]
      %v417 = vld [vmem:[%s277 + $0x420] sm:$0xff]
      %v418 = vld [vmem:[%s277 + $0x428] sm:$0xff]
      %v419 = vld [vmem:[%s277 + $0x430] sm:$0xff]
      %v420 = vld [vmem:[%s277 + $0x438] sm:$0xff]
      %v421 = vld [vmem:[%s277 + $0x440] sm:$0xff]
      %v422 = vld [vmem:[%s277 + $0x448] sm:$0xff]
      %v423 = vld [vmem:[%s277 + $0x450] sm:$0xff]
      %v424 = vld [vmem:[%s277 + $0x458] sm:$0xff]
      %v425 = vld [vmem:[%s277 + $0x460] sm:$0xff]
      %v426 = vld [vmem:[%s277 + $0x468] sm:$0xff]
      %v427 = vld [vmem:[%s277 + $0x470] sm:$0xff]
      %v428 = vld [vmem:[%s277 + $0x478] sm:$0xff]
      %v429 = vld [vmem:[%s277 + $0x480] sm:$0xff]
      %v430 = vld [vmem:[%s277 + $0x488] sm:$0xff]
      %v431 = vld [vmem:[%s277 + $0x490] sm:$0xff]
      %v432 = vld [vmem:[%s277 + $0x498] sm:$0xff]
      %v433 = vld [vmem:[%s277 + $0x4a0] sm:$0xff]
      %v434 = vld [vmem:[%s277 + $0x4a8] sm:$0xff]
      %v435 = vld [vmem:[%s277 + $0x4b0] sm:$0xff]
      %v436 = vld [vmem:[%s277 + $0x4b8] sm:$0xff]
      %v437 = vld [vmem:[%s277 + $0x4c0] sm:$0xff]
      %v438 = vld [vmem:[%s277 + $0x4c8] sm:$0xff]
      %v439 = vld [vmem:[%s277 + $0x4d0] sm:$0xff]
      %v440 = vld [vmem:[%s277 + $0x4d8] sm:$0xff]
      %v441 = vld [vmem:[%s277 + $0x4e0] sm:$0xff]
      %v442 = vld [vmem:[%s277 + $0x4e8] sm:$0xff]
      %v443 = vld [vmem:[%s277 + $0x4f0] sm:$0xff]
      %v444 = vld [vmem:[%s277 + $0x4f8] sm:$0xff]
      %v445 = vld [vmem:[%s277 + $0x500] sm:$0xff]
      %v446 = vld [vmem:[%s277 + $0x508] sm:$0xff]
      %v447 = vld [vmem:[%s277 + $0x510] sm:$0xff]
      %v448 = vld [vmem:[%s277 + $0x518] sm:$0xff]
      %v449 = vld [vmem:[%s277 + $0x520] sm:$0xff]
      %v450 = vld [vmem:[%s277 + $0x528] sm:$0xff]
      %v451 = vld [vmem:[%s277 + $0x530] sm:$0xff]
      %v452 = vld [vmem:[%s277 + $0x538] sm:$0xff]
      %v453 = vld [vmem:[%s277 + $0x540] sm:$0xff]
      %v454 = vld [vmem:[%s277 + $0x548] sm:$0xff]
      %v455 = vld [vmem:[%s277 + $0x550] sm:$0xff]
      %v456 = vld [vmem:[%s277 + $0x558] sm:$0xff]
      %v457 = vld [vmem:[%s277 + $0x560] sm:$0xff]
      %v458 = vld [vmem:[%s277 + $0x568] sm:$0xff]
      %v459 = vld [vmem:[%s277 + $0x570] sm:$0xff]
      %v460 = vld [vmem:[%s277 + $0x578] sm:$0xff]
      %v461 = vld [vmem:[%s277 + $0x580] sm:$0xff]
      %v462 = vld [vmem:[%s277 + $0x588] sm:$0xff]
      %v463 = vld [vmem:[%s277 + $0x590] sm:$0xff]
      %v464 = vld [vmem:[%s277 + $0x598] sm:$0xff]
      %v465 = vld [vmem:[%s277 + $0x5a0] sm:$0xff]
      %v466 = vld [vmem:[%s277 + $0x5a8] sm:$0xff]
      %v467 = vld [vmem:[%s277 + $0x5b0] sm:$0xff]
      %v468 = vld [vmem:[%s277 + $0x5b8] sm:$0xff]
      %v469 = vld [vmem:[%s277 + $0x5c0] sm:$0xff]
      %v470 = vld [vmem:[%s277 + $0x5c8] sm:$0xff]
      %v471 = vld [vmem:[%s277 + $0x5d0] sm:$0xff]
      %v472 = vld [vmem:[%s277 + $0x5d8] sm:$0xff]
      %v473 = vld [vmem:[%s277 + $0x5e0] sm:$0xff]
      %v474 = vld [vmem:[%s277 + $0x5e8] sm:$0xff]
      %v475 = vld [vmem:[%s277 + $0x5f0] sm:$0xff]
      %v476 = vld [vmem:[%s277 + $0x5f8] sm:$0xff]
      %v477 = vld [vmem:[%s277 + $0x600] sm:$0xff]
      %v478 = vld [vmem:[%s277 + $0x608] sm:$0xff]
      %v479 = vld [vmem:[%s277 + $0x610] sm:$0xff]
      %v480 = vld [vmem:[%s277 + $0x618] sm:$0xff]
      %v481 = vld [vmem:[%s277 + $0x620] sm:$0xff]
      %v482 = vld [vmem:[%s277 + $0x628] sm:$0xff]
      %v483 = vld [vmem:[%s277 + $0x630] sm:$0xff]
      %v484 = vld [vmem:[%s277 + $0x638] sm:$0xff]
      %v485 = vld [vmem:[%s277 + $0x640] sm:$0xff]
      %v486 = vld [vmem:[%s277 + $0x648] sm:$0xff]
      %v487 = vld [vmem:[%s277 + $0x650] sm:$0xff]
      %v488 = vld [vmem:[%s277 + $0x658] sm:$0xff]
      %v489 = vld [vmem:[%s277 + $0x660] sm:$0xff]
      %v490 = vld [vmem:[%s277 + $0x668] sm:$0xff]
      %v491 = vld [vmem:[%s277 + $0x670] sm:$0xff]
      %v492 = vld [vmem:[%s277 + $0x678] sm:$0xff]
      %v493 = vld [vmem:[%s277 + $0x680] sm:$0xff]
      %v494 = vld [vmem:[%s277 + $0x688] sm:$0xff]
      %v495 = vld [vmem:[%s277 + $0x690] sm:$0xff]
      %v496 = vld [vmem:[%s277 + $0x698] sm:$0xff]
      %v497 = vld [vmem:[%s277 + $0x6a0] sm:$0xff]
      %v498 = vld [vmem:[%s277 + $0x6a8] sm:$0xff]
      %v499 = vld [vmem:[%s277 + $0x6b0] sm:$0xff]
      %v500 = vld [vmem:[%s277 + $0x6b8] sm:$0xff]
      %v501 = vld [vmem:[%s277 + $0x6c0] sm:$0xff]
      %v502 = vld [vmem:[%s277 + $0x6c8] sm:$0xff]
      %v503 = vld [vmem:[%s277 + $0x6d0] sm:$0xff]
      %v504 = vld [vmem:[%s277 + $0x6d8] sm:$0xff]
      %v505 = vld [vmem:[%s277 + $0x6e0] sm:$0xff]
      %v506 = vld [vmem:[%s277 + $0x6e8] sm:$0xff]
      %v507 = vld [vmem:[%s277 + $0x6f0] sm:$0xff]
      %v508 = vld [vmem:[%s277 + $0x6f8] sm:$0xff]
      %v509 = vld [vmem:[%s277 + $0x700] sm:$0xff]
      %v510 = vld [vmem:[%s277 + $0x708] sm:$0xff]
      %v511 = vld [vmem:[%s277 + $0x710] sm:$0xff]
      %v512 = vld [vmem:[%s277 + $0x718] sm:$0xff]
      %v513 = vld [vmem:[%s277 + $0x720] sm:$0xff]
      %v514 = vld [vmem:[%s277 + $0x728] sm:$0xff]
      %v515 = vld [vmem:[%s277 + $0x730] sm:$0xff]
      %v516 = vld [vmem:[%s277 + $0x738] sm:$0xff]
      %v517 = vld [vmem:[%s277 + $0x740] sm:$0xff]
      %v518 = vld [vmem:[%s277 + $0x748] sm:$0xff]
      %v519 = vld [vmem:[%s277 + $0x750] sm:$0xff]
      %v520 = vld [vmem:[%s277 + $0x758] sm:$0xff]
      %v521 = vld [vmem:[%s277 + $0x760] sm:$0xff]
      %v522 = vld [vmem:[%s277 + $0x768] sm:$0xff]
      %v523 = vld [vmem:[%s277 + $0x770] sm:$0xff]
      %v524 = vld [vmem:[%s277 + $0x778] sm:$0xff]
      %v525 = vld [vmem:[%s277 + $0x780] sm:$0xff]
      %v526 = vld [vmem:[%s277 + $0x788] sm:$0xff]
      %v527 = vld [vmem:[%s277 + $0x790] sm:$0xff]
      %v528 = vld [vmem:[%s277 + $0x798] sm:$0xff]
      %v529 = vld [vmem:[%s277 + $0x7a0] sm:$0xff]
      %v530 = vld [vmem:[%s277 + $0x7a8] sm:$0xff]
      %v531 = vld [vmem:[%s277 + $0x7b0] sm:$0xff]
      %v532 = vld [vmem:[%s277 + $0x7b8] sm:$0xff]
      %v533 = vld [vmem:[%s277 + $0x7c0] sm:$0xff]
      %v534 = vld [vmem:[%s277 + $0x7c8] sm:$0xff]
      %v535 = vld [vmem:[%s277 + $0x7d0] sm:$0xff]
      %v536 = vld [vmem:[%s277 + $0x7d8] sm:$0xff]
      %v537 = vld [vmem:[%s277 + $0x7e0] sm:$0xff]
      %v538 = vld [vmem:[%s277 + $0x7e8] sm:$0xff]
      %v539 = vld [vmem:[%s277 + $0x7f0] sm:$0xff]
      %v540 = vld [vmem:[%s277 + $0x7f8] sm:$0xff]
      %v541 = vld [vmem:[%s277 + $0x800] sm:$0xff]
      %v542 = vld [vmem:[%s277 + $0x808] sm:$0xff]
      %v543 = vld [vmem:[%s277 + $0x810] sm:$0xff]
      %v544 = vld [vmem:[%s277 + $0x818] sm:$0xff]
      %v545 = vld [vmem:[%s277 + $0x820] sm:$0xff]
      %v546 = vld [vmem:[%s277 + $0x828] sm:$0xff]
      %v547 = vld [vmem:[%s277 + $0x830] sm:$0xff]
      %v548 = vld [vmem:[%s277 + $0x838] sm:$0xff]
      %v549 = vld [vmem:[%s277 + $0x840] sm:$0xff]
      %v550 = vld [vmem:[%s277 + $0x848] sm:$0xff]
      %v551 = vld [vmem:[%s277 + $0x850] sm:$0xff]
      %v552 = vld [vmem:[%s277 + $0x858] sm:$0xff]
      %v553 = vld [vmem:[%s277 + $0x860] sm:$0xff]
      %v554 = vld [vmem:[%s277 + $0x868] sm:$0xff]
      %v555 = vld [vmem:[%s277 + $0x870] sm:$0xff]
      %v556 = vld [vmem:[%s277 + $0x878] sm:$0xff]
      %v557 = vld [vmem:[%s277 + $0x880] sm:$0xff]
      %v558 = vld [vmem:[%s277 + $0x888] sm:$0xff]
      %v559 = vld [vmem:[%s277 + $0x890] sm:$0xff]
      %v560 = vld [vmem:[%s277 + $0x898] sm:$0xff]
      %v561 = vld [vmem:[%s277 + $0x8a0] sm:$0xff]
      %v562 = vld [vmem:[%s277 + $0x8a8] sm:$0xff]
      %v563 = vld [vmem:[%s277 + $0x8b0] sm:$0xff]
      %v564 = vld [vmem:[%s277 + $0x8b8] sm:$0xff]
      %v565 = vld [vmem:[%s277 + $0x8c0] sm:$0xff]
      %v566 = vld [vmem:[%s277 + $0x8c8] sm:$0xff]
      %v567 = vld [vmem:[%s277 + $0x8d0] sm:$0xff]
      %v568 = vld [vmem:[%s277 + $0x8d8] sm:$0xff]
      %v569 = vld [vmem:[%s277 + $0x8e0] sm:$0xff]
      %v570 = vld [vmem:[%s277 + $0x8e8] sm:$0xff]
      %v571 = vld [vmem:[%s277 + $0x8f0] sm:$0xff]
      %v572 = vld [vmem:[%s277 + $0x8f8] sm:$0xff]
      %v573 = vld [vmem:[%s277 + $0x900] sm:$0xff]
      %v574 = vld [vmem:[%s277 + $0x908] sm:$0xff]
      %v575 = vld [vmem:[%s277 + $0x910] sm:$0xff]
      %v576 = vld [vmem:[%s277 + $0x918] sm:$0xff]
      %v577 = vld [vmem:[%s277 + $0x920] sm:$0xff]
      %v578 = vld [vmem:[%s277 + $0x928] sm:$0xff]
      %v579 = vld [vmem:[%s277 + $0x930] sm:$0xff]
      %v580 = vld [vmem:[%s277 + $0x938] sm:$0xff]
      %v581 = vld [vmem:[%s277 + $0x940] sm:$0xff]
      %v582 = vld [vmem:[%s277 + $0x948] sm:$0xff]
      %v583 = vld [vmem:[%s277 + $0x950] sm:$0xff]
      %v584 = vld [vmem:[%s277 + $0x958] sm:$0xff]
      %v585 = vld [vmem:[%s277 + $0x960] sm:$0xff]
      %v586 = vld [vmem:[%s277 + $0x968] sm:$0xff]
      %v587 = vld [vmem:[%s277 + $0x970] sm:$0xff]
      %v588 = vld [vmem:[%s277 + $0x978] sm:$0xff]
      %v589 = vld [vmem:[%s277 + $0x980] sm:$0xff]
      %v590 = vld [vmem:[%s277 + $0x988] sm:$0xff]
      %v591 = vld [vmem:[%s277 + $0x990] sm:$0xff]
      %v592 = vld [vmem:[%s277 + $0x998] sm:$0xff]
      %v593 = vld [vmem:[%s277 + $0x9a0] sm:$0xff]
      %v594 = vld [vmem:[%s277 + $0x9a8] sm:$0xff]
      %v595 = vld [vmem:[%s277 + $0x9b0] sm:$0xff]
      %v596 = vld [vmem:[%s277 + $0x9b8] sm:$0xff]
      %v597 = vld [vmem:[%s277 + $0x9c0] sm:$0xff]
      %v598 = vld [vmem:[%s277 + $0x9c8] sm:$0xff]
      %v599 = vld [vmem:[%s277 + $0x9d0] sm:$0xff]
      %v600 = vld [vmem:[%s277 + $0x9d8] sm:$0xff]
      %v601 = vld [vmem:[%s277 + $0x9e0] sm:$0xff]
      %v602 = vld [vmem:[%s277 + $0x9e8] sm:$0xff]
      %v603 = vld [vmem:[%s277 + $0x9f0] sm:$0xff]
      %v604 = vld [vmem:[%s277 + $0x9f8] sm:$0xff]
      %v605 = vld [vmem:[%s277 + $0xa00] sm:$0xff]
      %v606 = vld [vmem:[%s277 + $0xa08] sm:$0xff]
      %v607 = vld [vmem:[%s277 + $0xa10] sm:$0xff]
      %v608 = vld [vmem:[%s277 + $0xa18] sm:$0xff]
      %v609 = vld [vmem:[%s277 + $0xa20] sm:$0xff]
      %v610 = vld [vmem:[%s277 + $0xa28] sm:$0xff]
      %v611 = vld [vmem:[%s277 + $0xa30] sm:$0xff]
      %v612 = vld [vmem:[%s277 + $0xa38] sm:$0xff]
      %v613 = vld [vmem:[%s277 + $0xa40] sm:$0xff]
      %v614 = vld [vmem:[%s277 + $0xa48] sm:$0xff]
      %v615 = vld [vmem:[%s277 + $0xa50] sm:$0xff]
      %v616 = vld [vmem:[%s277 + $0xa58] sm:$0xff]
      %v617 = vld [vmem:[%s277 + $0xa60] sm:$0xff]
      %v618 = vld [vmem:[%s277 + $0xa68] sm:$0xff]
      %v619 = vld [vmem:[%s277 + $0xa70] sm:$0xff]
      %v620 = vld [vmem:[%s277 + $0xa78] sm:$0xff]
      %v621 = vld [vmem:[%s277 + $0xa80] sm:$0xff]
      %v622 = vld [vmem:[%s277 + $0xa88] sm:$0xff]
      %v623 = vld [vmem:[%s277 + $0xa90] sm:$0xff]
      %v624 = vld [vmem:[%s277 + $0xa98] sm:$0xff]
      %v625 = vld [vmem:[%s277 + $0xaa0] sm:$0xff]
      %v626 = vld [vmem:[%s277 + $0xaa8] sm:$0xff]
      %v627 = vld [vmem:[%s277 + $0xab0] sm:$0xff]
      %v628 = vld [vmem:[%s277 + $0xab8] sm:$0xff]
      %v629 = vld [vmem:[%s277 + $0xac0] sm:$0xff]
      %v630 = vld [vmem:[%s277 + $0xac8] sm:$0xff]
      %v631 = vld [vmem:[%s277 + $0xad0] sm:$0xff]
      %v632 = vld [vmem:[%s277 + $0xad8] sm:$0xff]
      %v633 = vld [vmem:[%s277 + $0xae0] sm:$0xff]
      %v634 = vld [vmem:[%s277 + $0xae8] sm:$0xff]
      %v635 = vld [vmem:[%s277 + $0xaf0] sm:$0xff]
      %v636 = vld [vmem:[%s277 + $0xaf8] sm:$0xff]
      %v637 = vld [vmem:[%s277 + $0xb00] sm:$0xff]
      %v638 = vld [vmem:[%s277 + $0xb08] sm:$0xff]
      %v639 = vld [vmem:[%s277 + $0xb10] sm:$0xff]
      %v640 = vld [vmem:[%s277 + $0xb18] sm:$0xff]
      %v641 = vld [vmem:[%s277 + $0xb20] sm:$0xff]
      %v642 = vld [vmem:[%s277 + $0xb28] sm:$0xff]
      %v643 = vld [vmem:[%s277 + $0xb30] sm:$0xff]
      %v644 = vld [vmem:[%s277 + $0xb38] sm:$0xff]
      %v645 = vld [vmem:[%s277 + $0xb40] sm:$0xff]
      %v646 = vld [vmem:[%s277 + $0xb48] sm:$0xff]
      %v647 = vld [vmem:[%s277 + $0xb50] sm:$0xff]
      %v648 = vld [vmem:[%s277 + $0xb58] sm:$0xff]
      %v649 = vld [vmem:[%s277 + $0xb60] sm:$0xff]
      %v650 = vld [vmem:[%s277 + $0xb68] sm:$0xff]
      %v651 = vld [vmem:[%s277 + $0xb70] sm:$0xff]
      %v652 = vld [vmem:[%s277 + $0xb78] sm:$0xff]
      %v653 = vld [vmem:[%s277 + $0xb80] sm:$0xff]
      %v654 = vld [vmem:[%s277 + $0xb88] sm:$0xff]
      %v655 = vld [vmem:[%s277 + $0xb90] sm:$0xff]
      %v656 = vld [vmem:[%s277 + $0xb98] sm:$0xff]
      %v657 = vld [vmem:[%s277 + $0xba0] sm:$0xff]
      %v658 = vld [vmem:[%s277 + $0xba8] sm:$0xff]
      %v659 = vld [vmem:[%s277 + $0xbb0] sm:$0xff]
      %v660 = vld [vmem:[%s277 + $0xbb8] sm:$0xff]
      %v661 = vld [vmem:[%s277 + $0xbc0] sm:$0xff]
      %v662 = vld [vmem:[%s277 + $0xbc8] sm:$0xff]
      %v663 = vld [vmem:[%s277 + $0xbd0] sm:$0xff]
      %v664 = vld [vmem:[%s277 + $0xbd8] sm:$0xff]
      %v665 = vld [vmem:[%s277 + $0xbe0] sm:$0xff]
      %v666 = vld [vmem:[%s277 + $0xbe8] sm:$0xff]
      %v667 = vld [vmem:[%s277 + $0xbf0] sm:$0xff]
      %v668 = vld [vmem:[%s277 + $0xbf8] sm:$0xff]
      %v669 = vld [vmem:[%s277 + $0xc00] sm:$0xff]
      %v670 = vld [vmem:[%s277 + $0xc08] sm:$0xff]
      %v671 = vld [vmem:[%s277 + $0xc10] sm:$0xff]
      %v672 = vld [vmem:[%s277 + $0xc18] sm:$0xff]
      %v673 = vld [vmem:[%s277 + $0xc20] sm:$0xff]
      %v674 = vld [vmem:[%s277 + $0xc28] sm:$0xff]
      %v675 = vld [vmem:[%s277 + $0xc30] sm:$0xff]
      %v676 = vld [vmem:[%s277 + $0xc38] sm:$0xff]
      %v677 = vld [vmem:[%s277 + $0xc40] sm:$0xff]
      %v678 = vld [vmem:[%s277 + $0xc48] sm:$0xff]
      %v679 = vld [vmem:[%s277 + $0xc50] sm:$0xff]
      %v680 = vld [vmem:[%s277 + $0xc58] sm:$0xff]
      %v681 = vld [vmem:[%s277 + $0xc60] sm:$0xff]
      %v682 = vld [vmem:[%s277 + $0xc68] sm:$0xff]
      %v683 = vld [vmem:[%s277 + $0xc70] sm:$0xff]
      %v684 = vld [vmem:[%s277 + $0xc78] sm:$0xff]
      %v685 = vld [vmem:[%s277 + $0xc80] sm:$0xff]
      %v686 = vld [vmem:[%s277 + $0xc88] sm:$0xff]
      %v687 = vld [vmem:[%s277 + $0xc90] sm:$0xff]
      %v688 = vld [vmem:[%s277 + $0xc98] sm:$0xff]
      %v689 = vld [vmem:[%s277 + $0xca0] sm:$0xff]
      %v690 = vld [vmem:[%s277 + $0xca8] sm:$0xff]
      %v691 = vld [vmem:[%s277 + $0xcb0] sm:$0xff]
      %v692 = vld [vmem:[%s277 + $0xcb8] sm:$0xff]
      %v693 = vld [vmem:[%s277 + $0xcc0] sm:$0xff]
      %v694 = vld [vmem:[%s277 + $0xcc8] sm:$0xff]
      %v695 = vld [vmem:[%s277 + $0xcd0] sm:$0xff]
      %v696 = vld [vmem:[%s277 + $0xcd8] sm:$0xff]
      %v697 = vld [vmem:[%s277 + $0xce0] sm:$0xff]
      %v698 = vld [vmem:[%s277 + $0xce8] sm:$0xff]
      %v699 = vld [vmem:[%s277 + $0xcf0] sm:$0xff]
      %v700 = vld [vmem:[%s277 + $0xcf8] sm:$0xff]
      %v701 = vld [vmem:[%s277 + $0xd00] sm:$0xff]
      %v702 = vld [vmem:[%s277 + $0xd08] sm:$0xff]
      %v703 = vld [vmem:[%s277 + $0xd10] sm:$0xff]
      %v704 = vld [vmem:[%s277 + $0xd18] sm:$0xff]
      %v705 = vld [vmem:[%s277 + $0xd20] sm:$0xff]
      %v706 = vld [vmem:[%s277 + $0xd28] sm:$0xff]
      %v707 = vld [vmem:[%s277 + $0xd30] sm:$0xff]
      %v708 = vld [vmem:[%s277 + $0xd38] sm:$0xff]
      %v709 = vld [vmem:[%s277 + $0xd40] sm:$0xff]
      %v710 = vld [vmem:[%s277 + $0xd48] sm:$0xff]
      %v711 = vld [vmem:[%s277 + $0xd50] sm:$0xff]
      %v712 = vld [vmem:[%s277 + $0xd58] sm:$0xff]
      %v713 = vld [vmem:[%s277 + $0xd60] sm:$0xff]
      %v714 = vld [vmem:[%s277 + $0xd68] sm:$0xff]
      %v715 = vld [vmem:[%s277 + $0xd70] sm:$0xff]
      %v716 = vld [vmem:[%s277 + $0xd78] sm:$0xff]
      %v717 = vld [vmem:[%s277 + $0xd80] sm:$0xff]
      %v718 = vld [vmem:[%s277 + $0xd88] sm:$0xff]
      %v719 = vld [vmem:[%s277 + $0xd90] sm:$0xff]
      %v720 = vld [vmem:[%s277 + $0xd98] sm:$0xff]
      %v721 = vld [vmem:[%s277 + $0xda0] sm:$0xff]
      %v722 = vld [vmem:[%s277 + $0xda8] sm:$0xff]
      %v723 = vld [vmem:[%s277 + $0xdb0] sm:$0xff]
      %v724 = vld [vmem:[%s277 + $0xdb8] sm:$0xff]
      %v725 = vld [vmem:[%s277 + $0xdc0] sm:$0xff]
      %v726 = vld [vmem:[%s277 + $0xdc8] sm:$0xff]
      %v727 = vld [vmem:[%s277 + $0xdd0] sm:$0xff]
      %v728 = vld [vmem:[%s277 + $0xdd8] sm:$0xff]
      %v729 = vld [vmem:[%s277 + $0xde0] sm:$0xff]
      %v730 = vld [vmem:[%s277 + $0xde8] sm:$0xff]
      %v731 = vld [vmem:[%s277 + $0xdf0] sm:$0xff]
      %v732 = vld [vmem:[%s277 + $0xdf8] sm:$0xff]
      %v733 = vld [vmem:[%s277 + $0xe00] sm:$0xff]
      %v734 = vld [vmem:[%s277 + $0xe08] sm:$0xff]
      %v735 = vld [vmem:[%s277 + $0xe10] sm:$0xff]
      %v736 = vld [vmem:[%s277 + $0xe18] sm:$0xff]
      %v737 = vld [vmem:[%s277 + $0xe20] sm:$0xff]
      %v738 = vld [vmem:[%s277 + $0xe28] sm:$0xff]
      %v739 = vld [vmem:[%s277 + $0xe30] sm:$0xff]
      %v740 = vld [vmem:[%s277 + $0xe38] sm:$0xff]
      %v741 = vld [vmem:[%s277 + $0xe40] sm:$0xff]
      %v742 = vld [vmem:[%s277 + $0xe48] sm:$0xff]
      %v743 = vld [vmem:[%s277 + $0xe50] sm:$0xff]
      %v744 = vld [vmem:[%s277 + $0xe58] sm:$0xff]
      %v745 = vld [vmem:[%s277 + $0xe60] sm:$0xff]
      %v746 = vld [vmem:[%s277 + $0xe68] sm:$0xff]
      %v747 = vld [vmem:[%s277 + $0xe70] sm:$0xff]
      %v748 = vld [vmem:[%s277 + $0xe78] sm:$0xff]
      %v749 = vld [vmem:[%s277 + $0xe80] sm:$0xff]
      %v750 = vld [vmem:[%s277 + $0xe88] sm:$0xff]
      %v751 = vld [vmem:[%s277 + $0xe90] sm:$0xff]
      %v752 = vld [vmem:[%s277 + $0xe98] sm:$0xff]
      %v753 = vld [vmem:[%s277 + $0xea0] sm:$0xff]
      %v754 = vld [vmem:[%s277 + $0xea8] sm:$0xff]
      %v755 = vld [vmem:[%s277 + $0xeb0] sm:$0xff]
      %v756 = vld [vmem:[%s277 + $0xeb8] sm:$0xff]
      %v757 = vld [vmem:[%s277 + $0xec0] sm:$0xff]
      %v758 = vld [vmem:[%s277 + $0xec8] sm:$0xff]
      %v759 = vld [vmem:[%s277 + $0xed0] sm:$0xff]
      %v760 = vld [vmem:[%s277 + $0xed8] sm:$0xff]
      %v761 = vld [vmem:[%s277 + $0xee0] sm:$0xff]
      %v762 = vld [vmem:[%s277 + $0xee8] sm:$0xff]
      %v763 = vld [vmem:[%s277 + $0xef0] sm:$0xff]
      %v764 = vld [vmem:[%s277 + $0xef8] sm:$0xff]
      %v765 = vld [vmem:[%s277 + $0xf00] sm:$0xff]
      %v766 = vld [vmem:[%s277 + $0xf08] sm:$0xff]
      %v767 = vld [vmem:[%s277 + $0xf10] sm:$0xff]
      %v768 = vld [vmem:[%s277 + $0xf18] sm:$0xff]
      %v769 = vld [vmem:[%s277 + $0xf20] sm:$0xff]
      %v770 = vld [vmem:[%s277 + $0xf28] sm:$0xff]
      %v771 = vld [vmem:[%s277 + $0xf30] sm:$0xff]
      %v772 = vld [vmem:[%s277 + $0xf38] sm:$0xff]
      %v773 = vld [vmem:[%s277 + $0xf40] sm:$0xff]
      %v774 = vld [vmem:[%s277 + $0xf48] sm:$0xff]
      %v775 = vld [vmem:[%s277 + $0xf50] sm:$0xff]
      %v776 = vld [vmem:[%s277 + $0xf58] sm:$0xff]
      %v777 = vld [vmem:[%s277 + $0xf60] sm:$0xff]
      %v778 = vld [vmem:[%s277 + $0xf68] sm:$0xff]
      %v779 = vld [vmem:[%s277 + $0xf70] sm:$0xff]
      %v780 = vld [vmem:[%s277 + $0xf78] sm:$0xff]
      %v781 = vld [vmem:[%s277 + $0xf80] sm:$0xff]
      %v782 = vld [vmem:[%s277 + $0xf88] sm:$0xff]
      %v783 = vld [vmem:[%s277 + $0xf90] sm:$0xff]
      %v784 = vld [vmem:[%s277 + $0xf98] sm:$0xff]
      %v785 = vld [vmem:[%s277 + $0xfa0] sm:$0xff]
      %v786 = vld [vmem:[%s277 + $0xfa8] sm:$0xff]
      %v787 = vld [vmem:[%s277 + $0xfb0] sm:$0xff]
      %v788 = vld [vmem:[%s277 + $0xfb8] sm:$0xff]
      %v789 = vld [vmem:[%s277 + $0xfc0] sm:$0xff]
      %v790 = vld [vmem:[%s277 + $0xfc8] sm:$0xff]
      %v791 = vld [vmem:[%s277 + $0xfd0] sm:$0xff]
      %v792 = vld [vmem:[%s277 + $0xfd8] sm:$0xff]
      %v793 = vld [vmem:[%s277 + $0xfe0] sm:$0xff]
      %v794 = vld [vmem:[%s277 + $0xfe8] sm:$0xff]
      %v795 = vld [vmem:[%s277 + $0xff0] sm:$0xff]
      %v796 = vld [vmem:[%s277 + $0xff8] sm:$0xff]
      %v797 = vld [vmem:[%s277 + $0x1000] sm:$0xff]
      %v798 = vld [vmem:[%s277 + $0x1008] sm:$0xff]
      %v799 = vld [vmem:[%s277 + $0x1010] sm:$0xff]
      %v800 = vld [vmem:[%s277 + $0x1018] sm:$0xff]
      %v801 = vld [vmem:[%s277 + $0x1020] sm:$0xff]
      %v802 = vld [vmem:[%s277 + $0x1028] sm:$0xff]
      %v803 = vld [vmem:[%s277 + $0x1030] sm:$0xff]
      %v804 = vld [vmem:[%s277 + $0x1038] sm:$0xff]
      %v805 = vld [vmem:[%s277 + $0x1040] sm:$0xff]
      %v806 = vld [vmem:[%s277 + $0x1048] sm:$0xff]
      %v807 = vld [vmem:[%s277 + $0x1050] sm:$0xff]
      %v808 = vld [vmem:[%s277 + $0x1058] sm:$0xff]
      %v809 = vld [vmem:[%s277 + $0x1060] sm:$0xff]
      %v810 = vld [vmem:[%s277 + $0x1068] sm:$0xff]
      %v811 = vld [vmem:[%s277 + $0x1070] sm:$0xff]
      %v812 = vld [vmem:[%s277 + $0x1078] sm:$0xff]
      %v813 = vld [vmem:[%s277 + $0x1080] sm:$0xff]
      %v814 = vld [vmem:[%s277 + $0x1088] sm:$0xff]
      %v815 = vld [vmem:[%s277 + $0x1090] sm:$0xff]
      %v816 = vld [vmem:[%s277 + $0x1098] sm:$0xff]
      %v817 = vld [vmem:[%s277 + $0x10a0] sm:$0xff]
      %v818 = vld [vmem:[%s277 + $0x10a8] sm:$0xff]
      %v819 = vld [vmem:[%s277 + $0x10b0] sm:$0xff]
      %v820 = vld [vmem:[%s277 + $0x10b8] sm:$0xff]
      %v821 = vld [vmem:[%s277 + $0x10c0] sm:$0xff]
      %v822 = vld [vmem:[%s277 + $0x10c8] sm:$0xff]
      %v823 = vld [vmem:[%s277 + $0x10d0] sm:$0xff]
      %v824 = vld [vmem:[%s277 + $0x10d8] sm:$0xff]
      %v825 = vld [vmem:[%s277 + $0x10e0] sm:$0xff]
      %v826 = vld [vmem:[%s277 + $0x10e8] sm:$0xff]
      %v827 = vld [vmem:[%s277 + $0x10f0] sm:$0xff]
      %v828 = vld [vmem:[%s277 + $0x10f8] sm:$0xff]
      %v829 = vld [vmem:[%s277 + $0x1100] sm:$0xff]
      %v830 = vld [vmem:[%s277 + $0x1108] sm:$0xff]
      %v831 = vld [vmem:[%s277 + $0x1110] sm:$0xff]
      %v832 = vld [vmem:[%s277 + $0x1118] sm:$0xff]
      %v833 = vld [vmem:[%s277 + $0x1120] sm:$0xff]
      %v834 = vld [vmem:[%s277 + $0x1128] sm:$0xff]
      %v835 = vld [vmem:[%s277 + $0x1130] sm:$0xff]
      %v836 = vld [vmem:[%s277 + $0x1138] sm:$0xff]
      %v837 = vld [vmem:[%s277 + $0x1140] sm:$0xff]
      %v838 = vld [vmem:[%s277 + $0x1148] sm:$0xff]
      %v839 = vld [vmem:[%s277 + $0x1150] sm:$0xff]
      %v840 = vld [vmem:[%s277 + $0x1158] sm:$0xff]
      %v841 = vld [vmem:[%s277 + $0x1160] sm:$0xff]
      %v842 = vld [vmem:[%s277 + $0x1168] sm:$0xff]
      %v843 = vld [vmem:[%s277 + $0x1170] sm:$0xff]
      %v844 = vld [vmem:[%s277 + $0x1178] sm:$0xff]
      %v845 = vld [vmem:[%s277 + $0x1180] sm:$0xff]
      %v846 = vld [vmem:[%s277 + $0x1188] sm:$0xff]
      %v847 = vld [vmem:[%s277 + $0x1190] sm:$0xff]
      %v848 = vld [vmem:[%s277 + $0x1198] sm:$0xff]
      %v849 = vld [vmem:[%s277 + $0x11a0] sm:$0xff]
      %v850 = vld [vmem:[%s277 + $0x11a8] sm:$0xff]
      %v851 = vld [vmem:[%s277 + $0x11b0] sm:$0xff]
      %v852 = vld [vmem:[%s277 + $0x11b8] sm:$0xff]
      %v853 = vld [vmem:[%s277 + $0x11c0] sm:$0xff]
      %v854 = vld [vmem:[%s277 + $0x11c8] sm:$0xff]
      %v855 = vld [vmem:[%s277 + $0x11d0] sm:$0xff]
      %v856 = vld [vmem:[%s277 + $0x11d8] sm:$0xff]
      %v857 = vld [vmem:[%s277 + $0x11e0] sm:$0xff]
      %v858 = vld [vmem:[%s277 + $0x11e8] sm:$0xff]
      %v859 = vld [vmem:[%s277 + $0x11f0] sm:$0xff]
      %v860 = vld [vmem:[%s277 + $0x11f8] sm:$0xff]
      %v861 = vld [vmem:[%s277 + $0x1200] sm:$0xff]
      %v862 = vld [vmem:[%s277 + $0x1208] sm:$0xff]
      %v863 = vld [vmem:[%s277 + $0x1210] sm:$0xff]
      %v864 = vld [vmem:[%s277 + $0x1218] sm:$0xff]
      %v865 = vld [vmem:[%s277 + $0x1220] sm:$0xff]
      %v866 = vld [vmem:[%s277 + $0x1228] sm:$0xff]
      %v867 = vld [vmem:[%s277 + $0x1230] sm:$0xff]
      %v868 = vld [vmem:[%s277 + $0x1238] sm:$0xff]
      %v869 = vld [vmem:[%s277 + $0x1240] sm:$0xff]
      %v870 = vld [vmem:[%s277 + $0x1248] sm:$0xff]
      %v871 = vld [vmem:[%s277 + $0x1250] sm:$0xff]
      %v872 = vld [vmem:[%s277 + $0x1258] sm:$0xff]
      %v873 = vld [vmem:[%s277 + $0x1260] sm:$0xff]
      %v874 = vld [vmem:[%s277 + $0x1268] sm:$0xff]
      %v875 = vld [vmem:[%s277 + $0x1270] sm:$0xff]
      %v876 = vld [vmem:[%s277 + $0x1278] sm:$0xff]
      %v877 = vld [vmem:[%s277 + $0x1280] sm:$0xff]
      %v878 = vld [vmem:[%s277 + $0x1288] sm:$0xff]
      %v879 = vld [vmem:[%s277 + $0x1290] sm:$0xff]
      %v880 = vld [vmem:[%s277 + $0x1298] sm:$0xff]
      %v881 = vld [vmem:[%s277 + $0x12a0] sm:$0xff]
      %v882 = vld [vmem:[%s277 + $0x12a8] sm:$0xff]
      %v883 = vld [vmem:[%s277 + $0x12b0] sm:$0xff]
      %v884 = vld [vmem:[%s277 + $0x12b8] sm:$0xff]
      %v885 = vld [vmem:[%s277 + $0x12c0] sm:$0xff]
      %v886 = vld [vmem:[%s277 + $0x12c8] sm:$0xff]
      %v887 = vld [vmem:[%s277 + $0x12d0] sm:$0xff]
      %v888 = vld [vmem:[%s277 + $0x12d8] sm:$0xff]
      %v889 = vld [vmem:[%s277 + $0x12e0] sm:$0xff]
      %v890 = vld [vmem:[%s277 + $0x12e8] sm:$0xff]
      %v891 = vld [vmem:[%s277 + $0x12f0] sm:$0xff]
      %v892 = vld [vmem:[%s277 + $0x12f8] sm:$0xff]
      %v893 = vld [vmem:[%s277 + $0x1300] sm:$0xff]
      %v894 = vld [vmem:[%s277 + $0x1308] sm:$0xff]
      %v895 = vld [vmem:[%s277 + $0x1310] sm:$0xff]
      %v896 = vld [vmem:[%s277 + $0x1318] sm:$0xff]
      %v897 = vld [vmem:[%s277 + $0x1320] sm:$0xff]
      %v898 = vld [vmem:[%s277 + $0x1328] sm:$0xff]
      %v899 = vld [vmem:[%s277 + $0x1330] sm:$0xff]
      %v900 = vld [vmem:[%s277 + $0x1338] sm:$0xff]
      %v901 = vld [vmem:[%s277 + $0x1340] sm:$0xff]
      %v902 = vld [vmem:[%s277 + $0x1348] sm:$0xff]
      %v903 = vld [vmem:[%s277 + $0x1350] sm:$0xff]
      %v904 = vld [vmem:[%s277 + $0x1358] sm:$0xff]
      %v905 = vld [vmem:[%s277 + $0x1360] sm:$0xff]
      %v906 = vld [vmem:[%s277 + $0x1368] sm:$0xff]
      %v907 = vld [vmem:[%s277 + $0x1370] sm:$0xff]
      %v908 = vld [vmem:[%s277 + $0x1378] sm:$0xff]
      %v909 = vld [vmem:[%s277 + $0x1380] sm:$0xff]
      %v910 = vld [vmem:[%s277 + $0x1388] sm:$0xff]
      %v911 = vld [vmem:[%s277 + $0x1390] sm:$0xff]
      %v912 = vld [vmem:[%s277 + $0x1398] sm:$0xff]
      %v913 = vld [vmem:[%s277 + $0x13a0] sm:$0xff]
      %v914 = vld [vmem:[%s277 + $0x13a8] sm:$0xff]
      %v915 = vld [vmem:[%s277 + $0x13b0] sm:$0xff]
      %v916 = vld [vmem:[%s277 + $0x13b8] sm:$0xff]
      %v917 = vld [vmem:[%s277 + $0x13c0] sm:$0xff]
      %v918 = vld [vmem:[%s277 + $0x13c8] sm:$0xff]
      %v919 = vld [vmem:[%s277 + $0x13d0] sm:$0xff]
      %v920 = vld [vmem:[%s277 + $0x13d8] sm:$0xff]
      %v921 = vld [vmem:[%s277 + $0x13e0] sm:$0xff]
      %v922 = vld [vmem:[%s277 + $0x13e8] sm:$0xff]
      %v923 = vld [vmem:[%s277 + $0x13f0] sm:$0xff]
      %v924 = vld [vmem:[%s277 + $0x13f8] sm:$0xff]
      %v925 = vld [vmem:[%s277 + $0x1400] sm:$0xff]
      %v926 = vld [vmem:[%s277 + $0x1408] sm:$0xff]
      %v927 = vld [vmem:[%s277 + $0x1410] sm:$0xff]
      %v928 = vld [vmem:[%s277 + $0x1418] sm:$0xff]
      %v929 = vld [vmem:[%s277 + $0x1420] sm:$0xff]
      %v930 = vld [vmem:[%s277 + $0x1428] sm:$0xff]
      %v931 = vld [vmem:[%s277 + $0x1430] sm:$0xff]
      %v932 = vld [vmem:[%s277 + $0x1438] sm:$0xff]
      %v933 = vld [vmem:[%s277 + $0x1440] sm:$0xff]
      %v934 = vld [vmem:[%s277 + $0x1448] sm:$0xff]
      %v935 = vld [vmem:[%s277 + $0x1450] sm:$0xff]
      %v936 = vld [vmem:[%s277 + $0x1458] sm:$0xff]
      %v937 = vld [vmem:[%s277 + $0x1460] sm:$0xff]
      %v938 = vld [vmem:[%s277 + $0x1468] sm:$0xff]
      %v939 = vld [vmem:[%s277 + $0x1470] sm:$0xff]
      %v940 = vld [vmem:[%s277 + $0x1478] sm:$0xff]
      %v941 = vld [vmem:[%s277 + $0x1480] sm:$0xff]
      %v942 = vld [vmem:[%s277 + $0x1488] sm:$0xff]
      %v943 = vld [vmem:[%s277 + $0x1490] sm:$0xff]
      %v944 = vld [vmem:[%s277 + $0x1498] sm:$0xff]
      %v945 = vld [vmem:[%s277 + $0x14a0] sm:$0xff]
      %v946 = vld [vmem:[%s277 + $0x14a8] sm:$0xff]
      %v947 = vld [vmem:[%s277 + $0x14b0] sm:$0xff]
      %v948 = vld [vmem:[%s277 + $0x14b8] sm:$0xff]
      %v949 = vld [vmem:[%s277 + $0x14c0] sm:$0xff]
      %v950 = vld [vmem:[%s277 + $0x14c8] sm:$0xff]
      %v951 = vld [vmem:[%s277 + $0x14d0] sm:$0xff]
      %v952 = vld [vmem:[%s277 + $0x14d8] sm:$0xff]
      %v953 = vld [vmem:[%s277 + $0x14e0] sm:$0xff]
      %v954 = vld [vmem:[%s277 + $0x14e8] sm:$0xff]
      %v955 = vld [vmem:[%s277 + $0x14f0] sm:$0xff]
      %v956 = vld [vmem:[%s277 + $0x14f8] sm:$0xff]
      %v957 = vld [vmem:[%s277 + $0x1500] sm:$0xff]
      %v958 = vld [vmem:[%s277 + $0x1508] sm:$0xff]
      %v959 = vld [vmem:[%s277 + $0x1510] sm:$0xff]
      %v960 = vld [vmem:[%s277 + $0x1518] sm:$0xff]
      %v961 = vld [vmem:[%s277 + $0x1520] sm:$0xff]
      %v962 = vld [vmem:[%s277 + $0x1528] sm:$0xff]
      %v963 = vld [vmem:[%s277 + $0x1530] sm:$0xff]
      %v964 = vld [vmem:[%s277 + $0x1538] sm:$0xff]
      %v965 = vld [vmem:[%s277 + $0x1540] sm:$0xff]
      %v966 = vld [vmem:[%s277 + $0x1548] sm:$0xff]
      %v967 = vld [vmem:[%s277 + $0x1550] sm:$0xff]
      %v968 = vld [vmem:[%s277 + $0x1558] sm:$0xff]
      %v969 = vld [vmem:[%s277 + $0x1560] sm:$0xff]
      %v970 = vld [vmem:[%s277 + $0x1568] sm:$0xff]
      %v971 = vld [vmem:[%s277 + $0x1570] sm:$0xff]
      %v972 = vld [vmem:[%s277 + $0x1578] sm:$0xff]
      %v973 = vld [vmem:[%s277 + $0x1580] sm:$0xff]
      %v974 = vld [vmem:[%s277 + $0x1588] sm:$0xff]
      %v975 = vld [vmem:[%s277 + $0x1590] sm:$0xff]
      %v976 = vld [vmem:[%s277 + $0x1598] sm:$0xff]
      %v977 = vld [vmem:[%s277 + $0x15a0] sm:$0xff]
      %v978 = vld [vmem:[%s277 + $0x15a8] sm:$0xff]
      %v979 = vld [vmem:[%s277 + $0x15b0] sm:$0xff]
      %v980 = vld [vmem:[%s277 + $0x15b8] sm:$0xff]
      %v981 = vld [vmem:[%s277 + $0x15c0] sm:$0xff]
      %v982 = vld [vmem:[%s277 + $0x15c8] sm:$0xff]
      %v983 = vld [vmem:[%s277 + $0x15d0] sm:$0xff]
      %v984 = vld [vmem:[%s277 + $0x15d8] sm:$0xff]
      %v985 = vld [vmem:[%s277 + $0x15e0] sm:$0xff]
      %v986 = vld [vmem:[%s277 + $0x15e8] sm:$0xff]
      %v987 = vld [vmem:[%s277 + $0x15f0] sm:$0xff]
      %v988 = vld [vmem:[%s277 + $0x15f8] sm:$0xff]
      %v989 = vld [vmem:[%s277 + $0x1600] sm:$0xff]
      %v990 = vld [vmem:[%s277 + $0x1608] sm:$0xff]
      %v991 = vld [vmem:[%s277 + $0x1610] sm:$0xff]
      %v992 = vld [vmem:[%s277 + $0x1618] sm:$0xff]
      %v993 = vld [vmem:[%s277 + $0x1620] sm:$0xff]
      %v994 = vld [vmem:[%s277 + $0x1628] sm:$0xff]
      %v995 = vld [vmem:[%s277 + $0x1630] sm:$0xff]
      %v996 = vld [vmem:[%s277 + $0x1638] sm:$0xff]
      %v997 = vld [vmem:[%s277 + $0x1640] sm:$0xff]
      %v998 = vld [vmem:[%s277 + $0x1648] sm:$0xff]
      %v999 = vld [vmem:[%s277 + $0x1650] sm:$0xff]
      %v1000 = vld [vmem:[%s277 + $0x1658] sm:$0xff]
      %v1001 = vld [vmem:[%s277 + $0x1660] sm:$0xff]
      %v1002 = vld [vmem:[%s277 + $0x1668] sm:$0xff]
      %v1003 = vld [vmem:[%s277 + $0x1670] sm:$0xff]
      %v1004 = vld [vmem:[%s277 + $0x1678] sm:$0xff]
      %v1005 = vld [vmem:[%s277 + $0x1680] sm:$0xff]
      %v1006 = vld [vmem:[%s277 + $0x1688] sm:$0xff]
      %v1007 = vld [vmem:[%s277 + $0x1690] sm:$0xff]
      %v1008 = vld [vmem:[%s277 + $0x1698] sm:$0xff]
      %v1009 = vld [vmem:[%s277 + $0x16a0] sm:$0xff]
      %v1010 = vld [vmem:[%s277 + $0x16a8] sm:$0xff]
      %v1011 = vld [vmem:[%s277 + $0x16b0] sm:$0xff]
      %v1012 = vld [vmem:[%s277 + $0x16b8] sm:$0xff]
      %v1013 = vld [vmem:[%s277 + $0x16c0] sm:$0xff]
      %v1014 = vld [vmem:[%s277 + $0x16c8] sm:$0xff]
      %v1015 = vld [vmem:[%s277 + $0x16d0] sm:$0xff]
      %v1016 = vld [vmem:[%s277 + $0x16d8] sm:$0xff]
      %v1017 = vld [vmem:[%s277 + $0x16e0] sm:$0xff]
      %v1018 = vld [vmem:[%s277 + $0x16e8] sm:$0xff]
      %v1019 = vld [vmem:[%s277 + $0x16f0] sm:$0xff]
      %v1020 = vld [vmem:[%s277 + $0x16f8] sm:$0xff]
      %v1021 = vld [vmem:[%s277 + $0x1700] sm:$0xff]
      %v1022 = vld [vmem:[%s277 + $0x1708] sm:$0xff]
      %v1023 = vld [vmem:[%s277 + $0x1710] sm:$0xff]
      %v1024 = vld [vmem:[%s277 + $0x1718] sm:$0xff]
      %v1025 = vld [vmem:[%s277 + $0x1720] sm:$0xff]
      %v1026 = vld [vmem:[%s277 + $0x1728] sm:$0xff]
      %v1027 = vld [vmem:[%s277 + $0x1730] sm:$0xff]
      %v1028 = vld [vmem:[%s277 + $0x1738] sm:$0xff]
      %v1029 = vld [vmem:[%s277 + $0x1740] sm:$0xff]
      %v1030 = vld [vmem:[%s277 + $0x1748] sm:$0xff]
      %v1031 = vld [vmem:[%s277 + $0x1750] sm:$0xff]
      %v1032 = vld [vmem:[%s277 + $0x1758] sm:$0xff]
      %v1033 = vld [vmem:[%s277 + $0x1760] sm:$0xff]
      %v1034 = vld [vmem:[%s277 + $0x1768] sm:$0xff]
      %v1035 = vld [vmem:[%s277 + $0x1770] sm:$0xff]
      %v1036 = vld [vmem:[%s277 + $0x1778] sm:$0xff]
      %v1037 = vld [vmem:[%s277 + $0x1780] sm:$0xff]
      %v1038 = vld [vmem:[%s277 + $0x1788] sm:$0xff]
      %v1039 = vld [vmem:[%s277 + $0x1790] sm:$0xff]
      %v1040 = vld [vmem:[%s277 + $0x1798] sm:$0xff]
      %v1041 = vld [vmem:[%s277 + $0x17a0] sm:$0xff]
      %v1042 = vld [vmem:[%s277 + $0x17a8] sm:$0xff]
      %v1043 = vld [vmem:[%s277 + $0x17b0] sm:$0xff]
      %v1044 = vld [vmem:[%s277 + $0x17b8] sm:$0xff]
      %v1045 = vld [vmem:[%s277 + $0x17c0] sm:$0xff]
      %v1046 = vld [vmem:[%s277 + $0x17c8] sm:$0xff]
      %v1047 = vld [vmem:[%s277 + $0x17d0] sm:$0xff]
      %v1048 = vld [vmem:[%s277 + $0x17d8] sm:$0xff]
      %v1049 = vld [vmem:[%s277 + $0x17e0] sm:$0xff]
      %v1050 = vld [vmem:[%s277 + $0x17e8] sm:$0xff]
      %v1051 = vld [vmem:[%s277 + $0x17f0] sm:$0xff]
      %v1052 = vld [vmem:[%s277 + $0x17f8] sm:$0xff]
      %v1053 = vld [vmem:[%s277 + $0x1800] sm:$0xff]
      %v1054 = vld [vmem:[%s277 + $0x1808] sm:$0xff]
      %v1055 = vld [vmem:[%s277 + $0x1810] sm:$0xff]
      %v1056 = vld [vmem:[%s277 + $0x1818] sm:$0xff]
      %v1057 = vld [vmem:[%s277 + $0x1820] sm:$0xff]
      %v1058 = vld [vmem:[%s277 + $0x1828] sm:$0xff]
      %v1059 = vld [vmem:[%s277 + $0x1830] sm:$0xff]
      %v1060 = vld [vmem:[%s277 + $0x1838] sm:$0xff]
      %v1061 = vld [vmem:[%s277 + $0x1840] sm:$0xff]
      %v1062 = vld [vmem:[%s277 + $0x1848] sm:$0xff]
      %v1063 = vld [vmem:[%s277 + $0x1850] sm:$0xff]
      %v1064 = vld [vmem:[%s277 + $0x1858] sm:$0xff]
      %v1065 = vld [vmem:[%s277 + $0x1860] sm:$0xff]
      %v1066 = vld [vmem:[%s277 + $0x1868] sm:$0xff]
      %v1067 = vld [vmem:[%s277 + $0x1870] sm:$0xff]
      %v1068 = vld [vmem:[%s277 + $0x1878] sm:$0xff]
      %v1069 = vld [vmem:[%s277 + $0x1880] sm:$0xff]
      %v1070 = vld [vmem:[%s277 + $0x1888] sm:$0xff]
      %v1071 = vld [vmem:[%s277 + $0x1890] sm:$0xff]
      %v1072 = vld [vmem:[%s277 + $0x1898] sm:$0xff]
      %v1073 = vld [vmem:[%s277 + $0x18a0] sm:$0xff]
      %v1074 = vld [vmem:[%s277 + $0x18a8] sm:$0xff]
      %v1075 = vld [vmem:[%s277 + $0x18b0] sm:$0xff]
      %v1076 = vld [vmem:[%s277 + $0x18b8] sm:$0xff]
      %v1077 = vld [vmem:[%s277 + $0x18c0] sm:$0xff]
      %v1078 = vld [vmem:[%s277 + $0x18c8] sm:$0xff]
      %v1079 = vld [vmem:[%s277 + $0x18d0] sm:$0xff]
      %v1080 = vld [vmem:[%s277 + $0x18d8] sm:$0xff]
      %v1081 = vld [vmem:[%s277 + $0x18e0] sm:$0xff]
      %v1082 = vld [vmem:[%s277 + $0x18e8] sm:$0xff]
      %v1083 = vld [vmem:[%s277 + $0x18f0] sm:$0xff]
      %v1084 = vld [vmem:[%s277 + $0x18f8] sm:$0xff]
      %v1085 = vld [vmem:[%s277 + $0x1900] sm:$0xff]
      %v1086 = vld [vmem:[%s277 + $0x1908] sm:$0xff]
      %v1087 = vld [vmem:[%s277 + $0x1910] sm:$0xff]
      %v1088 = vld [vmem:[%s277 + $0x1918] sm:$0xff]
      %v1089 = vld [vmem:[%s277 + $0x1920] sm:$0xff]
      %v1090 = vld [vmem:[%s277 + $0x1928] sm:$0xff]
      %v1091 = vld [vmem:[%s277 + $0x1930] sm:$0xff]
      %v1092 = vld [vmem:[%s277 + $0x1938] sm:$0xff]
      %v1093 = vld [vmem:[%s277 + $0x1940] sm:$0xff]
      %v1094 = vld [vmem:[%s277 + $0x1948] sm:$0xff]
      %v1095 = vld [vmem:[%s277 + $0x1950] sm:$0xff]
      %v1096 = vld [vmem:[%s277 + $0x1958] sm:$0xff]
      %v1097 = vld [vmem:[%s277 + $0x1960] sm:$0xff]
      %v1098 = vld [vmem:[%s277 + $0x1968] sm:$0xff]
      %v1099 = vld [vmem:[%s277 + $0x1970] sm:$0xff]
      %v1100 = vld [vmem:[%s277 + $0x1978] sm:$0xff]
      %v1101 = vld [vmem:[%s277 + $0x1980] sm:$0xff]
      %v1102 = vld [vmem:[%s277 + $0x1988] sm:$0xff]
      %v1103 = vld [vmem:[%s277 + $0x1990] sm:$0xff]
      %v1104 = vld [vmem:[%s277 + $0x1998] sm:$0xff]
      %v1105 = vld [vmem:[%s277 + $0x19a0] sm:$0xff]
      %v1106 = vld [vmem:[%s277 + $0x19a8] sm:$0xff]
      %v1107 = vld [vmem:[%s277 + $0x19b0] sm:$0xff]
      %v1108 = vld [vmem:[%s277 + $0x19b8] sm:$0xff]
      %v1109 = vld [vmem:[%s277 + $0x19c0] sm:$0xff]
      %v1110 = vld [vmem:[%s277 + $0x19c8] sm:$0xff]
      %v1111 = vld [vmem:[%s277 + $0x19d0] sm:$0xff]
      %v1112 = vld [vmem:[%s277 + $0x19d8] sm:$0xff]
      %v1113 = vld [vmem:[%s277 + $0x19e0] sm:$0xff]
      %v1114 = vld [vmem:[%s277 + $0x19e8] sm:$0xff]
      %v1115 = vld [vmem:[%s277 + $0x19f0] sm:$0xff]
      %v1116 = vld [vmem:[%s277 + $0x19f8] sm:$0xff]
      %v1117 = vld [vmem:[%s277 + $0x1a00] sm:$0xff]
      %v1118 = vld [vmem:[%s277 + $0x1a08] sm:$0xff]
      %v1119 = vld [vmem:[%s277 + $0x1a10] sm:$0xff]
      %v1120 = vld [vmem:[%s277 + $0x1a18] sm:$0xff]
      %v1121 = vld [vmem:[%s277 + $0x1a20] sm:$0xff]
      %v1122 = vld [vmem:[%s277 + $0x1a28] sm:$0xff]
      %v1123 = vld [vmem:[%s277 + $0x1a30] sm:$0xff]
      %v1124 = vld [vmem:[%s277 + $0x1a38] sm:$0xff]
      %v1125 = vld [vmem:[%s277 + $0x1a40] sm:$0xff]
      %v1126 = vld [vmem:[%s277 + $0x1a48] sm:$0xff]
      %v1127 = vld [vmem:[%s277 + $0x1a50] sm:$0xff]
      %v1128 = vld [vmem:[%s277 + $0x1a58] sm:$0xff]
      %v1129 = vld [vmem:[%s277 + $0x1a60] sm:$0xff]
      %v1130 = vld [vmem:[%s277 + $0x1a68] sm:$0xff]
      %v1131 = vld [vmem:[%s277 + $0x1a70] sm:$0xff]
      %v1132 = vld [vmem:[%s277 + $0x1a78] sm:$0xff]
      %v1133 = vld [vmem:[%s277 + $0x1a80] sm:$0xff]
      %v1134 = vld [vmem:[%s277 + $0x1a88] sm:$0xff]
      %v1135 = vld [vmem:[%s277 + $0x1a90] sm:$0xff]
      %v1136 = vld [vmem:[%s277 + $0x1a98] sm:$0xff]
      %v1137 = vld [vmem:[%s277 + $0x1aa0] sm:$0xff]
      %v1138 = vld [vmem:[%s277 + $0x1aa8] sm:$0xff]
      %v1139 = vld [vmem:[%s277 + $0x1ab0] sm:$0xff]
      %v1140 = vld [vmem:[%s277 + $0x1ab8] sm:$0xff]
      %v1141 = vld [vmem:[%s277 + $0x1ac0] sm:$0xff]
      %v1142 = vld [vmem:[%s277 + $0x1ac8] sm:$0xff]
      %v1143 = vld [vmem:[%s277 + $0x1ad0] sm:$0xff]
      %v1144 = vld [vmem:[%s277 + $0x1ad8] sm:$0xff]
      %v1145 = vld [vmem:[%s277 + $0x1ae0] sm:$0xff]
      %v1146 = vld [vmem:[%s277 + $0x1ae8] sm:$0xff]
      %v1147 = vld [vmem:[%s277 + $0x1af0] sm:$0xff]
      %v1148 = vld [vmem:[%s277 + $0x1af8] sm:$0xff]
      %v1149 = vld [vmem:[%s277 + $0x1b00] sm:$0xff]
      %v1150 = vld [vmem:[%s277 + $0x1b08] sm:$0xff]
      %v1151 = vld [vmem:[%s277 + $0x1b10] sm:$0xff]
      %v1152 = vld [vmem:[%s277 + $0x1b18] sm:$0xff]
      %v1153 = vld [vmem:[%s277 + $0x1b20] sm:$0xff]
      %v1154 = vld [vmem:[%s277 + $0x1b28] sm:$0xff]
      %v1155 = vld [vmem:[%s277 + $0x1b30] sm:$0xff]
      %v1156 = vld [vmem:[%s277 + $0x1b38] sm:$0xff]
      %v1157 = vld [vmem:[%s277 + $0x1b40] sm:$0xff]
      %v1158 = vld [vmem:[%s277 + $0x1b48] sm:$0xff]
      %v1159 = vld [vmem:[%s277 + $0x1b50] sm:$0xff]
      %v1160 = vld [vmem:[%s277 + $0x1b58] sm:$0xff]
      %v1161 = vld [vmem:[%s277 + $0x1b60] sm:$0xff]
      %v1162 = vld [vmem:[%s277 + $0x1b68] sm:$0xff]
      %v1163 = vld [vmem:[%s277 + $0x1b70] sm:$0xff]
      %v1164 = vld [vmem:[%s277 + $0x1b78] sm:$0xff]
      %v1165 = vld [vmem:[%s277 + $0x1b80] sm:$0xff]
      %v1166 = vld [vmem:[%s277 + $0x1b88] sm:$0xff]
      %v1167 = vld [vmem:[%s277 + $0x1b90] sm:$0xff]
      %v1168 = vld [vmem:[%s277 + $0x1b98] sm:$0xff]
      %v1169 = vld [vmem:[%s277 + $0x1ba0] sm:$0xff]
      %v1170 = vld [vmem:[%s277 + $0x1ba8] sm:$0xff]
      %v1171 = vld [vmem:[%s277 + $0x1bb0] sm:$0xff]
      %v1172 = vld [vmem:[%s277 + $0x1bb8] sm:$0xff]
      %v1173 = vld [vmem:[%s277 + $0x1bc0] sm:$0xff]
      %v1174 = vld [vmem:[%s277 + $0x1bc8] sm:$0xff]
      %v1175 = vld [vmem:[%s277 + $0x1bd0] sm:$0xff]
      %v1176 = vld [vmem:[%s277 + $0x1bd8] sm:$0xff]
      %v1177 = vld [vmem:[%s277 + $0x1be0] sm:$0xff]
      %v1178 = vld [vmem:[%s277 + $0x1be8] sm:$0xff]
      %v1179 = vld [vmem:[%s277 + $0x1bf0] sm:$0xff]
      %v1180 = vld [vmem:[%s277 + $0x1bf8] sm:$0xff]
      %v1181 = vld [vmem:[%s277 + $0x1c00] sm:$0xff]
      %v1182 = vld [vmem:[%s277 + $0x1c08] sm:$0xff]
      %v1183 = vld [vmem:[%s277 + $0x1c10] sm:$0xff]
      %v1184 = vld [vmem:[%s277 + $0x1c18] sm:$0xff]
      %v1185 = vld [vmem:[%s277 + $0x1c20] sm:$0xff]
      %v1186 = vld [vmem:[%s277 + $0x1c28] sm:$0xff]
      %v1187 = vld [vmem:[%s277 + $0x1c30] sm:$0xff]
      %v1188 = vld [vmem:[%s277 + $0x1c38] sm:$0xff]
      %v1189 = vld [vmem:[%s277 + $0x1c40] sm:$0xff]
      %v1190 = vld [vmem:[%s277 + $0x1c48] sm:$0xff]
      %v1191 = vld [vmem:[%s277 + $0x1c50] sm:$0xff]
      %v1192 = vld [vmem:[%s277 + $0x1c58] sm:$0xff]
      %v1193 = vld [vmem:[%s277 + $0x1c60] sm:$0xff]
      %v1194 = vld [vmem:[%s277 + $0x1c68] sm:$0xff]
      %v1195 = vld [vmem:[%s277 + $0x1c70] sm:$0xff]
      %v1196 = vld [vmem:[%s277 + $0x1c78] sm:$0xff]
      %v1197 = vld [vmem:[%s277 + $0x1c80] sm:$0xff]
      %v1198 = vld [vmem:[%s277 + $0x1c88] sm:$0xff]
      %v1199 = vld [vmem:[%s277 + $0x1c90] sm:$0xff]
      %v1200 = vld [vmem:[%s277 + $0x1c98] sm:$0xff]
      %v1201 = vld [vmem:[%s277 + $0x1ca0] sm:$0xff]
      %v1202 = vld [vmem:[%s277 + $0x1ca8] sm:$0xff]
      %v1203 = vld [vmem:[%s277 + $0x1cb0] sm:$0xff]
      %v1204 = vld [vmem:[%s277 + $0x1cb8] sm:$0xff]
      %v1205 = vld [vmem:[%s277 + $0x1cc0] sm:$0xff]
      %v1206 = vld [vmem:[%s277 + $0x1cc8] sm:$0xff]
      %v1207 = vld [vmem:[%s277 + $0x1cd0] sm:$0xff]
      %v1208 = vld [vmem:[%s277 + $0x1cd8] sm:$0xff]
      %v1209 = vld [vmem:[%s277 + $0x1ce0] sm:$0xff]
      %v1210 = vld [vmem:[%s277 + $0x1ce8] sm:$0xff]
      %v1211 = vld [vmem:[%s277 + $0x1cf0] sm:$0xff]
      %v1212 = vld [vmem:[%s277 + $0x1cf8] sm:$0xff]
      %v1213 = vld [vmem:[%s277 + $0x1d00] sm:$0xff]
      %v1214 = vld [vmem:[%s277 + $0x1d08] sm:$0xff]
      %v1215 = vld [vmem:[%s277 + $0x1d10] sm:$0xff]
      %v1216 = vld [vmem:[%s277 + $0x1d18] sm:$0xff]
      %v1217 = vld [vmem:[%s277 + $0x1d20] sm:$0xff]
      %v1218 = vld [vmem:[%s277 + $0x1d28] sm:$0xff]
      %v1219 = vld [vmem:[%s277 + $0x1d30] sm:$0xff]
      %v1220 = vld [vmem:[%s277 + $0x1d38] sm:$0xff]
      %v1221 = vld [vmem:[%s277 + $0x1d40] sm:$0xff]
      %v1222 = vld [vmem:[%s277 + $0x1d48] sm:$0xff]
      %v1223 = vld [vmem:[%s277 + $0x1d50] sm:$0xff]
      %v1224 = vld [vmem:[%s277 + $0x1d58] sm:$0xff]
      %v1225 = vld [vmem:[%s277 + $0x1d60] sm:$0xff]
      %v1226 = vld [vmem:[%s277 + $0x1d68] sm:$0xff]
      %v1227 = vld [vmem:[%s277 + $0x1d70] sm:$0xff]
      %v1228 = vld [vmem:[%s277 + $0x1d78] sm:$0xff]
      %v1229 = vld [vmem:[%s277 + $0x1d80] sm:$0xff]
      %v1230 = vld [vmem:[%s277 + $0x1d88] sm:$0xff]
      %v1231 = vld [vmem:[%s277 + $0x1d90] sm:$0xff]
      %v1232 = vld [vmem:[%s277 + $0x1d98] sm:$0xff]
      %v1233 = vld [vmem:[%s277 + $0x1da0] sm:$0xff]
      %v1234 = vld [vmem:[%s277 + $0x1da8] sm:$0xff]
      %v1235 = vld [vmem:[%s277 + $0x1db0] sm:$0xff]
      %v1236 = vld [vmem:[%s277 + $0x1db8] sm:$0xff]
      %v1237 = vld [vmem:[%s277 + $0x1dc0] sm:$0xff]
      %v1238 = vld [vmem:[%s277 + $0x1dc8] sm:$0xff]
      %v1239 = vld [vmem:[%s277 + $0x1dd0] sm:$0xff]
      %v1240 = vld [vmem:[%s277 + $0x1dd8] sm:$0xff]
      %v1241 = vld [vmem:[%s277 + $0x1de0] sm:$0xff]
      %v1242 = vld [vmem:[%s277 + $0x1de8] sm:$0xff]
      %v1243 = vld [vmem:[%s277 + $0x1df0] sm:$0xff]
      %v1244 = vld [vmem:[%s277 + $0x1df8] sm:$0xff]
      %v1245 = vld [vmem:[%s277 + $0x1e00] sm:$0xff]
      %v1246 = vld [vmem:[%s277 + $0x1e08] sm:$0xff]
      %v1247 = vld [vmem:[%s277 + $0x1e10] sm:$0xff]
      %v1248 = vld [vmem:[%s277 + $0x1e18] sm:$0xff]
      %v1249 = vld [vmem:[%s277 + $0x1e20] sm:$0xff]
      %v1250 = vld [vmem:[%s277 + $0x1e28] sm:$0xff]
      %v1251 = vld [vmem:[%s277 + $0x1e30] sm:$0xff]
      %v1252 = vld [vmem:[%s277 + $0x1e38] sm:$0xff]
      %v1253 = vld [vmem:[%s277 + $0x1e40] sm:$0xff]
      %v1254 = vld [vmem:[%s277 + $0x1e48] sm:$0xff]
      %v1255 = vld [vmem:[%s277 + $0x1e50] sm:$0xff]
      %v1256 = vld [vmem:[%s277 + $0x1e58] sm:$0xff]
      %v1257 = vld [vmem:[%s277 + $0x1e60] sm:$0xff]
      %v1258 = vld [vmem:[%s277 + $0x1e68] sm:$0xff]
      %v1259 = vld [vmem:[%s277 + $0x1e70] sm:$0xff]
      %v1260 = vld [vmem:[%s277 + $0x1e78] sm:$0xff]
      %v1261 = vld [vmem:[%s277 + $0x1e80] sm:$0xff]
      %v1262 = vld [vmem:[%s277 + $0x1e88] sm:$0xff]
      %v1263 = vld [vmem:[%s277 + $0x1e90] sm:$0xff]
      %v1264 = vld [vmem:[%s277 + $0x1e98] sm:$0xff]
      %v1265 = vld [vmem:[%s277 + $0x1ea0] sm:$0xff]
      %v1266 = vld [vmem:[%s277 + $0x1ea8] sm:$0xff]
      %v1267 = vld [vmem:[%s277 + $0x1eb0] sm:$0xff]
      %v1268 = vld [vmem:[%s277 + $0x1eb8] sm:$0xff]
      %v1269 = vld [vmem:[%s277 + $0x1ec0] sm:$0xff]
      %v1270 = vld [vmem:[%s277 + $0x1ec8] sm:$0xff]
      %v1271 = vld [vmem:[%s277 + $0x1ed0] sm:$0xff]
      %v1272 = vld [vmem:[%s277 + $0x1ed8] sm:$0xff]
      %v1273 = vld [vmem:[%s277 + $0x1ee0] sm:$0xff]
      %v1274 = vld [vmem:[%s277 + $0x1ee8] sm:$0xff]
      %v1275 = vld [vmem:[%s277 + $0x1ef0] sm:$0xff]
      %v1276 = vld [vmem:[%s277 + $0x1ef8] sm:$0xff]
      %v1277 = vld [vmem:[%s277 + $0x1f00] sm:$0xff]
      %v1278 = vld [vmem:[%s277 + $0x1f08] sm:$0xff]
      %v1279 = vld [vmem:[%s277 + $0x1f10] sm:$0xff]
      %v1280 = vld [vmem:[%s277 + $0x1f18] sm:$0xff]
      %v1281 = vld [vmem:[%s277 + $0x1f20] sm:$0xff]
      %v1282 = vld [vmem:[%s277 + $0x1f28] sm:$0xff]
      %v1283 = vld [vmem:[%s277 + $0x1f30] sm:$0xff]
      %v1284 = vld [vmem:[%s277 + $0x1f38] sm:$0xff]
      %v1285 = vld [vmem:[%s277 + $0x1f40] sm:$0xff]
      %v1286 = vld [vmem:[%s277 + $0x1f48] sm:$0xff]
      %v1287 = vld [vmem:[%s277 + $0x1f50] sm:$0xff]
      %v1288 = vld [vmem:[%s277 + $0x1f58] sm:$0xff]
      %v1289 = vld [vmem:[%s277 + $0x1f60] sm:$0xff]
      %v1290 = vld [vmem:[%s277 + $0x1f68] sm:$0xff]
      %v1291 = vld [vmem:[%s277 + $0x1f70] sm:$0xff]
      %v1292 = vld [vmem:[%s277 + $0x1f78] sm:$0xff]
      %v1293 = vld [vmem:[%s277 + $0x1f80] sm:$0xff]
      %v1294 = vld [vmem:[%s277 + $0x1f88] sm:$0xff]
      %v1295 = vld [vmem:[%s277 + $0x1f90] sm:$0xff]
      %v1296 = vld [vmem:[%s277 + $0x1f98] sm:$0xff]
      %v1297 = vld [vmem:[%s277 + $0x1fa0] sm:$0xff]
      %v1298 = vld [vmem:[%s277 + $0x1fa8] sm:$0xff]
      %v1299 = vld [vmem:[%s277 + $0x1fb0] sm:$0xff]
      %v1300 = vld [vmem:[%s277 + $0x1fb8] sm:$0xff]
      %v1301 = vld [vmem:[%s277 + $0x1fc0] sm:$0xff]
      %v1302 = vld [vmem:[%s277 + $0x1fc8] sm:$0xff]
      %v1303 = vld [vmem:[%s277 + $0x1fd0] sm:$0xff]
      %v1304 = vld [vmem:[%s277 + $0x1fd8] sm:$0xff]
      %v1305 = vld [vmem:[%s277 + $0x1fe0] sm:$0xff]
      %v1306 = vld [vmem:[%s277 + $0x1fe8] sm:$0xff]
      %v1307 = vld [vmem:[%s277 + $0x1ff0] sm:$0xff]
      %v1308 = vld [vmem:[%s277 + $0x1ff8] sm:$0xff]
      %v1309 = vpack.c.bf16 %v349, %v285
      %v1310 = vpack.c.bf16 %v350, %v286
      %v1311 = vpack.c.bf16 %v351, %v287
      %v1312 = vpack.c.bf16 %v352, %v288
      %v1313 = vpack.c.bf16 %v353, %v289
      %v1314 = vpack.c.bf16 %v354, %v290
      %v1315 = vpack.c.bf16 %v355, %v291
      %v1316 = vpack.c.bf16 %v356, %v292
      %v1317 = vpack.c.bf16 %v357, %v293
      %v1318 = vpack.c.bf16 %v358, %v294
      %v1319 = vpack.c.bf16 %v359, %v295
      %v1320 = vpack.c.bf16 %v360, %v296
      %v1321 = vpack.c.bf16 %v361, %v297
      %v1322 = vpack.c.bf16 %v362, %v298
      %v1323 = vpack.c.bf16 %v363, %v299
      %v1324 = vpack.c.bf16 %v364, %v300
      %v1325 = vpack.c.bf16 %v365, %v301
      %v1326 = vpack.c.bf16 %v366, %v302
      %v1327 = vpack.c.bf16 %v367, %v303
      %v1328 = vpack.c.bf16 %v368, %v304
      %v1329 = vpack.c.bf16 %v369, %v305
      %v1330 = vpack.c.bf16 %v370, %v306
      %v1331 = vpack.c.bf16 %v371, %v307
      %v1332 = vpack.c.bf16 %v372, %v308
      %v1333 = vpack.c.bf16 %v373, %v309
      %v1334 = vpack.c.bf16 %v374, %v310
      %v1335 = vpack.c.bf16 %v375, %v311
      %v1336 = vpack.c.bf16 %v376, %v312
      %v1337 = vpack.c.bf16 %v377, %v313
      %v1338 = vpack.c.bf16 %v378, %v314
      %v1339 = vpack.c.bf16 %v379, %v315
      %v1340 = vpack.c.bf16 %v380, %v316
      %v1341 = vpack.c.bf16 %v381, %v317
      %v1342 = vpack.c.bf16 %v382, %v318
      %v1343 = vpack.c.bf16 %v383, %v319
      %v1344 = vpack.c.bf16 %v384, %v320
      %v1345 = vpack.c.bf16 %v385, %v321
      %v1346 = vpack.c.bf16 %v386, %v322
      %v1347 = vpack.c.bf16 %v387, %v323
      %v1348 = vpack.c.bf16 %v388, %v324
      %v1349 = vpack.c.bf16 %v389, %v325
      %v1350 = vpack.c.bf16 %v390, %v326
      %v1351 = vpack.c.bf16 %v391, %v327
      %v1352 = vpack.c.bf16 %v392, %v328
      %v1353 = vpack.c.bf16 %v393, %v329
      %v1354 = vpack.c.bf16 %v394, %v330
      %v1355 = vpack.c.bf16 %v395, %v331
      %v1356 = vpack.c.bf16 %v396, %v332
      %v1357 = vpack.c.bf16 %v397, %v333
      %v1358 = vpack.c.bf16 %v398, %v334
      %v1359 = vpack.c.bf16 %v399, %v335
      %v1360 = vpack.c.bf16 %v400, %v336
      %v1361 = vpack.c.bf16 %v401, %v337
      %v1362 = vpack.c.bf16 %v402, %v338
      %v1363 = vpack.c.bf16 %v403, %v339
      %v1364 = vpack.c.bf16 %v404, %v340
      %v1365 = vpack.c.bf16 %v405, %v341
      %v1366 = vpack.c.bf16 %v406, %v342
      %v1367 = vpack.c.bf16 %v407, %v343
      %v1368 = vpack.c.bf16 %v408, %v344
      %v1369 = vpack.c.bf16 %v409, %v345
      %v1370 = vpack.c.bf16 %v410, %v346
      %v1371 = vpack.c.bf16 %v411, %v347
      %v1372 = vpack.c.bf16 %v412, %v348
      %v1373 = vpack.c.bf16 %v477, %v413
      %v1374 = vpack.c.bf16 %v478, %v414
      %v1375 = vpack.c.bf16 %v479, %v415
      %v1376 = vpack.c.bf16 %v480, %v416
      %v1377 = vpack.c.bf16 %v481, %v417
      %v1378 = vpack.c.bf16 %v482, %v418
      %v1379 = vpack.c.bf16 %v483, %v419
      %v1380 = vpack.c.bf16 %v484, %v420
      %v1381 = vpack.c.bf16 %v485, %v421
      %v1382 = vpack.c.bf16 %v486, %v422
      %v1383 = vpack.c.bf16 %v487, %v423
      %v1384 = vpack.c.bf16 %v488, %v424
      %v1385 = vpack.c.bf16 %v489, %v425
      %v1386 = vpack.c.bf16 %v490, %v426
      %v1387 = vpack.c.bf16 %v491, %v427
      %v1388 = vpack.c.bf16 %v492, %v428
      %v1389 = vpack.c.bf16 %v493, %v429
      %v1390 = vpack.c.bf16 %v494, %v430
      %v1391 = vpack.c.bf16 %v495, %v431
      %v1392 = vpack.c.bf16 %v496, %v432
      %v1393 = vpack.c.bf16 %v497, %v433
      %v1394 = vpack.c.bf16 %v498, %v434
      %v1395 = vpack.c.bf16 %v499, %v435
      %v1396 = vpack.c.bf16 %v500, %v436
      %v1397 = vpack.c.bf16 %v501, %v437
      %v1398 = vpack.c.bf16 %v502, %v438
      %v1399 = vpack.c.bf16 %v503, %v439
      %v1400 = vpack.c.bf16 %v504, %v440
      %v1401 = vpack.c.bf16 %v505, %v441
      %v1402 = vpack.c.bf16 %v506, %v442
      %v1403 = vpack.c.bf16 %v507, %v443
      %v1404 = vpack.c.bf16 %v508, %v444
      %v1405 = vpack.c.bf16 %v509, %v445
      %v1406 = vpack.c.bf16 %v510, %v446
      %v1407 = vpack.c.bf16 %v511, %v447
      %v1408 = vpack.c.bf16 %v512, %v448
      %v1409 = vpack.c.bf16 %v513, %v449
      %v1410 = vpack.c.bf16 %v514, %v450
      %v1411 = vpack.c.bf16 %v515, %v451
      %v1412 = vpack.c.bf16 %v516, %v452
      %v1413 = vpack.c.bf16 %v517, %v453
      %v1414 = vpack.c.bf16 %v518, %v454
      %v1415 = vpack.c.bf16 %v519, %v455
      %v1416 = vpack.c.bf16 %v520, %v456
      %v1417 = vpack.c.bf16 %v521, %v457
      %v1418 = vpack.c.bf16 %v522, %v458
      %v1419 = vpack.c.bf16 %v523, %v459
      %v1420 = vpack.c.bf16 %v524, %v460
      %v1421 = vpack.c.bf16 %v525, %v461
      %v1422 = vpack.c.bf16 %v526, %v462
      %v1423 = vpack.c.bf16 %v527, %v463
      %v1424 = vpack.c.bf16 %v528, %v464
      %v1425 = vpack.c.bf16 %v529, %v465
      %v1426 = vpack.c.bf16 %v530, %v466
      %v1427 = vpack.c.bf16 %v531, %v467
      %v1428 = vpack.c.bf16 %v532, %v468
      %v1429 = vpack.c.bf16 %v533, %v469
      %v1430 = vpack.c.bf16 %v534, %v470
      %v1431 = vpack.c.bf16 %v535, %v471
      %v1432 = vpack.c.bf16 %v536, %v472
      %v1433 = vpack.c.bf16 %v537, %v473
      %v1434 = vpack.c.bf16 %v538, %v474
      %v1435 = vpack.c.bf16 %v539, %v475
      %v1436 = vpack.c.bf16 %v540, %v476
      %v1437 = vpack.c.bf16 %v605, %v541
      %v1438 = vpack.c.bf16 %v606, %v542
      %v1439 = vpack.c.bf16 %v607, %v543
      %v1440 = vpack.c.bf16 %v608, %v544
      %v1441 = vpack.c.bf16 %v609, %v545
      %v1442 = vpack.c.bf16 %v610, %v546
      %v1443 = vpack.c.bf16 %v611, %v547
      %v1444 = vpack.c.bf16 %v612, %v548
      %v1445 = vpack.c.bf16 %v613, %v549
      %v1446 = vpack.c.bf16 %v614, %v550
      %v1447 = vpack.c.bf16 %v615, %v551
      %v1448 = vpack.c.bf16 %v616, %v552
      %v1449 = vpack.c.bf16 %v617, %v553
      %v1450 = vpack.c.bf16 %v618, %v554
      %v1451 = vpack.c.bf16 %v619, %v555
      %v1452 = vpack.c.bf16 %v620, %v556
      %v1453 = vpack.c.bf16 %v621, %v557
      %v1454 = vpack.c.bf16 %v622, %v558
      %v1455 = vpack.c.bf16 %v623, %v559
      %v1456 = vpack.c.bf16 %v624, %v560
      %v1457 = vpack.c.bf16 %v625, %v561
      %v1458 = vpack.c.bf16 %v626, %v562
      %v1459 = vpack.c.bf16 %v627, %v563
      %v1460 = vpack.c.bf16 %v628, %v564
      %v1461 = vpack.c.bf16 %v629, %v565
      %v1462 = vpack.c.bf16 %v630, %v566
      %v1463 = vpack.c.bf16 %v631, %v567
      %v1464 = vpack.c.bf16 %v632, %v568
      %v1465 = vpack.c.bf16 %v633, %v569
      %v1466 = vpack.c.bf16 %v634, %v570
      %v1467 = vpack.c.bf16 %v635, %v571
      %v1468 = vpack.c.bf16 %v636, %v572
      %v1469 = vpack.c.bf16 %v637, %v573
      %v1470 = vpack.c.bf16 %v638, %v574
      %v1471 = vpack.c.bf16 %v639, %v575
      %v1472 = vpack.c.bf16 %v640, %v576
      %v1473 = vpack.c.bf16 %v641, %v577
      %v1474 = vpack.c.bf16 %v642, %v578
      %v1475 = vpack.c.bf16 %v643, %v579
      %v1476 = vpack.c.bf16 %v644, %v580
      %v1477 = vpack.c.bf16 %v645, %v581
      %v1478 = vpack.c.bf16 %v646, %v582
      %v1479 = vpack.c.bf16 %v647, %v583
      %v1480 = vpack.c.bf16 %v648, %v584
      %v1481 = vpack.c.bf16 %v649, %v585
      %v1482 = vpack.c.bf16 %v650, %v586
      %v1483 = vpack.c.bf16 %v651, %v587
      %v1484 = vpack.c.bf16 %v652, %v588
      %v1485 = vpack.c.bf16 %v653, %v589
      %v1486 = vpack.c.bf16 %v654, %v590
      %v1487 = vpack.c.bf16 %v655, %v591
      %v1488 = vpack.c.bf16 %v656, %v592
      %v1489 = vpack.c.bf16 %v657, %v593
      %v1490 = vpack.c.bf16 %v658, %v594
      %v1491 = vpack.c.bf16 %v659, %v595
      %v1492 = vpack.c.bf16 %v660, %v596
      %v1493 = vpack.c.bf16 %v661, %v597
      %v1494 = vpack.c.bf16 %v662, %v598
      %v1495 = vpack.c.bf16 %v663, %v599
      %v1496 = vpack.c.bf16 %v664, %v600
      %v1497 = vpack.c.bf16 %v665, %v601
      %v1498 = vpack.c.bf16 %v666, %v602
      %v1499 = vpack.c.bf16 %v667, %v603
      %v1500 = vpack.c.bf16 %v668, %v604
      %v1501 = vpack.c.bf16 %v733, %v669
      %v1502 = vpack.c.bf16 %v734, %v670
      %v1503 = vpack.c.bf16 %v735, %v671
      %v1504 = vpack.c.bf16 %v736, %v672
      %v1505 = vpack.c.bf16 %v737, %v673
      %v1506 = vpack.c.bf16 %v738, %v674
      %v1507 = vpack.c.bf16 %v739, %v675
      %v1508 = vpack.c.bf16 %v740, %v676
      %v1509 = vpack.c.bf16 %v741, %v677
      %v1510 = vpack.c.bf16 %v742, %v678
      %v1511 = vpack.c.bf16 %v743, %v679
      %v1512 = vpack.c.bf16 %v744, %v680
      %v1513 = vpack.c.bf16 %v745, %v681
      %v1514 = vpack.c.bf16 %v746, %v682
      %v1515 = vpack.c.bf16 %v747, %v683
      %v1516 = vpack.c.bf16 %v748, %v684
      %v1517 = vpack.c.bf16 %v749, %v685
      %v1518 = vpack.c.bf16 %v750, %v686
      %v1519 = vpack.c.bf16 %v751, %v687
      %v1520 = vpack.c.bf16 %v752, %v688
      %v1521 = vpack.c.bf16 %v753, %v689
      %v1522 = vpack.c.bf16 %v754, %v690
      %v1523 = vpack.c.bf16 %v755, %v691
      %v1524 = vpack.c.bf16 %v756, %v692
      %v1525 = vpack.c.bf16 %v757, %v693
      %v1526 = vpack.c.bf16 %v758, %v694
      %v1527 = vpack.c.bf16 %v759, %v695
      %v1528 = vpack.c.bf16 %v760, %v696
      %v1529 = vpack.c.bf16 %v761, %v697
      %v1530 = vpack.c.bf16 %v762, %v698
      %v1531 = vpack.c.bf16 %v763, %v699
      %v1532 = vpack.c.bf16 %v764, %v700
      %v1533 = vpack.c.bf16 %v765, %v701
      %v1534 = vpack.c.bf16 %v766, %v702
      %v1535 = vpack.c.bf16 %v767, %v703
      %v1536 = vpack.c.bf16 %v768, %v704
      %v1537 = vpack.c.bf16 %v769, %v705
      %v1538 = vpack.c.bf16 %v770, %v706
      %v1539 = vpack.c.bf16 %v771, %v707
      %v1540 = vpack.c.bf16 %v772, %v708
      %v1541 = vpack.c.bf16 %v773, %v709
      %v1542 = vpack.c.bf16 %v774, %v710
      %v1543 = vpack.c.bf16 %v775, %v711
      %v1544 = vpack.c.bf16 %v776, %v712
      %v1545 = vpack.c.bf16 %v777, %v713
      %v1546 = vpack.c.bf16 %v778, %v714
      %v1547 = vpack.c.bf16 %v779, %v715
      %v1548 = vpack.c.bf16 %v780, %v716
      %v1549 = vpack.c.bf16 %v781, %v717
      %v1550 = vpack.c.bf16 %v782, %v718
      %v1551 = vpack.c.bf16 %v783, %v719
      %v1552 = vpack.c.bf16 %v784, %v720
      %v1553 = vpack.c.bf16 %v785, %v721
      %v1554 = vpack.c.bf16 %v786, %v722
      %v1555 = vpack.c.bf16 %v787, %v723
      %v1556 = vpack.c.bf16 %v788, %v724
      %v1557 = vpack.c.bf16 %v789, %v725
      %v1558 = vpack.c.bf16 %v790, %v726
      %v1559 = vpack.c.bf16 %v791, %v727
      %v1560 = vpack.c.bf16 %v792, %v728
      %v1561 = vpack.c.bf16 %v793, %v729
      %v1562 = vpack.c.bf16 %v794, %v730
      %v1563 = vpack.c.bf16 %v795, %v731
      %v1564 = vpack.c.bf16 %v796, %v732
      %v1565 = vpack.c.bf16 %v861, %v797
      %v1566 = vpack.c.bf16 %v862, %v798
      %v1567 = vpack.c.bf16 %v863, %v799
      %v1568 = vpack.c.bf16 %v864, %v800
      %v1569 = vpack.c.bf16 %v865, %v801
      %v1570 = vpack.c.bf16 %v866, %v802
      %v1571 = vpack.c.bf16 %v867, %v803
      %v1572 = vpack.c.bf16 %v868, %v804
      %v1573 = vpack.c.bf16 %v869, %v805
      %v1574 = vpack.c.bf16 %v870, %v806
      %v1575 = vpack.c.bf16 %v871, %v807
      %v1576 = vpack.c.bf16 %v872, %v808
      %v1577 = vpack.c.bf16 %v873, %v809
      %v1578 = vpack.c.bf16 %v874, %v810
      %v1579 = vpack.c.bf16 %v875, %v811
      %v1580 = vpack.c.bf16 %v876, %v812
      %v1581 = vpack.c.bf16 %v877, %v813
      %v1582 = vpack.c.bf16 %v878, %v814
      %v1583 = vpack.c.bf16 %v879, %v815
      %v1584 = vpack.c.bf16 %v880, %v816
      %v1585 = vpack.c.bf16 %v881, %v817
      %v1586 = vpack.c.bf16 %v882, %v818
      %v1587 = vpack.c.bf16 %v883, %v819
      %v1588 = vpack.c.bf16 %v884, %v820
      %v1589 = vpack.c.bf16 %v885, %v821
      %v1590 = vpack.c.bf16 %v886, %v822
      %v1591 = vpack.c.bf16 %v887, %v823
      %v1592 = vpack.c.bf16 %v888, %v824
      %v1593 = vpack.c.bf16 %v889, %v825
      %v1594 = vpack.c.bf16 %v890, %v826
      %v1595 = vpack.c.bf16 %v891, %v827
      %v1596 = vpack.c.bf16 %v892, %v828
      %v1597 = vpack.c.bf16 %v893, %v829
      %v1598 = vpack.c.bf16 %v894, %v830
      %v1599 = vpack.c.bf16 %v895, %v831
      %v1600 = vpack.c.bf16 %v896, %v832
      %v1601 = vpack.c.bf16 %v897, %v833
      %v1602 = vpack.c.bf16 %v898, %v834
      %v1603 = vpack.c.bf16 %v899, %v835
      %v1604 = vpack.c.bf16 %v900, %v836
      %v1605 = vpack.c.bf16 %v901, %v837
      %v1606 = vpack.c.bf16 %v902, %v838
      %v1607 = vpack.c.bf16 %v903, %v839
      %v1608 = vpack.c.bf16 %v904, %v840
      %v1609 = vpack.c.bf16 %v905, %v841
      %v1610 = vpack.c.bf16 %v906, %v842
      %v1611 = vpack.c.bf16 %v907, %v843
      %v1612 = vpack.c.bf16 %v908, %v844
      %v1613 = vpack.c.bf16 %v909, %v845
      %v1614 = vpack.c.bf16 %v910, %v846
      %v1615 = vpack.c.bf16 %v911, %v847
      %v1616 = vpack.c.bf16 %v912, %v848
      %v1617 = vpack.c.bf16 %v913, %v849
      %v1618 = vpack.c.bf16 %v914, %v850
      %v1619 = vpack.c.bf16 %v915, %v851
      %v1620 = vpack.c.bf16 %v916, %v852
      %v1621 = vpack.c.bf16 %v917, %v853
      %v1622 = vpack.c.bf16 %v918, %v854
      %v1623 = vpack.c.bf16 %v919, %v855
      %v1624 = vpack.c.bf16 %v920, %v856
      %v1625 = vpack.c.bf16 %v921, %v857
      %v1626 = vpack.c.bf16 %v922, %v858
      %v1627 = vpack.c.bf16 %v923, %v859
      %v1628 = vpack.c.bf16 %v924, %v860
      %v1629 = vpack.c.bf16 %v989, %v925
      %v1630 = vpack.c.bf16 %v990, %v926
      %v1631 = vpack.c.bf16 %v991, %v927
      %v1632 = vpack.c.bf16 %v992, %v928
      %v1633 = vpack.c.bf16 %v993, %v929
      %v1634 = vpack.c.bf16 %v994, %v930
      %v1635 = vpack.c.bf16 %v995, %v931
      %v1636 = vpack.c.bf16 %v996, %v932
      %v1637 = vpack.c.bf16 %v997, %v933
      %v1638 = vpack.c.bf16 %v998, %v934
      %v1639 = vpack.c.bf16 %v999, %v935
      %v1640 = vpack.c.bf16 %v1000, %v936
      %v1641 = vpack.c.bf16 %v1001, %v937
      %v1642 = vpack.c.bf16 %v1002, %v938
      %v1643 = vpack.c.bf16 %v1003, %v939
      %v1644 = vpack.c.bf16 %v1004, %v940
      %v1645 = vpack.c.bf16 %v1005, %v941
      %v1646 = vpack.c.bf16 %v1006, %v942
      %v1647 = vpack.c.bf16 %v1007, %v943
      %v1648 = vpack.c.bf16 %v1008, %v944
      %v1649 = vpack.c.bf16 %v1009, %v945
      %v1650 = vpack.c.bf16 %v1010, %v946
      %v1651 = vpack.c.bf16 %v1011, %v947
      %v1652 = vpack.c.bf16 %v1012, %v948
      %v1653 = vpack.c.bf16 %v1013, %v949
      %v1654 = vpack.c.bf16 %v1014, %v950
      %v1655 = vpack.c.bf16 %v1015, %v951
      %v1656 = vpack.c.bf16 %v1016, %v952
      %v1657 = vpack.c.bf16 %v1017, %v953
      %v1658 = vpack.c.bf16 %v1018, %v954
      %v1659 = vpack.c.bf16 %v1019, %v955
      %v1660 = vpack.c.bf16 %v1020, %v956
      %v1661 = vpack.c.bf16 %v1021, %v957
      %v1662 = vpack.c.bf16 %v1022, %v958
      %v1663 = vpack.c.bf16 %v1023, %v959
      %v1664 = vpack.c.bf16 %v1024, %v960
      %v1665 = vpack.c.bf16 %v1025, %v961
      %v1666 = vpack.c.bf16 %v1026, %v962
      %v1667 = vpack.c.bf16 %v1027, %v963
      %v1668 = vpack.c.bf16 %v1028, %v964
      %v1669 = vpack.c.bf16 %v1029, %v965
      %v1670 = vpack.c.bf16 %v1030, %v966
      %v1671 = vpack.c.bf16 %v1031, %v967
      %v1672 = vpack.c.bf16 %v1032, %v968
      %v1673 = vpack.c.bf16 %v1033, %v969
      %v1674 = vpack.c.bf16 %v1034, %v970
      %v1675 = vpack.c.bf16 %v1035, %v971
      %v1676 = vpack.c.bf16 %v1036, %v972
      %v1677 = vpack.c.bf16 %v1037, %v973
      %v1678 = vpack.c.bf16 %v1038, %v974
      %v1679 = vpack.c.bf16 %v1039, %v975
      %v1680 = vpack.c.bf16 %v1040, %v976
      %v1681 = vpack.c.bf16 %v1041, %v977
      %v1682 = vpack.c.bf16 %v1042, %v978
      %v1683 = vpack.c.bf16 %v1043, %v979
      %v1684 = vpack.c.bf16 %v1044, %v980
      %v1685 = vpack.c.bf16 %v1045, %v981
      %v1686 = vpack.c.bf16 %v1046, %v982
      %v1687 = vpack.c.bf16 %v1047, %v983
      %v1688 = vpack.c.bf16 %v1048, %v984
      %v1689 = vpack.c.bf16 %v1049, %v985
      %v1690 = vpack.c.bf16 %v1050, %v986
      %v1691 = vpack.c.bf16 %v1051, %v987
      %v1692 = vpack.c.bf16 %v1052, %v988
      %v1693 = vpack.c.bf16 %v1117, %v1053
      %v1694 = vpack.c.bf16 %v1118, %v1054
      %v1695 = vpack.c.bf16 %v1119, %v1055
      %v1696 = vpack.c.bf16 %v1120, %v1056
      %v1697 = vpack.c.bf16 %v1121, %v1057
      %v1698 = vpack.c.bf16 %v1122, %v1058
      %v1699 = vpack.c.bf16 %v1123, %v1059
      %v1700 = vpack.c.bf16 %v1124, %v1060
      %v1701 = vpack.c.bf16 %v1125, %v1061
      %v1702 = vpack.c.bf16 %v1126, %v1062
      %v1703 = vpack.c.bf16 %v1127, %v1063
      %v1704 = vpack.c.bf16 %v1128, %v1064
      %v1705 = vpack.c.bf16 %v1129, %v1065
      %v1706 = vpack.c.bf16 %v1130, %v1066
      %v1707 = vpack.c.bf16 %v1131, %v1067
      %v1708 = vpack.c.bf16 %v1132, %v1068
      %v1709 = vpack.c.bf16 %v1133, %v1069
      %v1710 = vpack.c.bf16 %v1134, %v1070
      %v1711 = vpack.c.bf16 %v1135, %v1071
      %v1712 = vpack.c.bf16 %v1136, %v1072
      %v1713 = vpack.c.bf16 %v1137, %v1073
      %v1714 = vpack.c.bf16 %v1138, %v1074
      %v1715 = vpack.c.bf16 %v1139, %v1075
      %v1716 = vpack.c.bf16 %v1140, %v1076
      %v1717 = vpack.c.bf16 %v1141, %v1077
      %v1718 = vpack.c.bf16 %v1142, %v1078
      %v1719 = vpack.c.bf16 %v1143, %v1079
      %v1720 = vpack.c.bf16 %v1144, %v1080
      %v1721 = vpack.c.bf16 %v1145, %v1081
      %v1722 = vpack.c.bf16 %v1146, %v1082
      %v1723 = vpack.c.bf16 %v1147, %v1083
      %v1724 = vpack.c.bf16 %v1148, %v1084
      %v1725 = vpack.c.bf16 %v1149, %v1085
      %v1726 = vpack.c.bf16 %v1150, %v1086
      %v1727 = vpack.c.bf16 %v1151, %v1087
      %v1728 = vpack.c.bf16 %v1152, %v1088
      %v1729 = vpack.c.bf16 %v1153, %v1089
      %v1730 = vpack.c.bf16 %v1154, %v1090
      %v1731 = vpack.c.bf16 %v1155, %v1091
      %v1732 = vpack.c.bf16 %v1156, %v1092
      %v1733 = vpack.c.bf16 %v1157, %v1093
      %v1734 = vpack.c.bf16 %v1158, %v1094
      %v1735 = vpack.c.bf16 %v1159, %v1095
      %v1736 = vpack.c.bf16 %v1160, %v1096
      %v1737 = vpack.c.bf16 %v1161, %v1097
      %v1738 = vpack.c.bf16 %v1162, %v1098
      %v1739 = vpack.c.bf16 %v1163, %v1099
      %v1740 = vpack.c.bf16 %v1164, %v1100
      %v1741 = vpack.c.bf16 %v1165, %v1101
      %v1742 = vpack.c.bf16 %v1166, %v1102
      %v1743 = vpack.c.bf16 %v1167, %v1103
      %v1744 = vpack.c.bf16 %v1168, %v1104
      %v1745 = vpack.c.bf16 %v1169, %v1105
      %v1746 = vpack.c.bf16 %v1170, %v1106
      %v1747 = vpack.c.bf16 %v1171, %v1107
      %v1748 = vpack.c.bf16 %v1172, %v1108
      %v1749 = vpack.c.bf16 %v1173, %v1109
      %v1750 = vpack.c.bf16 %v1174, %v1110
      %v1751 = vpack.c.bf16 %v1175, %v1111
      %v1752 = vpack.c.bf16 %v1176, %v1112
      %v1753 = vpack.c.bf16 %v1177, %v1113
      %v1754 = vpack.c.bf16 %v1178, %v1114
      %v1755 = vpack.c.bf16 %v1179, %v1115
      %v1756 = vpack.c.bf16 %v1180, %v1116
      %v1757 = vpack.c.bf16 %v1245, %v1181
      %v1758 = vpack.c.bf16 %v1246, %v1182
      %v1759 = vpack.c.bf16 %v1247, %v1183
      %v1760 = vpack.c.bf16 %v1248, %v1184
      %v1761 = vpack.c.bf16 %v1249, %v1185
      %v1762 = vpack.c.bf16 %v1250, %v1186
      %v1763 = vpack.c.bf16 %v1251, %v1187
      %v1764 = vpack.c.bf16 %v1252, %v1188
      %v1765 = vpack.c.bf16 %v1253, %v1189
      %v1766 = vpack.c.bf16 %v1254, %v1190
      %v1767 = vpack.c.bf16 %v1255, %v1191
      %v1768 = vpack.c.bf16 %v1256, %v1192
      %v1769 = vpack.c.bf16 %v1257, %v1193
      %v1770 = vpack.c.bf16 %v1258, %v1194
      %v1771 = vpack.c.bf16 %v1259, %v1195
      %v1772 = vpack.c.bf16 %v1260, %v1196
      %v1773 = vpack.c.bf16 %v1261, %v1197
      %v1774 = vpack.c.bf16 %v1262, %v1198
      %v1775 = vpack.c.bf16 %v1263, %v1199
      %v1776 = vpack.c.bf16 %v1264, %v1200
      %v1777 = vpack.c.bf16 %v1265, %v1201
      %v1778 = vpack.c.bf16 %v1266, %v1202
      %v1779 = vpack.c.bf16 %v1267, %v1203
      %v1780 = vpack.c.bf16 %v1268, %v1204
      %v1781 = vpack.c.bf16 %v1269, %v1205
      %v1782 = vpack.c.bf16 %v1270, %v1206
      %v1783 = vpack.c.bf16 %v1271, %v1207
      %v1784 = vpack.c.bf16 %v1272, %v1208
      %v1785 = vpack.c.bf16 %v1273, %v1209
      %v1786 = vpack.c.bf16 %v1274, %v1210
      %v1787 = vpack.c.bf16 %v1275, %v1211
      %v1788 = vpack.c.bf16 %v1276, %v1212
      %v1789 = vpack.c.bf16 %v1277, %v1213
      %v1790 = vpack.c.bf16 %v1278, %v1214
      %v1791 = vpack.c.bf16 %v1279, %v1215
      %v1792 = vpack.c.bf16 %v1280, %v1216
      %v1793 = vpack.c.bf16 %v1281, %v1217
      %v1794 = vpack.c.bf16 %v1282, %v1218
      %v1795 = vpack.c.bf16 %v1283, %v1219
      %v1796 = vpack.c.bf16 %v1284, %v1220
      %v1797 = vpack.c.bf16 %v1285, %v1221
      %v1798 = vpack.c.bf16 %v1286, %v1222
      %v1799 = vpack.c.bf16 %v1287, %v1223
      %v1800 = vpack.c.bf16 %v1288, %v1224
      %v1801 = vpack.c.bf16 %v1289, %v1225
      %v1802 = vpack.c.bf16 %v1290, %v1226
      %v1803 = vpack.c.bf16 %v1291, %v1227
      %v1804 = vpack.c.bf16 %v1292, %v1228
      %v1805 = vpack.c.bf16 %v1293, %v1229
      %v1806 = vpack.c.bf16 %v1294, %v1230
      %v1807 = vpack.c.bf16 %v1295, %v1231
      %v1808 = vpack.c.bf16 %v1296, %v1232
      %v1809 = vpack.c.bf16 %v1297, %v1233
      %v1810 = vpack.c.bf16 %v1298, %v1234
      %v1811 = vpack.c.bf16 %v1299, %v1235
      %v1812 = vpack.c.bf16 %v1300, %v1236
      %v1813 = vpack.c.bf16 %v1301, %v1237
      %v1814 = vpack.c.bf16 %v1302, %v1238
      %v1815 = vpack.c.bf16 %v1303, %v1239
      %v1816 = vpack.c.bf16 %v1304, %v1240
      %v1817 = vpack.c.bf16 %v1305, %v1241
      %v1818 = vpack.c.bf16 %v1306, %v1242
      %v1819 = vpack.c.bf16 %v1307, %v1243
      %v1820 = vpack.c.bf16 %v1308, %v1244
      %v1821 = vld [vmem:[%s1] sm:$0xf]
      %v1822 = vld [vmem:[%s1 + $0x4] sm:$0xf]
      %v1823 = vld [vmem:[%s1 + $0x8] sm:$0xf]
      %v1824 = vld [vmem:[%s1 + $0xc] sm:$0xf]
      %v1825 = vld [vmem:[%s1 + $0x10] sm:$0xf]
      %v1826 = vld [vmem:[%s1 + $0x14] sm:$0xf]
      %v1827 = vld [vmem:[%s1 + $0x18] sm:$0xf]
      %v1828 = vld [vmem:[%s1 + $0x1c] sm:$0xf]
      %v1829 = vld [vmem:[%s1 + $0x20] sm:$0xf]
      %v1830 = vld [vmem:[%s1 + $0x24] sm:$0xf]
      %v1831 = vld [vmem:[%s1 + $0x28] sm:$0xf]
      %v1832 = vld [vmem:[%s1 + $0x2c] sm:$0xf]
      %v1833 = vld [vmem:[%s1 + $0x30] sm:$0xf]
      %v1834 = vld [vmem:[%s1 + $0x34] sm:$0xf]
      %v1835 = vld [vmem:[%s1 + $0x38] sm:$0xf]
      %v1836 = vld [vmem:[%s1 + $0x3c] sm:$0xf]
      %v1837 = vld [vmem:[%s1 + $0x40] sm:$0xf]
      %v1838 = vld [vmem:[%s1 + $0x44] sm:$0xf]
      %v1839 = vld [vmem:[%s1 + $0x48] sm:$0xf]
      %v1840 = vld [vmem:[%s1 + $0x4c] sm:$0xf]
      %v1841 = vld [vmem:[%s1 + $0x50] sm:$0xf]
      %v1842 = vld [vmem:[%s1 + $0x54] sm:$0xf]
      %v1843 = vld [vmem:[%s1 + $0x58] sm:$0xf]
      %v1844 = vld [vmem:[%s1 + $0x5c] sm:$0xf]
      %v1845 = vld [vmem:[%s1 + $0x60] sm:$0xf]
      %v1846 = vld [vmem:[%s1 + $0x64] sm:$0xf]
      %v1847 = vld [vmem:[%s1 + $0x68] sm:$0xf]
      %v1848 = vld [vmem:[%s1 + $0x6c] sm:$0xf]
      %v1849 = vld [vmem:[%s1 + $0x70] sm:$0xf]
      %v1850 = vld [vmem:[%s1 + $0x74] sm:$0xf]
      %v1851 = vld [vmem:[%s1 + $0x78] sm:$0xf]
      %v1852 = vld [vmem:[%s1 + $0x7c] sm:$0xf]
      %v1853 = vld [vmem:[%s1 + $0x80] sm:$0xf]
      %v1854 = vld [vmem:[%s1 + $0x84] sm:$0xf]
      %v1855 = vld [vmem:[%s1 + $0x88] sm:$0xf]
      %v1856 = vld [vmem:[%s1 + $0x8c] sm:$0xf]
      %v1857 = vld [vmem:[%s1 + $0x90] sm:$0xf]
      %v1858 = vld [vmem:[%s1 + $0x94] sm:$0xf]
      %v1859 = vld [vmem:[%s1 + $0x98] sm:$0xf]
      %v1860 = vld [vmem:[%s1 + $0x9c] sm:$0xf]
      %v1861 = vld [vmem:[%s1 + $0xa0] sm:$0xf]
      %v1862 = vld [vmem:[%s1 + $0xa4] sm:$0xf]
      %v1863 = vld [vmem:[%s1 + $0xa8] sm:$0xf]
      %v1864 = vld [vmem:[%s1 + $0xac] sm:$0xf]
      %v1865 = vld [vmem:[%s1 + $0xb0] sm:$0xf]
      %v1866 = vld [vmem:[%s1 + $0xb4] sm:$0xf]
      %v1867 = vld [vmem:[%s1 + $0xb8] sm:$0xf]
      %v1868 = vld [vmem:[%s1 + $0xbc] sm:$0xf]
      %v1869 = vld [vmem:[%s1 + $0xc0] sm:$0xf]
      %v1870 = vld [vmem:[%s1 + $0xc4] sm:$0xf]
      %v1871 = vld [vmem:[%s1 + $0xc8] sm:$0xf]
      %v1872 = vld [vmem:[%s1 + $0xcc] sm:$0xf]
      %v1873 = vld [vmem:[%s1 + $0xd0] sm:$0xf]
      %v1874 = vld [vmem:[%s1 + $0xd4] sm:$0xf]
      %v1875 = vld [vmem:[%s1 + $0xd8] sm:$0xf]
      %v1876 = vld [vmem:[%s1 + $0xdc] sm:$0xf]
      %v1877 = vld [vmem:[%s1 + $0xe0] sm:$0xf]
      %v1878 = vld [vmem:[%s1 + $0xe4] sm:$0xf]
      %v1879 = vld [vmem:[%s1 + $0xe8] sm:$0xf]
      %v1880 = vld [vmem:[%s1 + $0xec] sm:$0xf]
      %v1881 = vld [vmem:[%s1 + $0xf0] sm:$0xf]
      %v1882 = vld [vmem:[%s1 + $0xf4] sm:$0xf]
      %v1883 = vld [vmem:[%s1 + $0xf8] sm:$0xf]
      %v1884 = vld [vmem:[%s1 + $0xfc] sm:$0xf]
      %v1885 = vld [vmem:[%s1 + $0x100] sm:$0xf]
      %v1886 = vld [vmem:[%s1 + $0x104] sm:$0xf]
      %v1887 = vld [vmem:[%s1 + $0x108] sm:$0xf]
      %v1888 = vld [vmem:[%s1 + $0x10c] sm:$0xf]
      %v1889 = vld [vmem:[%s1 + $0x110] sm:$0xf]
      %v1890 = vld [vmem:[%s1 + $0x114] sm:$0xf]
      %v1891 = vld [vmem:[%s1 + $0x118] sm:$0xf]
      %v1892 = vld [vmem:[%s1 + $0x11c] sm:$0xf]
      %v1893 = vld [vmem:[%s1 + $0x120] sm:$0xf]
      %v1894 = vld [vmem:[%s1 + $0x124] sm:$0xf]
      %v1895 = vld [vmem:[%s1 + $0x128] sm:$0xf]
      %v1896 = vld [vmem:[%s1 + $0x12c] sm:$0xf]
      %v1897 = vld [vmem:[%s1 + $0x130] sm:$0xf]
      %v1898 = vld [vmem:[%s1 + $0x134] sm:$0xf]
      %v1899 = vld [vmem:[%s1 + $0x138] sm:$0xf]
      %v1900 = vld [vmem:[%s1 + $0x13c] sm:$0xf]
      %v1901 = vld [vmem:[%s1 + $0x140] sm:$0xf]
      %v1902 = vld [vmem:[%s1 + $0x144] sm:$0xf]
      %v1903 = vld [vmem:[%s1 + $0x148] sm:$0xf]
      %v1904 = vld [vmem:[%s1 + $0x14c] sm:$0xf]
      %v1905 = vld [vmem:[%s1 + $0x150] sm:$0xf]
      %v1906 = vld [vmem:[%s1 + $0x154] sm:$0xf]
      %v1907 = vld [vmem:[%s1 + $0x158] sm:$0xf]
      %v1908 = vld [vmem:[%s1 + $0x15c] sm:$0xf]
      %v1909 = vld [vmem:[%s1 + $0x160] sm:$0xf]
      %v1910 = vld [vmem:[%s1 + $0x164] sm:$0xf]
      %v1911 = vld [vmem:[%s1 + $0x168] sm:$0xf]
      %v1912 = vld [vmem:[%s1 + $0x16c] sm:$0xf]
      %v1913 = vld [vmem:[%s1 + $0x170] sm:$0xf]
      %v1914 = vld [vmem:[%s1 + $0x174] sm:$0xf]
      %v1915 = vld [vmem:[%s1 + $0x178] sm:$0xf]
      %v1916 = vld [vmem:[%s1 + $0x17c] sm:$0xf]
      %v1917 = vld [vmem:[%s1 + $0x180] sm:$0xf]
      %v1918 = vld [vmem:[%s1 + $0x184] sm:$0xf]
      %v1919 = vld [vmem:[%s1 + $0x188] sm:$0xf]
      %v1920 = vld [vmem:[%s1 + $0x18c] sm:$0xf]
      %v1921 = vld [vmem:[%s1 + $0x190] sm:$0xf]
      %v1922 = vld [vmem:[%s1 + $0x194] sm:$0xf]
      %v1923 = vld [vmem:[%s1 + $0x198] sm:$0xf]
      %v1924 = vld [vmem:[%s1 + $0x19c] sm:$0xf]
      %v1925 = vld [vmem:[%s1 + $0x1a0] sm:$0xf]
      %v1926 = vld [vmem:[%s1 + $0x1a4] sm:$0xf]
      %v1927 = vld [vmem:[%s1 + $0x1a8] sm:$0xf]
      %v1928 = vld [vmem:[%s1 + $0x1ac] sm:$0xf]
      %v1929 = vld [vmem:[%s1 + $0x1b0] sm:$0xf]
      %v1930 = vld [vmem:[%s1 + $0x1b4] sm:$0xf]
      %v1931 = vld [vmem:[%s1 + $0x1b8] sm:$0xf]
      %v1932 = vld [vmem:[%s1 + $0x1bc] sm:$0xf]
      %v1933 = vld [vmem:[%s1 + $0x1c0] sm:$0xf]
      %v1934 = vld [vmem:[%s1 + $0x1c4] sm:$0xf]
      %v1935 = vld [vmem:[%s1 + $0x1c8] sm:$0xf]
      %v1936 = vld [vmem:[%s1 + $0x1cc] sm:$0xf]
      %v1937 = vld [vmem:[%s1 + $0x1d0] sm:$0xf]
      %v1938 = vld [vmem:[%s1 + $0x1d4] sm:$0xf]
      %v1939 = vld [vmem:[%s1 + $0x1d8] sm:$0xf]
      %v1940 = vld [vmem:[%s1 + $0x1dc] sm:$0xf]
      %v1941 = vld [vmem:[%s1 + $0x1e0] sm:$0xf]
      %v1942 = vld [vmem:[%s1 + $0x1e4] sm:$0xf]
      %v1943 = vld [vmem:[%s1 + $0x1e8] sm:$0xf]
      %v1944 = vld [vmem:[%s1 + $0x1ec] sm:$0xf]
      %v1945 = vld [vmem:[%s1 + $0x1f0] sm:$0xf]
      %v1946 = vld [vmem:[%s1 + $0x1f4] sm:$0xf]
      %v1947 = vld [vmem:[%s1 + $0x1f8] sm:$0xf]
      %v1948 = vld [vmem:[%s1 + $0x1fc] sm:$0xf]
      %v1949 = vld [vmem:[%s1 + $0x200] sm:$0xf]
      %v1950 = vld [vmem:[%s1 + $0x204] sm:$0xf]
      %v1951 = vld [vmem:[%s1 + $0x208] sm:$0xf]
      %v1952 = vld [vmem:[%s1 + $0x20c] sm:$0xf]
      %v1953 = vld [vmem:[%s1 + $0x210] sm:$0xf]
      %v1954 = vld [vmem:[%s1 + $0x214] sm:$0xf]
      %v1955 = vld [vmem:[%s1 + $0x218] sm:$0xf]
      %v1956 = vld [vmem:[%s1 + $0x21c] sm:$0xf]
      %v1957 = vld [vmem:[%s1 + $0x220] sm:$0xf]
      %v1958 = vld [vmem:[%s1 + $0x224] sm:$0xf]
      %v1959 = vld [vmem:[%s1 + $0x228] sm:$0xf]
      %v1960 = vld [vmem:[%s1 + $0x22c] sm:$0xf]
      %v1961 = vld [vmem:[%s1 + $0x230] sm:$0xf]
      %v1962 = vld [vmem:[%s1 + $0x234] sm:$0xf]
      %v1963 = vld [vmem:[%s1 + $0x238] sm:$0xf]
      %v1964 = vld [vmem:[%s1 + $0x23c] sm:$0xf]
      %v1965 = vld [vmem:[%s1 + $0x240] sm:$0xf]
      %v1966 = vld [vmem:[%s1 + $0x244] sm:$0xf]
      %v1967 = vld [vmem:[%s1 + $0x248] sm:$0xf]
      %v1968 = vld [vmem:[%s1 + $0x24c] sm:$0xf]
      %v1969 = vld [vmem:[%s1 + $0x250] sm:$0xf]
      %v1970 = vld [vmem:[%s1 + $0x254] sm:$0xf]
      %v1971 = vld [vmem:[%s1 + $0x258] sm:$0xf]
      %v1972 = vld [vmem:[%s1 + $0x25c] sm:$0xf]
      %v1973 = vld [vmem:[%s1 + $0x260] sm:$0xf]
      %v1974 = vld [vmem:[%s1 + $0x264] sm:$0xf]
      %v1975 = vld [vmem:[%s1 + $0x268] sm:$0xf]
      %v1976 = vld [vmem:[%s1 + $0x26c] sm:$0xf]
      %v1977 = vld [vmem:[%s1 + $0x270] sm:$0xf]
      %v1978 = vld [vmem:[%s1 + $0x274] sm:$0xf]
      %v1979 = vld [vmem:[%s1 + $0x278] sm:$0xf]
      %v1980 = vld [vmem:[%s1 + $0x27c] sm:$0xf]
      %v1981 = vld [vmem:[%s1 + $0x280] sm:$0xf]
      %v1982 = vld [vmem:[%s1 + $0x284] sm:$0xf]
      %v1983 = vld [vmem:[%s1 + $0x288] sm:$0xf]
      %v1984 = vld [vmem:[%s1 + $0x28c] sm:$0xf]
      %v1985 = vld [vmem:[%s1 + $0x290] sm:$0xf]
      %v1986 = vld [vmem:[%s1 + $0x294] sm:$0xf]
      %v1987 = vld [vmem:[%s1 + $0x298] sm:$0xf]
      %v1988 = vld [vmem:[%s1 + $0x29c] sm:$0xf]
      %v1989 = vld [vmem:[%s1 + $0x2a0] sm:$0xf]
      %v1990 = vld [vmem:[%s1 + $0x2a4] sm:$0xf]
      %v1991 = vld [vmem:[%s1 + $0x2a8] sm:$0xf]
      %v1992 = vld [vmem:[%s1 + $0x2ac] sm:$0xf]
      %v1993 = vld [vmem:[%s1 + $0x2b0] sm:$0xf]
      %v1994 = vld [vmem:[%s1 + $0x2b4] sm:$0xf]
      %v1995 = vld [vmem:[%s1 + $0x2b8] sm:$0xf]
      %v1996 = vld [vmem:[%s1 + $0x2bc] sm:$0xf]
      %v1997 = vld [vmem:[%s1 + $0x2c0] sm:$0xf]
      %v1998 = vld [vmem:[%s1 + $0x2c4] sm:$0xf]
      %v1999 = vld [vmem:[%s1 + $0x2c8] sm:$0xf]
      %v2000 = vld [vmem:[%s1 + $0x2cc] sm:$0xf]
      %v2001 = vld [vmem:[%s1 + $0x2d0] sm:$0xf]
      %v2002 = vld [vmem:[%s1 + $0x2d4] sm:$0xf]
      %v2003 = vld [vmem:[%s1 + $0x2d8] sm:$0xf]
      %v2004 = vld [vmem:[%s1 + $0x2dc] sm:$0xf]
      %v2005 = vld [vmem:[%s1 + $0x2e0] sm:$0xf]
      %v2006 = vld [vmem:[%s1 + $0x2e4] sm:$0xf]
      %v2007 = vld [vmem:[%s1 + $0x2e8] sm:$0xf]
      %v2008 = vld [vmem:[%s1 + $0x2ec] sm:$0xf]
      %v2009 = vld [vmem:[%s1 + $0x2f0] sm:$0xf]
      %v2010 = vld [vmem:[%s1 + $0x2f4] sm:$0xf]
      %v2011 = vld [vmem:[%s1 + $0x2f8] sm:$0xf]
      %v2012 = vld [vmem:[%s1 + $0x2fc] sm:$0xf]
      %v2013 = vld [vmem:[%s1 + $0x300] sm:$0xf]
      %v2014 = vld [vmem:[%s1 + $0x304] sm:$0xf]
      %v2015 = vld [vmem:[%s1 + $0x308] sm:$0xf]
      %v2016 = vld [vmem:[%s1 + $0x30c] sm:$0xf]
      %v2017 = vld [vmem:[%s1 + $0x310] sm:$0xf]
      %v2018 = vld [vmem:[%s1 + $0x314] sm:$0xf]
      %v2019 = vld [vmem:[%s1 + $0x318] sm:$0xf]
      %v2020 = vld [vmem:[%s1 + $0x31c] sm:$0xf]
      %v2021 = vld [vmem:[%s1 + $0x320] sm:$0xf]
      %v2022 = vld [vmem:[%s1 + $0x324] sm:$0xf]
      %v2023 = vld [vmem:[%s1 + $0x328] sm:$0xf]
      %v2024 = vld [vmem:[%s1 + $0x32c] sm:$0xf]
      %v2025 = vld [vmem:[%s1 + $0x330] sm:$0xf]
      %v2026 = vld [vmem:[%s1 + $0x334] sm:$0xf]
      %v2027 = vld [vmem:[%s1 + $0x338] sm:$0xf]
      %v2028 = vld [vmem:[%s1 + $0x33c] sm:$0xf]
      %v2029 = vld [vmem:[%s1 + $0x340] sm:$0xf]
      %v2030 = vld [vmem:[%s1 + $0x344] sm:$0xf]
      %v2031 = vld [vmem:[%s1 + $0x348] sm:$0xf]
      %v2032 = vld [vmem:[%s1 + $0x34c] sm:$0xf]
      %v2033 = vld [vmem:[%s1 + $0x350] sm:$0xf]
      %v2034 = vld [vmem:[%s1 + $0x354] sm:$0xf]
      %v2035 = vld [vmem:[%s1 + $0x358] sm:$0xf]
      %v2036 = vld [vmem:[%s1 + $0x35c] sm:$0xf]
      %v2037 = vld [vmem:[%s1 + $0x360] sm:$0xf]
      %v2038 = vld [vmem:[%s1 + $0x364] sm:$0xf]
      %v2039 = vld [vmem:[%s1 + $0x368] sm:$0xf]
      %v2040 = vld [vmem:[%s1 + $0x36c] sm:$0xf]
      %v2041 = vld [vmem:[%s1 + $0x370] sm:$0xf]
      %v2042 = vld [vmem:[%s1 + $0x374] sm:$0xf]
      %v2043 = vld [vmem:[%s1 + $0x378] sm:$0xf]
      %v2044 = vld [vmem:[%s1 + $0x37c] sm:$0xf]
      %v2045 = vld [vmem:[%s1 + $0x380] sm:$0xf]
      %v2046 = vld [vmem:[%s1 + $0x384] sm:$0xf]
      %v2047 = vld [vmem:[%s1 + $0x388] sm:$0xf]
      %v2048 = vld [vmem:[%s1 + $0x38c] sm:$0xf]
      %v2049 = vld [vmem:[%s1 + $0x390] sm:$0xf]
      %v2050 = vld [vmem:[%s1 + $0x394] sm:$0xf]
      %v2051 = vld [vmem:[%s1 + $0x398] sm:$0xf]
      %v2052 = vld [vmem:[%s1 + $0x39c] sm:$0xf]
      %v2053 = vld [vmem:[%s1 + $0x3a0] sm:$0xf]
      %v2054 = vld [vmem:[%s1 + $0x3a4] sm:$0xf]
      %v2055 = vld [vmem:[%s1 + $0x3a8] sm:$0xf]
      %v2056 = vld [vmem:[%s1 + $0x3ac] sm:$0xf]
      %v2057 = vld [vmem:[%s1 + $0x3b0] sm:$0xf]
      %v2058 = vld [vmem:[%s1 + $0x3b4] sm:$0xf]
      %v2059 = vld [vmem:[%s1 + $0x3b8] sm:$0xf]
      %v2060 = vld [vmem:[%s1 + $0x3bc] sm:$0xf]
      %v2061 = vld [vmem:[%s1 + $0x3c0] sm:$0xf]
      %v2062 = vld [vmem:[%s1 + $0x3c4] sm:$0xf]
      %v2063 = vld [vmem:[%s1 + $0x3c8] sm:$0xf]
      %v2064 = vld [vmem:[%s1 + $0x3cc] sm:$0xf]
      %v2065 = vld [vmem:[%s1 + $0x3d0] sm:$0xf]
      %v2066 = vld [vmem:[%s1 + $0x3d4] sm:$0xf]
      %v2067 = vld [vmem:[%s1 + $0x3d8] sm:$0xf]
      %v2068 = vld [vmem:[%s1 + $0x3dc] sm:$0xf]
      %v2069 = vld [vmem:[%s1 + $0x3e0] sm:$0xf]
      %v2070 = vld [vmem:[%s1 + $0x3e4] sm:$0xf]
      %v2071 = vld [vmem:[%s1 + $0x3e8] sm:$0xf]
      %v2072 = vld [vmem:[%s1 + $0x3ec] sm:$0xf]
      %v2073 = vld [vmem:[%s1 + $0x3f0] sm:$0xf]
      %v2074 = vld [vmem:[%s1 + $0x3f4] sm:$0xf]
      %v2075 = vld [vmem:[%s1 + $0x3f8] sm:$0xf]
      %v2076 = vld [vmem:[%s1 + $0x3fc] sm:$0xf]
      %v2077 = vld [vmem:[%s1 + $0x400] sm:$0xf]
      %v2078 = vld [vmem:[%s1 + $0x404] sm:$0xf]
      %v2079 = vld [vmem:[%s1 + $0x408] sm:$0xf]
      %v2080 = vld [vmem:[%s1 + $0x40c] sm:$0xf]
      %v2081 = vld [vmem:[%s1 + $0x410] sm:$0xf]
      %v2082 = vld [vmem:[%s1 + $0x414] sm:$0xf]
      %v2083 = vld [vmem:[%s1 + $0x418] sm:$0xf]
      %v2084 = vld [vmem:[%s1 + $0x41c] sm:$0xf]
      %v2085 = vld [vmem:[%s1 + $0x420] sm:$0xf]
      %v2086 = vld [vmem:[%s1 + $0x424] sm:$0xf]
      %v2087 = vld [vmem:[%s1 + $0x428] sm:$0xf]
      %v2088 = vld [vmem:[%s1 + $0x42c] sm:$0xf]
      %v2089 = vld [vmem:[%s1 + $0x430] sm:$0xf]
      %v2090 = vld [vmem:[%s1 + $0x434] sm:$0xf]
      %v2091 = vld [vmem:[%s1 + $0x438] sm:$0xf]
      %v2092 = vld [vmem:[%s1 + $0x43c] sm:$0xf]
      %v2093 = vld [vmem:[%s1 + $0x440] sm:$0xf]
      %v2094 = vld [vmem:[%s1 + $0x444] sm:$0xf]
      %v2095 = vld [vmem:[%s1 + $0x448] sm:$0xf]
      %v2096 = vld [vmem:[%s1 + $0x44c] sm:$0xf]
      %v2097 = vld [vmem:[%s1 + $0x450] sm:$0xf]
      %v2098 = vld [vmem:[%s1 + $0x454] sm:$0xf]
      %v2099 = vld [vmem:[%s1 + $0x458] sm:$0xf]
      %v2100 = vld [vmem:[%s1 + $0x45c] sm:$0xf]
      %v2101 = vld [vmem:[%s1 + $0x460] sm:$0xf]
      %v2102 = vld [vmem:[%s1 + $0x464] sm:$0xf]
      %v2103 = vld [vmem:[%s1 + $0x468] sm:$0xf]
      %v2104 = vld [vmem:[%s1 + $0x46c] sm:$0xf]
      %v2105 = vld [vmem:[%s1 + $0x470] sm:$0xf]
      %v2106 = vld [vmem:[%s1 + $0x474] sm:$0xf]
      %v2107 = vld [vmem:[%s1 + $0x478] sm:$0xf]
      %v2108 = vld [vmem:[%s1 + $0x47c] sm:$0xf]
      %v2109 = vld [vmem:[%s1 + $0x480] sm:$0xf]
      %v2110 = vld [vmem:[%s1 + $0x484] sm:$0xf]
      %v2111 = vld [vmem:[%s1 + $0x488] sm:$0xf]
      %v2112 = vld [vmem:[%s1 + $0x48c] sm:$0xf]
      %v2113 = vld [vmem:[%s1 + $0x490] sm:$0xf]
      %v2114 = vld [vmem:[%s1 + $0x494] sm:$0xf]
      %v2115 = vld [vmem:[%s1 + $0x498] sm:$0xf]
      %v2116 = vld [vmem:[%s1 + $0x49c] sm:$0xf]
      %v2117 = vld [vmem:[%s1 + $0x4a0] sm:$0xf]
      %v2118 = vld [vmem:[%s1 + $0x4a4] sm:$0xf]
      %v2119 = vld [vmem:[%s1 + $0x4a8] sm:$0xf]
      %v2120 = vld [vmem:[%s1 + $0x4ac] sm:$0xf]
      %v2121 = vld [vmem:[%s1 + $0x4b0] sm:$0xf]
      %v2122 = vld [vmem:[%s1 + $0x4b4] sm:$0xf]
      %v2123 = vld [vmem:[%s1 + $0x4b8] sm:$0xf]
      %v2124 = vld [vmem:[%s1 + $0x4bc] sm:$0xf]
      %v2125 = vld [vmem:[%s1 + $0x4c0] sm:$0xf]
      %v2126 = vld [vmem:[%s1 + $0x4c4] sm:$0xf]
      %v2127 = vld [vmem:[%s1 + $0x4c8] sm:$0xf]
      %v2128 = vld [vmem:[%s1 + $0x4cc] sm:$0xf]
      %v2129 = vld [vmem:[%s1 + $0x4d0] sm:$0xf]
      %v2130 = vld [vmem:[%s1 + $0x4d4] sm:$0xf]
      %v2131 = vld [vmem:[%s1 + $0x4d8] sm:$0xf]
      %v2132 = vld [vmem:[%s1 + $0x4dc] sm:$0xf]
      %v2133 = vld [vmem:[%s1 + $0x4e0] sm:$0xf]
      %v2134 = vld [vmem:[%s1 + $0x4e4] sm:$0xf]
      %v2135 = vld [vmem:[%s1 + $0x4e8] sm:$0xf]
      %v2136 = vld [vmem:[%s1 + $0x4ec] sm:$0xf]
      %v2137 = vld [vmem:[%s1 + $0x4f0] sm:$0xf]
      %v2138 = vld [vmem:[%s1 + $0x4f4] sm:$0xf]
      %v2139 = vld [vmem:[%s1 + $0x4f8] sm:$0xf]
      %v2140 = vld [vmem:[%s1 + $0x4fc] sm:$0xf]
      %v2141 = vld [vmem:[%s1 + $0x500] sm:$0xf]
      %v2142 = vld [vmem:[%s1 + $0x504] sm:$0xf]
      %v2143 = vld [vmem:[%s1 + $0x508] sm:$0xf]
      %v2144 = vld [vmem:[%s1 + $0x50c] sm:$0xf]
      %v2145 = vld [vmem:[%s1 + $0x510] sm:$0xf]
      %v2146 = vld [vmem:[%s1 + $0x514] sm:$0xf]
      %v2147 = vld [vmem:[%s1 + $0x518] sm:$0xf]
      %v2148 = vld [vmem:[%s1 + $0x51c] sm:$0xf]
      %v2149 = vld [vmem:[%s1 + $0x520] sm:$0xf]
      %v2150 = vld [vmem:[%s1 + $0x524] sm:$0xf]
      %v2151 = vld [vmem:[%s1 + $0x528] sm:$0xf]
      %v2152 = vld [vmem:[%s1 + $0x52c] sm:$0xf]
      %v2153 = vld [vmem:[%s1 + $0x530] sm:$0xf]
      %v2154 = vld [vmem:[%s1 + $0x534] sm:$0xf]
      %v2155 = vld [vmem:[%s1 + $0x538] sm:$0xf]
      %v2156 = vld [vmem:[%s1 + $0x53c] sm:$0xf]
      %v2157 = vld [vmem:[%s1 + $0x540] sm:$0xf]
      %v2158 = vld [vmem:[%s1 + $0x544] sm:$0xf]
      %v2159 = vld [vmem:[%s1 + $0x548] sm:$0xf]
      %v2160 = vld [vmem:[%s1 + $0x54c] sm:$0xf]
      %v2161 = vld [vmem:[%s1 + $0x550] sm:$0xf]
      %v2162 = vld [vmem:[%s1 + $0x554] sm:$0xf]
      %v2163 = vld [vmem:[%s1 + $0x558] sm:$0xf]
      %v2164 = vld [vmem:[%s1 + $0x55c] sm:$0xf]
      %v2165 = vld [vmem:[%s1 + $0x560] sm:$0xf]
      %v2166 = vld [vmem:[%s1 + $0x564] sm:$0xf]
      %v2167 = vld [vmem:[%s1 + $0x568] sm:$0xf]
      %v2168 = vld [vmem:[%s1 + $0x56c] sm:$0xf]
      %v2169 = vld [vmem:[%s1 + $0x570] sm:$0xf]
      %v2170 = vld [vmem:[%s1 + $0x574] sm:$0xf]
      %v2171 = vld [vmem:[%s1 + $0x578] sm:$0xf]
      %v2172 = vld [vmem:[%s1 + $0x57c] sm:$0xf]
      %v2173 = vld [vmem:[%s1 + $0x580] sm:$0xf]
      %v2174 = vld [vmem:[%s1 + $0x584] sm:$0xf]
      %v2175 = vld [vmem:[%s1 + $0x588] sm:$0xf]
      %v2176 = vld [vmem:[%s1 + $0x58c] sm:$0xf]
      %v2177 = vld [vmem:[%s1 + $0x590] sm:$0xf]
      %v2178 = vld [vmem:[%s1 + $0x594] sm:$0xf]
      %v2179 = vld [vmem:[%s1 + $0x598] sm:$0xf]
      %v2180 = vld [vmem:[%s1 + $0x59c] sm:$0xf]
      %v2181 = vld [vmem:[%s1 + $0x5a0] sm:$0xf]
      %v2182 = vld [vmem:[%s1 + $0x5a4] sm:$0xf]
      %v2183 = vld [vmem:[%s1 + $0x5a8] sm:$0xf]
      %v2184 = vld [vmem:[%s1 + $0x5ac] sm:$0xf]
      %v2185 = vld [vmem:[%s1 + $0x5b0] sm:$0xf]
      %v2186 = vld [vmem:[%s1 + $0x5b4] sm:$0xf]
      %v2187 = vld [vmem:[%s1 + $0x5b8] sm:$0xf]
      %v2188 = vld [vmem:[%s1 + $0x5bc] sm:$0xf]
      %v2189 = vld [vmem:[%s1 + $0x5c0] sm:$0xf]
      %v2190 = vld [vmem:[%s1 + $0x5c4] sm:$0xf]
      %v2191 = vld [vmem:[%s1 + $0x5c8] sm:$0xf]
      %v2192 = vld [vmem:[%s1 + $0x5cc] sm:$0xf]
      %v2193 = vld [vmem:[%s1 + $0x5d0] sm:$0xf]
      %v2194 = vld [vmem:[%s1 + $0x5d4] sm:$0xf]
      %v2195 = vld [vmem:[%s1 + $0x5d8] sm:$0xf]
      %v2196 = vld [vmem:[%s1 + $0x5dc] sm:$0xf]
      %v2197 = vld [vmem:[%s1 + $0x5e0] sm:$0xf]
      %v2198 = vld [vmem:[%s1 + $0x5e4] sm:$0xf]
      %v2199 = vld [vmem:[%s1 + $0x5e8] sm:$0xf]
      %v2200 = vld [vmem:[%s1 + $0x5ec] sm:$0xf]
      %v2201 = vld [vmem:[%s1 + $0x5f0] sm:$0xf]
      %v2202 = vld [vmem:[%s1 + $0x5f4] sm:$0xf]
      %v2203 = vld [vmem:[%s1 + $0x5f8] sm:$0xf]
      %v2204 = vld [vmem:[%s1 + $0x5fc] sm:$0xf]
      %v2205 = vld [vmem:[%s1 + $0x600] sm:$0xf]
      %v2206 = vld [vmem:[%s1 + $0x604] sm:$0xf]
      %v2207 = vld [vmem:[%s1 + $0x608] sm:$0xf]
      %v2208 = vld [vmem:[%s1 + $0x60c] sm:$0xf]
      %v2209 = vld [vmem:[%s1 + $0x610] sm:$0xf]
      %v2210 = vld [vmem:[%s1 + $0x614] sm:$0xf]
      %v2211 = vld [vmem:[%s1 + $0x618] sm:$0xf]
      %v2212 = vld [vmem:[%s1 + $0x61c] sm:$0xf]
      %v2213 = vld [vmem:[%s1 + $0x620] sm:$0xf]
      %v2214 = vld [vmem:[%s1 + $0x624] sm:$0xf]
      %v2215 = vld [vmem:[%s1 + $0x628] sm:$0xf]
      %v2216 = vld [vmem:[%s1 + $0x62c] sm:$0xf]
      %v2217 = vld [vmem:[%s1 + $0x630] sm:$0xf]
      %v2218 = vld [vmem:[%s1 + $0x634] sm:$0xf]
      %v2219 = vld [vmem:[%s1 + $0x638] sm:$0xf]
      %v2220 = vld [vmem:[%s1 + $0x63c] sm:$0xf]
      %v2221 = vld [vmem:[%s1 + $0x640] sm:$0xf]
      %v2222 = vld [vmem:[%s1 + $0x644] sm:$0xf]
      %v2223 = vld [vmem:[%s1 + $0x648] sm:$0xf]
      %v2224 = vld [vmem:[%s1 + $0x64c] sm:$0xf]
      %v2225 = vld [vmem:[%s1 + $0x650] sm:$0xf]
      %v2226 = vld [vmem:[%s1 + $0x654] sm:$0xf]
      %v2227 = vld [vmem:[%s1 + $0x658] sm:$0xf]
      %v2228 = vld [vmem:[%s1 + $0x65c] sm:$0xf]
      %v2229 = vld [vmem:[%s1 + $0x660] sm:$0xf]
      %v2230 = vld [vmem:[%s1 + $0x664] sm:$0xf]
      %v2231 = vld [vmem:[%s1 + $0x668] sm:$0xf]
      %v2232 = vld [vmem:[%s1 + $0x66c] sm:$0xf]
      %v2233 = vld [vmem:[%s1 + $0x670] sm:$0xf]
      %v2234 = vld [vmem:[%s1 + $0x674] sm:$0xf]
      %v2235 = vld [vmem:[%s1 + $0x678] sm:$0xf]
      %v2236 = vld [vmem:[%s1 + $0x67c] sm:$0xf]
      %v2237 = vld [vmem:[%s1 + $0x680] sm:$0xf]
      %v2238 = vld [vmem:[%s1 + $0x684] sm:$0xf]
      %v2239 = vld [vmem:[%s1 + $0x688] sm:$0xf]
      %v2240 = vld [vmem:[%s1 + $0x68c] sm:$0xf]
      %v2241 = vld [vmem:[%s1 + $0x690] sm:$0xf]
      %v2242 = vld [vmem:[%s1 + $0x694] sm:$0xf]
      %v2243 = vld [vmem:[%s1 + $0x698] sm:$0xf]
      %v2244 = vld [vmem:[%s1 + $0x69c] sm:$0xf]
      %v2245 = vld [vmem:[%s1 + $0x6a0] sm:$0xf]
      %v2246 = vld [vmem:[%s1 + $0x6a4] sm:$0xf]
      %v2247 = vld [vmem:[%s1 + $0x6a8] sm:$0xf]
      %v2248 = vld [vmem:[%s1 + $0x6ac] sm:$0xf]
      %v2249 = vld [vmem:[%s1 + $0x6b0] sm:$0xf]
      %v2250 = vld [vmem:[%s1 + $0x6b4] sm:$0xf]
      %v2251 = vld [vmem:[%s1 + $0x6b8] sm:$0xf]
      %v2252 = vld [vmem:[%s1 + $0x6bc] sm:$0xf]
      %v2253 = vld [vmem:[%s1 + $0x6c0] sm:$0xf]
      %v2254 = vld [vmem:[%s1 + $0x6c4] sm:$0xf]
      %v2255 = vld [vmem:[%s1 + $0x6c8] sm:$0xf]
      %v2256 = vld [vmem:[%s1 + $0x6cc] sm:$0xf]
      %v2257 = vld [vmem:[%s1 + $0x6d0] sm:$0xf]
      %v2258 = vld [vmem:[%s1 + $0x6d4] sm:$0xf]
      %v2259 = vld [vmem:[%s1 + $0x6d8] sm:$0xf]
      %v2260 = vld [vmem:[%s1 + $0x6dc] sm:$0xf]
      %v2261 = vld [vmem:[%s1 + $0x6e0] sm:$0xf]
      %v2262 = vld [vmem:[%s1 + $0x6e4] sm:$0xf]
      %v2263 = vld [vmem:[%s1 + $0x6e8] sm:$0xf]
      %v2264 = vld [vmem:[%s1 + $0x6ec] sm:$0xf]
      %v2265 = vld [vmem:[%s1 + $0x6f0] sm:$0xf]
      %v2266 = vld [vmem:[%s1 + $0x6f4] sm:$0xf]
      %v2267 = vld [vmem:[%s1 + $0x6f8] sm:$0xf]
      %v2268 = vld [vmem:[%s1 + $0x6fc] sm:$0xf]
      %v2269 = vld [vmem:[%s1 + $0x700] sm:$0xf]
      %v2270 = vld [vmem:[%s1 + $0x704] sm:$0xf]
      %v2271 = vld [vmem:[%s1 + $0x708] sm:$0xf]
      %v2272 = vld [vmem:[%s1 + $0x70c] sm:$0xf]
      %v2273 = vld [vmem:[%s1 + $0x710] sm:$0xf]
      %v2274 = vld [vmem:[%s1 + $0x714] sm:$0xf]
      %v2275 = vld [vmem:[%s1 + $0x718] sm:$0xf]
      %v2276 = vld [vmem:[%s1 + $0x71c] sm:$0xf]
      %v2277 = vld [vmem:[%s1 + $0x720] sm:$0xf]
      %v2278 = vld [vmem:[%s1 + $0x724] sm:$0xf]
      %v2279 = vld [vmem:[%s1 + $0x728] sm:$0xf]
      %v2280 = vld [vmem:[%s1 + $0x72c] sm:$0xf]
      %v2281 = vld [vmem:[%s1 + $0x730] sm:$0xf]
      %v2282 = vld [vmem:[%s1 + $0x734] sm:$0xf]
      %v2283 = vld [vmem:[%s1 + $0x738] sm:$0xf]
      %v2284 = vld [vmem:[%s1 + $0x73c] sm:$0xf]
      %v2285 = vld [vmem:[%s1 + $0x740] sm:$0xf]
      %v2286 = vld [vmem:[%s1 + $0x744] sm:$0xf]
      %v2287 = vld [vmem:[%s1 + $0x748] sm:$0xf]
      %v2288 = vld [vmem:[%s1 + $0x74c] sm:$0xf]
      %v2289 = vld [vmem:[%s1 + $0x750] sm:$0xf]
      %v2290 = vld [vmem:[%s1 + $0x754] sm:$0xf]
      %v2291 = vld [vmem:[%s1 + $0x758] sm:$0xf]
      %v2292 = vld [vmem:[%s1 + $0x75c] sm:$0xf]
      %v2293 = vld [vmem:[%s1 + $0x760] sm:$0xf]
      %v2294 = vld [vmem:[%s1 + $0x764] sm:$0xf]
      %v2295 = vld [vmem:[%s1 + $0x768] sm:$0xf]
      %v2296 = vld [vmem:[%s1 + $0x76c] sm:$0xf]
      %v2297 = vld [vmem:[%s1 + $0x770] sm:$0xf]
      %v2298 = vld [vmem:[%s1 + $0x774] sm:$0xf]
      %v2299 = vld [vmem:[%s1 + $0x778] sm:$0xf]
      %v2300 = vld [vmem:[%s1 + $0x77c] sm:$0xf]
      %v2301 = vld [vmem:[%s1 + $0x780] sm:$0xf]
      %v2302 = vld [vmem:[%s1 + $0x784] sm:$0xf]
      %v2303 = vld [vmem:[%s1 + $0x788] sm:$0xf]
      %v2304 = vld [vmem:[%s1 + $0x78c] sm:$0xf]
      %v2305 = vld [vmem:[%s1 + $0x790] sm:$0xf]
      %v2306 = vld [vmem:[%s1 + $0x794] sm:$0xf]
      %v2307 = vld [vmem:[%s1 + $0x798] sm:$0xf]
      %v2308 = vld [vmem:[%s1 + $0x79c] sm:$0xf]
      %v2309 = vld [vmem:[%s1 + $0x7a0] sm:$0xf]
      %v2310 = vld [vmem:[%s1 + $0x7a4] sm:$0xf]
      %v2311 = vld [vmem:[%s1 + $0x7a8] sm:$0xf]
      %v2312 = vld [vmem:[%s1 + $0x7ac] sm:$0xf]
      %v2313 = vld [vmem:[%s1 + $0x7b0] sm:$0xf]
      %v2314 = vld [vmem:[%s1 + $0x7b4] sm:$0xf]
      %v2315 = vld [vmem:[%s1 + $0x7b8] sm:$0xf]
      %v2316 = vld [vmem:[%s1 + $0x7bc] sm:$0xf]
      %v2317 = vld [vmem:[%s1 + $0x7c0] sm:$0xf]
      %v2318 = vld [vmem:[%s1 + $0x7c4] sm:$0xf]
      %v2319 = vld [vmem:[%s1 + $0x7c8] sm:$0xf]
      %v2320 = vld [vmem:[%s1 + $0x7cc] sm:$0xf]
      %v2321 = vld [vmem:[%s1 + $0x7d0] sm:$0xf]
      %v2322 = vld [vmem:[%s1 + $0x7d4] sm:$0xf]
      %v2323 = vld [vmem:[%s1 + $0x7d8] sm:$0xf]
      %v2324 = vld [vmem:[%s1 + $0x7dc] sm:$0xf]
      %v2325 = vld [vmem:[%s1 + $0x7e0] sm:$0xf]
      %v2326 = vld [vmem:[%s1 + $0x7e4] sm:$0xf]
      %v2327 = vld [vmem:[%s1 + $0x7e8] sm:$0xf]
      %v2328 = vld [vmem:[%s1 + $0x7ec] sm:$0xf]
      %v2329 = vld [vmem:[%s1 + $0x7f0] sm:$0xf]
      %v2330 = vld [vmem:[%s1 + $0x7f4] sm:$0xf]
      %v2331 = vld [vmem:[%s1 + $0x7f8] sm:$0xf]
      %v2332 = vld [vmem:[%s1 + $0x7fc] sm:$0xf]
      %v2333 = vld [vmem:[%s1 + $0x800] sm:$0xf]
      %v2334 = vld [vmem:[%s1 + $0x804] sm:$0xf]
      %v2335 = vld [vmem:[%s1 + $0x808] sm:$0xf]
      %v2336 = vld [vmem:[%s1 + $0x80c] sm:$0xf]
      %v2337 = vld [vmem:[%s1 + $0x810] sm:$0xf]
      %v2338 = vld [vmem:[%s1 + $0x814] sm:$0xf]
      %v2339 = vld [vmem:[%s1 + $0x818] sm:$0xf]
      %v2340 = vld [vmem:[%s1 + $0x81c] sm:$0xf]
      %v2341 = vld [vmem:[%s1 + $0x820] sm:$0xf]
      %v2342 = vld [vmem:[%s1 + $0x824] sm:$0xf]
      %v2343 = vld [vmem:[%s1 + $0x828] sm:$0xf]
      %v2344 = vld [vmem:[%s1 + $0x82c] sm:$0xf]
      %v2345 = vld [vmem:[%s1 + $0x830] sm:$0xf]
      %v2346 = vld [vmem:[%s1 + $0x834] sm:$0xf]
      %v2347 = vld [vmem:[%s1 + $0x838] sm:$0xf]
      %v2348 = vld [vmem:[%s1 + $0x83c] sm:$0xf]
      %v2349 = vld [vmem:[%s1 + $0x840] sm:$0xf]
      %v2350 = vld [vmem:[%s1 + $0x844] sm:$0xf]
      %v2351 = vld [vmem:[%s1 + $0x848] sm:$0xf]
      %v2352 = vld [vmem:[%s1 + $0x84c] sm:$0xf]
      %v2353 = vld [vmem:[%s1 + $0x850] sm:$0xf]
      %v2354 = vld [vmem:[%s1 + $0x854] sm:$0xf]
      %v2355 = vld [vmem:[%s1 + $0x858] sm:$0xf]
      %v2356 = vld [vmem:[%s1 + $0x85c] sm:$0xf]
      %v2357 = vld [vmem:[%s1 + $0x860] sm:$0xf]
      %v2358 = vld [vmem:[%s1 + $0x864] sm:$0xf]
      %v2359 = vld [vmem:[%s1 + $0x868] sm:$0xf]
      %v2360 = vld [vmem:[%s1 + $0x86c] sm:$0xf]
      %v2361 = vld [vmem:[%s1 + $0x870] sm:$0xf]
      %v2362 = vld [vmem:[%s1 + $0x874] sm:$0xf]
      %v2363 = vld [vmem:[%s1 + $0x878] sm:$0xf]
      %v2364 = vld [vmem:[%s1 + $0x87c] sm:$0xf]
      %v2365 = vld [vmem:[%s1 + $0x880] sm:$0xf]
      %v2366 = vld [vmem:[%s1 + $0x884] sm:$0xf]
      %v2367 = vld [vmem:[%s1 + $0x888] sm:$0xf]
      %v2368 = vld [vmem:[%s1 + $0x88c] sm:$0xf]
      %v2369 = vld [vmem:[%s1 + $0x890] sm:$0xf]
      %v2370 = vld [vmem:[%s1 + $0x894] sm:$0xf]
      %v2371 = vld [vmem:[%s1 + $0x898] sm:$0xf]
      %v2372 = vld [vmem:[%s1 + $0x89c] sm:$0xf]
      %v2373 = vld [vmem:[%s1 + $0x8a0] sm:$0xf]
      %v2374 = vld [vmem:[%s1 + $0x8a4] sm:$0xf]
      %v2375 = vld [vmem:[%s1 + $0x8a8] sm:$0xf]
      %v2376 = vld [vmem:[%s1 + $0x8ac] sm:$0xf]
      %v2377 = vld [vmem:[%s1 + $0x8b0] sm:$0xf]
      %v2378 = vld [vmem:[%s1 + $0x8b4] sm:$0xf]
      %v2379 = vld [vmem:[%s1 + $0x8b8] sm:$0xf]
      %v2380 = vld [vmem:[%s1 + $0x8bc] sm:$0xf]
      %v2381 = vld [vmem:[%s1 + $0x8c0] sm:$0xf]
      %v2382 = vld [vmem:[%s1 + $0x8c4] sm:$0xf]
      %v2383 = vld [vmem:[%s1 + $0x8c8] sm:$0xf]
      %v2384 = vld [vmem:[%s1 + $0x8cc] sm:$0xf]
      %v2385 = vld [vmem:[%s1 + $0x8d0] sm:$0xf]
      %v2386 = vld [vmem:[%s1 + $0x8d4] sm:$0xf]
      %v2387 = vld [vmem:[%s1 + $0x8d8] sm:$0xf]
      %v2388 = vld [vmem:[%s1 + $0x8dc] sm:$0xf]
      %v2389 = vld [vmem:[%s1 + $0x8e0] sm:$0xf]
      %v2390 = vld [vmem:[%s1 + $0x8e4] sm:$0xf]
      %v2391 = vld [vmem:[%s1 + $0x8e8] sm:$0xf]
      %v2392 = vld [vmem:[%s1 + $0x8ec] sm:$0xf]
      %v2393 = vld [vmem:[%s1 + $0x8f0] sm:$0xf]
      %v2394 = vld [vmem:[%s1 + $0x8f4] sm:$0xf]
      %v2395 = vld [vmem:[%s1 + $0x8f8] sm:$0xf]
      %v2396 = vld [vmem:[%s1 + $0x8fc] sm:$0xf]
      %v2397 = vld [vmem:[%s1 + $0x900] sm:$0xf]
      %v2398 = vld [vmem:[%s1 + $0x904] sm:$0xf]
      %v2399 = vld [vmem:[%s1 + $0x908] sm:$0xf]
      %v2400 = vld [vmem:[%s1 + $0x90c] sm:$0xf]
      %v2401 = vld [vmem:[%s1 + $0x910] sm:$0xf]
      %v2402 = vld [vmem:[%s1 + $0x914] sm:$0xf]
      %v2403 = vld [vmem:[%s1 + $0x918] sm:$0xf]
      %v2404 = vld [vmem:[%s1 + $0x91c] sm:$0xf]
      %v2405 = vld [vmem:[%s1 + $0x920] sm:$0xf]
      %v2406 = vld [vmem:[%s1 + $0x924] sm:$0xf]
      %v2407 = vld [vmem:[%s1 + $0x928] sm:$0xf]
      %v2408 = vld [vmem:[%s1 + $0x92c] sm:$0xf]
      %v2409 = vld [vmem:[%s1 + $0x930] sm:$0xf]
      %v2410 = vld [vmem:[%s1 + $0x934] sm:$0xf]
      %v2411 = vld [vmem:[%s1 + $0x938] sm:$0xf]
      %v2412 = vld [vmem:[%s1 + $0x93c] sm:$0xf]
      %v2413 = vld [vmem:[%s1 + $0x940] sm:$0xf]
      %v2414 = vld [vmem:[%s1 + $0x944] sm:$0xf]
      %v2415 = vld [vmem:[%s1 + $0x948] sm:$0xf]
      %v2416 = vld [vmem:[%s1 + $0x94c] sm:$0xf]
      %v2417 = vld [vmem:[%s1 + $0x950] sm:$0xf]
      %v2418 = vld [vmem:[%s1 + $0x954] sm:$0xf]
      %v2419 = vld [vmem:[%s1 + $0x958] sm:$0xf]
      %v2420 = vld [vmem:[%s1 + $0x95c] sm:$0xf]
      %v2421 = vld [vmem:[%s1 + $0x960] sm:$0xf]
      %v2422 = vld [vmem:[%s1 + $0x964] sm:$0xf]
      %v2423 = vld [vmem:[%s1 + $0x968] sm:$0xf]
      %v2424 = vld [vmem:[%s1 + $0x96c] sm:$0xf]
      %v2425 = vld [vmem:[%s1 + $0x970] sm:$0xf]
      %v2426 = vld [vmem:[%s1 + $0x974] sm:$0xf]
      %v2427 = vld [vmem:[%s1 + $0x978] sm:$0xf]
      %v2428 = vld [vmem:[%s1 + $0x97c] sm:$0xf]
      %v2429 = vld [vmem:[%s1 + $0x980] sm:$0xf]
      %v2430 = vld [vmem:[%s1 + $0x984] sm:$0xf]
      %v2431 = vld [vmem:[%s1 + $0x988] sm:$0xf]
      %v2432 = vld [vmem:[%s1 + $0x98c] sm:$0xf]
      %v2433 = vld [vmem:[%s1 + $0x990] sm:$0xf]
      %v2434 = vld [vmem:[%s1 + $0x994] sm:$0xf]
      %v2435 = vld [vmem:[%s1 + $0x998] sm:$0xf]
      %v2436 = vld [vmem:[%s1 + $0x99c] sm:$0xf]
      %v2437 = vld [vmem:[%s1 + $0x9a0] sm:$0xf]
      %v2438 = vld [vmem:[%s1 + $0x9a4] sm:$0xf]
      %v2439 = vld [vmem:[%s1 + $0x9a8] sm:$0xf]
      %v2440 = vld [vmem:[%s1 + $0x9ac] sm:$0xf]
      %v2441 = vld [vmem:[%s1 + $0x9b0] sm:$0xf]
      %v2442 = vld [vmem:[%s1 + $0x9b4] sm:$0xf]
      %v2443 = vld [vmem:[%s1 + $0x9b8] sm:$0xf]
      %v2444 = vld [vmem:[%s1 + $0x9bc] sm:$0xf]
      %v2445 = vld [vmem:[%s1 + $0x9c0] sm:$0xf]
      %v2446 = vld [vmem:[%s1 + $0x9c4] sm:$0xf]
      %v2447 = vld [vmem:[%s1 + $0x9c8] sm:$0xf]
      %v2448 = vld [vmem:[%s1 + $0x9cc] sm:$0xf]
      %v2449 = vld [vmem:[%s1 + $0x9d0] sm:$0xf]
      %v2450 = vld [vmem:[%s1 + $0x9d4] sm:$0xf]
      %v2451 = vld [vmem:[%s1 + $0x9d8] sm:$0xf]
      %v2452 = vld [vmem:[%s1 + $0x9dc] sm:$0xf]
      %v2453 = vld [vmem:[%s1 + $0x9e0] sm:$0xf]
      %v2454 = vld [vmem:[%s1 + $0x9e4] sm:$0xf]
      %v2455 = vld [vmem:[%s1 + $0x9e8] sm:$0xf]
      %v2456 = vld [vmem:[%s1 + $0x9ec] sm:$0xf]
      %v2457 = vld [vmem:[%s1 + $0x9f0] sm:$0xf]
      %v2458 = vld [vmem:[%s1 + $0x9f4] sm:$0xf]
      %v2459 = vld [vmem:[%s1 + $0x9f8] sm:$0xf]
      %v2460 = vld [vmem:[%s1 + $0x9fc] sm:$0xf]
      %v2461 = vld [vmem:[%s1 + $0xa00] sm:$0xf]
      %v2462 = vld [vmem:[%s1 + $0xa04] sm:$0xf]
      %v2463 = vld [vmem:[%s1 + $0xa08] sm:$0xf]
      %v2464 = vld [vmem:[%s1 + $0xa0c] sm:$0xf]
      %v2465 = vld [vmem:[%s1 + $0xa10] sm:$0xf]
      %v2466 = vld [vmem:[%s1 + $0xa14] sm:$0xf]
      %v2467 = vld [vmem:[%s1 + $0xa18] sm:$0xf]
      %v2468 = vld [vmem:[%s1 + $0xa1c] sm:$0xf]
      %v2469 = vld [vmem:[%s1 + $0xa20] sm:$0xf]
      %v2470 = vld [vmem:[%s1 + $0xa24] sm:$0xf]
      %v2471 = vld [vmem:[%s1 + $0xa28] sm:$0xf]
      %v2472 = vld [vmem:[%s1 + $0xa2c] sm:$0xf]
      %v2473 = vld [vmem:[%s1 + $0xa30] sm:$0xf]
      %v2474 = vld [vmem:[%s1 + $0xa34] sm:$0xf]
      %v2475 = vld [vmem:[%s1 + $0xa38] sm:$0xf]
      %v2476 = vld [vmem:[%s1 + $0xa3c] sm:$0xf]
      %v2477 = vld [vmem:[%s1 + $0xa40] sm:$0xf]
      %v2478 = vld [vmem:[%s1 + $0xa44] sm:$0xf]
      %v2479 = vld [vmem:[%s1 + $0xa48] sm:$0xf]
      %v2480 = vld [vmem:[%s1 + $0xa4c] sm:$0xf]
      %v2481 = vld [vmem:[%s1 + $0xa50] sm:$0xf]
      %v2482 = vld [vmem:[%s1 + $0xa54] sm:$0xf]
      %v2483 = vld [vmem:[%s1 + $0xa58] sm:$0xf]
      %v2484 = vld [vmem:[%s1 + $0xa5c] sm:$0xf]
      %v2485 = vld [vmem:[%s1 + $0xa60] sm:$0xf]
      %v2486 = vld [vmem:[%s1 + $0xa64] sm:$0xf]
      %v2487 = vld [vmem:[%s1 + $0xa68] sm:$0xf]
      %v2488 = vld [vmem:[%s1 + $0xa6c] sm:$0xf]
      %v2489 = vld [vmem:[%s1 + $0xa70] sm:$0xf]
      %v2490 = vld [vmem:[%s1 + $0xa74] sm:$0xf]
      %v2491 = vld [vmem:[%s1 + $0xa78] sm:$0xf]
      %v2492 = vld [vmem:[%s1 + $0xa7c] sm:$0xf]
      %v2493 = vld [vmem:[%s1 + $0xa80] sm:$0xf]
      %v2494 = vld [vmem:[%s1 + $0xa84] sm:$0xf]
      %v2495 = vld [vmem:[%s1 + $0xa88] sm:$0xf]
      %v2496 = vld [vmem:[%s1 + $0xa8c] sm:$0xf]
      %v2497 = vld [vmem:[%s1 + $0xa90] sm:$0xf]
      %v2498 = vld [vmem:[%s1 + $0xa94] sm:$0xf]
      %v2499 = vld [vmem:[%s1 + $0xa98] sm:$0xf]
      %v2500 = vld [vmem:[%s1 + $0xa9c] sm:$0xf]
      %v2501 = vld [vmem:[%s1 + $0xaa0] sm:$0xf]
      %v2502 = vld [vmem:[%s1 + $0xaa4] sm:$0xf]
      %v2503 = vld [vmem:[%s1 + $0xaa8] sm:$0xf]
      %v2504 = vld [vmem:[%s1 + $0xaac] sm:$0xf]
      %v2505 = vld [vmem:[%s1 + $0xab0] sm:$0xf]
      %v2506 = vld [vmem:[%s1 + $0xab4] sm:$0xf]
      %v2507 = vld [vmem:[%s1 + $0xab8] sm:$0xf]
      %v2508 = vld [vmem:[%s1 + $0xabc] sm:$0xf]
      %v2509 = vld [vmem:[%s1 + $0xac0] sm:$0xf]
      %v2510 = vld [vmem:[%s1 + $0xac4] sm:$0xf]
      %v2511 = vld [vmem:[%s1 + $0xac8] sm:$0xf]
      %v2512 = vld [vmem:[%s1 + $0xacc] sm:$0xf]
      %v2513 = vld [vmem:[%s1 + $0xad0] sm:$0xf]
      %v2514 = vld [vmem:[%s1 + $0xad4] sm:$0xf]
      %v2515 = vld [vmem:[%s1 + $0xad8] sm:$0xf]
      %v2516 = vld [vmem:[%s1 + $0xadc] sm:$0xf]
      %v2517 = vld [vmem:[%s1 + $0xae0] sm:$0xf]
      %v2518 = vld [vmem:[%s1 + $0xae4] sm:$0xf]
      %v2519 = vld [vmem:[%s1 + $0xae8] sm:$0xf]
      %v2520 = vld [vmem:[%s1 + $0xaec] sm:$0xf]
      %v2521 = vld [vmem:[%s1 + $0xaf0] sm:$0xf]
      %v2522 = vld [vmem:[%s1 + $0xaf4] sm:$0xf]
      %v2523 = vld [vmem:[%s1 + $0xaf8] sm:$0xf]
      %v2524 = vld [vmem:[%s1 + $0xafc] sm:$0xf]
      %v2525 = vld [vmem:[%s1 + $0xb00] sm:$0xf]
      %v2526 = vld [vmem:[%s1 + $0xb04] sm:$0xf]
      %v2527 = vld [vmem:[%s1 + $0xb08] sm:$0xf]
      %v2528 = vld [vmem:[%s1 + $0xb0c] sm:$0xf]
      %v2529 = vld [vmem:[%s1 + $0xb10] sm:$0xf]
      %v2530 = vld [vmem:[%s1 + $0xb14] sm:$0xf]
      %v2531 = vld [vmem:[%s1 + $0xb18] sm:$0xf]
      %v2532 = vld [vmem:[%s1 + $0xb1c] sm:$0xf]
      %v2533 = vld [vmem:[%s1 + $0xb20] sm:$0xf]
      %v2534 = vld [vmem:[%s1 + $0xb24] sm:$0xf]
      %v2535 = vld [vmem:[%s1 + $0xb28] sm:$0xf]
      %v2536 = vld [vmem:[%s1 + $0xb2c] sm:$0xf]
      %v2537 = vld [vmem:[%s1 + $0xb30] sm:$0xf]
      %v2538 = vld [vmem:[%s1 + $0xb34] sm:$0xf]
      %v2539 = vld [vmem:[%s1 + $0xb38] sm:$0xf]
      %v2540 = vld [vmem:[%s1 + $0xb3c] sm:$0xf]
      %v2541 = vld [vmem:[%s1 + $0xb40] sm:$0xf]
      %v2542 = vld [vmem:[%s1 + $0xb44] sm:$0xf]
      %v2543 = vld [vmem:[%s1 + $0xb48] sm:$0xf]
      %v2544 = vld [vmem:[%s1 + $0xb4c] sm:$0xf]
      %v2545 = vld [vmem:[%s1 + $0xb50] sm:$0xf]
      %v2546 = vld [vmem:[%s1 + $0xb54] sm:$0xf]
      %v2547 = vld [vmem:[%s1 + $0xb58] sm:$0xf]
      %v2548 = vld [vmem:[%s1 + $0xb5c] sm:$0xf]
      %v2549 = vld [vmem:[%s1 + $0xb60] sm:$0xf]
      %v2550 = vld [vmem:[%s1 + $0xb64] sm:$0xf]
      %v2551 = vld [vmem:[%s1 + $0xb68] sm:$0xf]
      %v2552 = vld [vmem:[%s1 + $0xb6c] sm:$0xf]
      %v2553 = vld [vmem:[%s1 + $0xb70] sm:$0xf]
      %v2554 = vld [vmem:[%s1 + $0xb74] sm:$0xf]
      %v2555 = vld [vmem:[%s1 + $0xb78] sm:$0xf]
      %v2556 = vld [vmem:[%s1 + $0xb7c] sm:$0xf]
      %v2557 = vld [vmem:[%s1 + $0xb80] sm:$0xf]
      %v2558 = vld [vmem:[%s1 + $0xb84] sm:$0xf]
      %v2559 = vld [vmem:[%s1 + $0xb88] sm:$0xf]
      %v2560 = vld [vmem:[%s1 + $0xb8c] sm:$0xf]
      %v2561 = vld [vmem:[%s1 + $0xb90] sm:$0xf]
      %v2562 = vld [vmem:[%s1 + $0xb94] sm:$0xf]
      %v2563 = vld [vmem:[%s1 + $0xb98] sm:$0xf]
      %v2564 = vld [vmem:[%s1 + $0xb9c] sm:$0xf]
      %v2565 = vld [vmem:[%s1 + $0xba0] sm:$0xf]
      %v2566 = vld [vmem:[%s1 + $0xba4] sm:$0xf]
      %v2567 = vld [vmem:[%s1 + $0xba8] sm:$0xf]
      %v2568 = vld [vmem:[%s1 + $0xbac] sm:$0xf]
      %v2569 = vld [vmem:[%s1 + $0xbb0] sm:$0xf]
      %v2570 = vld [vmem:[%s1 + $0xbb4] sm:$0xf]
      %v2571 = vld [vmem:[%s1 + $0xbb8] sm:$0xf]
      %v2572 = vld [vmem:[%s1 + $0xbbc] sm:$0xf]
      %v2573 = vld [vmem:[%s1 + $0xbc0] sm:$0xf]
      %v2574 = vld [vmem:[%s1 + $0xbc4] sm:$0xf]
      %v2575 = vld [vmem:[%s1 + $0xbc8] sm:$0xf]
      %v2576 = vld [vmem:[%s1 + $0xbcc] sm:$0xf]
      %v2577 = vld [vmem:[%s1 + $0xbd0] sm:$0xf]
      %v2578 = vld [vmem:[%s1 + $0xbd4] sm:$0xf]
      %v2579 = vld [vmem:[%s1 + $0xbd8] sm:$0xf]
      %v2580 = vld [vmem:[%s1 + $0xbdc] sm:$0xf]
      %v2581 = vld [vmem:[%s1 + $0xbe0] sm:$0xf]
      %v2582 = vld [vmem:[%s1 + $0xbe4] sm:$0xf]
      %v2583 = vld [vmem:[%s1 + $0xbe8] sm:$0xf]
      %v2584 = vld [vmem:[%s1 + $0xbec] sm:$0xf]
      %v2585 = vld [vmem:[%s1 + $0xbf0] sm:$0xf]
      %v2586 = vld [vmem:[%s1 + $0xbf4] sm:$0xf]
      %v2587 = vld [vmem:[%s1 + $0xbf8] sm:$0xf]
      %v2588 = vld [vmem:[%s1 + $0xbfc] sm:$0xf]
      %v2589 = vld [vmem:[%s1 + $0xc00] sm:$0xf]
      %v2590 = vld [vmem:[%s1 + $0xc04] sm:$0xf]
      %v2591 = vld [vmem:[%s1 + $0xc08] sm:$0xf]
      %v2592 = vld [vmem:[%s1 + $0xc0c] sm:$0xf]
      %v2593 = vld [vmem:[%s1 + $0xc10] sm:$0xf]
      %v2594 = vld [vmem:[%s1 + $0xc14] sm:$0xf]
      %v2595 = vld [vmem:[%s1 + $0xc18] sm:$0xf]
      %v2596 = vld [vmem:[%s1 + $0xc1c] sm:$0xf]
      %v2597 = vld [vmem:[%s1 + $0xc20] sm:$0xf]
      %v2598 = vld [vmem:[%s1 + $0xc24] sm:$0xf]
      %v2599 = vld [vmem:[%s1 + $0xc28] sm:$0xf]
      %v2600 = vld [vmem:[%s1 + $0xc2c] sm:$0xf]
      %v2601 = vld [vmem:[%s1 + $0xc30] sm:$0xf]
      %v2602 = vld [vmem:[%s1 + $0xc34] sm:$0xf]
      %v2603 = vld [vmem:[%s1 + $0xc38] sm:$0xf]
      %v2604 = vld [vmem:[%s1 + $0xc3c] sm:$0xf]
      %v2605 = vld [vmem:[%s1 + $0xc40] sm:$0xf]
      %v2606 = vld [vmem:[%s1 + $0xc44] sm:$0xf]
      %v2607 = vld [vmem:[%s1 + $0xc48] sm:$0xf]
      %v2608 = vld [vmem:[%s1 + $0xc4c] sm:$0xf]
      %v2609 = vld [vmem:[%s1 + $0xc50] sm:$0xf]
      %v2610 = vld [vmem:[%s1 + $0xc54] sm:$0xf]
      %v2611 = vld [vmem:[%s1 + $0xc58] sm:$0xf]
      %v2612 = vld [vmem:[%s1 + $0xc5c] sm:$0xf]
      %v2613 = vld [vmem:[%s1 + $0xc60] sm:$0xf]
      %v2614 = vld [vmem:[%s1 + $0xc64] sm:$0xf]
      %v2615 = vld [vmem:[%s1 + $0xc68] sm:$0xf]
      %v2616 = vld [vmem:[%s1 + $0xc6c] sm:$0xf]
      %v2617 = vld [vmem:[%s1 + $0xc70] sm:$0xf]
      %v2618 = vld [vmem:[%s1 + $0xc74] sm:$0xf]
      %v2619 = vld [vmem:[%s1 + $0xc78] sm:$0xf]
      %v2620 = vld [vmem:[%s1 + $0xc7c] sm:$0xf]
      %v2621 = vld [vmem:[%s1 + $0xc80] sm:$0xf]
      %v2622 = vld [vmem:[%s1 + $0xc84] sm:$0xf]
      %v2623 = vld [vmem:[%s1 + $0xc88] sm:$0xf]
      %v2624 = vld [vmem:[%s1 + $0xc8c] sm:$0xf]
      %v2625 = vld [vmem:[%s1 + $0xc90] sm:$0xf]
      %v2626 = vld [vmem:[%s1 + $0xc94] sm:$0xf]
      %v2627 = vld [vmem:[%s1 + $0xc98] sm:$0xf]
      %v2628 = vld [vmem:[%s1 + $0xc9c] sm:$0xf]
      %v2629 = vld [vmem:[%s1 + $0xca0] sm:$0xf]
      %v2630 = vld [vmem:[%s1 + $0xca4] sm:$0xf]
      %v2631 = vld [vmem:[%s1 + $0xca8] sm:$0xf]
      %v2632 = vld [vmem:[%s1 + $0xcac] sm:$0xf]
      %v2633 = vld [vmem:[%s1 + $0xcb0] sm:$0xf]
      %v2634 = vld [vmem:[%s1 + $0xcb4] sm:$0xf]
      %v2635 = vld [vmem:[%s1 + $0xcb8] sm:$0xf]
      %v2636 = vld [vmem:[%s1 + $0xcbc] sm:$0xf]
      %v2637 = vld [vmem:[%s1 + $0xcc0] sm:$0xf]
      %v2638 = vld [vmem:[%s1 + $0xcc4] sm:$0xf]
      %v2639 = vld [vmem:[%s1 + $0xcc8] sm:$0xf]
      %v2640 = vld [vmem:[%s1 + $0xccc] sm:$0xf]
      %v2641 = vld [vmem:[%s1 + $0xcd0] sm:$0xf]
      %v2642 = vld [vmem:[%s1 + $0xcd4] sm:$0xf]
      %v2643 = vld [vmem:[%s1 + $0xcd8] sm:$0xf]
      %v2644 = vld [vmem:[%s1 + $0xcdc] sm:$0xf]
      %v2645 = vld [vmem:[%s1 + $0xce0] sm:$0xf]
      %v2646 = vld [vmem:[%s1 + $0xce4] sm:$0xf]
      %v2647 = vld [vmem:[%s1 + $0xce8] sm:$0xf]
      %v2648 = vld [vmem:[%s1 + $0xcec] sm:$0xf]
      %v2649 = vld [vmem:[%s1 + $0xcf0] sm:$0xf]
      %v2650 = vld [vmem:[%s1 + $0xcf4] sm:$0xf]
      %v2651 = vld [vmem:[%s1 + $0xcf8] sm:$0xf]
      %v2652 = vld [vmem:[%s1 + $0xcfc] sm:$0xf]
      %v2653 = vld [vmem:[%s1 + $0xd00] sm:$0xf]
      %v2654 = vld [vmem:[%s1 + $0xd04] sm:$0xf]
      %v2655 = vld [vmem:[%s1 + $0xd08] sm:$0xf]
      %v2656 = vld [vmem:[%s1 + $0xd0c] sm:$0xf]
      %v2657 = vld [vmem:[%s1 + $0xd10] sm:$0xf]
      %v2658 = vld [vmem:[%s1 + $0xd14] sm:$0xf]
      %v2659 = vld [vmem:[%s1 + $0xd18] sm:$0xf]
      %v2660 = vld [vmem:[%s1 + $0xd1c] sm:$0xf]
      %v2661 = vld [vmem:[%s1 + $0xd20] sm:$0xf]
      %v2662 = vld [vmem:[%s1 + $0xd24] sm:$0xf]
      %v2663 = vld [vmem:[%s1 + $0xd28] sm:$0xf]
      %v2664 = vld [vmem:[%s1 + $0xd2c] sm:$0xf]
      %v2665 = vld [vmem:[%s1 + $0xd30] sm:$0xf]
      %v2666 = vld [vmem:[%s1 + $0xd34] sm:$0xf]
      %v2667 = vld [vmem:[%s1 + $0xd38] sm:$0xf]
      %v2668 = vld [vmem:[%s1 + $0xd3c] sm:$0xf]
      %v2669 = vld [vmem:[%s1 + $0xd40] sm:$0xf]
      %v2670 = vld [vmem:[%s1 + $0xd44] sm:$0xf]
      %v2671 = vld [vmem:[%s1 + $0xd48] sm:$0xf]
      %v2672 = vld [vmem:[%s1 + $0xd4c] sm:$0xf]
      %v2673 = vld [vmem:[%s1 + $0xd50] sm:$0xf]
      %v2674 = vld [vmem:[%s1 + $0xd54] sm:$0xf]
      %v2675 = vld [vmem:[%s1 + $0xd58] sm:$0xf]
      %v2676 = vld [vmem:[%s1 + $0xd5c] sm:$0xf]
      %v2677 = vld [vmem:[%s1 + $0xd60] sm:$0xf]
      %v2678 = vld [vmem:[%s1 + $0xd64] sm:$0xf]
      %v2679 = vld [vmem:[%s1 + $0xd68] sm:$0xf]
      %v2680 = vld [vmem:[%s1 + $0xd6c] sm:$0xf]
      %v2681 = vld [vmem:[%s1 + $0xd70] sm:$0xf]
      %v2682 = vld [vmem:[%s1 + $0xd74] sm:$0xf]
      %v2683 = vld [vmem:[%s1 + $0xd78] sm:$0xf]
      %v2684 = vld [vmem:[%s1 + $0xd7c] sm:$0xf]
      %v2685 = vld [vmem:[%s1 + $0xd80] sm:$0xf]
      %v2686 = vld [vmem:[%s1 + $0xd84] sm:$0xf]
      %v2687 = vld [vmem:[%s1 + $0xd88] sm:$0xf]
      %v2688 = vld [vmem:[%s1 + $0xd8c] sm:$0xf]
      %v2689 = vld [vmem:[%s1 + $0xd90] sm:$0xf]
      %v2690 = vld [vmem:[%s1 + $0xd94] sm:$0xf]
      %v2691 = vld [vmem:[%s1 + $0xd98] sm:$0xf]
      %v2692 = vld [vmem:[%s1 + $0xd9c] sm:$0xf]
      %v2693 = vld [vmem:[%s1 + $0xda0] sm:$0xf]
      %v2694 = vld [vmem:[%s1 + $0xda4] sm:$0xf]
      %v2695 = vld [vmem:[%s1 + $0xda8] sm:$0xf]
      %v2696 = vld [vmem:[%s1 + $0xdac] sm:$0xf]
      %v2697 = vld [vmem:[%s1 + $0xdb0] sm:$0xf]
      %v2698 = vld [vmem:[%s1 + $0xdb4] sm:$0xf]
      %v2699 = vld [vmem:[%s1 + $0xdb8] sm:$0xf]
      %v2700 = vld [vmem:[%s1 + $0xdbc] sm:$0xf]
      %v2701 = vld [vmem:[%s1 + $0xdc0] sm:$0xf]
      %v2702 = vld [vmem:[%s1 + $0xdc4] sm:$0xf]
      %v2703 = vld [vmem:[%s1 + $0xdc8] sm:$0xf]
      %v2704 = vld [vmem:[%s1 + $0xdcc] sm:$0xf]
      %v2705 = vld [vmem:[%s1 + $0xdd0] sm:$0xf]
      %v2706 = vld [vmem:[%s1 + $0xdd4] sm:$0xf]
      %v2707 = vld [vmem:[%s1 + $0xdd8] sm:$0xf]
      %v2708 = vld [vmem:[%s1 + $0xddc] sm:$0xf]
      %v2709 = vld [vmem:[%s1 + $0xde0] sm:$0xf]
      %v2710 = vld [vmem:[%s1 + $0xde4] sm:$0xf]
      %v2711 = vld [vmem:[%s1 + $0xde8] sm:$0xf]
      %v2712 = vld [vmem:[%s1 + $0xdec] sm:$0xf]
      %v2713 = vld [vmem:[%s1 + $0xdf0] sm:$0xf]
      %v2714 = vld [vmem:[%s1 + $0xdf4] sm:$0xf]
      %v2715 = vld [vmem:[%s1 + $0xdf8] sm:$0xf]
      %v2716 = vld [vmem:[%s1 + $0xdfc] sm:$0xf]
      %v2717 = vld [vmem:[%s1 + $0xe00] sm:$0xf]
      %v2718 = vld [vmem:[%s1 + $0xe04] sm:$0xf]
      %v2719 = vld [vmem:[%s1 + $0xe08] sm:$0xf]
      %v2720 = vld [vmem:[%s1 + $0xe0c] sm:$0xf]
      %v2721 = vld [vmem:[%s1 + $0xe10] sm:$0xf]
      %v2722 = vld [vmem:[%s1 + $0xe14] sm:$0xf]
      %v2723 = vld [vmem:[%s1 + $0xe18] sm:$0xf]
      %v2724 = vld [vmem:[%s1 + $0xe1c] sm:$0xf]
      %v2725 = vld [vmem:[%s1 + $0xe20] sm:$0xf]
      %v2726 = vld [vmem:[%s1 + $0xe24] sm:$0xf]
      %v2727 = vld [vmem:[%s1 + $0xe28] sm:$0xf]
      %v2728 = vld [vmem:[%s1 + $0xe2c] sm:$0xf]
      %v2729 = vld [vmem:[%s1 + $0xe30] sm:$0xf]
      %v2730 = vld [vmem:[%s1 + $0xe34] sm:$0xf]
      %v2731 = vld [vmem:[%s1 + $0xe38] sm:$0xf]
      %v2732 = vld [vmem:[%s1 + $0xe3c] sm:$0xf]
      %v2733 = vld [vmem:[%s1 + $0xe40] sm:$0xf]
      %v2734 = vld [vmem:[%s1 + $0xe44] sm:$0xf]
      %v2735 = vld [vmem:[%s1 + $0xe48] sm:$0xf]
      %v2736 = vld [vmem:[%s1 + $0xe4c] sm:$0xf]
      %v2737 = vld [vmem:[%s1 + $0xe50] sm:$0xf]
      %v2738 = vld [vmem:[%s1 + $0xe54] sm:$0xf]
      %v2739 = vld [vmem:[%s1 + $0xe58] sm:$0xf]
      %v2740 = vld [vmem:[%s1 + $0xe5c] sm:$0xf]
      %v2741 = vld [vmem:[%s1 + $0xe60] sm:$0xf]
      %v2742 = vld [vmem:[%s1 + $0xe64] sm:$0xf]
      %v2743 = vld [vmem:[%s1 + $0xe68] sm:$0xf]
      %v2744 = vld [vmem:[%s1 + $0xe6c] sm:$0xf]
      %v2745 = vld [vmem:[%s1 + $0xe70] sm:$0xf]
      %v2746 = vld [vmem:[%s1 + $0xe74] sm:$0xf]
      %v2747 = vld [vmem:[%s1 + $0xe78] sm:$0xf]
      %v2748 = vld [vmem:[%s1 + $0xe7c] sm:$0xf]
      %v2749 = vld [vmem:[%s1 + $0xe80] sm:$0xf]
      %v2750 = vld [vmem:[%s1 + $0xe84] sm:$0xf]
      %v2751 = vld [vmem:[%s1 + $0xe88] sm:$0xf]
      %v2752 = vld [vmem:[%s1 + $0xe8c] sm:$0xf]
      %v2753 = vld [vmem:[%s1 + $0xe90] sm:$0xf]
      %v2754 = vld [vmem:[%s1 + $0xe94] sm:$0xf]
      %v2755 = vld [vmem:[%s1 + $0xe98] sm:$0xf]
      %v2756 = vld [vmem:[%s1 + $0xe9c] sm:$0xf]
      %v2757 = vld [vmem:[%s1 + $0xea0] sm:$0xf]
      %v2758 = vld [vmem:[%s1 + $0xea4] sm:$0xf]
      %v2759 = vld [vmem:[%s1 + $0xea8] sm:$0xf]
      %v2760 = vld [vmem:[%s1 + $0xeac] sm:$0xf]
      %v2761 = vld [vmem:[%s1 + $0xeb0] sm:$0xf]
      %v2762 = vld [vmem:[%s1 + $0xeb4] sm:$0xf]
      %v2763 = vld [vmem:[%s1 + $0xeb8] sm:$0xf]
      %v2764 = vld [vmem:[%s1 + $0xebc] sm:$0xf]
      %v2765 = vld [vmem:[%s1 + $0xec0] sm:$0xf]
      %v2766 = vld [vmem:[%s1 + $0xec4] sm:$0xf]
      %v2767 = vld [vmem:[%s1 + $0xec8] sm:$0xf]
      %v2768 = vld [vmem:[%s1 + $0xecc] sm:$0xf]
      %v2769 = vld [vmem:[%s1 + $0xed0] sm:$0xf]
      %v2770 = vld [vmem:[%s1 + $0xed4] sm:$0xf]
      %v2771 = vld [vmem:[%s1 + $0xed8] sm:$0xf]
      %v2772 = vld [vmem:[%s1 + $0xedc] sm:$0xf]
      %v2773 = vld [vmem:[%s1 + $0xee0] sm:$0xf]
      %v2774 = vld [vmem:[%s1 + $0xee4] sm:$0xf]
      %v2775 = vld [vmem:[%s1 + $0xee8] sm:$0xf]
      %v2776 = vld [vmem:[%s1 + $0xeec] sm:$0xf]
      %v2777 = vld [vmem:[%s1 + $0xef0] sm:$0xf]
      %v2778 = vld [vmem:[%s1 + $0xef4] sm:$0xf]
      %v2779 = vld [vmem:[%s1 + $0xef8] sm:$0xf]
      %v2780 = vld [vmem:[%s1 + $0xefc] sm:$0xf]
      %v2781 = vld [vmem:[%s1 + $0xf00] sm:$0xf]
      %v2782 = vld [vmem:[%s1 + $0xf04] sm:$0xf]
      %v2783 = vld [vmem:[%s1 + $0xf08] sm:$0xf]
      %v2784 = vld [vmem:[%s1 + $0xf0c] sm:$0xf]
      %v2785 = vld [vmem:[%s1 + $0xf10] sm:$0xf]
      %v2786 = vld [vmem:[%s1 + $0xf14] sm:$0xf]
      %v2787 = vld [vmem:[%s1 + $0xf18] sm:$0xf]
      %v2788 = vld [vmem:[%s1 + $0xf1c] sm:$0xf]
      %v2789 = vld [vmem:[%s1 + $0xf20] sm:$0xf]
      %v2790 = vld [vmem:[%s1 + $0xf24] sm:$0xf]
      %v2791 = vld [vmem:[%s1 + $0xf28] sm:$0xf]
      %v2792 = vld [vmem:[%s1 + $0xf2c] sm:$0xf]
      %v2793 = vld [vmem:[%s1 + $0xf30] sm:$0xf]
      %v2794 = vld [vmem:[%s1 + $0xf34] sm:$0xf]
      %v2795 = vld [vmem:[%s1 + $0xf38] sm:$0xf]
      %v2796 = vld [vmem:[%s1 + $0xf3c] sm:$0xf]
      %v2797 = vld [vmem:[%s1 + $0xf40] sm:$0xf]
      %v2798 = vld [vmem:[%s1 + $0xf44] sm:$0xf]
      %v2799 = vld [vmem:[%s1 + $0xf48] sm:$0xf]
      %v2800 = vld [vmem:[%s1 + $0xf4c] sm:$0xf]
      %v2801 = vld [vmem:[%s1 + $0xf50] sm:$0xf]
      %v2802 = vld [vmem:[%s1 + $0xf54] sm:$0xf]
      %v2803 = vld [vmem:[%s1 + $0xf58] sm:$0xf]
      %v2804 = vld [vmem:[%s1 + $0xf5c] sm:$0xf]
      %v2805 = vld [vmem:[%s1 + $0xf60] sm:$0xf]
      %v2806 = vld [vmem:[%s1 + $0xf64] sm:$0xf]
      %v2807 = vld [vmem:[%s1 + $0xf68] sm:$0xf]
      %v2808 = vld [vmem:[%s1 + $0xf6c] sm:$0xf]
      %v2809 = vld [vmem:[%s1 + $0xf70] sm:$0xf]
      %v2810 = vld [vmem:[%s1 + $0xf74] sm:$0xf]
      %v2811 = vld [vmem:[%s1 + $0xf78] sm:$0xf]
      %v2812 = vld [vmem:[%s1 + $0xf7c] sm:$0xf]
      %v2813 = vld [vmem:[%s1 + $0xf80] sm:$0xf]
      %v2814 = vld [vmem:[%s1 + $0xf84] sm:$0xf]
      %v2815 = vld [vmem:[%s1 + $0xf88] sm:$0xf]
      %v2816 = vld [vmem:[%s1 + $0xf8c] sm:$0xf]
      %v2817 = vld [vmem:[%s1 + $0xf90] sm:$0xf]
      %v2818 = vld [vmem:[%s1 + $0xf94] sm:$0xf]
      %v2819 = vld [vmem:[%s1 + $0xf98] sm:$0xf]
      %v2820 = vld [vmem:[%s1 + $0xf9c] sm:$0xf]
      %v2821 = vld [vmem:[%s1 + $0xfa0] sm:$0xf]
      %v2822 = vld [vmem:[%s1 + $0xfa4] sm:$0xf]
      %v2823 = vld [vmem:[%s1 + $0xfa8] sm:$0xf]
      %v2824 = vld [vmem:[%s1 + $0xfac] sm:$0xf]
      %v2825 = vld [vmem:[%s1 + $0xfb0] sm:$0xf]
      %v2826 = vld [vmem:[%s1 + $0xfb4] sm:$0xf]
      %v2827 = vld [vmem:[%s1 + $0xfb8] sm:$0xf]
      %v2828 = vld [vmem:[%s1 + $0xfbc] sm:$0xf]
      %v2829 = vld [vmem:[%s1 + $0xfc0] sm:$0xf]
      %v2830 = vld [vmem:[%s1 + $0xfc4] sm:$0xf]
      %v2831 = vld [vmem:[%s1 + $0xfc8] sm:$0xf]
      %v2832 = vld [vmem:[%s1 + $0xfcc] sm:$0xf]
      %v2833 = vld [vmem:[%s1 + $0xfd0] sm:$0xf]
      %v2834 = vld [vmem:[%s1 + $0xfd4] sm:$0xf]
      %v2835 = vld [vmem:[%s1 + $0xfd8] sm:$0xf]
      %v2836 = vld [vmem:[%s1 + $0xfdc] sm:$0xf]
      %v2837 = vld [vmem:[%s1 + $0xfe0] sm:$0xf]
      %v2838 = vld [vmem:[%s1 + $0xfe4] sm:$0xf]
      %v2839 = vld [vmem:[%s1 + $0xfe8] sm:$0xf]
      %v2840 = vld [vmem:[%s1 + $0xfec] sm:$0xf]
      %v2841 = vld [vmem:[%s1 + $0xff0] sm:$0xf]
      %v2842 = vld [vmem:[%s1 + $0xff4] sm:$0xf]
      %v2843 = vld [vmem:[%s1 + $0xff8] sm:$0x1]
      %v2844 = vld [vmem:[%s2] sm:$0x1]
      %v2846 = vperm.slane %v2844, 0
      %v3871 = vunpack.c.l.b16 %v1821
      %v3872 = vunpack.c.l.b16 %v1822
      %v3873 = vunpack.c.l.b16 %v1823
      %v3874 = vunpack.c.l.b16 %v1824
      %v3875 = vunpack.c.l.b16 %v1825
      %v3876 = vunpack.c.l.b16 %v1826
      %v3877 = vunpack.c.l.b16 %v1827
      %v3878 = vunpack.c.l.b16 %v1828
      %v3879 = vunpack.c.l.b16 %v1829
      %v3880 = vunpack.c.l.b16 %v1830
      %v3881 = vunpack.c.l.b16 %v1831
      %v3882 = vunpack.c.l.b16 %v1832
      %v3883 = vunpack.c.l.b16 %v1833
      %v3884 = vunpack.c.l.b16 %v1834
      %v3885 = vunpack.c.l.b16 %v1835
      %v3886 = vunpack.c.l.b16 %v1836
      %v3887 = vunpack.c.l.b16 %v1837
      %v3888 = vunpack.c.l.b16 %v1838
      %v3889 = vunpack.c.l.b16 %v1839
      %v3890 = vunpack.c.l.b16 %v1840
      %v3891 = vunpack.c.l.b16 %v1841
      %v3892 = vunpack.c.l.b16 %v1842
      %v3893 = vunpack.c.l.b16 %v1843
      %v3894 = vunpack.c.l.b16 %v1844
      %v3895 = vunpack.c.l.b16 %v1845
      %v3896 = vunpack.c.l.b16 %v1846
      %v3897 = vunpack.c.l.b16 %v1847
      %v3898 = vunpack.c.l.b16 %v1848
      %v3899 = vunpack.c.l.b16 %v1849
      %v3900 = vunpack.c.l.b16 %v1850
      %v3901 = vunpack.c.l.b16 %v1851
      %v3902 = vunpack.c.l.b16 %v1852
      %v3903 = vunpack.c.l.b16 %v1853
      %v3904 = vunpack.c.l.b16 %v1854
      %v3905 = vunpack.c.l.b16 %v1855
      %v3906 = vunpack.c.l.b16 %v1856
      %v3907 = vunpack.c.l.b16 %v1857
      %v3908 = vunpack.c.l.b16 %v1858
      %v3909 = vunpack.c.l.b16 %v1859
      %v3910 = vunpack.c.l.b16 %v1860
      %v3911 = vunpack.c.l.b16 %v1861
      %v3912 = vunpack.c.l.b16 %v1862
      %v3913 = vunpack.c.l.b16 %v1863
      %v3914 = vunpack.c.l.b16 %v1864
      %v3915 = vunpack.c.l.b16 %v1865
      %v3916 = vunpack.c.l.b16 %v1866
      %v3917 = vunpack.c.l.b16 %v1867
      %v3918 = vunpack.c.l.b16 %v1868
      %v3919 = vunpack.c.l.b16 %v1869
      %v3920 = vunpack.c.l.b16 %v1870
      %v3921 = vunpack.c.l.b16 %v1871
      %v3922 = vunpack.c.l.b16 %v1872
      %v3923 = vunpack.c.l.b16 %v1873
      %v3924 = vunpack.c.l.b16 %v1874
      %v3925 = vunpack.c.l.b16 %v1875
      %v3926 = vunpack.c.l.b16 %v1876
      %v3927 = vunpack.c.l.b16 %v1877
      %v3928 = vunpack.c.l.b16 %v1878
      %v3929 = vunpack.c.l.b16 %v1879
      %v3930 = vunpack.c.l.b16 %v1880
      %v3931 = vunpack.c.l.b16 %v1881
      %v3932 = vunpack.c.l.b16 %v1882
      %v3933 = vunpack.c.l.b16 %v1883
      %v3934 = vunpack.c.l.b16 %v1884
      %v3935 = vunpack.c.l.b16 %v1885
      %v3936 = vunpack.c.l.b16 %v1886
      %v3937 = vunpack.c.l.b16 %v1887
      %v3938 = vunpack.c.l.b16 %v1888
      %v3939 = vunpack.c.l.b16 %v1889
      %v3940 = vunpack.c.l.b16 %v1890
      %v3941 = vunpack.c.l.b16 %v1891
      %v3942 = vunpack.c.l.b16 %v1892
      %v3943 = vunpack.c.l.b16 %v1893
      %v3944 = vunpack.c.l.b16 %v1894
      %v3945 = vunpack.c.l.b16 %v1895
      %v3946 = vunpack.c.l.b16 %v1896
      %v3947 = vunpack.c.l.b16 %v1897
      %v3948 = vunpack.c.l.b16 %v1898
      %v3949 = vunpack.c.l.b16 %v1899
      %v3950 = vunpack.c.l.b16 %v1900
      %v3951 = vunpack.c.l.b16 %v1901
      %v3952 = vunpack.c.l.b16 %v1902
      %v3953 = vunpack.c.l.b16 %v1903
      %v3954 = vunpack.c.l.b16 %v1904
      %v3955 = vunpack.c.l.b16 %v1905
      %v3956 = vunpack.c.l.b16 %v1906
      %v3957 = vunpack.c.l.b16 %v1907
      %v3958 = vunpack.c.l.b16 %v1908
      %v3959 = vunpack.c.l.b16 %v1909
      %v3960 = vunpack.c.l.b16 %v1910
      %v3961 = vunpack.c.l.b16 %v1911
      %v3962 = vunpack.c.l.b16 %v1912
      %v3963 = vunpack.c.l.b16 %v1913
      %v3964 = vunpack.c.l.b16 %v1914
      %v3965 = vunpack.c.l.b16 %v1915
      %v3966 = vunpack.c.l.b16 %v1916
      %v3967 = vunpack.c.l.b16 %v1917
      %v3968 = vunpack.c.l.b16 %v1918
      %v3969 = vunpack.c.l.b16 %v1919
      %v3970 = vunpack.c.l.b16 %v1920
      %v3971 = vunpack.c.l.b16 %v1921
      %v3972 = vunpack.c.l.b16 %v1922
      %v3973 = vunpack.c.l.b16 %v1923
      %v3974 = vunpack.c.l.b16 %v1924
      %v3975 = vunpack.c.l.b16 %v1925
      %v3976 = vunpack.c.l.b16 %v1926
      %v3977 = vunpack.c.l.b16 %v1927
      %v3978 = vunpack.c.l.b16 %v1928
      %v3979 = vunpack.c.l.b16 %v1929
      %v3980 = vunpack.c.l.b16 %v1930
      %v3981 = vunpack.c.l.b16 %v1931
      %v3982 = vunpack.c.l.b16 %v1932
      %v3983 = vunpack.c.l.b16 %v1933
      %v3984 = vunpack.c.l.b16 %v1934
      %v3985 = vunpack.c.l.b16 %v1935
      %v3986 = vunpack.c.l.b16 %v1936
      %v3987 = vunpack.c.l.b16 %v1937
      %v3988 = vunpack.c.l.b16 %v1938
      %v3989 = vunpack.c.l.b16 %v1939
      %v3990 = vunpack.c.l.b16 %v1940
      %v3991 = vunpack.c.l.b16 %v1941
      %v3992 = vunpack.c.l.b16 %v1942
      %v3993 = vunpack.c.l.b16 %v1943
      %v3994 = vunpack.c.l.b16 %v1944
      %v3995 = vunpack.c.l.b16 %v1945
      %v3996 = vunpack.c.l.b16 %v1946
      %v3997 = vunpack.c.l.b16 %v1947
      %v3998 = vunpack.c.l.b16 %v1948
      %v3999 = vunpack.c.l.b16 %v1949
      %v4000 = vunpack.c.l.b16 %v1950
      %v4001 = vunpack.c.l.b16 %v1951
      %v4002 = vunpack.c.l.b16 %v1952
      %v4003 = vunpack.c.l.b16 %v1953
      %v4004 = vunpack.c.l.b16 %v1954
      %v4005 = vunpack.c.l.b16 %v1955
      %v4006 = vunpack.c.l.b16 %v1956
      %v4007 = vunpack.c.l.b16 %v1957
      %v4008 = vunpack.c.l.b16 %v1958
      %v4009 = vunpack.c.l.b16 %v1959
      %v4010 = vunpack.c.l.b16 %v1960
      %v4011 = vunpack.c.l.b16 %v1961
      %v4012 = vunpack.c.l.b16 %v1962
      %v4013 = vunpack.c.l.b16 %v1963
      %v4014 = vunpack.c.l.b16 %v1964
      %v4015 = vunpack.c.l.b16 %v1965
      %v4016 = vunpack.c.l.b16 %v1966
      %v4017 = vunpack.c.l.b16 %v1967
      %v4018 = vunpack.c.l.b16 %v1968
      %v4019 = vunpack.c.l.b16 %v1969
      %v4020 = vunpack.c.l.b16 %v1970
      %v4021 = vunpack.c.l.b16 %v1971
      %v4022 = vunpack.c.l.b16 %v1972
      %v4023 = vunpack.c.l.b16 %v1973
      %v4024 = vunpack.c.l.b16 %v1974
      %v4025 = vunpack.c.l.b16 %v1975
      %v4026 = vunpack.c.l.b16 %v1976
      %v4027 = vunpack.c.l.b16 %v1977
      %v4028 = vunpack.c.l.b16 %v1978
      %v4029 = vunpack.c.l.b16 %v1979
      %v4030 = vunpack.c.l.b16 %v1980
      %v4031 = vunpack.c.l.b16 %v1981
      %v4032 = vunpack.c.l.b16 %v1982
      %v4033 = vunpack.c.l.b16 %v1983
      %v4034 = vunpack.c.l.b16 %v1984
      %v4035 = vunpack.c.l.b16 %v1985
      %v4036 = vunpack.c.l.b16 %v1986
      %v4037 = vunpack.c.l.b16 %v1987
      %v4038 = vunpack.c.l.b16 %v1988
      %v4039 = vunpack.c.l.b16 %v1989
      %v4040 = vunpack.c.l.b16 %v1990
      %v4041 = vunpack.c.l.b16 %v1991
      %v4042 = vunpack.c.l.b16 %v1992
      %v4043 = vunpack.c.l.b16 %v1993
      %v4044 = vunpack.c.l.b16 %v1994
      %v4045 = vunpack.c.l.b16 %v1995
      %v4046 = vunpack.c.l.b16 %v1996
      %v4047 = vunpack.c.l.b16 %v1997
      %v4048 = vunpack.c.l.b16 %v1998
      %v4049 = vunpack.c.l.b16 %v1999
      %v4050 = vunpack.c.l.b16 %v2000
      %v4051 = vunpack.c.l.b16 %v2001
      %v4052 = vunpack.c.l.b16 %v2002
      %v4053 = vunpack.c.l.b16 %v2003
      %v4054 = vunpack.c.l.b16 %v2004
      %v4055 = vunpack.c.l.b16 %v2005
      %v4056 = vunpack.c.l.b16 %v2006
      %v4057 = vunpack.c.l.b16 %v2007
      %v4058 = vunpack.c.l.b16 %v2008
      %v4059 = vunpack.c.l.b16 %v2009
      %v4060 = vunpack.c.l.b16 %v2010
      %v4061 = vunpack.c.l.b16 %v2011
      %v4062 = vunpack.c.l.b16 %v2012
      %v4063 = vunpack.c.l.b16 %v2013
      %v4064 = vunpack.c.l.b16 %v2014
      %v4065 = vunpack.c.l.b16 %v2015
      %v4066 = vunpack.c.l.b16 %v2016
      %v4067 = vunpack.c.l.b16 %v2017
      %v4068 = vunpack.c.l.b16 %v2018
      %v4069 = vunpack.c.l.b16 %v2019
      %v4070 = vunpack.c.l.b16 %v2020
      %v4071 = vunpack.c.l.b16 %v2021
      %v4072 = vunpack.c.l.b16 %v2022
      %v4073 = vunpack.c.l.b16 %v2023
      %v4074 = vunpack.c.l.b16 %v2024
      %v4075 = vunpack.c.l.b16 %v2025
      %v4076 = vunpack.c.l.b16 %v2026
      %v4077 = vunpack.c.l.b16 %v2027
      %v4078 = vunpack.c.l.b16 %v2028
      %v4079 = vunpack.c.l.b16 %v2029
      %v4080 = vunpack.c.l.b16 %v2030
      %v4081 = vunpack.c.l.b16 %v2031
      %v4082 = vunpack.c.l.b16 %v2032
      %v4083 = vunpack.c.l.b16 %v2033
      %v4084 = vunpack.c.l.b16 %v2034
      %v4085 = vunpack.c.l.b16 %v2035
      %v4086 = vunpack.c.l.b16 %v2036
      %v4087 = vunpack.c.l.b16 %v2037
      %v4088 = vunpack.c.l.b16 %v2038
      %v4089 = vunpack.c.l.b16 %v2039
      %v4090 = vunpack.c.l.b16 %v2040
      %v4091 = vunpack.c.l.b16 %v2041
      %v4092 = vunpack.c.l.b16 %v2042
      %v4093 = vunpack.c.l.b16 %v2043
      %v4094 = vunpack.c.l.b16 %v2044
      %v4095 = vunpack.c.l.b16 %v2045
      %v4096 = vunpack.c.l.b16 %v2046
      %v4097 = vunpack.c.l.b16 %v2047
      %v4098 = vunpack.c.l.b16 %v2048
      %v4099 = vunpack.c.l.b16 %v2049
      %v4100 = vunpack.c.l.b16 %v2050
      %v4101 = vunpack.c.l.b16 %v2051
      %v4102 = vunpack.c.l.b16 %v2052
      %v4103 = vunpack.c.l.b16 %v2053
      %v4104 = vunpack.c.l.b16 %v2054
      %v4105 = vunpack.c.l.b16 %v2055
      %v4106 = vunpack.c.l.b16 %v2056
      %v4107 = vunpack.c.l.b16 %v2057
      %v4108 = vunpack.c.l.b16 %v2058
      %v4109 = vunpack.c.l.b16 %v2059
      %v4110 = vunpack.c.l.b16 %v2060
      %v4111 = vunpack.c.l.b16 %v2061
      %v4112 = vunpack.c.l.b16 %v2062
      %v4113 = vunpack.c.l.b16 %v2063
      %v4114 = vunpack.c.l.b16 %v2064
      %v4115 = vunpack.c.l.b16 %v2065
      %v4116 = vunpack.c.l.b16 %v2066
      %v4117 = vunpack.c.l.b16 %v2067
      %v4118 = vunpack.c.l.b16 %v2068
      %v4119 = vunpack.c.l.b16 %v2069
      %v4120 = vunpack.c.l.b16 %v2070
      %v4121 = vunpack.c.l.b16 %v2071
      %v4122 = vunpack.c.l.b16 %v2072
      %v4123 = vunpack.c.l.b16 %v2073
      %v4124 = vunpack.c.l.b16 %v2074
      %v4125 = vunpack.c.l.b16 %v2075
      %v4126 = vunpack.c.l.b16 %v2076
      %v4127 = vunpack.c.l.b16 %v2077
      %v4128 = vunpack.c.l.b16 %v2078
      %v4129 = vunpack.c.l.b16 %v2079
      %v4130 = vunpack.c.l.b16 %v2080
      %v4131 = vunpack.c.l.b16 %v2081
      %v4132 = vunpack.c.l.b16 %v2082
      %v4133 = vunpack.c.l.b16 %v2083
      %v4134 = vunpack.c.l.b16 %v2084
      %v4135 = vunpack.c.l.b16 %v2085
      %v4136 = vunpack.c.l.b16 %v2086
      %v4137 = vunpack.c.l.b16 %v2087
      %v4138 = vunpack.c.l.b16 %v2088
      %v4139 = vunpack.c.l.b16 %v2089
      %v4140 = vunpack.c.l.b16 %v2090
      %v4141 = vunpack.c.l.b16 %v2091
      %v4142 = vunpack.c.l.b16 %v2092
      %v4143 = vunpack.c.l.b16 %v2093
      %v4144 = vunpack.c.l.b16 %v2094
      %v4145 = vunpack.c.l.b16 %v2095
      %v4146 = vunpack.c.l.b16 %v2096
      %v4147 = vunpack.c.l.b16 %v2097
      %v4148 = vunpack.c.l.b16 %v2098
      %v4149 = vunpack.c.l.b16 %v2099
      %v4150 = vunpack.c.l.b16 %v2100
      %v4151 = vunpack.c.l.b16 %v2101
      %v4152 = vunpack.c.l.b16 %v2102
      %v4153 = vunpack.c.l.b16 %v2103
      %v4154 = vunpack.c.l.b16 %v2104
      %v4155 = vunpack.c.l.b16 %v2105
      %v4156 = vunpack.c.l.b16 %v2106
      %v4157 = vunpack.c.l.b16 %v2107
      %v4158 = vunpack.c.l.b16 %v2108
      %v4159 = vunpack.c.l.b16 %v2109
      %v4160 = vunpack.c.l.b16 %v2110
      %v4161 = vunpack.c.l.b16 %v2111
      %v4162 = vunpack.c.l.b16 %v2112
      %v4163 = vunpack.c.l.b16 %v2113
      %v4164 = vunpack.c.l.b16 %v2114
      %v4165 = vunpack.c.l.b16 %v2115
      %v4166 = vunpack.c.l.b16 %v2116
      %v4167 = vunpack.c.l.b16 %v2117
      %v4168 = vunpack.c.l.b16 %v2118
      %v4169 = vunpack.c.l.b16 %v2119
      %v4170 = vunpack.c.l.b16 %v2120
      %v4171 = vunpack.c.l.b16 %v2121
      %v4172 = vunpack.c.l.b16 %v2122
      %v4173 = vunpack.c.l.b16 %v2123
      %v4174 = vunpack.c.l.b16 %v2124
      %v4175 = vunpack.c.l.b16 %v2125
      %v4176 = vunpack.c.l.b16 %v2126
      %v4177 = vunpack.c.l.b16 %v2127
      %v4178 = vunpack.c.l.b16 %v2128
      %v4179 = vunpack.c.l.b16 %v2129
      %v4180 = vunpack.c.l.b16 %v2130
      %v4181 = vunpack.c.l.b16 %v2131
      %v4182 = vunpack.c.l.b16 %v2132
      %v4183 = vunpack.c.l.b16 %v2133
      %v4184 = vunpack.c.l.b16 %v2134
      %v4185 = vunpack.c.l.b16 %v2135
      %v4186 = vunpack.c.l.b16 %v2136
      %v4187 = vunpack.c.l.b16 %v2137
      %v4188 = vunpack.c.l.b16 %v2138
      %v4189 = vunpack.c.l.b16 %v2139
      %v4190 = vunpack.c.l.b16 %v2140
      %v4191 = vunpack.c.l.b16 %v2141
      %v4192 = vunpack.c.l.b16 %v2142
      %v4193 = vunpack.c.l.b16 %v2143
      %v4194 = vunpack.c.l.b16 %v2144
      %v4195 = vunpack.c.l.b16 %v2145
      %v4196 = vunpack.c.l.b16 %v2146
      %v4197 = vunpack.c.l.b16 %v2147
      %v4198 = vunpack.c.l.b16 %v2148
      %v4199 = vunpack.c.l.b16 %v2149
      %v4200 = vunpack.c.l.b16 %v2150
      %v4201 = vunpack.c.l.b16 %v2151
      %v4202 = vunpack.c.l.b16 %v2152
      %v4203 = vunpack.c.l.b16 %v2153
      %v4204 = vunpack.c.l.b16 %v2154
      %v4205 = vunpack.c.l.b16 %v2155
      %v4206 = vunpack.c.l.b16 %v2156
      %v4207 = vunpack.c.l.b16 %v2157
      %v4208 = vunpack.c.l.b16 %v2158
      %v4209 = vunpack.c.l.b16 %v2159
      %v4210 = vunpack.c.l.b16 %v2160
      %v4211 = vunpack.c.l.b16 %v2161
      %v4212 = vunpack.c.l.b16 %v2162
      %v4213 = vunpack.c.l.b16 %v2163
      %v4214 = vunpack.c.l.b16 %v2164
      %v4215 = vunpack.c.l.b16 %v2165
      %v4216 = vunpack.c.l.b16 %v2166
      %v4217 = vunpack.c.l.b16 %v2167
      %v4218 = vunpack.c.l.b16 %v2168
      %v4219 = vunpack.c.l.b16 %v2169
      %v4220 = vunpack.c.l.b16 %v2170
      %v4221 = vunpack.c.l.b16 %v2171
      %v4222 = vunpack.c.l.b16 %v2172
      %v4223 = vunpack.c.l.b16 %v2173
      %v4224 = vunpack.c.l.b16 %v2174
      %v4225 = vunpack.c.l.b16 %v2175
      %v4226 = vunpack.c.l.b16 %v2176
      %v4227 = vunpack.c.l.b16 %v2177
      %v4228 = vunpack.c.l.b16 %v2178
      %v4229 = vunpack.c.l.b16 %v2179
      %v4230 = vunpack.c.l.b16 %v2180
      %v4231 = vunpack.c.l.b16 %v2181
      %v4232 = vunpack.c.l.b16 %v2182
      %v4233 = vunpack.c.l.b16 %v2183
      %v4234 = vunpack.c.l.b16 %v2184
      %v4235 = vunpack.c.l.b16 %v2185
      %v4236 = vunpack.c.l.b16 %v2186
      %v4237 = vunpack.c.l.b16 %v2187
      %v4238 = vunpack.c.l.b16 %v2188
      %v4239 = vunpack.c.l.b16 %v2189
      %v4240 = vunpack.c.l.b16 %v2190
      %v4241 = vunpack.c.l.b16 %v2191
      %v4242 = vunpack.c.l.b16 %v2192
      %v4243 = vunpack.c.l.b16 %v2193
      %v4244 = vunpack.c.l.b16 %v2194
      %v4245 = vunpack.c.l.b16 %v2195
      %v4246 = vunpack.c.l.b16 %v2196
      %v4247 = vunpack.c.l.b16 %v2197
      %v4248 = vunpack.c.l.b16 %v2198
      %v4249 = vunpack.c.l.b16 %v2199
      %v4250 = vunpack.c.l.b16 %v2200
      %v4251 = vunpack.c.l.b16 %v2201
      %v4252 = vunpack.c.l.b16 %v2202
      %v4253 = vunpack.c.l.b16 %v2203
      %v4254 = vunpack.c.l.b16 %v2204
      %v4255 = vunpack.c.l.b16 %v2205
      %v4256 = vunpack.c.l.b16 %v2206
      %v4257 = vunpack.c.l.b16 %v2207
      %v4258 = vunpack.c.l.b16 %v2208
      %v4259 = vunpack.c.l.b16 %v2209
      %v4260 = vunpack.c.l.b16 %v2210
      %v4261 = vunpack.c.l.b16 %v2211
      %v4262 = vunpack.c.l.b16 %v2212
      %v4263 = vunpack.c.l.b16 %v2213
      %v4264 = vunpack.c.l.b16 %v2214
      %v4265 = vunpack.c.l.b16 %v2215
      %v4266 = vunpack.c.l.b16 %v2216
      %v4267 = vunpack.c.l.b16 %v2217
      %v4268 = vunpack.c.l.b16 %v2218
      %v4269 = vunpack.c.l.b16 %v2219
      %v4270 = vunpack.c.l.b16 %v2220
      %v4271 = vunpack.c.l.b16 %v2221
      %v4272 = vunpack.c.l.b16 %v2222
      %v4273 = vunpack.c.l.b16 %v2223
      %v4274 = vunpack.c.l.b16 %v2224
      %v4275 = vunpack.c.l.b16 %v2225
      %v4276 = vunpack.c.l.b16 %v2226
      %v4277 = vunpack.c.l.b16 %v2227
      %v4278 = vunpack.c.l.b16 %v2228
      %v4279 = vunpack.c.l.b16 %v2229
      %v4280 = vunpack.c.l.b16 %v2230
      %v4281 = vunpack.c.l.b16 %v2231
      %v4282 = vunpack.c.l.b16 %v2232
      %v4283 = vunpack.c.l.b16 %v2233
      %v4284 = vunpack.c.l.b16 %v2234
      %v4285 = vunpack.c.l.b16 %v2235
      %v4286 = vunpack.c.l.b16 %v2236
      %v4287 = vunpack.c.l.b16 %v2237
      %v4288 = vunpack.c.l.b16 %v2238
      %v4289 = vunpack.c.l.b16 %v2239
      %v4290 = vunpack.c.l.b16 %v2240
      %v4291 = vunpack.c.l.b16 %v2241
      %v4292 = vunpack.c.l.b16 %v2242
      %v4293 = vunpack.c.l.b16 %v2243
      %v4294 = vunpack.c.l.b16 %v2244
      %v4295 = vunpack.c.l.b16 %v2245
      %v4296 = vunpack.c.l.b16 %v2246
      %v4297 = vunpack.c.l.b16 %v2247
      %v4298 = vunpack.c.l.b16 %v2248
      %v4299 = vunpack.c.l.b16 %v2249
      %v4300 = vunpack.c.l.b16 %v2250
      %v4301 = vunpack.c.l.b16 %v2251
      %v4302 = vunpack.c.l.b16 %v2252
      %v4303 = vunpack.c.l.b16 %v2253
      %v4304 = vunpack.c.l.b16 %v2254
      %v4305 = vunpack.c.l.b16 %v2255
      %v4306 = vunpack.c.l.b16 %v2256
      %v4307 = vunpack.c.l.b16 %v2257
      %v4308 = vunpack.c.l.b16 %v2258
      %v4309 = vunpack.c.l.b16 %v2259
      %v4310 = vunpack.c.l.b16 %v2260
      %v4311 = vunpack.c.l.b16 %v2261
      %v4312 = vunpack.c.l.b16 %v2262
      %v4313 = vunpack.c.l.b16 %v2263
      %v4314 = vunpack.c.l.b16 %v2264
      %v4315 = vunpack.c.l.b16 %v2265
      %v4316 = vunpack.c.l.b16 %v2266
      %v4317 = vunpack.c.l.b16 %v2267
      %v4318 = vunpack.c.l.b16 %v2268
      %v4319 = vunpack.c.l.b16 %v2269
      %v4320 = vunpack.c.l.b16 %v2270
      %v4321 = vunpack.c.l.b16 %v2271
      %v4322 = vunpack.c.l.b16 %v2272
      %v4323 = vunpack.c.l.b16 %v2273
      %v4324 = vunpack.c.l.b16 %v2274
      %v4325 = vunpack.c.l.b16 %v2275
      %v4326 = vunpack.c.l.b16 %v2276
      %v4327 = vunpack.c.l.b16 %v2277
      %v4328 = vunpack.c.l.b16 %v2278
      %v4329 = vunpack.c.l.b16 %v2279
      %v4330 = vunpack.c.l.b16 %v2280
      %v4331 = vunpack.c.l.b16 %v2281
      %v4332 = vunpack.c.l.b16 %v2282
      %v4333 = vunpack.c.l.b16 %v2283
      %v4334 = vunpack.c.l.b16 %v2284
      %v4335 = vunpack.c.l.b16 %v2285
      %v4336 = vunpack.c.l.b16 %v2286
      %v4337 = vunpack.c.l.b16 %v2287
      %v4338 = vunpack.c.l.b16 %v2288
      %v4339 = vunpack.c.l.b16 %v2289
      %v4340 = vunpack.c.l.b16 %v2290
      %v4341 = vunpack.c.l.b16 %v2291
      %v4342 = vunpack.c.l.b16 %v2292
      %v4343 = vunpack.c.l.b16 %v2293
      %v4344 = vunpack.c.l.b16 %v2294
      %v4345 = vunpack.c.l.b16 %v2295
      %v4346 = vunpack.c.l.b16 %v2296
      %v4347 = vunpack.c.l.b16 %v2297
      %v4348 = vunpack.c.l.b16 %v2298
      %v4349 = vunpack.c.l.b16 %v2299
      %v4350 = vunpack.c.l.b16 %v2300
      %v4351 = vunpack.c.l.b16 %v2301
      %v4352 = vunpack.c.l.b16 %v2302
      %v4353 = vunpack.c.l.b16 %v2303
      %v4354 = vunpack.c.l.b16 %v2304
      %v4355 = vunpack.c.l.b16 %v2305
      %v4356 = vunpack.c.l.b16 %v2306
      %v4357 = vunpack.c.l.b16 %v2307
      %v4358 = vunpack.c.l.b16 %v2308
      %v4359 = vunpack.c.l.b16 %v2309
      %v4360 = vunpack.c.l.b16 %v2310
      %v4361 = vunpack.c.l.b16 %v2311
      %v4362 = vunpack.c.l.b16 %v2312
      %v4363 = vunpack.c.l.b16 %v2313
      %v4364 = vunpack.c.l.b16 %v2314
      %v4365 = vunpack.c.l.b16 %v2315
      %v4366 = vunpack.c.l.b16 %v2316
      %v4367 = vunpack.c.l.b16 %v2317
      %v4368 = vunpack.c.l.b16 %v2318
      %v4369 = vunpack.c.l.b16 %v2319
      %v4370 = vunpack.c.l.b16 %v2320
      %v4371 = vunpack.c.l.b16 %v2321
      %v4372 = vunpack.c.l.b16 %v2322
      %v4373 = vunpack.c.l.b16 %v2323
      %v4374 = vunpack.c.l.b16 %v2324
      %v4375 = vunpack.c.l.b16 %v2325
      %v4376 = vunpack.c.l.b16 %v2326
      %v4377 = vunpack.c.l.b16 %v2327
      %v4378 = vunpack.c.l.b16 %v2328
      %v4379 = vunpack.c.l.b16 %v2329
      %v4380 = vunpack.c.l.b16 %v2330
      %v4381 = vunpack.c.l.b16 %v2331
      %v4382 = vunpack.c.l.b16 %v2332
      %v4383 = vunpack.c.l.b16 %v2333
      %v4384 = vunpack.c.l.b16 %v2334
      %v4385 = vunpack.c.l.b16 %v2335
      %v4386 = vunpack.c.l.b16 %v2336
      %v4387 = vunpack.c.l.b16 %v2337
      %v4388 = vunpack.c.l.b16 %v2338
      %v4389 = vunpack.c.l.b16 %v2339
      %v4390 = vunpack.c.l.b16 %v2340
      %v4391 = vunpack.c.l.b16 %v2341
      %v4392 = vunpack.c.l.b16 %v2342
      %v4393 = vunpack.c.l.b16 %v2343
      %v4394 = vunpack.c.l.b16 %v2344
      %v4395 = vunpack.c.l.b16 %v2345
      %v4396 = vunpack.c.l.b16 %v2346
      %v4397 = vunpack.c.l.b16 %v2347
      %v4398 = vunpack.c.l.b16 %v2348
      %v4399 = vunpack.c.l.b16 %v2349
      %v4400 = vunpack.c.l.b16 %v2350
      %v4401 = vunpack.c.l.b16 %v2351
      %v4402 = vunpack.c.l.b16 %v2352
      %v4403 = vunpack.c.l.b16 %v2353
      %v4404 = vunpack.c.l.b16 %v2354
      %v4405 = vunpack.c.l.b16 %v2355
      %v4406 = vunpack.c.l.b16 %v2356
      %v4407 = vunpack.c.l.b16 %v2357
      %v4408 = vunpack.c.l.b16 %v2358
      %v4409 = vunpack.c.l.b16 %v2359
      %v4410 = vunpack.c.l.b16 %v2360
      %v4411 = vunpack.c.l.b16 %v2361
      %v4412 = vunpack.c.l.b16 %v2362
      %v4413 = vunpack.c.l.b16 %v2363
      %v4414 = vunpack.c.l.b16 %v2364
      %v4415 = vunpack.c.l.b16 %v2365
      %v4416 = vunpack.c.l.b16 %v2366
      %v4417 = vunpack.c.l.b16 %v2367
      %v4418 = vunpack.c.l.b16 %v2368
      %v4419 = vunpack.c.l.b16 %v2369
      %v4420 = vunpack.c.l.b16 %v2370
      %v4421 = vunpack.c.l.b16 %v2371
      %v4422 = vunpack.c.l.b16 %v2372
      %v4423 = vunpack.c.l.b16 %v2373
      %v4424 = vunpack.c.l.b16 %v2374
      %v4425 = vunpack.c.l.b16 %v2375
      %v4426 = vunpack.c.l.b16 %v2376
      %v4427 = vunpack.c.l.b16 %v2377
      %v4428 = vunpack.c.l.b16 %v2378
      %v4429 = vunpack.c.l.b16 %v2379
      %v4430 = vunpack.c.l.b16 %v2380
      %v4431 = vunpack.c.l.b16 %v2381
      %v4432 = vunpack.c.l.b16 %v2382
      %v4433 = vunpack.c.l.b16 %v2383
      %v4434 = vunpack.c.l.b16 %v2384
      %v4435 = vunpack.c.l.b16 %v2385
      %v4436 = vunpack.c.l.b16 %v2386
      %v4437 = vunpack.c.l.b16 %v2387
      %v4438 = vunpack.c.l.b16 %v2388
      %v4439 = vunpack.c.l.b16 %v2389
      %v4440 = vunpack.c.l.b16 %v2390
      %v4441 = vunpack.c.l.b16 %v2391
      %v4442 = vunpack.c.l.b16 %v2392
      %v4443 = vunpack.c.l.b16 %v2393
      %v4444 = vunpack.c.l.b16 %v2394
      %v4445 = vunpack.c.l.b16 %v2395
      %v4446 = vunpack.c.l.b16 %v2396
      %v4447 = vunpack.c.l.b16 %v2397
      %v4448 = vunpack.c.l.b16 %v2398
      %v4449 = vunpack.c.l.b16 %v2399
      %v4450 = vunpack.c.l.b16 %v2400
      %v4451 = vunpack.c.l.b16 %v2401
      %v4452 = vunpack.c.l.b16 %v2402
      %v4453 = vunpack.c.l.b16 %v2403
      %v4454 = vunpack.c.l.b16 %v2404
      %v4455 = vunpack.c.l.b16 %v2405
      %v4456 = vunpack.c.l.b16 %v2406
      %v4457 = vunpack.c.l.b16 %v2407
      %v4458 = vunpack.c.l.b16 %v2408
      %v4459 = vunpack.c.l.b16 %v2409
      %v4460 = vunpack.c.l.b16 %v2410
      %v4461 = vunpack.c.l.b16 %v2411
      %v4462 = vunpack.c.l.b16 %v2412
      %v4463 = vunpack.c.l.b16 %v2413
      %v4464 = vunpack.c.l.b16 %v2414
      %v4465 = vunpack.c.l.b16 %v2415
      %v4466 = vunpack.c.l.b16 %v2416
      %v4467 = vunpack.c.l.b16 %v2417
      %v4468 = vunpack.c.l.b16 %v2418
      %v4469 = vunpack.c.l.b16 %v2419
      %v4470 = vunpack.c.l.b16 %v2420
      %v4471 = vunpack.c.l.b16 %v2421
      %v4472 = vunpack.c.l.b16 %v2422
      %v4473 = vunpack.c.l.b16 %v2423
      %v4474 = vunpack.c.l.b16 %v2424
      %v4475 = vunpack.c.l.b16 %v2425
      %v4476 = vunpack.c.l.b16 %v2426
      %v4477 = vunpack.c.l.b16 %v2427
      %v4478 = vunpack.c.l.b16 %v2428
      %v4479 = vunpack.c.l.b16 %v2429
      %v4480 = vunpack.c.l.b16 %v2430
      %v4481 = vunpack.c.l.b16 %v2431
      %v4482 = vunpack.c.l.b16 %v2432
      %v4483 = vunpack.c.l.b16 %v2433
      %v4484 = vunpack.c.l.b16 %v2434
      %v4485 = vunpack.c.l.b16 %v2435
      %v4486 = vunpack.c.l.b16 %v2436
      %v4487 = vunpack.c.l.b16 %v2437
      %v4488 = vunpack.c.l.b16 %v2438
      %v4489 = vunpack.c.l.b16 %v2439
      %v4490 = vunpack.c.l.b16 %v2440
      %v4491 = vunpack.c.l.b16 %v2441
      %v4492 = vunpack.c.l.b16 %v2442
      %v4493 = vunpack.c.l.b16 %v2443
      %v4494 = vunpack.c.l.b16 %v2444
      %v4495 = vunpack.c.l.b16 %v2445
      %v4496 = vunpack.c.l.b16 %v2446
      %v4497 = vunpack.c.l.b16 %v2447
      %v4498 = vunpack.c.l.b16 %v2448
      %v4499 = vunpack.c.l.b16 %v2449
      %v4500 = vunpack.c.l.b16 %v2450
      %v4501 = vunpack.c.l.b16 %v2451
      %v4502 = vunpack.c.l.b16 %v2452
      %v4503 = vunpack.c.l.b16 %v2453
      %v4504 = vunpack.c.l.b16 %v2454
      %v4505 = vunpack.c.l.b16 %v2455
      %v4506 = vunpack.c.l.b16 %v2456
      %v4507 = vunpack.c.l.b16 %v2457
      %v4508 = vunpack.c.l.b16 %v2458
      %v4509 = vunpack.c.l.b16 %v2459
      %v4510 = vunpack.c.l.b16 %v2460
      %v4511 = vunpack.c.l.b16 %v2461
      %v4512 = vunpack.c.l.b16 %v2462
      %v4513 = vunpack.c.l.b16 %v2463
      %v4514 = vunpack.c.l.b16 %v2464
      %v4515 = vunpack.c.l.b16 %v2465
      %v4516 = vunpack.c.l.b16 %v2466
      %v4517 = vunpack.c.l.b16 %v2467
      %v4518 = vunpack.c.l.b16 %v2468
      %v4519 = vunpack.c.l.b16 %v2469
      %v4520 = vunpack.c.l.b16 %v2470
      %v4521 = vunpack.c.l.b16 %v2471
      %v4522 = vunpack.c.l.b16 %v2472
      %v4523 = vunpack.c.l.b16 %v2473
      %v4524 = vunpack.c.l.b16 %v2474
      %v4525 = vunpack.c.l.b16 %v2475
      %v4526 = vunpack.c.l.b16 %v2476
      %v4527 = vunpack.c.l.b16 %v2477
      %v4528 = vunpack.c.l.b16 %v2478
      %v4529 = vunpack.c.l.b16 %v2479
      %v4530 = vunpack.c.l.b16 %v2480
      %v4531 = vunpack.c.l.b16 %v2481
      %v4532 = vunpack.c.l.b16 %v2482
      %v4533 = vunpack.c.l.b16 %v2483
      %v4534 = vunpack.c.l.b16 %v2484
      %v4535 = vunpack.c.l.b16 %v2485
      %v4536 = vunpack.c.l.b16 %v2486
      %v4537 = vunpack.c.l.b16 %v2487
      %v4538 = vunpack.c.l.b16 %v2488
      %v4539 = vunpack.c.l.b16 %v2489
      %v4540 = vunpack.c.l.b16 %v2490
      %v4541 = vunpack.c.l.b16 %v2491
      %v4542 = vunpack.c.l.b16 %v2492
      %v4543 = vunpack.c.l.b16 %v2493
      %v4544 = vunpack.c.l.b16 %v2494
      %v4545 = vunpack.c.l.b16 %v2495
      %v4546 = vunpack.c.l.b16 %v2496
      %v4547 = vunpack.c.l.b16 %v2497
      %v4548 = vunpack.c.l.b16 %v2498
      %v4549 = vunpack.c.l.b16 %v2499
      %v4550 = vunpack.c.l.b16 %v2500
      %v4551 = vunpack.c.l.b16 %v2501
      %v4552 = vunpack.c.l.b16 %v2502
      %v4553 = vunpack.c.l.b16 %v2503
      %v4554 = vunpack.c.l.b16 %v2504
      %v4555 = vunpack.c.l.b16 %v2505
      %v4556 = vunpack.c.l.b16 %v2506
      %v4557 = vunpack.c.l.b16 %v2507
      %v4558 = vunpack.c.l.b16 %v2508
      %v4559 = vunpack.c.l.b16 %v2509
      %v4560 = vunpack.c.l.b16 %v2510
      %v4561 = vunpack.c.l.b16 %v2511
      %v4562 = vunpack.c.l.b16 %v2512
      %v4563 = vunpack.c.l.b16 %v2513
      %v4564 = vunpack.c.l.b16 %v2514
      %v4565 = vunpack.c.l.b16 %v2515
      %v4566 = vunpack.c.l.b16 %v2516
      %v4567 = vunpack.c.l.b16 %v2517
      %v4568 = vunpack.c.l.b16 %v2518
      %v4569 = vunpack.c.l.b16 %v2519
      %v4570 = vunpack.c.l.b16 %v2520
      %v4571 = vunpack.c.l.b16 %v2521
      %v4572 = vunpack.c.l.b16 %v2522
      %v4573 = vunpack.c.l.b16 %v2523
      %v4574 = vunpack.c.l.b16 %v2524
      %v4575 = vunpack.c.l.b16 %v2525
      %v4576 = vunpack.c.l.b16 %v2526
      %v4577 = vunpack.c.l.b16 %v2527
      %v4578 = vunpack.c.l.b16 %v2528
      %v4579 = vunpack.c.l.b16 %v2529
      %v4580 = vunpack.c.l.b16 %v2530
      %v4581 = vunpack.c.l.b16 %v2531
      %v4582 = vunpack.c.l.b16 %v2532
      %v4583 = vunpack.c.l.b16 %v2533
      %v4584 = vunpack.c.l.b16 %v2534
      %v4585 = vunpack.c.l.b16 %v2535
      %v4586 = vunpack.c.l.b16 %v2536
      %v4587 = vunpack.c.l.b16 %v2537
      %v4588 = vunpack.c.l.b16 %v2538
      %v4589 = vunpack.c.l.b16 %v2539
      %v4590 = vunpack.c.l.b16 %v2540
      %v4591 = vunpack.c.l.b16 %v2541
      %v4592 = vunpack.c.l.b16 %v2542
      %v4593 = vunpack.c.l.b16 %v2543
      %v4594 = vunpack.c.l.b16 %v2544
      %v4595 = vunpack.c.l.b16 %v2545
      %v4596 = vunpack.c.l.b16 %v2546
      %v4597 = vunpack.c.l.b16 %v2547
      %v4598 = vunpack.c.l.b16 %v2548
      %v4599 = vunpack.c.l.b16 %v2549
      %v4600 = vunpack.c.l.b16 %v2550
      %v4601 = vunpack.c.l.b16 %v2551
      %v4602 = vunpack.c.l.b16 %v2552
      %v4603 = vunpack.c.l.b16 %v2553
      %v4604 = vunpack.c.l.b16 %v2554
      %v4605 = vunpack.c.l.b16 %v2555
      %v4606 = vunpack.c.l.b16 %v2556
      %v4607 = vunpack.c.l.b16 %v2557
      %v4608 = vunpack.c.l.b16 %v2558
      %v4609 = vunpack.c.l.b16 %v2559
      %v4610 = vunpack.c.l.b16 %v2560
      %v4611 = vunpack.c.l.b16 %v2561
      %v4612 = vunpack.c.l.b16 %v2562
      %v4613 = vunpack.c.l.b16 %v2563
      %v4614 = vunpack.c.l.b16 %v2564
      %v4615 = vunpack.c.l.b16 %v2565
      %v4616 = vunpack.c.l.b16 %v2566
      %v4617 = vunpack.c.l.b16 %v2567
      %v4618 = vunpack.c.l.b16 %v2568
      %v4619 = vunpack.c.l.b16 %v2569
      %v4620 = vunpack.c.l.b16 %v2570
      %v4621 = vunpack.c.l.b16 %v2571
      %v4622 = vunpack.c.l.b16 %v2572
      %v4623 = vunpack.c.l.b16 %v2573
      %v4624 = vunpack.c.l.b16 %v2574
      %v4625 = vunpack.c.l.b16 %v2575
      %v4626 = vunpack.c.l.b16 %v2576
      %v4627 = vunpack.c.l.b16 %v2577
      %v4628 = vunpack.c.l.b16 %v2578
      %v4629 = vunpack.c.l.b16 %v2579
      %v4630 = vunpack.c.l.b16 %v2580
      %v4631 = vunpack.c.l.b16 %v2581
      %v4632 = vunpack.c.l.b16 %v2582
      %v4633 = vunpack.c.l.b16 %v2583
      %v4634 = vunpack.c.l.b16 %v2584
      %v4635 = vunpack.c.l.b16 %v2585
      %v4636 = vunpack.c.l.b16 %v2586
      %v4637 = vunpack.c.l.b16 %v2587
      %v4638 = vunpack.c.l.b16 %v2588
      %v4639 = vunpack.c.l.b16 %v2589
      %v4640 = vunpack.c.l.b16 %v2590
      %v4641 = vunpack.c.l.b16 %v2591
      %v4642 = vunpack.c.l.b16 %v2592
      %v4643 = vunpack.c.l.b16 %v2593
      %v4644 = vunpack.c.l.b16 %v2594
      %v4645 = vunpack.c.l.b16 %v2595
      %v4646 = vunpack.c.l.b16 %v2596
      %v4647 = vunpack.c.l.b16 %v2597
      %v4648 = vunpack.c.l.b16 %v2598
      %v4649 = vunpack.c.l.b16 %v2599
      %v4650 = vunpack.c.l.b16 %v2600
      %v4651 = vunpack.c.l.b16 %v2601
      %v4652 = vunpack.c.l.b16 %v2602
      %v4653 = vunpack.c.l.b16 %v2603
      %v4654 = vunpack.c.l.b16 %v2604
      %v4655 = vunpack.c.l.b16 %v2605
      %v4656 = vunpack.c.l.b16 %v2606
      %v4657 = vunpack.c.l.b16 %v2607
      %v4658 = vunpack.c.l.b16 %v2608
      %v4659 = vunpack.c.l.b16 %v2609
      %v4660 = vunpack.c.l.b16 %v2610
      %v4661 = vunpack.c.l.b16 %v2611
      %v4662 = vunpack.c.l.b16 %v2612
      %v4663 = vunpack.c.l.b16 %v2613
      %v4664 = vunpack.c.l.b16 %v2614
      %v4665 = vunpack.c.l.b16 %v2615
      %v4666 = vunpack.c.l.b16 %v2616
      %v4667 = vunpack.c.l.b16 %v2617
      %v4668 = vunpack.c.l.b16 %v2618
      %v4669 = vunpack.c.l.b16 %v2619
      %v4670 = vunpack.c.l.b16 %v2620
      %v4671 = vunpack.c.l.b16 %v2621
      %v4672 = vunpack.c.l.b16 %v2622
      %v4673 = vunpack.c.l.b16 %v2623
      %v4674 = vunpack.c.l.b16 %v2624
      %v4675 = vunpack.c.l.b16 %v2625
      %v4676 = vunpack.c.l.b16 %v2626
      %v4677 = vunpack.c.l.b16 %v2627
      %v4678 = vunpack.c.l.b16 %v2628
      %v4679 = vunpack.c.l.b16 %v2629
      %v4680 = vunpack.c.l.b16 %v2630
      %v4681 = vunpack.c.l.b16 %v2631
      %v4682 = vunpack.c.l.b16 %v2632
      %v4683 = vunpack.c.l.b16 %v2633
      %v4684 = vunpack.c.l.b16 %v2634
      %v4685 = vunpack.c.l.b16 %v2635
      %v4686 = vunpack.c.l.b16 %v2636
      %v4687 = vunpack.c.l.b16 %v2637
      %v4688 = vunpack.c.l.b16 %v2638
      %v4689 = vunpack.c.l.b16 %v2639
      %v4690 = vunpack.c.l.b16 %v2640
      %v4691 = vunpack.c.l.b16 %v2641
      %v4692 = vunpack.c.l.b16 %v2642
      %v4693 = vunpack.c.l.b16 %v2643
      %v4694 = vunpack.c.l.b16 %v2644
      %v4695 = vunpack.c.l.b16 %v2645
      %v4696 = vunpack.c.l.b16 %v2646
      %v4697 = vunpack.c.l.b16 %v2647
      %v4698 = vunpack.c.l.b16 %v2648
      %v4699 = vunpack.c.l.b16 %v2649
      %v4700 = vunpack.c.l.b16 %v2650
      %v4701 = vunpack.c.l.b16 %v2651
      %v4702 = vunpack.c.l.b16 %v2652
      %v4703 = vunpack.c.l.b16 %v2653
      %v4704 = vunpack.c.l.b16 %v2654
      %v4705 = vunpack.c.l.b16 %v2655
      %v4706 = vunpack.c.l.b16 %v2656
      %v4707 = vunpack.c.l.b16 %v2657
      %v4708 = vunpack.c.l.b16 %v2658
      %v4709 = vunpack.c.l.b16 %v2659
      %v4710 = vunpack.c.l.b16 %v2660
      %v4711 = vunpack.c.l.b16 %v2661
      %v4712 = vunpack.c.l.b16 %v2662
      %v4713 = vunpack.c.l.b16 %v2663
      %v4714 = vunpack.c.l.b16 %v2664
      %v4715 = vunpack.c.l.b16 %v2665
      %v4716 = vunpack.c.l.b16 %v2666
      %v4717 = vunpack.c.l.b16 %v2667
      %v4718 = vunpack.c.l.b16 %v2668
      %v4719 = vunpack.c.l.b16 %v2669
      %v4720 = vunpack.c.l.b16 %v2670
      %v4721 = vunpack.c.l.b16 %v2671
      %v4722 = vunpack.c.l.b16 %v2672
      %v4723 = vunpack.c.l.b16 %v2673
      %v4724 = vunpack.c.l.b16 %v2674
      %v4725 = vunpack.c.l.b16 %v2675
      %v4726 = vunpack.c.l.b16 %v2676
      %v4727 = vunpack.c.l.b16 %v2677
      %v4728 = vunpack.c.l.b16 %v2678
      %v4729 = vunpack.c.l.b16 %v2679
      %v4730 = vunpack.c.l.b16 %v2680
      %v4731 = vunpack.c.l.b16 %v2681
      %v4732 = vunpack.c.l.b16 %v2682
      %v4733 = vunpack.c.l.b16 %v2683
      %v4734 = vunpack.c.l.b16 %v2684
      %v4735 = vunpack.c.l.b16 %v2685
      %v4736 = vunpack.c.l.b16 %v2686
      %v4737 = vunpack.c.l.b16 %v2687
      %v4738 = vunpack.c.l.b16 %v2688
      %v4739 = vunpack.c.l.b16 %v2689
      %v4740 = vunpack.c.l.b16 %v2690
      %v4741 = vunpack.c.l.b16 %v2691
      %v4742 = vunpack.c.l.b16 %v2692
      %v4743 = vunpack.c.l.b16 %v2693
      %v4744 = vunpack.c.l.b16 %v2694
      %v4745 = vunpack.c.l.b16 %v2695
      %v4746 = vunpack.c.l.b16 %v2696
      %v4747 = vunpack.c.l.b16 %v2697
      %v4748 = vunpack.c.l.b16 %v2698
      %v4749 = vunpack.c.l.b16 %v2699
      %v4750 = vunpack.c.l.b16 %v2700
      %v4751 = vunpack.c.l.b16 %v2701
      %v4752 = vunpack.c.l.b16 %v2702
      %v4753 = vunpack.c.l.b16 %v2703
      %v4754 = vunpack.c.l.b16 %v2704
      %v4755 = vunpack.c.l.b16 %v2705
      %v4756 = vunpack.c.l.b16 %v2706
      %v4757 = vunpack.c.l.b16 %v2707
      %v4758 = vunpack.c.l.b16 %v2708
      %v4759 = vunpack.c.l.b16 %v2709
      %v4760 = vunpack.c.l.b16 %v2710
      %v4761 = vunpack.c.l.b16 %v2711
      %v4762 = vunpack.c.l.b16 %v2712
      %v4763 = vunpack.c.l.b16 %v2713
      %v4764 = vunpack.c.l.b16 %v2714
      %v4765 = vunpack.c.l.b16 %v2715
      %v4766 = vunpack.c.l.b16 %v2716
      %v4767 = vunpack.c.l.b16 %v2717
      %v4768 = vunpack.c.l.b16 %v2718
      %v4769 = vunpack.c.l.b16 %v2719
      %v4770 = vunpack.c.l.b16 %v2720
      %v4771 = vunpack.c.l.b16 %v2721
      %v4772 = vunpack.c.l.b16 %v2722
      %v4773 = vunpack.c.l.b16 %v2723
      %v4774 = vunpack.c.l.b16 %v2724
      %v4775 = vunpack.c.l.b16 %v2725
      %v4776 = vunpack.c.l.b16 %v2726
      %v4777 = vunpack.c.l.b16 %v2727
      %v4778 = vunpack.c.l.b16 %v2728
      %v4779 = vunpack.c.l.b16 %v2729
      %v4780 = vunpack.c.l.b16 %v2730
      %v4781 = vunpack.c.l.b16 %v2731
      %v4782 = vunpack.c.l.b16 %v2732
      %v4783 = vunpack.c.l.b16 %v2733
      %v4784 = vunpack.c.l.b16 %v2734
      %v4785 = vunpack.c.l.b16 %v2735
      %v4786 = vunpack.c.l.b16 %v2736
      %v4787 = vunpack.c.l.b16 %v2737
      %v4788 = vunpack.c.l.b16 %v2738
      %v4789 = vunpack.c.l.b16 %v2739
      %v4790 = vunpack.c.l.b16 %v2740
      %v4791 = vunpack.c.l.b16 %v2741
      %v4792 = vunpack.c.l.b16 %v2742
      %v4793 = vunpack.c.l.b16 %v2743
      %v4794 = vunpack.c.l.b16 %v2744
      %v4795 = vunpack.c.l.b16 %v2745
      %v4796 = vunpack.c.l.b16 %v2746
      %v4797 = vunpack.c.l.b16 %v2747
      %v4798 = vunpack.c.l.b16 %v2748
      %v4799 = vunpack.c.l.b16 %v2749
      %v4800 = vunpack.c.l.b16 %v2750
      %v4801 = vunpack.c.l.b16 %v2751
      %v4802 = vunpack.c.l.b16 %v2752
      %v4803 = vunpack.c.l.b16 %v2753
      %v4804 = vunpack.c.l.b16 %v2754
      %v4805 = vunpack.c.l.b16 %v2755
      %v4806 = vunpack.c.l.b16 %v2756
      %v4807 = vunpack.c.l.b16 %v2757
      %v4808 = vunpack.c.l.b16 %v2758
      %v4809 = vunpack.c.l.b16 %v2759
      %v4810 = vunpack.c.l.b16 %v2760
      %v4811 = vunpack.c.l.b16 %v2761
      %v4812 = vunpack.c.l.b16 %v2762
      %v4813 = vunpack.c.l.b16 %v2763
      %v4814 = vunpack.c.l.b16 %v2764
      %v4815 = vunpack.c.l.b16 %v2765
      %v4816 = vunpack.c.l.b16 %v2766
      %v4817 = vunpack.c.l.b16 %v2767
      %v4818 = vunpack.c.l.b16 %v2768
      %v4819 = vunpack.c.l.b16 %v2769
      %v4820 = vunpack.c.l.b16 %v2770
      %v4821 = vunpack.c.l.b16 %v2771
      %v4822 = vunpack.c.l.b16 %v2772
      %v4823 = vunpack.c.l.b16 %v2773
      %v4824 = vunpack.c.l.b16 %v2774
      %v4825 = vunpack.c.l.b16 %v2775
      %v4826 = vunpack.c.l.b16 %v2776
      %v4827 = vunpack.c.l.b16 %v2777
      %v4828 = vunpack.c.l.b16 %v2778
      %v4829 = vunpack.c.l.b16 %v2779
      %v4830 = vunpack.c.l.b16 %v2780
      %v4831 = vunpack.c.l.b16 %v2781
      %v4832 = vunpack.c.l.b16 %v2782
      %v4833 = vunpack.c.l.b16 %v2783
      %v4834 = vunpack.c.l.b16 %v2784
      %v4835 = vunpack.c.l.b16 %v2785
      %v4836 = vunpack.c.l.b16 %v2786
      %v4837 = vunpack.c.l.b16 %v2787
      %v4838 = vunpack.c.l.b16 %v2788
      %v4839 = vunpack.c.l.b16 %v2789
      %v4840 = vunpack.c.l.b16 %v2790
      %v4841 = vunpack.c.l.b16 %v2791
      %v4842 = vunpack.c.l.b16 %v2792
      %v4843 = vunpack.c.l.b16 %v2793
      %v4844 = vunpack.c.l.b16 %v2794
      %v4845 = vunpack.c.l.b16 %v2795
      %v4846 = vunpack.c.l.b16 %v2796
      %v4847 = vunpack.c.l.b16 %v2797
      %v4848 = vunpack.c.l.b16 %v2798
      %v4849 = vunpack.c.l.b16 %v2799
      %v4850 = vunpack.c.l.b16 %v2800
      %v4851 = vunpack.c.l.b16 %v2801
      %v4852 = vunpack.c.l.b16 %v2802
      %v4853 = vunpack.c.l.b16 %v2803
      %v4854 = vunpack.c.l.b16 %v2804
      %v4855 = vunpack.c.l.b16 %v2805
      %v4856 = vunpack.c.l.b16 %v2806
      %v4857 = vunpack.c.l.b16 %v2807
      %v4858 = vunpack.c.l.b16 %v2808
      %v4859 = vunpack.c.l.b16 %v2809
      %v4860 = vunpack.c.l.b16 %v2810
      %v4861 = vunpack.c.l.b16 %v2811
      %v4862 = vunpack.c.l.b16 %v2812
      %v4863 = vunpack.c.l.b16 %v2813
      %v4864 = vunpack.c.l.b16 %v2814
      %v4865 = vunpack.c.l.b16 %v2815
      %v4866 = vunpack.c.l.b16 %v2816
      %v4867 = vunpack.c.l.b16 %v2817
      %v4868 = vunpack.c.l.b16 %v2818
      %v4869 = vunpack.c.l.b16 %v2819
      %v4870 = vunpack.c.l.b16 %v2820
      %v4871 = vunpack.c.l.b16 %v2821
      %v4872 = vunpack.c.l.b16 %v2822
      %v4873 = vunpack.c.l.b16 %v2823
      %v4874 = vunpack.c.l.b16 %v2824
      %v4875 = vunpack.c.l.b16 %v2825
      %v4876 = vunpack.c.l.b16 %v2826
      %v4877 = vunpack.c.l.b16 %v2827
      %v4878 = vunpack.c.l.b16 %v2828
      %v4879 = vunpack.c.l.b16 %v2829
      %v4880 = vunpack.c.l.b16 %v2830
      %v4881 = vunpack.c.l.b16 %v2831
      %v4882 = vunpack.c.l.b16 %v2832
      %v4883 = vunpack.c.l.b16 %v2833
      %v4884 = vunpack.c.l.b16 %v2834
      %v4885 = vunpack.c.l.b16 %v2835
      %v4886 = vunpack.c.l.b16 %v2836
      %v4887 = vunpack.c.l.b16 %v2837
      %v4888 = vunpack.c.l.b16 %v2838
      %v4889 = vunpack.c.l.b16 %v2839
      %v4890 = vunpack.c.l.b16 %v2840
      %v4891 = vunpack.c.l.b16 %v2841
      %v4892 = vunpack.c.l.b16 %v2842
      %v4893 = vunpack.c.l.b16 %v2843
      %v4894 = vpack.c.b16 %v3872, %v3871
      %v4895 = vpack.c.b16 %v3874, %v3873
      %v4896 = vpack.c.b16 %v3876, %v3875
      %v4897 = vpack.c.b16 %v3878, %v3877
      %v4898 = vpack.c.b16 %v3880, %v3879
      %v4899 = vpack.c.b16 %v3882, %v3881
      %v4900 = vpack.c.b16 %v3884, %v3883
      %v4901 = vpack.c.b16 %v3886, %v3885
      %v4902 = vpack.c.b16 %v3888, %v3887
      %v4903 = vpack.c.b16 %v3890, %v3889
      %v4904 = vpack.c.b16 %v3892, %v3891
      %v4905 = vpack.c.b16 %v3894, %v3893
      %v4906 = vpack.c.b16 %v3896, %v3895
      %v4907 = vpack.c.b16 %v3898, %v3897
      %v4908 = vpack.c.b16 %v3900, %v3899
      %v4909 = vpack.c.b16 %v3902, %v3901
      %v4910 = vpack.c.b16 %v3904, %v3903
      %v4911 = vpack.c.b16 %v3906, %v3905
      %v4912 = vpack.c.b16 %v3908, %v3907
      %v4913 = vpack.c.b16 %v3910, %v3909
      %v4914 = vpack.c.b16 %v3912, %v3911
      %v4915 = vpack.c.b16 %v3914, %v3913
      %v4916 = vpack.c.b16 %v3916, %v3915
      %v4917 = vpack.c.b16 %v3918, %v3917
      %v4918 = vpack.c.b16 %v3920, %v3919
      %v4919 = vpack.c.b16 %v3922, %v3921
      %v4920 = vpack.c.b16 %v3924, %v3923
      %v4921 = vpack.c.b16 %v3926, %v3925
      %v4922 = vpack.c.b16 %v3928, %v3927
      %v4923 = vpack.c.b16 %v3930, %v3929
      %v4924 = vpack.c.b16 %v3932, %v3931
      %v4925 = vpack.c.b16 %v3934, %v3933
      %v4926 = vpack.c.b16 %v3936, %v3935
      %v4927 = vpack.c.b16 %v3938, %v3937
      %v4928 = vpack.c.b16 %v3940, %v3939
      %v4929 = vpack.c.b16 %v3942, %v3941
      %v4930 = vpack.c.b16 %v3944, %v3943
      %v4931 = vpack.c.b16 %v3946, %v3945
      %v4932 = vpack.c.b16 %v3948, %v3947
      %v4933 = vpack.c.b16 %v3950, %v3949
      %v4934 = vpack.c.b16 %v3952, %v3951
      %v4935 = vpack.c.b16 %v3954, %v3953
      %v4936 = vpack.c.b16 %v3956, %v3955
      %v4937 = vpack.c.b16 %v3958, %v3957
      %v4938 = vpack.c.b16 %v3960, %v3959
      %v4939 = vpack.c.b16 %v3962, %v3961
      %v4940 = vpack.c.b16 %v3964, %v3963
      %v4941 = vpack.c.b16 %v3966, %v3965
      %v4942 = vpack.c.b16 %v3968, %v3967
      %v4943 = vpack.c.b16 %v3970, %v3969
      %v4944 = vpack.c.b16 %v3972, %v3971
      %v4945 = vpack.c.b16 %v3974, %v3973
      %v4946 = vpack.c.b16 %v3976, %v3975
      %v4947 = vpack.c.b16 %v3978, %v3977
      %v4948 = vpack.c.b16 %v3980, %v3979
      %v4949 = vpack.c.b16 %v3982, %v3981
      %v4950 = vpack.c.b16 %v3984, %v3983
      %v4951 = vpack.c.b16 %v3986, %v3985
      %v4952 = vpack.c.b16 %v3988, %v3987
      %v4953 = vpack.c.b16 %v3990, %v3989
      %v4954 = vpack.c.b16 %v3992, %v3991
      %v4955 = vpack.c.b16 %v3994, %v3993
      %v4956 = vpack.c.b16 %v3996, %v3995
      %v4957 = vpack.c.b16 %v3998, %v3997
      %v4958 = vpack.c.b16 %v4000, %v3999
      %v4959 = vpack.c.b16 %v4002, %v4001
      %v4960 = vpack.c.b16 %v4004, %v4003
      %v4961 = vpack.c.b16 %v4006, %v4005
      %v4962 = vpack.c.b16 %v4008, %v4007
      %v4963 = vpack.c.b16 %v4010, %v4009
      %v4964 = vpack.c.b16 %v4012, %v4011
      %v4965 = vpack.c.b16 %v4014, %v4013
      %v4966 = vpack.c.b16 %v4016, %v4015
      %v4967 = vpack.c.b16 %v4018, %v4017
      %v4968 = vpack.c.b16 %v4020, %v4019
      %v4969 = vpack.c.b16 %v4022, %v4021
      %v4970 = vpack.c.b16 %v4024, %v4023
      %v4971 = vpack.c.b16 %v4026, %v4025
      %v4972 = vpack.c.b16 %v4028, %v4027
      %v4973 = vpack.c.b16 %v4030, %v4029
      %v4974 = vpack.c.b16 %v4032, %v4031
      %v4975 = vpack.c.b16 %v4034, %v4033
      %v4976 = vpack.c.b16 %v4036, %v4035
      %v4977 = vpack.c.b16 %v4038, %v4037
      %v4978 = vpack.c.b16 %v4040, %v4039
      %v4979 = vpack.c.b16 %v4042, %v4041
      %v4980 = vpack.c.b16 %v4044, %v4043
      %v4981 = vpack.c.b16 %v4046, %v4045
      %v4982 = vpack.c.b16 %v4048, %v4047
      %v4983 = vpack.c.b16 %v4050, %v4049
      %v4984 = vpack.c.b16 %v4052, %v4051
      %v4985 = vpack.c.b16 %v4054, %v4053
      %v4986 = vpack.c.b16 %v4056, %v4055
      %v4987 = vpack.c.b16 %v4058, %v4057
      %v4988 = vpack.c.b16 %v4060, %v4059
      %v4989 = vpack.c.b16 %v4062, %v4061
      %v4990 = vpack.c.b16 %v4064, %v4063
      %v4991 = vpack.c.b16 %v4066, %v4065
      %v4992 = vpack.c.b16 %v4068, %v4067
      %v4993 = vpack.c.b16 %v4070, %v4069
      %v4994 = vpack.c.b16 %v4072, %v4071
      %v4995 = vpack.c.b16 %v4074, %v4073
      %v4996 = vpack.c.b16 %v4076, %v4075
      %v4997 = vpack.c.b16 %v4078, %v4077
      %v4998 = vpack.c.b16 %v4080, %v4079
      %v4999 = vpack.c.b16 %v4082, %v4081
      %v5000 = vpack.c.b16 %v4084, %v4083
      %v5001 = vpack.c.b16 %v4086, %v4085
      %v5002 = vpack.c.b16 %v4088, %v4087
      %v5003 = vpack.c.b16 %v4090, %v4089
      %v5004 = vpack.c.b16 %v4092, %v4091
      %v5005 = vpack.c.b16 %v4094, %v4093
      %v5006 = vpack.c.b16 %v4096, %v4095
      %v5007 = vpack.c.b16 %v4098, %v4097
      %v5008 = vpack.c.b16 %v4100, %v4099
      %v5009 = vpack.c.b16 %v4102, %v4101
      %v5010 = vpack.c.b16 %v4104, %v4103
      %v5011 = vpack.c.b16 %v4106, %v4105
      %v5012 = vpack.c.b16 %v4108, %v4107
      %v5013 = vpack.c.b16 %v4110, %v4109
      %v5014 = vpack.c.b16 %v4112, %v4111
      %v5015 = vpack.c.b16 %v4114, %v4113
      %v5016 = vpack.c.b16 %v4116, %v4115
      %v5017 = vpack.c.b16 %v4118, %v4117
      %v5018 = vpack.c.b16 %v4120, %v4119
      %v5019 = vpack.c.b16 %v4122, %v4121
      %v5020 = vpack.c.b16 %v4124, %v4123
      %v5021 = vpack.c.b16 %v4126, %v4125
      %v5022 = vpack.c.b16 %v4128, %v4127
      %v5023 = vpack.c.b16 %v4130, %v4129
      %v5024 = vpack.c.b16 %v4132, %v4131
      %v5025 = vpack.c.b16 %v4134, %v4133
      %v5026 = vpack.c.b16 %v4136, %v4135
      %v5027 = vpack.c.b16 %v4138, %v4137
      %v5028 = vpack.c.b16 %v4140, %v4139
      %v5029 = vpack.c.b16 %v4142, %v4141
      %v5030 = vpack.c.b16 %v4144, %v4143
      %v5031 = vpack.c.b16 %v4146, %v4145
      %v5032 = vpack.c.b16 %v4148, %v4147
      %v5033 = vpack.c.b16 %v4150, %v4149
      %v5034 = vpack.c.b16 %v4152, %v4151
      %v5035 = vpack.c.b16 %v4154, %v4153
      %v5036 = vpack.c.b16 %v4156, %v4155
      %v5037 = vpack.c.b16 %v4158, %v4157
      %v5038 = vpack.c.b16 %v4160, %v4159
      %v5039 = vpack.c.b16 %v4162, %v4161
      %v5040 = vpack.c.b16 %v4164, %v4163
      %v5041 = vpack.c.b16 %v4166, %v4165
      %v5042 = vpack.c.b16 %v4168, %v4167
      %v5043 = vpack.c.b16 %v4170, %v4169
      %v5044 = vpack.c.b16 %v4172, %v4171
      %v5045 = vpack.c.b16 %v4174, %v4173
      %v5046 = vpack.c.b16 %v4176, %v4175
      %v5047 = vpack.c.b16 %v4178, %v4177
      %v5048 = vpack.c.b16 %v4180, %v4179
      %v5049 = vpack.c.b16 %v4182, %v4181
      %v5050 = vpack.c.b16 %v4184, %v4183
      %v5051 = vpack.c.b16 %v4186, %v4185
      %v5052 = vpack.c.b16 %v4188, %v4187
      %v5053 = vpack.c.b16 %v4190, %v4189
      %v5054 = vpack.c.b16 %v4192, %v4191
      %v5055 = vpack.c.b16 %v4194, %v4193
      %v5056 = vpack.c.b16 %v4196, %v4195
      %v5057 = vpack.c.b16 %v4198, %v4197
      %v5058 = vpack.c.b16 %v4200, %v4199
      %v5059 = vpack.c.b16 %v4202, %v4201
      %v5060 = vpack.c.b16 %v4204, %v4203
      %v5061 = vpack.c.b16 %v4206, %v4205
      %v5062 = vpack.c.b16 %v4208, %v4207
      %v5063 = vpack.c.b16 %v4210, %v4209
      %v5064 = vpack.c.b16 %v4212, %v4211
      %v5065 = vpack.c.b16 %v4214, %v4213
      %v5066 = vpack.c.b16 %v4216, %v4215
      %v5067 = vpack.c.b16 %v4218, %v4217
      %v5068 = vpack.c.b16 %v4220, %v4219
      %v5069 = vpack.c.b16 %v4222, %v4221
      %v5070 = vpack.c.b16 %v4224, %v4223
      %v5071 = vpack.c.b16 %v4226, %v4225
      %v5072 = vpack.c.b16 %v4228, %v4227
      %v5073 = vpack.c.b16 %v4230, %v4229
      %v5074 = vpack.c.b16 %v4232, %v4231
      %v5075 = vpack.c.b16 %v4234, %v4233
      %v5076 = vpack.c.b16 %v4236, %v4235
      %v5077 = vpack.c.b16 %v4238, %v4237
      %v5078 = vpack.c.b16 %v4240, %v4239
      %v5079 = vpack.c.b16 %v4242, %v4241
      %v5080 = vpack.c.b16 %v4244, %v4243
      %v5081 = vpack.c.b16 %v4246, %v4245
      %v5082 = vpack.c.b16 %v4248, %v4247
      %v5083 = vpack.c.b16 %v4250, %v4249
      %v5084 = vpack.c.b16 %v4252, %v4251
      %v5085 = vpack.c.b16 %v4254, %v4253
      %v5086 = vpack.c.b16 %v4256, %v4255
      %v5087 = vpack.c.b16 %v4258, %v4257
      %v5088 = vpack.c.b16 %v4260, %v4259
      %v5089 = vpack.c.b16 %v4262, %v4261
      %v5090 = vpack.c.b16 %v4264, %v4263
      %v5091 = vpack.c.b16 %v4266, %v4265
      %v5092 = vpack.c.b16 %v4268, %v4267
      %v5093 = vpack.c.b16 %v4270, %v4269
      %v5094 = vpack.c.b16 %v4272, %v4271
      %v5095 = vpack.c.b16 %v4274, %v4273
      %v5096 = vpack.c.b16 %v4276, %v4275
      %v5097 = vpack.c.b16 %v4278, %v4277
      %v5098 = vpack.c.b16 %v4280, %v4279
      %v5099 = vpack.c.b16 %v4282, %v4281
      %v5100 = vpack.c.b16 %v4284, %v4283
      %v5101 = vpack.c.b16 %v4286, %v4285
      %v5102 = vpack.c.b16 %v4288, %v4287
      %v5103 = vpack.c.b16 %v4290, %v4289
      %v5104 = vpack.c.b16 %v4292, %v4291
      %v5105 = vpack.c.b16 %v4294, %v4293
      %v5106 = vpack.c.b16 %v4296, %v4295
      %v5107 = vpack.c.b16 %v4298, %v4297
      %v5108 = vpack.c.b16 %v4300, %v4299
      %v5109 = vpack.c.b16 %v4302, %v4301
      %v5110 = vpack.c.b16 %v4304, %v4303
      %v5111 = vpack.c.b16 %v4306, %v4305
      %v5112 = vpack.c.b16 %v4308, %v4307
      %v5113 = vpack.c.b16 %v4310, %v4309
      %v5114 = vpack.c.b16 %v4312, %v4311
      %v5115 = vpack.c.b16 %v4314, %v4313
      %v5116 = vpack.c.b16 %v4316, %v4315
      %v5117 = vpack.c.b16 %v4318, %v4317
      %v5118 = vpack.c.b16 %v4320, %v4319
      %v5119 = vpack.c.b16 %v4322, %v4321
      %v5120 = vpack.c.b16 %v4324, %v4323
      %v5121 = vpack.c.b16 %v4326, %v4325
      %v5122 = vpack.c.b16 %v4328, %v4327
      %v5123 = vpack.c.b16 %v4330, %v4329
      %v5124 = vpack.c.b16 %v4332, %v4331
      %v5125 = vpack.c.b16 %v4334, %v4333
      %v5126 = vpack.c.b16 %v4336, %v4335
      %v5127 = vpack.c.b16 %v4338, %v4337
      %v5128 = vpack.c.b16 %v4340, %v4339
      %v5129 = vpack.c.b16 %v4342, %v4341
      %v5130 = vpack.c.b16 %v4344, %v4343
      %v5131 = vpack.c.b16 %v4346, %v4345
      %v5132 = vpack.c.b16 %v4348, %v4347
      %v5133 = vpack.c.b16 %v4350, %v4349
      %v5134 = vpack.c.b16 %v4352, %v4351
      %v5135 = vpack.c.b16 %v4354, %v4353
      %v5136 = vpack.c.b16 %v4356, %v4355
      %v5137 = vpack.c.b16 %v4358, %v4357
      %v5138 = vpack.c.b16 %v4360, %v4359
      %v5139 = vpack.c.b16 %v4362, %v4361
      %v5140 = vpack.c.b16 %v4364, %v4363
      %v5141 = vpack.c.b16 %v4366, %v4365
      %v5142 = vpack.c.b16 %v4368, %v4367
      %v5143 = vpack.c.b16 %v4370, %v4369
      %v5144 = vpack.c.b16 %v4372, %v4371
      %v5145 = vpack.c.b16 %v4374, %v4373
      %v5146 = vpack.c.b16 %v4376, %v4375
      %v5147 = vpack.c.b16 %v4378, %v4377
      %v5148 = vpack.c.b16 %v4380, %v4379
      %v5149 = vpack.c.b16 %v4382, %v4381
      %v5150 = vpack.c.b16 %v4384, %v4383
      %v5151 = vpack.c.b16 %v4386, %v4385
      %v5152 = vpack.c.b16 %v4388, %v4387
      %v5153 = vpack.c.b16 %v4390, %v4389
      %v5154 = vpack.c.b16 %v4392, %v4391
      %v5155 = vpack.c.b16 %v4394, %v4393
      %v5156 = vpack.c.b16 %v4396, %v4395
      %v5157 = vpack.c.b16 %v4398, %v4397
      %v5158 = vpack.c.b16 %v4400, %v4399
      %v5159 = vpack.c.b16 %v4402, %v4401
      %v5160 = vpack.c.b16 %v4404, %v4403
      %v5161 = vpack.c.b16 %v4406, %v4405
      %v5162 = vpack.c.b16 %v4408, %v4407
      %v5163 = vpack.c.b16 %v4410, %v4409
      %v5164 = vpack.c.b16 %v4412, %v4411
      %v5165 = vpack.c.b16 %v4414, %v4413
      %v5166 = vpack.c.b16 %v4416, %v4415
      %v5167 = vpack.c.b16 %v4418, %v4417
      %v5168 = vpack.c.b16 %v4420, %v4419
      %v5169 = vpack.c.b16 %v4422, %v4421
      %v5170 = vpack.c.b16 %v4424, %v4423
      %v5171 = vpack.c.b16 %v4426, %v4425
      %v5172 = vpack.c.b16 %v4428, %v4427
      %v5173 = vpack.c.b16 %v4430, %v4429
      %v5174 = vpack.c.b16 %v4432, %v4431
      %v5175 = vpack.c.b16 %v4434, %v4433
      %v5176 = vpack.c.b16 %v4436, %v4435
      %v5177 = vpack.c.b16 %v4438, %v4437
      %v5178 = vpack.c.b16 %v4440, %v4439
      %v5179 = vpack.c.b16 %v4442, %v4441
      %v5180 = vpack.c.b16 %v4444, %v4443
      %v5181 = vpack.c.b16 %v4446, %v4445
      %v5182 = vpack.c.b16 %v4448, %v4447
      %v5183 = vpack.c.b16 %v4450, %v4449
      %v5184 = vpack.c.b16 %v4452, %v4451
      %v5185 = vpack.c.b16 %v4454, %v4453
      %v5186 = vpack.c.b16 %v4456, %v4455
      %v5187 = vpack.c.b16 %v4458, %v4457
      %v5188 = vpack.c.b16 %v4460, %v4459
      %v5189 = vpack.c.b16 %v4462, %v4461
      %v5190 = vpack.c.b16 %v4464, %v4463
      %v5191 = vpack.c.b16 %v4466, %v4465
      %v5192 = vpack.c.b16 %v4468, %v4467
      %v5193 = vpack.c.b16 %v4470, %v4469
      %v5194 = vpack.c.b16 %v4472, %v4471
      %v5195 = vpack.c.b16 %v4474, %v4473
      %v5196 = vpack.c.b16 %v4476, %v4475
      %v5197 = vpack.c.b16 %v4478, %v4477
      %v5198 = vpack.c.b16 %v4480, %v4479
      %v5199 = vpack.c.b16 %v4482, %v4481
      %v5200 = vpack.c.b16 %v4484, %v4483
      %v5201 = vpack.c.b16 %v4486, %v4485
      %v5202 = vpack.c.b16 %v4488, %v4487
      %v5203 = vpack.c.b16 %v4490, %v4489
      %v5204 = vpack.c.b16 %v4492, %v4491
      %v5205 = vpack.c.b16 %v4494, %v4493
      %v5206 = vpack.c.b16 %v4496, %v4495
      %v5207 = vpack.c.b16 %v4498, %v4497
      %v5208 = vpack.c.b16 %v4500, %v4499
      %v5209 = vpack.c.b16 %v4502, %v4501
      %v5210 = vpack.c.b16 %v4504, %v4503
      %v5211 = vpack.c.b16 %v4506, %v4505
      %v5212 = vpack.c.b16 %v4508, %v4507
      %v5213 = vpack.c.b16 %v4510, %v4509
      %v5214 = vpack.c.b16 %v4512, %v4511
      %v5215 = vpack.c.b16 %v4514, %v4513
      %v5216 = vpack.c.b16 %v4516, %v4515
      %v5217 = vpack.c.b16 %v4518, %v4517
      %v5218 = vpack.c.b16 %v4520, %v4519
      %v5219 = vpack.c.b16 %v4522, %v4521
      %v5220 = vpack.c.b16 %v4524, %v4523
      %v5221 = vpack.c.b16 %v4526, %v4525
      %v5222 = vpack.c.b16 %v4528, %v4527
      %v5223 = vpack.c.b16 %v4530, %v4529
      %v5224 = vpack.c.b16 %v4532, %v4531
      %v5225 = vpack.c.b16 %v4534, %v4533
      %v5226 = vpack.c.b16 %v4536, %v4535
      %v5227 = vpack.c.b16 %v4538, %v4537
      %v5228 = vpack.c.b16 %v4540, %v4539
      %v5229 = vpack.c.b16 %v4542, %v4541
      %v5230 = vpack.c.b16 %v4544, %v4543
      %v5231 = vpack.c.b16 %v4546, %v4545
      %v5232 = vpack.c.b16 %v4548, %v4547
      %v5233 = vpack.c.b16 %v4550, %v4549
      %v5234 = vpack.c.b16 %v4552, %v4551
      %v5235 = vpack.c.b16 %v4554, %v4553
      %v5236 = vpack.c.b16 %v4556, %v4555
      %v5237 = vpack.c.b16 %v4558, %v4557
      %v5238 = vpack.c.b16 %v4560, %v4559
      %v5239 = vpack.c.b16 %v4562, %v4561
      %v5240 = vpack.c.b16 %v4564, %v4563
      %v5241 = vpack.c.b16 %v4566, %v4565
      %v5242 = vpack.c.b16 %v4568, %v4567
      %v5243 = vpack.c.b16 %v4570, %v4569
      %v5244 = vpack.c.b16 %v4572, %v4571
      %v5245 = vpack.c.b16 %v4574, %v4573
      %v5246 = vpack.c.b16 %v4576, %v4575
      %v5247 = vpack.c.b16 %v4578, %v4577
      %v5248 = vpack.c.b16 %v4580, %v4579
      %v5249 = vpack.c.b16 %v4582, %v4581
      %v5250 = vpack.c.b16 %v4584, %v4583
      %v5251 = vpack.c.b16 %v4586, %v4585
      %v5252 = vpack.c.b16 %v4588, %v4587
      %v5253 = vpack.c.b16 %v4590, %v4589
      %v5254 = vpack.c.b16 %v4592, %v4591
      %v5255 = vpack.c.b16 %v4594, %v4593
      %v5256 = vpack.c.b16 %v4596, %v4595
      %v5257 = vpack.c.b16 %v4598, %v4597
      %v5258 = vpack.c.b16 %v4600, %v4599
      %v5259 = vpack.c.b16 %v4602, %v4601
      %v5260 = vpack.c.b16 %v4604, %v4603
      %v5261 = vpack.c.b16 %v4606, %v4605
      %v5262 = vpack.c.b16 %v4608, %v4607
      %v5263 = vpack.c.b16 %v4610, %v4609
      %v5264 = vpack.c.b16 %v4612, %v4611
      %v5265 = vpack.c.b16 %v4614, %v4613
      %v5266 = vpack.c.b16 %v4616, %v4615
      %v5267 = vpack.c.b16 %v4618, %v4617
      %v5268 = vpack.c.b16 %v4620, %v4619
      %v5269 = vpack.c.b16 %v4622, %v4621
      %v5270 = vpack.c.b16 %v4624, %v4623
      %v5271 = vpack.c.b16 %v4626, %v4625
      %v5272 = vpack.c.b16 %v4628, %v4627
      %v5273 = vpack.c.b16 %v4630, %v4629
      %v5274 = vpack.c.b16 %v4632, %v4631
      %v5275 = vpack.c.b16 %v4634, %v4633
      %v5276 = vpack.c.b16 %v4636, %v4635
      %v5277 = vpack.c.b16 %v4638, %v4637
      %v5278 = vpack.c.b16 %v4640, %v4639
      %v5279 = vpack.c.b16 %v4642, %v4641
      %v5280 = vpack.c.b16 %v4644, %v4643
      %v5281 = vpack.c.b16 %v4646, %v4645
      %v5282 = vpack.c.b16 %v4648, %v4647
      %v5283 = vpack.c.b16 %v4650, %v4649
      %v5284 = vpack.c.b16 %v4652, %v4651
      %v5285 = vpack.c.b16 %v4654, %v4653
      %v5286 = vpack.c.b16 %v4656, %v4655
      %v5287 = vpack.c.b16 %v4658, %v4657
      %v5288 = vpack.c.b16 %v4660, %v4659
      %v5289 = vpack.c.b16 %v4662, %v4661
      %v5290 = vpack.c.b16 %v4664, %v4663
      %v5291 = vpack.c.b16 %v4666, %v4665
      %v5292 = vpack.c.b16 %v4668, %v4667
      %v5293 = vpack.c.b16 %v4670, %v4669
      %v5294 = vpack.c.b16 %v4672, %v4671
      %v5295 = vpack.c.b16 %v4674, %v4673
      %v5296 = vpack.c.b16 %v4676, %v4675
      %v5297 = vpack.c.b16 %v4678, %v4677
      %v5298 = vpack.c.b16 %v4680, %v4679
      %v5299 = vpack.c.b16 %v4682, %v4681
      %v5300 = vpack.c.b16 %v4684, %v4683
      %v5301 = vpack.c.b16 %v4686, %v4685
      %v5302 = vpack.c.b16 %v4688, %v4687
      %v5303 = vpack.c.b16 %v4690, %v4689
      %v5304 = vpack.c.b16 %v4692, %v4691
      %v5305 = vpack.c.b16 %v4694, %v4693
      %v5306 = vpack.c.b16 %v4696, %v4695
      %v5307 = vpack.c.b16 %v4698, %v4697
      %v5308 = vpack.c.b16 %v4700, %v4699
      %v5309 = vpack.c.b16 %v4702, %v4701
      %v5310 = vpack.c.b16 %v4704, %v4703
      %v5311 = vpack.c.b16 %v4706, %v4705
      %v5312 = vpack.c.b16 %v4708, %v4707
      %v5313 = vpack.c.b16 %v4710, %v4709
      %v5314 = vpack.c.b16 %v4712, %v4711
      %v5315 = vpack.c.b16 %v4714, %v4713
      %v5316 = vpack.c.b16 %v4716, %v4715
      %v5317 = vpack.c.b16 %v4718, %v4717
      %v5318 = vpack.c.b16 %v4720, %v4719
      %v5319 = vpack.c.b16 %v4722, %v4721
      %v5320 = vpack.c.b16 %v4724, %v4723
      %v5321 = vpack.c.b16 %v4726, %v4725
      %v5322 = vpack.c.b16 %v4728, %v4727
      %v5323 = vpack.c.b16 %v4730, %v4729
      %v5324 = vpack.c.b16 %v4732, %v4731
      %v5325 = vpack.c.b16 %v4734, %v4733
      %v5326 = vpack.c.b16 %v4736, %v4735
      %v5327 = vpack.c.b16 %v4738, %v4737
      %v5328 = vpack.c.b16 %v4740, %v4739
      %v5329 = vpack.c.b16 %v4742, %v4741
      %v5330 = vpack.c.b16 %v4744, %v4743
      %v5331 = vpack.c.b16 %v4746, %v4745
      %v5332 = vpack.c.b16 %v4748, %v4747
      %v5333 = vpack.c.b16 %v4750, %v4749
      %v5334 = vpack.c.b16 %v4752, %v4751
      %v5335 = vpack.c.b16 %v4754, %v4753
      %v5336 = vpack.c.b16 %v4756, %v4755
      %v5337 = vpack.c.b16 %v4758, %v4757
      %v5338 = vpack.c.b16 %v4760, %v4759
      %v5339 = vpack.c.b16 %v4762, %v4761
      %v5340 = vpack.c.b16 %v4764, %v4763
      %v5341 = vpack.c.b16 %v4766, %v4765
      %v5342 = vpack.c.b16 %v4768, %v4767
      %v5343 = vpack.c.b16 %v4770, %v4769
      %v5344 = vpack.c.b16 %v4772, %v4771
      %v5345 = vpack.c.b16 %v4774, %v4773
      %v5346 = vpack.c.b16 %v4776, %v4775
      %v5347 = vpack.c.b16 %v4778, %v4777
      %v5348 = vpack.c.b16 %v4780, %v4779
      %v5349 = vpack.c.b16 %v4782, %v4781
      %v5350 = vpack.c.b16 %v4784, %v4783
      %v5351 = vpack.c.b16 %v4786, %v4785
      %v5352 = vpack.c.b16 %v4788, %v4787
      %v5353 = vpack.c.b16 %v4790, %v4789
      %v5354 = vpack.c.b16 %v4792, %v4791
      %v5355 = vpack.c.b16 %v4794, %v4793
      %v5356 = vpack.c.b16 %v4796, %v4795
      %v5357 = vpack.c.b16 %v4798, %v4797
      %v5358 = vpack.c.b16 %v4800, %v4799
      %v5359 = vpack.c.b16 %v4802, %v4801
      %v5360 = vpack.c.b16 %v4804, %v4803
      %v5361 = vpack.c.b16 %v4806, %v4805
      %v5362 = vpack.c.b16 %v4808, %v4807
      %v5363 = vpack.c.b16 %v4810, %v4809
      %v5364 = vpack.c.b16 %v4812, %v4811
      %v5365 = vpack.c.b16 %v4814, %v4813
      %v5366 = vpack.c.b16 %v4816, %v4815
      %v5367 = vpack.c.b16 %v4818, %v4817
      %v5368 = vpack.c.b16 %v4820, %v4819
      %v5369 = vpack.c.b16 %v4822, %v4821
      %v5370 = vpack.c.b16 %v4824, %v4823
      %v5371 = vpack.c.b16 %v4826, %v4825
      %v5372 = vpack.c.b16 %v4828, %v4827
      %v5373 = vpack.c.b16 %v4830, %v4829
      %v5374 = vpack.c.b16 %v4832, %v4831
      %v5375 = vpack.c.b16 %v4834, %v4833
      %v5376 = vpack.c.b16 %v4836, %v4835
      %v5377 = vpack.c.b16 %v4838, %v4837
      %v5378 = vpack.c.b16 %v4840, %v4839
      %v5379 = vpack.c.b16 %v4842, %v4841
      %v5380 = vpack.c.b16 %v4844, %v4843
      %v5381 = vpack.c.b16 %v4846, %v4845
      %v5382 = vpack.c.b16 %v4848, %v4847
      %v5383 = vpack.c.b16 %v4850, %v4849
      %v5384 = vpack.c.b16 %v4852, %v4851
      %v5385 = vpack.c.b16 %v4854, %v4853
      %v5386 = vpack.c.b16 %v4856, %v4855
      %v5387 = vpack.c.b16 %v4858, %v4857
      %v5388 = vpack.c.b16 %v4860, %v4859
      %v5389 = vpack.c.b16 %v4862, %v4861
      %v5390 = vpack.c.b16 %v4864, %v4863
      %v5391 = vpack.c.b16 %v4866, %v4865
      %v5392 = vpack.c.b16 %v4868, %v4867
      %v5393 = vpack.c.b16 %v4870, %v4869
      %v5394 = vpack.c.b16 %v4872, %v4871
      %v5395 = vpack.c.b16 %v4874, %v4873
      %v5396 = vpack.c.b16 %v4876, %v4875
      %v5397 = vpack.c.b16 %v4878, %v4877
      %v5398 = vpack.c.b16 %v4880, %v4879
      %v5399 = vpack.c.b16 %v4882, %v4881
      %v5400 = vpack.c.b16 %v4884, %v4883
      %v5401 = vpack.c.b16 %v4886, %v4885
      %v5402 = vpack.c.b16 %v4888, %v4887
      %v5403 = vpack.c.b16 %v4890, %v4889
      %v5404 = vpack.c.b16 %v4892, %v4891
      %v5405 = vpack.c.b16 %v4893, %v4893
      %vm5917 = vcmask 932864
      %v5919 = vsel %vm5917, %v1372, 0
      %v5922 = vsel %vm5917, %v1436, 0
      %v5925 = vsel %vm5917, %v1500, 0
      %v5928 = vsel %vm5917, %v1564, 0
      %v5931 = vsel %vm5917, %v1628, 0
      %v5934 = vsel %vm5917, %v1692, 0
      %v5937 = vsel %vm5917, %v1756, 0
      %v5940 = vsel %vm5917, %v1820, 0
      %vm5942 = vcmask 1040384
      %v5944 = vsel %vm5942, %v5405, 0
      %5946 = vmatpush.bf16.msra.mxu0 %v4901
      %5947 = vmatpush.bf16.msra.mxu0 %v4900
      %5948 = vmatpush.bf16.msra.mxu0 %v4899
      %5949 = vmatpush.bf16.msra.mxu0 %v4898
      %5950 = vmatpush.bf16.msra.mxu0 %v4897
      %5951 = vmatpush.bf16.msra.mxu0 %v4896
      %5952 = vmatpush.bf16.msra.mxu0 %v4895
      %5953 = vmatpush.bf16.msra.mxu0 %v4894
      %5954 = vmatmul.bf16.gmra.mxu0 %v1309
      %v5955 = vpop.f32.mrf.mxu0
      %v5956 = vadd.f32 %v2846, %v5955
      %v5957 = vpop.f32.mrf.mxu0
      %v5958 = vadd.f32 %v2846, %v5957
      %5959 = vmatmul.bf16.gmra.mxu0 %v1373
      %v5960 = vpop.f32.mrf.mxu0
      %v5961 = vadd.f32 %v2846, %v5960
      %v5962 = vpop.f32.mrf.mxu0
      %v5963 = vadd.f32 %v2846, %v5962
      %5964 = vmatmul.bf16.gmra.mxu0 %v1437
      %v5965 = vpop.f32.mrf.mxu0
      %v5966 = vadd.f32 %v2846, %v5965
      %v5967 = vpop.f32.mrf.mxu0
      %v5968 = vadd.f32 %v2846, %v5967
      %5969 = vmatmul.bf16.gmra.mxu0 %v1501
      %v5970 = vpop.f32.mrf.mxu0
      %v5971 = vadd.f32 %v2846, %v5970
      %v5972 = vpop.f32.mrf.mxu0
      %v5973 = vadd.f32 %v2846, %v5972
      %5974 = vmatmul.bf16.gmra.mxu0 %v1565
      %v5975 = vpop.f32.mrf.mxu0
      %v5976 = vadd.f32 %v2846, %v5975
      %v5977 = vpop.f32.mrf.mxu0
      %v5978 = vadd.f32 %v2846, %v5977
      %5979 = vmatmul.bf16.gmra.mxu0 %v1629
      %v5980 = vpop.f32.mrf.mxu0
      %v5981 = vadd.f32 %v2846, %v5980
      %v5982 = vpop.f32.mrf.mxu0
      %v5983 = vadd.f32 %v2846, %v5982
      %5984 = vmatmul.bf16.gmra.mxu0 %v1693
      %v5985 = vpop.f32.mrf.mxu0
      %v5986 = vadd.f32 %v2846, %v5985
      %v5987 = vpop.f32.mrf.mxu0
      %v5988 = vadd.f32 %v2846, %v5987
      %5989 = vmatmul.bf16.gmra.mxu0 %v1757
      %v5990 = vpop.f32.mrf.mxu0
      %v5991 = vadd.f32 %v2846, %v5990
      %v5992 = vpop.f32.mrf.mxu0
      %v5993 = vadd.f32 %v2846, %v5992
      %5994 = vdwg.mxu0
      %5995 = vmatpush.bf16.msra.mxu0 %v4909
      %5996 = vmatpush.bf16.msra.mxu0 %v4908
      %5997 = vmatpush.bf16.msra.mxu0 %v4907
      %5998 = vmatpush.bf16.msra.mxu0 %v4906
      %5999 = vmatpush.bf16.msra.mxu0 %v4905
      %6000 = vmatpush.bf16.msra.mxu0 %v4904
      %6001 = vmatpush.bf16.msra.mxu0 %v4903
      %6002 = vmatpush.bf16.msra.mxu0 %v4902
      %6003 = vmatmul.bf16.gmra.mxu0 %v1310
      %v6004 = vpop.f32.mrf.mxu0
      %v6005 = vadd.f32 %v5956, %v6004
      %v6006 = vpop.f32.mrf.mxu0
      %v6007 = vadd.f32 %v5958, %v6006
      %6008 = vmatmul.bf16.gmra.mxu0 %v1374
      %v6009 = vpop.f32.mrf.mxu0
      %v6010 = vadd.f32 %v5961, %v6009
      %v6011 = vpop.f32.mrf.mxu0
      %v6012 = vadd.f32 %v5963, %v6011
      %6013 = vmatmul.bf16.gmra.mxu0 %v1438
      %v6014 = vpop.f32.mrf.mxu0
      %v6015 = vadd.f32 %v5966, %v6014
      %v6016 = vpop.f32.mrf.mxu0
      %v6017 = vadd.f32 %v5968, %v6016
      %6018 = vmatmul.bf16.gmra.mxu0 %v1502
      %v6019 = vpop.f32.mrf.mxu0
      %v6020 = vadd.f32 %v5971, %v6019
      %v6021 = vpop.f32.mrf.mxu0
      %v6022 = vadd.f32 %v5973, %v6021
      %6023 = vmatmul.bf16.gmra.mxu0 %v1566
      %v6024 = vpop.f32.mrf.mxu0
      %v6025 = vadd.f32 %v5976, %v6024
      %v6026 = vpop.f32.mrf.mxu0
      %v6027 = vadd.f32 %v5978, %v6026
      %6028 = vmatmul.bf16.gmra.mxu0 %v1630
      %v6029 = vpop.f32.mrf.mxu0
      %v6030 = vadd.f32 %v5981, %v6029
      %v6031 = vpop.f32.mrf.mxu0
      %v6032 = vadd.f32 %v5983, %v6031
      %6033 = vmatmul.bf16.gmra.mxu0 %v1694
      %v6034 = vpop.f32.mrf.mxu0
      %v6035 = vadd.f32 %v5986, %v6034
      %v6036 = vpop.f32.mrf.mxu0
      %v6037 = vadd.f32 %v5988, %v6036
      %6038 = vmatmul.bf16.gmra.mxu0 %v1758
      %v6039 = vpop.f32.mrf.mxu0
      %v6040 = vadd.f32 %v5991, %v6039
      %v6041 = vpop.f32.mrf.mxu0
      %v6042 = vadd.f32 %v5993, %v6041
      %6043 = vdwg.mxu0
      %6044 = vmatpush.bf16.msra.mxu0 %v4917
      %6045 = vmatpush.bf16.msra.mxu0 %v4916
      %6046 = vmatpush.bf16.msra.mxu0 %v4915
      %6047 = vmatpush.bf16.msra.mxu0 %v4914
      %6048 = vmatpush.bf16.msra.mxu0 %v4913
      %6049 = vmatpush.bf16.msra.mxu0 %v4912
      %6050 = vmatpush.bf16.msra.mxu0 %v4911
      %6051 = vmatpush.bf16.msra.mxu0 %v4910
      %6052 = vmatmul.bf16.gmra.mxu0 %v1311
      %v6053 = vpop.f32.mrf.mxu0
      %v6054 = vadd.f32 %v6005, %v6053
      %v6055 = vpop.f32.mrf.mxu0
      %v6056 = vadd.f32 %v6007, %v6055
      %6057 = vmatmul.bf16.gmra.mxu0 %v1375
      %v6058 = vpop.f32.mrf.mxu0
      %v6059 = vadd.f32 %v6010, %v6058
      %v6060 = vpop.f32.mrf.mxu0
      %v6061 = vadd.f32 %v6012, %v6060
      %6062 = vmatmul.bf16.gmra.mxu0 %v1439
      %v6063 = vpop.f32.mrf.mxu0
      %v6064 = vadd.f32 %v6015, %v6063
      %v6065 = vpop.f32.mrf.mxu0
      %v6066 = vadd.f32 %v6017, %v6065
      %6067 = vmatmul.bf16.gmra.mxu0 %v1503
      %v6068 = vpop.f32.mrf.mxu0
      %v6069 = vadd.f32 %v6020, %v6068
      %v6070 = vpop.f32.mrf.mxu0
      %v6071 = vadd.f32 %v6022, %v6070
      %6072 = vmatmul.bf16.gmra.mxu0 %v1567
      %v6073 = vpop.f32.mrf.mxu0
      %v6074 = vadd.f32 %v6025, %v6073
      %v6075 = vpop.f32.mrf.mxu0
      %v6076 = vadd.f32 %v6027, %v6075
      %6077 = vmatmul.bf16.gmra.mxu0 %v1631
      %v6078 = vpop.f32.mrf.mxu0
      %v6079 = vadd.f32 %v6030, %v6078
      %v6080 = vpop.f32.mrf.mxu0
      %v6081 = vadd.f32 %v6032, %v6080
      %6082 = vmatmul.bf16.gmra.mxu0 %v1695
      %v6083 = vpop.f32.mrf.mxu0
      %v6084 = vadd.f32 %v6035, %v6083
      %v6085 = vpop.f32.mrf.mxu0
      %v6086 = vadd.f32 %v6037, %v6085
      %6087 = vmatmul.bf16.gmra.mxu0 %v1759
      %v6088 = vpop.f32.mrf.mxu0
      %v6089 = vadd.f32 %v6040, %v6088
      %v6090 = vpop.f32.mrf.mxu0
      %v6091 = vadd.f32 %v6042, %v6090
      %6092 = vdwg.mxu0
      %6093 = vmatpush.bf16.msra.mxu0 %v4925
      %6094 = vmatpush.bf16.msra.mxu0 %v4924
      %6095 = vmatpush.bf16.msra.mxu0 %v4923
      %6096 = vmatpush.bf16.msra.mxu0 %v4922
      %6097 = vmatpush.bf16.msra.mxu0 %v4921
      %6098 = vmatpush.bf16.msra.mxu0 %v4920
      %6099 = vmatpush.bf16.msra.mxu0 %v4919
      %6100 = vmatpush.bf16.msra.mxu0 %v4918
      %6101 = vmatmul.bf16.gmra.mxu0 %v1312
      %v6102 = vpop.f32.mrf.mxu0
      %v6103 = vadd.f32 %v6054, %v6102
      %v6104 = vpop.f32.mrf.mxu0
      %v6105 = vadd.f32 %v6056, %v6104
      %6106 = vmatmul.bf16.gmra.mxu0 %v1376
      %v6107 = vpop.f32.mrf.mxu0
      %v6108 = vadd.f32 %v6059, %v6107
      %v6109 = vpop.f32.mrf.mxu0
      %v6110 = vadd.f32 %v6061, %v6109
      %6111 = vmatmul.bf16.gmra.mxu0 %v1440
      %v6112 = vpop.f32.mrf.mxu0
      %v6113 = vadd.f32 %v6064, %v6112
      %v6114 = vpop.f32.mrf.mxu0
      %v6115 = vadd.f32 %v6066, %v6114
      %6116 = vmatmul.bf16.gmra.mxu0 %v1504
      %v6117 = vpop.f32.mrf.mxu0
      %v6118 = vadd.f32 %v6069, %v6117
      %v6119 = vpop.f32.mrf.mxu0
      %v6120 = vadd.f32 %v6071, %v6119
      %6121 = vmatmul.bf16.gmra.mxu0 %v1568
      %v6122 = vpop.f32.mrf.mxu0
      %v6123 = vadd.f32 %v6074, %v6122
      %v6124 = vpop.f32.mrf.mxu0
      %v6125 = vadd.f32 %v6076, %v6124
      %6126 = vmatmul.bf16.gmra.mxu0 %v1632
      %v6127 = vpop.f32.mrf.mxu0
      %v6128 = vadd.f32 %v6079, %v6127
      %v6129 = vpop.f32.mrf.mxu0
      %v6130 = vadd.f32 %v6081, %v6129
      %6131 = vmatmul.bf16.gmra.mxu0 %v1696
      %v6132 = vpop.f32.mrf.mxu0
      %v6133 = vadd.f32 %v6084, %v6132
      %v6134 = vpop.f32.mrf.mxu0
      %v6135 = vadd.f32 %v6086, %v6134
      %6136 = vmatmul.bf16.gmra.mxu0 %v1760
      %v6137 = vpop.f32.mrf.mxu0
      %v6138 = vadd.f32 %v6089, %v6137
      %v6139 = vpop.f32.mrf.mxu0
      %v6140 = vadd.f32 %v6091, %v6139
      %6141 = vdwg.mxu0
      %6142 = vmatpush.bf16.msra.mxu0 %v4933
      %6143 = vmatpush.bf16.msra.mxu0 %v4932
      %6144 = vmatpush.bf16.msra.mxu0 %v4931
      %6145 = vmatpush.bf16.msra.mxu0 %v4930
      %6146 = vmatpush.bf16.msra.mxu0 %v4929
      %6147 = vmatpush.bf16.msra.mxu0 %v4928
      %6148 = vmatpush.bf16.msra.mxu0 %v4927
      %6149 = vmatpush.bf16.msra.mxu0 %v4926
      %6150 = vmatmul.bf16.gmra.mxu0 %v1313
      %v6151 = vpop.f32.mrf.mxu0
      %v6152 = vadd.f32 %v6103, %v6151
      %v6153 = vpop.f32.mrf.mxu0
      %v6154 = vadd.f32 %v6105, %v6153
      %6155 = vmatmul.bf16.gmra.mxu0 %v1377
      %v6156 = vpop.f32.mrf.mxu0
      %v6157 = vadd.f32 %v6108, %v6156
      %v6158 = vpop.f32.mrf.mxu0
      %v6159 = vadd.f32 %v6110, %v6158
      %6160 = vmatmul.bf16.gmra.mxu0 %v1441
      %v6161 = vpop.f32.mrf.mxu0
      %v6162 = vadd.f32 %v6113, %v6161
      %v6163 = vpop.f32.mrf.mxu0
      %v6164 = vadd.f32 %v6115, %v6163
      %6165 = vmatmul.bf16.gmra.mxu0 %v1505
      %v6166 = vpop.f32.mrf.mxu0
      %v6167 = vadd.f32 %v6118, %v6166
      %v6168 = vpop.f32.mrf.mxu0
      %v6169 = vadd.f32 %v6120, %v6168
      %6170 = vmatmul.bf16.gmra.mxu0 %v1569
      %v6171 = vpop.f32.mrf.mxu0
      %v6172 = vadd.f32 %v6123, %v6171
      %v6173 = vpop.f32.mrf.mxu0
      %v6174 = vadd.f32 %v6125, %v6173
      %6175 = vmatmul.bf16.gmra.mxu0 %v1633
      %v6176 = vpop.f32.mrf.mxu0
      %v6177 = vadd.f32 %v6128, %v6176
      %v6178 = vpop.f32.mrf.mxu0
      %v6179 = vadd.f32 %v6130, %v6178
      %6180 = vmatmul.bf16.gmra.mxu0 %v1697
      %v6181 = vpop.f32.mrf.mxu0
      %v6182 = vadd.f32 %v6133, %v6181
      %v6183 = vpop.f32.mrf.mxu0
      %v6184 = vadd.f32 %v6135, %v6183
      %6185 = vmatmul.bf16.gmra.mxu0 %v1761
      %v6186 = vpop.f32.mrf.mxu0
      %v6187 = vadd.f32 %v6138, %v6186
      %v6188 = vpop.f32.mrf.mxu0
      %v6189 = vadd.f32 %v6140, %v6188
      %6190 = vdwg.mxu0
      %6191 = vmatpush.bf16.msra.mxu0 %v4941
      %6192 = vmatpush.bf16.msra.mxu0 %v4940
      %6193 = vmatpush.bf16.msra.mxu0 %v4939
      %6194 = vmatpush.bf16.msra.mxu0 %v4938
      %6195 = vmatpush.bf16.msra.mxu0 %v4937
      %6196 = vmatpush.bf16.msra.mxu0 %v4936
      %6197 = vmatpush.bf16.msra.mxu0 %v4935
      %6198 = vmatpush.bf16.msra.mxu0 %v4934
      %6199 = vmatmul.bf16.gmra.mxu0 %v1314
      %v6200 = vpop.f32.mrf.mxu0
      %v6201 = vadd.f32 %v6152, %v6200
      %v6202 = vpop.f32.mrf.mxu0
      %v6203 = vadd.f32 %v6154, %v6202
      %6204 = vmatmul.bf16.gmra.mxu0 %v1378
      %v6205 = vpop.f32.mrf.mxu0
      %v6206 = vadd.f32 %v6157, %v6205
      %v6207 = vpop.f32.mrf.mxu0
      %v6208 = vadd.f32 %v6159, %v6207
      %6209 = vmatmul.bf16.gmra.mxu0 %v1442
      %v6210 = vpop.f32.mrf.mxu0
      %v6211 = vadd.f32 %v6162, %v6210
      %v6212 = vpop.f32.mrf.mxu0
      %v6213 = vadd.f32 %v6164, %v6212
      %6214 = vmatmul.bf16.gmra.mxu0 %v1506
      %v6215 = vpop.f32.mrf.mxu0
      %v6216 = vadd.f32 %v6167, %v6215
      %v6217 = vpop.f32.mrf.mxu0
      %v6218 = vadd.f32 %v6169, %v6217
      %6219 = vmatmul.bf16.gmra.mxu0 %v1570
      %v6220 = vpop.f32.mrf.mxu0
      %v6221 = vadd.f32 %v6172, %v6220
      %v6222 = vpop.f32.mrf.mxu0
      %v6223 = vadd.f32 %v6174, %v6222
      %6224 = vmatmul.bf16.gmra.mxu0 %v1634
      %v6225 = vpop.f32.mrf.mxu0
      %v6226 = vadd.f32 %v6177, %v6225
      %v6227 = vpop.f32.mrf.mxu0
      %v6228 = vadd.f32 %v6179, %v6227
      %6229 = vmatmul.bf16.gmra.mxu0 %v1698
      %v6230 = vpop.f32.mrf.mxu0
      %v6231 = vadd.f32 %v6182, %v6230
      %v6232 = vpop.f32.mrf.mxu0
      %v6233 = vadd.f32 %v6184, %v6232
      %6234 = vmatmul.bf16.gmra.mxu0 %v1762
      %v6235 = vpop.f32.mrf.mxu0
      %v6236 = vadd.f32 %v6187, %v6235
      %v6237 = vpop.f32.mrf.mxu0
      %v6238 = vadd.f32 %v6189, %v6237
      %6239 = vdwg.mxu0
      %6240 = vmatpush.bf16.msra.mxu0 %v4949
      %6241 = vmatpush.bf16.msra.mxu0 %v4948
      %6242 = vmatpush.bf16.msra.mxu0 %v4947
      %6243 = vmatpush.bf16.msra.mxu0 %v4946
      %6244 = vmatpush.bf16.msra.mxu0 %v4945
      %6245 = vmatpush.bf16.msra.mxu0 %v4944
      %6246 = vmatpush.bf16.msra.mxu0 %v4943
      %6247 = vmatpush.bf16.msra.mxu0 %v4942
      %6248 = vmatmul.bf16.gmra.mxu0 %v1315
      %v6249 = vpop.f32.mrf.mxu0
      %v6250 = vadd.f32 %v6201, %v6249
      %v6251 = vpop.f32.mrf.mxu0
      %v6252 = vadd.f32 %v6203, %v6251
      %6253 = vmatmul.bf16.gmra.mxu0 %v1379
      %v6254 = vpop.f32.mrf.mxu0
      %v6255 = vadd.f32 %v6206, %v6254
      %v6256 = vpop.f32.mrf.mxu0
      %v6257 = vadd.f32 %v6208, %v6256
      %6258 = vmatmul.bf16.gmra.mxu0 %v1443
      %v6259 = vpop.f32.mrf.mxu0
      %v6260 = vadd.f32 %v6211, %v6259
      %v6261 = vpop.f32.mrf.mxu0
      %v6262 = vadd.f32 %v6213, %v6261
      %6263 = vmatmul.bf16.gmra.mxu0 %v1507
      %v6264 = vpop.f32.mrf.mxu0
      %v6265 = vadd.f32 %v6216, %v6264
      %v6266 = vpop.f32.mrf.mxu0
      %v6267 = vadd.f32 %v6218, %v6266
      %6268 = vmatmul.bf16.gmra.mxu0 %v1571
      %v6269 = vpop.f32.mrf.mxu0
      %v6270 = vadd.f32 %v6221, %v6269
      %v6271 = vpop.f32.mrf.mxu0
      %v6272 = vadd.f32 %v6223, %v6271
      %6273 = vmatmul.bf16.gmra.mxu0 %v1635
      %v6274 = vpop.f32.mrf.mxu0
      %v6275 = vadd.f32 %v6226, %v6274
      %v6276 = vpop.f32.mrf.mxu0
      %v6277 = vadd.f32 %v6228, %v6276
      %6278 = vmatmul.bf16.gmra.mxu0 %v1699
      %v6279 = vpop.f32.mrf.mxu0
      %v6280 = vadd.f32 %v6231, %v6279
      %v6281 = vpop.f32.mrf.mxu0
      %v6282 = vadd.f32 %v6233, %v6281
      %6283 = vmatmul.bf16.gmra.mxu0 %v1763
      %v6284 = vpop.f32.mrf.mxu0
      %v6285 = vadd.f32 %v6236, %v6284
      %v6286 = vpop.f32.mrf.mxu0
      %v6287 = vadd.f32 %v6238, %v6286
      %6288 = vdwg.mxu0
      %6289 = vmatpush.bf16.msra.mxu0 %v4957
      %6290 = vmatpush.bf16.msra.mxu0 %v4956
      %6291 = vmatpush.bf16.msra.mxu0 %v4955
      %6292 = vmatpush.bf16.msra.mxu0 %v4954
      %6293 = vmatpush.bf16.msra.mxu0 %v4953
      %6294 = vmatpush.bf16.msra.mxu0 %v4952
      %6295 = vmatpush.bf16.msra.mxu0 %v4951
      %6296 = vmatpush.bf16.msra.mxu0 %v4950
      %6297 = vmatmul.bf16.gmra.mxu0 %v1316
      %v6298 = vpop.f32.mrf.mxu0
      %v6299 = vadd.f32 %v6250, %v6298
      %v6300 = vpop.f32.mrf.mxu0
      %v6301 = vadd.f32 %v6252, %v6300
      %6302 = vmatmul.bf16.gmra.mxu0 %v1380
      %v6303 = vpop.f32.mrf.mxu0
      %v6304 = vadd.f32 %v6255, %v6303
      %v6305 = vpop.f32.mrf.mxu0
      %v6306 = vadd.f32 %v6257, %v6305
      %6307 = vmatmul.bf16.gmra.mxu0 %v1444
      %v6308 = vpop.f32.mrf.mxu0
      %v6309 = vadd.f32 %v6260, %v6308
      %v6310 = vpop.f32.mrf.mxu0
      %v6311 = vadd.f32 %v6262, %v6310
      %6312 = vmatmul.bf16.gmra.mxu0 %v1508
      %v6313 = vpop.f32.mrf.mxu0
      %v6314 = vadd.f32 %v6265, %v6313
      %v6315 = vpop.f32.mrf.mxu0
      %v6316 = vadd.f32 %v6267, %v6315
      %6317 = vmatmul.bf16.gmra.mxu0 %v1572
      %v6318 = vpop.f32.mrf.mxu0
      %v6319 = vadd.f32 %v6270, %v6318
      %v6320 = vpop.f32.mrf.mxu0
      %v6321 = vadd.f32 %v6272, %v6320
      %6322 = vmatmul.bf16.gmra.mxu0 %v1636
      %v6323 = vpop.f32.mrf.mxu0
      %v6324 = vadd.f32 %v6275, %v6323
      %v6325 = vpop.f32.mrf.mxu0
      %v6326 = vadd.f32 %v6277, %v6325
      %6327 = vmatmul.bf16.gmra.mxu0 %v1700
      %v6328 = vpop.f32.mrf.mxu0
      %v6329 = vadd.f32 %v6280, %v6328
      %v6330 = vpop.f32.mrf.mxu0
      %v6331 = vadd.f32 %v6282, %v6330
      %6332 = vmatmul.bf16.gmra.mxu0 %v1764
      %v6333 = vpop.f32.mrf.mxu0
      %v6334 = vadd.f32 %v6285, %v6333
      %v6335 = vpop.f32.mrf.mxu0
      %v6336 = vadd.f32 %v6287, %v6335
      %6337 = vdwg.mxu0
      %6338 = vmatpush.bf16.msra.mxu0 %v4965
      %6339 = vmatpush.bf16.msra.mxu0 %v4964
      %6340 = vmatpush.bf16.msra.mxu0 %v4963
      %6341 = vmatpush.bf16.msra.mxu0 %v4962
      %6342 = vmatpush.bf16.msra.mxu0 %v4961
      %6343 = vmatpush.bf16.msra.mxu0 %v4960
      %6344 = vmatpush.bf16.msra.mxu0 %v4959
      %6345 = vmatpush.bf16.msra.mxu0 %v4958
      %6346 = vmatmul.bf16.gmra.mxu0 %v1317
      %v6347 = vpop.f32.mrf.mxu0
      %v6348 = vadd.f32 %v6299, %v6347
      %v6349 = vpop.f32.mrf.mxu0
      %v6350 = vadd.f32 %v6301, %v6349
      %6351 = vmatmul.bf16.gmra.mxu0 %v1381
      %v6352 = vpop.f32.mrf.mxu0
      %v6353 = vadd.f32 %v6304, %v6352
      %v6354 = vpop.f32.mrf.mxu0
      %v6355 = vadd.f32 %v6306, %v6354
      %6356 = vmatmul.bf16.gmra.mxu0 %v1445
      %v6357 = vpop.f32.mrf.mxu0
      %v6358 = vadd.f32 %v6309, %v6357
      %v6359 = vpop.f32.mrf.mxu0
      %v6360 = vadd.f32 %v6311, %v6359
      %6361 = vmatmul.bf16.gmra.mxu0 %v1509
      %v6362 = vpop.f32.mrf.mxu0
      %v6363 = vadd.f32 %v6314, %v6362
      %v6364 = vpop.f32.mrf.mxu0
      %v6365 = vadd.f32 %v6316, %v6364
      %6366 = vmatmul.bf16.gmra.mxu0 %v1573
      %v6367 = vpop.f32.mrf.mxu0
      %v6368 = vadd.f32 %v6319, %v6367
      %v6369 = vpop.f32.mrf.mxu0
      %v6370 = vadd.f32 %v6321, %v6369
      %6371 = vmatmul.bf16.gmra.mxu0 %v1637
      %v6372 = vpop.f32.mrf.mxu0
      %v6373 = vadd.f32 %v6324, %v6372
      %v6374 = vpop.f32.mrf.mxu0
      %v6375 = vadd.f32 %v6326, %v6374
      %6376 = vmatmul.bf16.gmra.mxu0 %v1701
      %v6377 = vpop.f32.mrf.mxu0
      %v6378 = vadd.f32 %v6329, %v6377
      %v6379 = vpop.f32.mrf.mxu0
      %v6380 = vadd.f32 %v6331, %v6379
      %6381 = vmatmul.bf16.gmra.mxu0 %v1765
      %v6382 = vpop.f32.mrf.mxu0
      %v6383 = vadd.f32 %v6334, %v6382
      %v6384 = vpop.f32.mrf.mxu0
      %v6385 = vadd.f32 %v6336, %v6384
      %6386 = vdwg.mxu0
      %6387 = vmatpush.bf16.msra.mxu0 %v4973
      %6388 = vmatpush.bf16.msra.mxu0 %v4972
      %6389 = vmatpush.bf16.msra.mxu0 %v4971
      %6390 = vmatpush.bf16.msra.mxu0 %v4970
      %6391 = vmatpush.bf16.msra.mxu0 %v4969
      %6392 = vmatpush.bf16.msra.mxu0 %v4968
      %6393 = vmatpush.bf16.msra.mxu0 %v4967
      %6394 = vmatpush.bf16.msra.mxu0 %v4966
      %6395 = vmatmul.bf16.gmra.mxu0 %v1318
      %v6396 = vpop.f32.mrf.mxu0
      %v6397 = vadd.f32 %v6348, %v6396
      %v6398 = vpop.f32.mrf.mxu0
      %v6399 = vadd.f32 %v6350, %v6398
      %6400 = vmatmul.bf16.gmra.mxu0 %v1382
      %v6401 = vpop.f32.mrf.mxu0
      %v6402 = vadd.f32 %v6353, %v6401
      %v6403 = vpop.f32.mrf.mxu0
      %v6404 = vadd.f32 %v6355, %v6403
      %6405 = vmatmul.bf16.gmra.mxu0 %v1446
      %v6406 = vpop.f32.mrf.mxu0
      %v6407 = vadd.f32 %v6358, %v6406
      %v6408 = vpop.f32.mrf.mxu0
      %v6409 = vadd.f32 %v6360, %v6408
      %6410 = vmatmul.bf16.gmra.mxu0 %v1510
      %v6411 = vpop.f32.mrf.mxu0
      %v6412 = vadd.f32 %v6363, %v6411
      %v6413 = vpop.f32.mrf.mxu0
      %v6414 = vadd.f32 %v6365, %v6413
      %6415 = vmatmul.bf16.gmra.mxu0 %v1574
      %v6416 = vpop.f32.mrf.mxu0
      %v6417 = vadd.f32 %v6368, %v6416
      %v6418 = vpop.f32.mrf.mxu0
      %v6419 = vadd.f32 %v6370, %v6418
      %6420 = vmatmul.bf16.gmra.mxu0 %v1638
      %v6421 = vpop.f32.mrf.mxu0
      %v6422 = vadd.f32 %v6373, %v6421
      %v6423 = vpop.f32.mrf.mxu0
      %v6424 = vadd.f32 %v6375, %v6423
      %6425 = vmatmul.bf16.gmra.mxu0 %v1702
      %v6426 = vpop.f32.mrf.mxu0
      %v6427 = vadd.f32 %v6378, %v6426
      %v6428 = vpop.f32.mrf.mxu0
      %v6429 = vadd.f32 %v6380, %v6428
      %6430 = vmatmul.bf16.gmra.mxu0 %v1766
      %v6431 = vpop.f32.mrf.mxu0
      %v6432 = vadd.f32 %v6383, %v6431
      %v6433 = vpop.f32.mrf.mxu0
      %v6434 = vadd.f32 %v6385, %v6433
      %6435 = vdwg.mxu0
      %6436 = vmatpush.bf16.msra.mxu0 %v4981
      %6437 = vmatpush.bf16.msra.mxu0 %v4980
      %6438 = vmatpush.bf16.msra.mxu0 %v4979
      %6439 = vmatpush.bf16.msra.mxu0 %v4978
      %6440 = vmatpush.bf16.msra.mxu0 %v4977
      %6441 = vmatpush.bf16.msra.mxu0 %v4976
      %6442 = vmatpush.bf16.msra.mxu0 %v4975
      %6443 = vmatpush.bf16.msra.mxu0 %v4974
      %6444 = vmatmul.bf16.gmra.mxu0 %v1319
      %v6445 = vpop.f32.mrf.mxu0
      %v6446 = vadd.f32 %v6397, %v6445
      %v6447 = vpop.f32.mrf.mxu0
      %v6448 = vadd.f32 %v6399, %v6447
      %6449 = vmatmul.bf16.gmra.mxu0 %v1383
      %v6450 = vpop.f32.mrf.mxu0
      %v6451 = vadd.f32 %v6402, %v6450
      %v6452 = vpop.f32.mrf.mxu0
      %v6453 = vadd.f32 %v6404, %v6452
      %6454 = vmatmul.bf16.gmra.mxu0 %v1447
      %v6455 = vpop.f32.mrf.mxu0
      %v6456 = vadd.f32 %v6407, %v6455
      %v6457 = vpop.f32.mrf.mxu0
      %v6458 = vadd.f32 %v6409, %v6457
      %6459 = vmatmul.bf16.gmra.mxu0 %v1511
      %v6460 = vpop.f32.mrf.mxu0
      %v6461 = vadd.f32 %v6412, %v6460
      %v6462 = vpop.f32.mrf.mxu0
      %v6463 = vadd.f32 %v6414, %v6462
      %6464 = vmatmul.bf16.gmra.mxu0 %v1575
      %v6465 = vpop.f32.mrf.mxu0
      %v6466 = vadd.f32 %v6417, %v6465
      %v6467 = vpop.f32.mrf.mxu0
      %v6468 = vadd.f32 %v6419, %v6467
      %6469 = vmatmul.bf16.gmra.mxu0 %v1639
      %v6470 = vpop.f32.mrf.mxu0
      %v6471 = vadd.f32 %v6422, %v6470
      %v6472 = vpop.f32.mrf.mxu0
      %v6473 = vadd.f32 %v6424, %v6472
      %6474 = vmatmul.bf16.gmra.mxu0 %v1703
      %v6475 = vpop.f32.mrf.mxu0
      %v6476 = vadd.f32 %v6427, %v6475
      %v6477 = vpop.f32.mrf.mxu0
      %v6478 = vadd.f32 %v6429, %v6477
      %6479 = vmatmul.bf16.gmra.mxu0 %v1767
      %v6480 = vpop.f32.mrf.mxu0
      %v6481 = vadd.f32 %v6432, %v6480
      %v6482 = vpop.f32.mrf.mxu0
      %v6483 = vadd.f32 %v6434, %v6482
      %6484 = vdwg.mxu0
      %6485 = vmatpush.bf16.msra.mxu0 %v4989
      %6486 = vmatpush.bf16.msra.mxu0 %v4988
      %6487 = vmatpush.bf16.msra.mxu0 %v4987
      %6488 = vmatpush.bf16.msra.mxu0 %v4986
      %6489 = vmatpush.bf16.msra.mxu0 %v4985
      %6490 = vmatpush.bf16.msra.mxu0 %v4984
      %6491 = vmatpush.bf16.msra.mxu0 %v4983
      %6492 = vmatpush.bf16.msra.mxu0 %v4982
      %6493 = vmatmul.bf16.gmra.mxu0 %v1320
      %v6494 = vpop.f32.mrf.mxu0
      %v6495 = vadd.f32 %v6446, %v6494
      %v6496 = vpop.f32.mrf.mxu0
      %v6497 = vadd.f32 %v6448, %v6496
      %6498 = vmatmul.bf16.gmra.mxu0 %v1384
      %v6499 = vpop.f32.mrf.mxu0
      %v6500 = vadd.f32 %v6451, %v6499
      %v6501 = vpop.f32.mrf.mxu0
      %v6502 = vadd.f32 %v6453, %v6501
      %6503 = vmatmul.bf16.gmra.mxu0 %v1448
      %v6504 = vpop.f32.mrf.mxu0
      %v6505 = vadd.f32 %v6456, %v6504
      %v6506 = vpop.f32.mrf.mxu0
      %v6507 = vadd.f32 %v6458, %v6506
      %6508 = vmatmul.bf16.gmra.mxu0 %v1512
      %v6509 = vpop.f32.mrf.mxu0
      %v6510 = vadd.f32 %v6461, %v6509
      %v6511 = vpop.f32.mrf.mxu0
      %v6512 = vadd.f32 %v6463, %v6511
      %6513 = vmatmul.bf16.gmra.mxu0 %v1576
      %v6514 = vpop.f32.mrf.mxu0
      %v6515 = vadd.f32 %v6466, %v6514
      %v6516 = vpop.f32.mrf.mxu0
      %v6517 = vadd.f32 %v6468, %v6516
      %6518 = vmatmul.bf16.gmra.mxu0 %v1640
      %v6519 = vpop.f32.mrf.mxu0
      %v6520 = vadd.f32 %v6471, %v6519
      %v6521 = vpop.f32.mrf.mxu0
      %v6522 = vadd.f32 %v6473, %v6521
      %6523 = vmatmul.bf16.gmra.mxu0 %v1704
      %v6524 = vpop.f32.mrf.mxu0
      %v6525 = vadd.f32 %v6476, %v6524
      %v6526 = vpop.f32.mrf.mxu0
      %v6527 = vadd.f32 %v6478, %v6526
      %6528 = vmatmul.bf16.gmra.mxu0 %v1768
      %v6529 = vpop.f32.mrf.mxu0
      %v6530 = vadd.f32 %v6481, %v6529
      %v6531 = vpop.f32.mrf.mxu0
      %v6532 = vadd.f32 %v6483, %v6531
      %6533 = vdwg.mxu0
      %6534 = vmatpush.bf16.msra.mxu0 %v4997
      %6535 = vmatpush.bf16.msra.mxu0 %v4996
      %6536 = vmatpush.bf16.msra.mxu0 %v4995
      %6537 = vmatpush.bf16.msra.mxu0 %v4994
      %6538 = vmatpush.bf16.msra.mxu0 %v4993
      %6539 = vmatpush.bf16.msra.mxu0 %v4992
      %6540 = vmatpush.bf16.msra.mxu0 %v4991
      %6541 = vmatpush.bf16.msra.mxu0 %v4990
      %6542 = vmatmul.bf16.gmra.mxu0 %v1321
      %v6543 = vpop.f32.mrf.mxu0
      %v6544 = vadd.f32 %v6495, %v6543
      %v6545 = vpop.f32.mrf.mxu0
      %v6546 = vadd.f32 %v6497, %v6545
      %6547 = vmatmul.bf16.gmra.mxu0 %v1385
      %v6548 = vpop.f32.mrf.mxu0
      %v6549 = vadd.f32 %v6500, %v6548
      %v6550 = vpop.f32.mrf.mxu0
      %v6551 = vadd.f32 %v6502, %v6550
      %6552 = vmatmul.bf16.gmra.mxu0 %v1449
      %v6553 = vpop.f32.mrf.mxu0
      %v6554 = vadd.f32 %v6505, %v6553
      %v6555 = vpop.f32.mrf.mxu0
      %v6556 = vadd.f32 %v6507, %v6555
      %6557 = vmatmul.bf16.gmra.mxu0 %v1513
      %v6558 = vpop.f32.mrf.mxu0
      %v6559 = vadd.f32 %v6510, %v6558
      %v6560 = vpop.f32.mrf.mxu0
      %v6561 = vadd.f32 %v6512, %v6560
      %6562 = vmatmul.bf16.gmra.mxu0 %v1577
      %v6563 = vpop.f32.mrf.mxu0
      %v6564 = vadd.f32 %v6515, %v6563
      %v6565 = vpop.f32.mrf.mxu0
      %v6566 = vadd.f32 %v6517, %v6565
      %6567 = vmatmul.bf16.gmra.mxu0 %v1641
      %v6568 = vpop.f32.mrf.mxu0
      %v6569 = vadd.f32 %v6520, %v6568
      %v6570 = vpop.f32.mrf.mxu0
      %v6571 = vadd.f32 %v6522, %v6570
      %6572 = vmatmul.bf16.gmra.mxu0 %v1705
      %v6573 = vpop.f32.mrf.mxu0
      %v6574 = vadd.f32 %v6525, %v6573
      %v6575 = vpop.f32.mrf.mxu0
      %v6576 = vadd.f32 %v6527, %v6575
      %6577 = vmatmul.bf16.gmra.mxu0 %v1769
      %v6578 = vpop.f32.mrf.mxu0
      %v6579 = vadd.f32 %v6530, %v6578
      %v6580 = vpop.f32.mrf.mxu0
      %v6581 = vadd.f32 %v6532, %v6580
      %6582 = vdwg.mxu0
      %6583 = vmatpush.bf16.msra.mxu0 %v5005
      %6584 = vmatpush.bf16.msra.mxu0 %v5004
      %6585 = vmatpush.bf16.msra.mxu0 %v5003
      %6586 = vmatpush.bf16.msra.mxu0 %v5002
      %6587 = vmatpush.bf16.msra.mxu0 %v5001
      %6588 = vmatpush.bf16.msra.mxu0 %v5000
      %6589 = vmatpush.bf16.msra.mxu0 %v4999
      %6590 = vmatpush.bf16.msra.mxu0 %v4998
      %6591 = vmatmul.bf16.gmra.mxu0 %v1322
      %v6592 = vpop.f32.mrf.mxu0
      %v6593 = vadd.f32 %v6544, %v6592
      %v6594 = vpop.f32.mrf.mxu0
      %v6595 = vadd.f32 %v6546, %v6594
      %6596 = vmatmul.bf16.gmra.mxu0 %v1386
      %v6597 = vpop.f32.mrf.mxu0
      %v6598 = vadd.f32 %v6549, %v6597
      %v6599 = vpop.f32.mrf.mxu0
      %v6600 = vadd.f32 %v6551, %v6599
      %6601 = vmatmul.bf16.gmra.mxu0 %v1450
      %v6602 = vpop.f32.mrf.mxu0
      %v6603 = vadd.f32 %v6554, %v6602
      %v6604 = vpop.f32.mrf.mxu0
      %v6605 = vadd.f32 %v6556, %v6604
      %6606 = vmatmul.bf16.gmra.mxu0 %v1514
      %v6607 = vpop.f32.mrf.mxu0
      %v6608 = vadd.f32 %v6559, %v6607
      %v6609 = vpop.f32.mrf.mxu0
      %v6610 = vadd.f32 %v6561, %v6609
      %6611 = vmatmul.bf16.gmra.mxu0 %v1578
      %v6612 = vpop.f32.mrf.mxu0
      %v6613 = vadd.f32 %v6564, %v6612
      %v6614 = vpop.f32.mrf.mxu0
      %v6615 = vadd.f32 %v6566, %v6614
      %6616 = vmatmul.bf16.gmra.mxu0 %v1642
      %v6617 = vpop.f32.mrf.mxu0
      %v6618 = vadd.f32 %v6569, %v6617
      %v6619 = vpop.f32.mrf.mxu0
      %v6620 = vadd.f32 %v6571, %v6619
      %6621 = vmatmul.bf16.gmra.mxu0 %v1706
      %v6622 = vpop.f32.mrf.mxu0
      %v6623 = vadd.f32 %v6574, %v6622
      %v6624 = vpop.f32.mrf.mxu0
      %v6625 = vadd.f32 %v6576, %v6624
      %6626 = vmatmul.bf16.gmra.mxu0 %v1770
      %v6627 = vpop.f32.mrf.mxu0
      %v6628 = vadd.f32 %v6579, %v6627
      %v6629 = vpop.f32.mrf.mxu0
      %v6630 = vadd.f32 %v6581, %v6629
      %6631 = vdwg.mxu0
      %6632 = vmatpush.bf16.msra.mxu0 %v5013
      %6633 = vmatpush.bf16.msra.mxu0 %v5012
      %6634 = vmatpush.bf16.msra.mxu0 %v5011
      %6635 = vmatpush.bf16.msra.mxu0 %v5010
      %6636 = vmatpush.bf16.msra.mxu0 %v5009
      %6637 = vmatpush.bf16.msra.mxu0 %v5008
      %6638 = vmatpush.bf16.msra.mxu0 %v5007
      %6639 = vmatpush.bf16.msra.mxu0 %v5006
      %6640 = vmatmul.bf16.gmra.mxu0 %v1323
      %v6641 = vpop.f32.mrf.mxu0
      %v6642 = vadd.f32 %v6593, %v6641
      %v6643 = vpop.f32.mrf.mxu0
      %v6644 = vadd.f32 %v6595, %v6643
      %6645 = vmatmul.bf16.gmra.mxu0 %v1387
      %v6646 = vpop.f32.mrf.mxu0
      %v6647 = vadd.f32 %v6598, %v6646
      %v6648 = vpop.f32.mrf.mxu0
      %v6649 = vadd.f32 %v6600, %v6648
      %6650 = vmatmul.bf16.gmra.mxu0 %v1451
      %v6651 = vpop.f32.mrf.mxu0
      %v6652 = vadd.f32 %v6603, %v6651
      %v6653 = vpop.f32.mrf.mxu0
      %v6654 = vadd.f32 %v6605, %v6653
      %6655 = vmatmul.bf16.gmra.mxu0 %v1515
      %v6656 = vpop.f32.mrf.mxu0
      %v6657 = vadd.f32 %v6608, %v6656
      %v6658 = vpop.f32.mrf.mxu0
      %v6659 = vadd.f32 %v6610, %v6658
      %6660 = vmatmul.bf16.gmra.mxu0 %v1579
      %v6661 = vpop.f32.mrf.mxu0
      %v6662 = vadd.f32 %v6613, %v6661
      %v6663 = vpop.f32.mrf.mxu0
      %v6664 = vadd.f32 %v6615, %v6663
      %6665 = vmatmul.bf16.gmra.mxu0 %v1643
      %v6666 = vpop.f32.mrf.mxu0
      %v6667 = vadd.f32 %v6618, %v6666
      %v6668 = vpop.f32.mrf.mxu0
      %v6669 = vadd.f32 %v6620, %v6668
      %6670 = vmatmul.bf16.gmra.mxu0 %v1707
      %v6671 = vpop.f32.mrf.mxu0
      %v6672 = vadd.f32 %v6623, %v6671
      %v6673 = vpop.f32.mrf.mxu0
      %v6674 = vadd.f32 %v6625, %v6673
      %6675 = vmatmul.bf16.gmra.mxu0 %v1771
      %v6676 = vpop.f32.mrf.mxu0
      %v6677 = vadd.f32 %v6628, %v6676
      %v6678 = vpop.f32.mrf.mxu0
      %v6679 = vadd.f32 %v6630, %v6678
      %6680 = vdwg.mxu0
      %6681 = vmatpush.bf16.msra.mxu0 %v5021
      %6682 = vmatpush.bf16.msra.mxu0 %v5020
      %6683 = vmatpush.bf16.msra.mxu0 %v5019
      %6684 = vmatpush.bf16.msra.mxu0 %v5018
      %6685 = vmatpush.bf16.msra.mxu0 %v5017
      %6686 = vmatpush.bf16.msra.mxu0 %v5016
      %6687 = vmatpush.bf16.msra.mxu0 %v5015
      %6688 = vmatpush.bf16.msra.mxu0 %v5014
      %6689 = vmatmul.bf16.gmra.mxu0 %v1324
      %v6690 = vpop.f32.mrf.mxu0
      %v6691 = vadd.f32 %v6642, %v6690
      %v6692 = vpop.f32.mrf.mxu0
      %v6693 = vadd.f32 %v6644, %v6692
      %6694 = vmatmul.bf16.gmra.mxu0 %v1388
      %v6695 = vpop.f32.mrf.mxu0
      %v6696 = vadd.f32 %v6647, %v6695
      %v6697 = vpop.f32.mrf.mxu0
      %v6698 = vadd.f32 %v6649, %v6697
      %6699 = vmatmul.bf16.gmra.mxu0 %v1452
      %v6700 = vpop.f32.mrf.mxu0
      %v6701 = vadd.f32 %v6652, %v6700
      %v6702 = vpop.f32.mrf.mxu0
      %v6703 = vadd.f32 %v6654, %v6702
      %6704 = vmatmul.bf16.gmra.mxu0 %v1516
      %v6705 = vpop.f32.mrf.mxu0
      %v6706 = vadd.f32 %v6657, %v6705
      %v6707 = vpop.f32.mrf.mxu0
      %v6708 = vadd.f32 %v6659, %v6707
      %6709 = vmatmul.bf16.gmra.mxu0 %v1580
      %v6710 = vpop.f32.mrf.mxu0
      %v6711 = vadd.f32 %v6662, %v6710
      %v6712 = vpop.f32.mrf.mxu0
      %v6713 = vadd.f32 %v6664, %v6712
      %6714 = vmatmul.bf16.gmra.mxu0 %v1644
      %v6715 = vpop.f32.mrf.mxu0
      %v6716 = vadd.f32 %v6667, %v6715
      %v6717 = vpop.f32.mrf.mxu0
      %v6718 = vadd.f32 %v6669, %v6717
      %6719 = vmatmul.bf16.gmra.mxu0 %v1708
      %v6720 = vpop.f32.mrf.mxu0
      %v6721 = vadd.f32 %v6672, %v6720
      %v6722 = vpop.f32.mrf.mxu0
      %v6723 = vadd.f32 %v6674, %v6722
      %6724 = vmatmul.bf16.gmra.mxu0 %v1772
      %v6725 = vpop.f32.mrf.mxu0
      %v6726 = vadd.f32 %v6677, %v6725
      %v6727 = vpop.f32.mrf.mxu0
      %v6728 = vadd.f32 %v6679, %v6727
      %6729 = vdwg.mxu0
      %6730 = vmatpush.bf16.msra.mxu0 %v5029
      %6731 = vmatpush.bf16.msra.mxu0 %v5028
      %6732 = vmatpush.bf16.msra.mxu0 %v5027
      %6733 = vmatpush.bf16.msra.mxu0 %v5026
      %6734 = vmatpush.bf16.msra.mxu0 %v5025
      %6735 = vmatpush.bf16.msra.mxu0 %v5024
      %6736 = vmatpush.bf16.msra.mxu0 %v5023
      %6737 = vmatpush.bf16.msra.mxu0 %v5022
      %6738 = vmatmul.bf16.gmra.mxu0 %v1325
      %v6739 = vpop.f32.mrf.mxu0
      %v6740 = vadd.f32 %v6691, %v6739
      %v6741 = vpop.f32.mrf.mxu0
      %v6742 = vadd.f32 %v6693, %v6741
      %6743 = vmatmul.bf16.gmra.mxu0 %v1389
      %v6744 = vpop.f32.mrf.mxu0
      %v6745 = vadd.f32 %v6696, %v6744
      %v6746 = vpop.f32.mrf.mxu0
      %v6747 = vadd.f32 %v6698, %v6746
      %6748 = vmatmul.bf16.gmra.mxu0 %v1453
      %v6749 = vpop.f32.mrf.mxu0
      %v6750 = vadd.f32 %v6701, %v6749
      %v6751 = vpop.f32.mrf.mxu0
      %v6752 = vadd.f32 %v6703, %v6751
      %6753 = vmatmul.bf16.gmra.mxu0 %v1517
      %v6754 = vpop.f32.mrf.mxu0
      %v6755 = vadd.f32 %v6706, %v6754
      %v6756 = vpop.f32.mrf.mxu0
      %v6757 = vadd.f32 %v6708, %v6756
      %6758 = vmatmul.bf16.gmra.mxu0 %v1581
      %v6759 = vpop.f32.mrf.mxu0
      %v6760 = vadd.f32 %v6711, %v6759
      %v6761 = vpop.f32.mrf.mxu0
      %v6762 = vadd.f32 %v6713, %v6761
      %6763 = vmatmul.bf16.gmra.mxu0 %v1645
      %v6764 = vpop.f32.mrf.mxu0
      %v6765 = vadd.f32 %v6716, %v6764
      %v6766 = vpop.f32.mrf.mxu0
      %v6767 = vadd.f32 %v6718, %v6766
      %6768 = vmatmul.bf16.gmra.mxu0 %v1709
      %v6769 = vpop.f32.mrf.mxu0
      %v6770 = vadd.f32 %v6721, %v6769
      %v6771 = vpop.f32.mrf.mxu0
      %v6772 = vadd.f32 %v6723, %v6771
      %6773 = vmatmul.bf16.gmra.mxu0 %v1773
      %v6774 = vpop.f32.mrf.mxu0
      %v6775 = vadd.f32 %v6726, %v6774
      %v6776 = vpop.f32.mrf.mxu0
      %v6777 = vadd.f32 %v6728, %v6776
      %6778 = vdwg.mxu0
      %6779 = vmatpush.bf16.msra.mxu0 %v5037
      %6780 = vmatpush.bf16.msra.mxu0 %v5036
      %6781 = vmatpush.bf16.msra.mxu0 %v5035
      %6782 = vmatpush.bf16.msra.mxu0 %v5034
      %6783 = vmatpush.bf16.msra.mxu0 %v5033
      %6784 = vmatpush.bf16.msra.mxu0 %v5032
      %6785 = vmatpush.bf16.msra.mxu0 %v5031
      %6786 = vmatpush.bf16.msra.mxu0 %v5030
      %6787 = vmatmul.bf16.gmra.mxu0 %v1326
      %v6788 = vpop.f32.mrf.mxu0
      %v6789 = vadd.f32 %v6740, %v6788
      %v6790 = vpop.f32.mrf.mxu0
      %v6791 = vadd.f32 %v6742, %v6790
      %6792 = vmatmul.bf16.gmra.mxu0 %v1390
      %v6793 = vpop.f32.mrf.mxu0
      %v6794 = vadd.f32 %v6745, %v6793
      %v6795 = vpop.f32.mrf.mxu0
      %v6796 = vadd.f32 %v6747, %v6795
      %6797 = vmatmul.bf16.gmra.mxu0 %v1454
      %v6798 = vpop.f32.mrf.mxu0
      %v6799 = vadd.f32 %v6750, %v6798
      %v6800 = vpop.f32.mrf.mxu0
      %v6801 = vadd.f32 %v6752, %v6800
      %6802 = vmatmul.bf16.gmra.mxu0 %v1518
      %v6803 = vpop.f32.mrf.mxu0
      %v6804 = vadd.f32 %v6755, %v6803
      %v6805 = vpop.f32.mrf.mxu0
      %v6806 = vadd.f32 %v6757, %v6805
      %6807 = vmatmul.bf16.gmra.mxu0 %v1582
      %v6808 = vpop.f32.mrf.mxu0
      %v6809 = vadd.f32 %v6760, %v6808
      %v6810 = vpop.f32.mrf.mxu0
      %v6811 = vadd.f32 %v6762, %v6810
      %6812 = vmatmul.bf16.gmra.mxu0 %v1646
      %v6813 = vpop.f32.mrf.mxu0
      %v6814 = vadd.f32 %v6765, %v6813
      %v6815 = vpop.f32.mrf.mxu0
      %v6816 = vadd.f32 %v6767, %v6815
      %6817 = vmatmul.bf16.gmra.mxu0 %v1710
      %v6818 = vpop.f32.mrf.mxu0
      %v6819 = vadd.f32 %v6770, %v6818
      %v6820 = vpop.f32.mrf.mxu0
      %v6821 = vadd.f32 %v6772, %v6820
      %6822 = vmatmul.bf16.gmra.mxu0 %v1774
      %v6823 = vpop.f32.mrf.mxu0
      %v6824 = vadd.f32 %v6775, %v6823
      %v6825 = vpop.f32.mrf.mxu0
      %v6826 = vadd.f32 %v6777, %v6825
      %6827 = vdwg.mxu0
      %6828 = vmatpush.bf16.msra.mxu0 %v5045
      %6829 = vmatpush.bf16.msra.mxu0 %v5044
      %6830 = vmatpush.bf16.msra.mxu0 %v5043
      %6831 = vmatpush.bf16.msra.mxu0 %v5042
      %6832 = vmatpush.bf16.msra.mxu0 %v5041
      %6833 = vmatpush.bf16.msra.mxu0 %v5040
      %6834 = vmatpush.bf16.msra.mxu0 %v5039
      %6835 = vmatpush.bf16.msra.mxu0 %v5038
      %6836 = vmatmul.bf16.gmra.mxu0 %v1327
      %v6837 = vpop.f32.mrf.mxu0
      %v6838 = vadd.f32 %v6789, %v6837
      %v6839 = vpop.f32.mrf.mxu0
      %v6840 = vadd.f32 %v6791, %v6839
      %6841 = vmatmul.bf16.gmra.mxu0 %v1391
      %v6842 = vpop.f32.mrf.mxu0
      %v6843 = vadd.f32 %v6794, %v6842
      %v6844 = vpop.f32.mrf.mxu0
      %v6845 = vadd.f32 %v6796, %v6844
      %6846 = vmatmul.bf16.gmra.mxu0 %v1455
      %v6847 = vpop.f32.mrf.mxu0
      %v6848 = vadd.f32 %v6799, %v6847
      %v6849 = vpop.f32.mrf.mxu0
      %v6850 = vadd.f32 %v6801, %v6849
      %6851 = vmatmul.bf16.gmra.mxu0 %v1519
      %v6852 = vpop.f32.mrf.mxu0
      %v6853 = vadd.f32 %v6804, %v6852
      %v6854 = vpop.f32.mrf.mxu0
      %v6855 = vadd.f32 %v6806, %v6854
      %6856 = vmatmul.bf16.gmra.mxu0 %v1583
      %v6857 = vpop.f32.mrf.mxu0
      %v6858 = vadd.f32 %v6809, %v6857
      %v6859 = vpop.f32.mrf.mxu0
      %v6860 = vadd.f32 %v6811, %v6859
      %6861 = vmatmul.bf16.gmra.mxu0 %v1647
      %v6862 = vpop.f32.mrf.mxu0
      %v6863 = vadd.f32 %v6814, %v6862
      %v6864 = vpop.f32.mrf.mxu0
      %v6865 = vadd.f32 %v6816, %v6864
      %6866 = vmatmul.bf16.gmra.mxu0 %v1711
      %v6867 = vpop.f32.mrf.mxu0
      %v6868 = vadd.f32 %v6819, %v6867
      %v6869 = vpop.f32.mrf.mxu0
      %v6870 = vadd.f32 %v6821, %v6869
      %6871 = vmatmul.bf16.gmra.mxu0 %v1775
      %v6872 = vpop.f32.mrf.mxu0
      %v6873 = vadd.f32 %v6824, %v6872
      %v6874 = vpop.f32.mrf.mxu0
      %v6875 = vadd.f32 %v6826, %v6874
      %6876 = vdwg.mxu0
      %6877 = vmatpush.bf16.msra.mxu0 %v5053
      %6878 = vmatpush.bf16.msra.mxu0 %v5052
      %6879 = vmatpush.bf16.msra.mxu0 %v5051
      %6880 = vmatpush.bf16.msra.mxu0 %v5050
      %6881 = vmatpush.bf16.msra.mxu0 %v5049
      %6882 = vmatpush.bf16.msra.mxu0 %v5048
      %6883 = vmatpush.bf16.msra.mxu0 %v5047
      %6884 = vmatpush.bf16.msra.mxu0 %v5046
      %6885 = vmatmul.bf16.gmra.mxu0 %v1328
      %v6886 = vpop.f32.mrf.mxu0
      %v6887 = vadd.f32 %v6838, %v6886
      %v6888 = vpop.f32.mrf.mxu0
      %v6889 = vadd.f32 %v6840, %v6888
      %6890 = vmatmul.bf16.gmra.mxu0 %v1392
      %v6891 = vpop.f32.mrf.mxu0
      %v6892 = vadd.f32 %v6843, %v6891
      %v6893 = vpop.f32.mrf.mxu0
      %v6894 = vadd.f32 %v6845, %v6893
      %6895 = vmatmul.bf16.gmra.mxu0 %v1456
      %v6896 = vpop.f32.mrf.mxu0
      %v6897 = vadd.f32 %v6848, %v6896
      %v6898 = vpop.f32.mrf.mxu0
      %v6899 = vadd.f32 %v6850, %v6898
      %6900 = vmatmul.bf16.gmra.mxu0 %v1520
      %v6901 = vpop.f32.mrf.mxu0
      %v6902 = vadd.f32 %v6853, %v6901
      %v6903 = vpop.f32.mrf.mxu0
      %v6904 = vadd.f32 %v6855, %v6903
      %6905 = vmatmul.bf16.gmra.mxu0 %v1584
      %v6906 = vpop.f32.mrf.mxu0
      %v6907 = vadd.f32 %v6858, %v6906
      %v6908 = vpop.f32.mrf.mxu0
      %v6909 = vadd.f32 %v6860, %v6908
      %6910 = vmatmul.bf16.gmra.mxu0 %v1648
      %v6911 = vpop.f32.mrf.mxu0
      %v6912 = vadd.f32 %v6863, %v6911
      %v6913 = vpop.f32.mrf.mxu0
      %v6914 = vadd.f32 %v6865, %v6913
      %6915 = vmatmul.bf16.gmra.mxu0 %v1712
      %v6916 = vpop.f32.mrf.mxu0
      %v6917 = vadd.f32 %v6868, %v6916
      %v6918 = vpop.f32.mrf.mxu0
      %v6919 = vadd.f32 %v6870, %v6918
      %6920 = vmatmul.bf16.gmra.mxu0 %v1776
      %v6921 = vpop.f32.mrf.mxu0
      %v6922 = vadd.f32 %v6873, %v6921
      %v6923 = vpop.f32.mrf.mxu0
      %v6924 = vadd.f32 %v6875, %v6923
      %6925 = vdwg.mxu0
      %6926 = vmatpush.bf16.msra.mxu0 %v5061
      %6927 = vmatpush.bf16.msra.mxu0 %v5060
      %6928 = vmatpush.bf16.msra.mxu0 %v5059
      %6929 = vmatpush.bf16.msra.mxu0 %v5058
      %6930 = vmatpush.bf16.msra.mxu0 %v5057
      %6931 = vmatpush.bf16.msra.mxu0 %v5056
      %6932 = vmatpush.bf16.msra.mxu0 %v5055
      %6933 = vmatpush.bf16.msra.mxu0 %v5054
      %6934 = vmatmul.bf16.gmra.mxu0 %v1329
      %v6935 = vpop.f32.mrf.mxu0
      %v6936 = vadd.f32 %v6887, %v6935
      %v6937 = vpop.f32.mrf.mxu0
      %v6938 = vadd.f32 %v6889, %v6937
      %6939 = vmatmul.bf16.gmra.mxu0 %v1393
      %v6940 = vpop.f32.mrf.mxu0
      %v6941 = vadd.f32 %v6892, %v6940
      %v6942 = vpop.f32.mrf.mxu0
      %v6943 = vadd.f32 %v6894, %v6942
      %6944 = vmatmul.bf16.gmra.mxu0 %v1457
      %v6945 = vpop.f32.mrf.mxu0
      %v6946 = vadd.f32 %v6897, %v6945
      %v6947 = vpop.f32.mrf.mxu0
      %v6948 = vadd.f32 %v6899, %v6947
      %6949 = vmatmul.bf16.gmra.mxu0 %v1521
      %v6950 = vpop.f32.mrf.mxu0
      %v6951 = vadd.f32 %v6902, %v6950
      %v6952 = vpop.f32.mrf.mxu0
      %v6953 = vadd.f32 %v6904, %v6952
      %6954 = vmatmul.bf16.gmra.mxu0 %v1585
      %v6955 = vpop.f32.mrf.mxu0
      %v6956 = vadd.f32 %v6907, %v6955
      %v6957 = vpop.f32.mrf.mxu0
      %v6958 = vadd.f32 %v6909, %v6957
      %6959 = vmatmul.bf16.gmra.mxu0 %v1649
      %v6960 = vpop.f32.mrf.mxu0
      %v6961 = vadd.f32 %v6912, %v6960
      %v6962 = vpop.f32.mrf.mxu0
      %v6963 = vadd.f32 %v6914, %v6962
      %6964 = vmatmul.bf16.gmra.mxu0 %v1713
      %v6965 = vpop.f32.mrf.mxu0
      %v6966 = vadd.f32 %v6917, %v6965
      %v6967 = vpop.f32.mrf.mxu0
      %v6968 = vadd.f32 %v6919, %v6967
      %6969 = vmatmul.bf16.gmra.mxu0 %v1777
      %v6970 = vpop.f32.mrf.mxu0
      %v6971 = vadd.f32 %v6922, %v6970
      %v6972 = vpop.f32.mrf.mxu0
      %v6973 = vadd.f32 %v6924, %v6972
      %6974 = vdwg.mxu0
      %6975 = vmatpush.bf16.msra.mxu0 %v5069
      %6976 = vmatpush.bf16.msra.mxu0 %v5068
      %6977 = vmatpush.bf16.msra.mxu0 %v5067
      %6978 = vmatpush.bf16.msra.mxu0 %v5066
      %6979 = vmatpush.bf16.msra.mxu0 %v5065
      %6980 = vmatpush.bf16.msra.mxu0 %v5064
      %6981 = vmatpush.bf16.msra.mxu0 %v5063
      %6982 = vmatpush.bf16.msra.mxu0 %v5062
      %6983 = vmatmul.bf16.gmra.mxu0 %v1330
      %v6984 = vpop.f32.mrf.mxu0
      %v6985 = vadd.f32 %v6936, %v6984
      %v6986 = vpop.f32.mrf.mxu0
      %v6987 = vadd.f32 %v6938, %v6986
      %6988 = vmatmul.bf16.gmra.mxu0 %v1394
      %v6989 = vpop.f32.mrf.mxu0
      %v6990 = vadd.f32 %v6941, %v6989
      %v6991 = vpop.f32.mrf.mxu0
      %v6992 = vadd.f32 %v6943, %v6991
      %6993 = vmatmul.bf16.gmra.mxu0 %v1458
      %v6994 = vpop.f32.mrf.mxu0
      %v6995 = vadd.f32 %v6946, %v6994
      %v6996 = vpop.f32.mrf.mxu0
      %v6997 = vadd.f32 %v6948, %v6996
      %6998 = vmatmul.bf16.gmra.mxu0 %v1522
      %v6999 = vpop.f32.mrf.mxu0
      %v7000 = vadd.f32 %v6951, %v6999
      %v7001 = vpop.f32.mrf.mxu0
      %v7002 = vadd.f32 %v6953, %v7001
      %7003 = vmatmul.bf16.gmra.mxu0 %v1586
      %v7004 = vpop.f32.mrf.mxu0
      %v7005 = vadd.f32 %v6956, %v7004
      %v7006 = vpop.f32.mrf.mxu0
      %v7007 = vadd.f32 %v6958, %v7006
      %7008 = vmatmul.bf16.gmra.mxu0 %v1650
      %v7009 = vpop.f32.mrf.mxu0
      %v7010 = vadd.f32 %v6961, %v7009
      %v7011 = vpop.f32.mrf.mxu0
      %v7012 = vadd.f32 %v6963, %v7011
      %7013 = vmatmul.bf16.gmra.mxu0 %v1714
      %v7014 = vpop.f32.mrf.mxu0
      %v7015 = vadd.f32 %v6966, %v7014
      %v7016 = vpop.f32.mrf.mxu0
      %v7017 = vadd.f32 %v6968, %v7016
      %7018 = vmatmul.bf16.gmra.mxu0 %v1778
      %v7019 = vpop.f32.mrf.mxu0
      %v7020 = vadd.f32 %v6971, %v7019
      %v7021 = vpop.f32.mrf.mxu0
      %v7022 = vadd.f32 %v6973, %v7021
      %7023 = vdwg.mxu0
      %7024 = vmatpush.bf16.msra.mxu0 %v5077
      %7025 = vmatpush.bf16.msra.mxu0 %v5076
      %7026 = vmatpush.bf16.msra.mxu0 %v5075
      %7027 = vmatpush.bf16.msra.mxu0 %v5074
      %7028 = vmatpush.bf16.msra.mxu0 %v5073
      %7029 = vmatpush.bf16.msra.mxu0 %v5072
      %7030 = vmatpush.bf16.msra.mxu0 %v5071
      %7031 = vmatpush.bf16.msra.mxu0 %v5070
      %7032 = vmatmul.bf16.gmra.mxu0 %v1331
      %v7033 = vpop.f32.mrf.mxu0
      %v7034 = vadd.f32 %v6985, %v7033
      %v7035 = vpop.f32.mrf.mxu0
      %v7036 = vadd.f32 %v6987, %v7035
      %7037 = vmatmul.bf16.gmra.mxu0 %v1395
      %v7038 = vpop.f32.mrf.mxu0
      %v7039 = vadd.f32 %v6990, %v7038
      %v7040 = vpop.f32.mrf.mxu0
      %v7041 = vadd.f32 %v6992, %v7040
      %7042 = vmatmul.bf16.gmra.mxu0 %v1459
      %v7043 = vpop.f32.mrf.mxu0
      %v7044 = vadd.f32 %v6995, %v7043
      %v7045 = vpop.f32.mrf.mxu0
      %v7046 = vadd.f32 %v6997, %v7045
      %7047 = vmatmul.bf16.gmra.mxu0 %v1523
      %v7048 = vpop.f32.mrf.mxu0
      %v7049 = vadd.f32 %v7000, %v7048
      %v7050 = vpop.f32.mrf.mxu0
      %v7051 = vadd.f32 %v7002, %v7050
      %7052 = vmatmul.bf16.gmra.mxu0 %v1587
      %v7053 = vpop.f32.mrf.mxu0
      %v7054 = vadd.f32 %v7005, %v7053
      %v7055 = vpop.f32.mrf.mxu0
      %v7056 = vadd.f32 %v7007, %v7055
      %7057 = vmatmul.bf16.gmra.mxu0 %v1651
      %v7058 = vpop.f32.mrf.mxu0
      %v7059 = vadd.f32 %v7010, %v7058
      %v7060 = vpop.f32.mrf.mxu0
      %v7061 = vadd.f32 %v7012, %v7060
      %7062 = vmatmul.bf16.gmra.mxu0 %v1715
      %v7063 = vpop.f32.mrf.mxu0
      %v7064 = vadd.f32 %v7015, %v7063
      %v7065 = vpop.f32.mrf.mxu0
      %v7066 = vadd.f32 %v7017, %v7065
      %7067 = vmatmul.bf16.gmra.mxu0 %v1779
      %v7068 = vpop.f32.mrf.mxu0
      %v7069 = vadd.f32 %v7020, %v7068
      %v7070 = vpop.f32.mrf.mxu0
      %v7071 = vadd.f32 %v7022, %v7070
      %7072 = vdwg.mxu0
      %7073 = vmatpush.bf16.msra.mxu0 %v5085
      %7074 = vmatpush.bf16.msra.mxu0 %v5084
      %7075 = vmatpush.bf16.msra.mxu0 %v5083
      %7076 = vmatpush.bf16.msra.mxu0 %v5082
      %7077 = vmatpush.bf16.msra.mxu0 %v5081
      %7078 = vmatpush.bf16.msra.mxu0 %v5080
      %7079 = vmatpush.bf16.msra.mxu0 %v5079
      %7080 = vmatpush.bf16.msra.mxu0 %v5078
      %7081 = vmatmul.bf16.gmra.mxu0 %v1332
      %v7082 = vpop.f32.mrf.mxu0
      %v7083 = vadd.f32 %v7034, %v7082
      %v7084 = vpop.f32.mrf.mxu0
      %v7085 = vadd.f32 %v7036, %v7084
      %7086 = vmatmul.bf16.gmra.mxu0 %v1396
      %v7087 = vpop.f32.mrf.mxu0
      %v7088 = vadd.f32 %v7039, %v7087
      %v7089 = vpop.f32.mrf.mxu0
      %v7090 = vadd.f32 %v7041, %v7089
      %7091 = vmatmul.bf16.gmra.mxu0 %v1460
      %v7092 = vpop.f32.mrf.mxu0
      %v7093 = vadd.f32 %v7044, %v7092
      %v7094 = vpop.f32.mrf.mxu0
      %v7095 = vadd.f32 %v7046, %v7094
      %7096 = vmatmul.bf16.gmra.mxu0 %v1524
      %v7097 = vpop.f32.mrf.mxu0
      %v7098 = vadd.f32 %v7049, %v7097
      %v7099 = vpop.f32.mrf.mxu0
      %v7100 = vadd.f32 %v7051, %v7099
      %7101 = vmatmul.bf16.gmra.mxu0 %v1588
      %v7102 = vpop.f32.mrf.mxu0
      %v7103 = vadd.f32 %v7054, %v7102
      %v7104 = vpop.f32.mrf.mxu0
      %v7105 = vadd.f32 %v7056, %v7104
      %7106 = vmatmul.bf16.gmra.mxu0 %v1652
      %v7107 = vpop.f32.mrf.mxu0
      %v7108 = vadd.f32 %v7059, %v7107
      %v7109 = vpop.f32.mrf.mxu0
      %v7110 = vadd.f32 %v7061, %v7109
      %7111 = vmatmul.bf16.gmra.mxu0 %v1716
      %v7112 = vpop.f32.mrf.mxu0
      %v7113 = vadd.f32 %v7064, %v7112
      %v7114 = vpop.f32.mrf.mxu0
      %v7115 = vadd.f32 %v7066, %v7114
      %7116 = vmatmul.bf16.gmra.mxu0 %v1780
      %v7117 = vpop.f32.mrf.mxu0
      %v7118 = vadd.f32 %v7069, %v7117
      %v7119 = vpop.f32.mrf.mxu0
      %v7120 = vadd.f32 %v7071, %v7119
      %7121 = vdwg.mxu0
      %7122 = vmatpush.bf16.msra.mxu0 %v5093
      %7123 = vmatpush.bf16.msra.mxu0 %v5092
      %7124 = vmatpush.bf16.msra.mxu0 %v5091
      %7125 = vmatpush.bf16.msra.mxu0 %v5090
      %7126 = vmatpush.bf16.msra.mxu0 %v5089
      %7127 = vmatpush.bf16.msra.mxu0 %v5088
      %7128 = vmatpush.bf16.msra.mxu0 %v5087
      %7129 = vmatpush.bf16.msra.mxu0 %v5086
      %7130 = vmatmul.bf16.gmra.mxu0 %v1333
      %v7131 = vpop.f32.mrf.mxu0
      %v7132 = vadd.f32 %v7083, %v7131
      %v7133 = vpop.f32.mrf.mxu0
      %v7134 = vadd.f32 %v7085, %v7133
      %7135 = vmatmul.bf16.gmra.mxu0 %v1397
      %v7136 = vpop.f32.mrf.mxu0
      %v7137 = vadd.f32 %v7088, %v7136
      %v7138 = vpop.f32.mrf.mxu0
      %v7139 = vadd.f32 %v7090, %v7138
      %7140 = vmatmul.bf16.gmra.mxu0 %v1461
      %v7141 = vpop.f32.mrf.mxu0
      %v7142 = vadd.f32 %v7093, %v7141
      %v7143 = vpop.f32.mrf.mxu0
      %v7144 = vadd.f32 %v7095, %v7143
      %7145 = vmatmul.bf16.gmra.mxu0 %v1525
      %v7146 = vpop.f32.mrf.mxu0
      %v7147 = vadd.f32 %v7098, %v7146
      %v7148 = vpop.f32.mrf.mxu0
      %v7149 = vadd.f32 %v7100, %v7148
      %7150 = vmatmul.bf16.gmra.mxu0 %v1589
      %v7151 = vpop.f32.mrf.mxu0
      %v7152 = vadd.f32 %v7103, %v7151
      %v7153 = vpop.f32.mrf.mxu0
      %v7154 = vadd.f32 %v7105, %v7153
      %7155 = vmatmul.bf16.gmra.mxu0 %v1653
      %v7156 = vpop.f32.mrf.mxu0
      %v7157 = vadd.f32 %v7108, %v7156
      %v7158 = vpop.f32.mrf.mxu0
      %v7159 = vadd.f32 %v7110, %v7158
      %7160 = vmatmul.bf16.gmra.mxu0 %v1717
      %v7161 = vpop.f32.mrf.mxu0
      %v7162 = vadd.f32 %v7113, %v7161
      %v7163 = vpop.f32.mrf.mxu0
      %v7164 = vadd.f32 %v7115, %v7163
      %7165 = vmatmul.bf16.gmra.mxu0 %v1781
      %v7166 = vpop.f32.mrf.mxu0
      %v7167 = vadd.f32 %v7118, %v7166
      %v7168 = vpop.f32.mrf.mxu0
      %v7169 = vadd.f32 %v7120, %v7168
      %7170 = vdwg.mxu0
      %7171 = vmatpush.bf16.msra.mxu0 %v5101
      %7172 = vmatpush.bf16.msra.mxu0 %v5100
      %7173 = vmatpush.bf16.msra.mxu0 %v5099
      %7174 = vmatpush.bf16.msra.mxu0 %v5098
      %7175 = vmatpush.bf16.msra.mxu0 %v5097
      %7176 = vmatpush.bf16.msra.mxu0 %v5096
      %7177 = vmatpush.bf16.msra.mxu0 %v5095
      %7178 = vmatpush.bf16.msra.mxu0 %v5094
      %7179 = vmatmul.bf16.gmra.mxu0 %v1334
      %v7180 = vpop.f32.mrf.mxu0
      %v7181 = vadd.f32 %v7132, %v7180
      %v7182 = vpop.f32.mrf.mxu0
      %v7183 = vadd.f32 %v7134, %v7182
      %7184 = vmatmul.bf16.gmra.mxu0 %v1398
      %v7185 = vpop.f32.mrf.mxu0
      %v7186 = vadd.f32 %v7137, %v7185
      %v7187 = vpop.f32.mrf.mxu0
      %v7188 = vadd.f32 %v7139, %v7187
      %7189 = vmatmul.bf16.gmra.mxu0 %v1462
      %v7190 = vpop.f32.mrf.mxu0
      %v7191 = vadd.f32 %v7142, %v7190
      %v7192 = vpop.f32.mrf.mxu0
      %v7193 = vadd.f32 %v7144, %v7192
      %7194 = vmatmul.bf16.gmra.mxu0 %v1526
      %v7195 = vpop.f32.mrf.mxu0
      %v7196 = vadd.f32 %v7147, %v7195
      %v7197 = vpop.f32.mrf.mxu0
      %v7198 = vadd.f32 %v7149, %v7197
      %7199 = vmatmul.bf16.gmra.mxu0 %v1590
      %v7200 = vpop.f32.mrf.mxu0
      %v7201 = vadd.f32 %v7152, %v7200
      %v7202 = vpop.f32.mrf.mxu0
      %v7203 = vadd.f32 %v7154, %v7202
      %7204 = vmatmul.bf16.gmra.mxu0 %v1654
      %v7205 = vpop.f32.mrf.mxu0
      %v7206 = vadd.f32 %v7157, %v7205
      %v7207 = vpop.f32.mrf.mxu0
      %v7208 = vadd.f32 %v7159, %v7207
      %7209 = vmatmul.bf16.gmra.mxu0 %v1718
      %v7210 = vpop.f32.mrf.mxu0
      %v7211 = vadd.f32 %v7162, %v7210
      %v7212 = vpop.f32.mrf.mxu0
      %v7213 = vadd.f32 %v7164, %v7212
      %7214 = vmatmul.bf16.gmra.mxu0 %v1782
      %v7215 = vpop.f32.mrf.mxu0
      %v7216 = vadd.f32 %v7167, %v7215
      %v7217 = vpop.f32.mrf.mxu0
      %v7218 = vadd.f32 %v7169, %v7217
      %7219 = vdwg.mxu0
      %7220 = vmatpush.bf16.msra.mxu0 %v5109
      %7221 = vmatpush.bf16.msra.mxu0 %v5108
      %7222 = vmatpush.bf16.msra.mxu0 %v5107
      %7223 = vmatpush.bf16.msra.mxu0 %v5106
      %7224 = vmatpush.bf16.msra.mxu0 %v5105
      %7225 = vmatpush.bf16.msra.mxu0 %v5104
      %7226 = vmatpush.bf16.msra.mxu0 %v5103
      %7227 = vmatpush.bf16.msra.mxu0 %v5102
      %7228 = vmatmul.bf16.gmra.mxu0 %v1335
      %v7229 = vpop.f32.mrf.mxu0
      %v7230 = vadd.f32 %v7181, %v7229
      %v7231 = vpop.f32.mrf.mxu0
      %v7232 = vadd.f32 %v7183, %v7231
      %7233 = vmatmul.bf16.gmra.mxu0 %v1399
      %v7234 = vpop.f32.mrf.mxu0
      %v7235 = vadd.f32 %v7186, %v7234
      %v7236 = vpop.f32.mrf.mxu0
      %v7237 = vadd.f32 %v7188, %v7236
      %7238 = vmatmul.bf16.gmra.mxu0 %v1463
      %v7239 = vpop.f32.mrf.mxu0
      %v7240 = vadd.f32 %v7191, %v7239
      %v7241 = vpop.f32.mrf.mxu0
      %v7242 = vadd.f32 %v7193, %v7241
      %7243 = vmatmul.bf16.gmra.mxu0 %v1527
      %v7244 = vpop.f32.mrf.mxu0
      %v7245 = vadd.f32 %v7196, %v7244
      %v7246 = vpop.f32.mrf.mxu0
      %v7247 = vadd.f32 %v7198, %v7246
      %7248 = vmatmul.bf16.gmra.mxu0 %v1591
      %v7249 = vpop.f32.mrf.mxu0
      %v7250 = vadd.f32 %v7201, %v7249
      %v7251 = vpop.f32.mrf.mxu0
      %v7252 = vadd.f32 %v7203, %v7251
      %7253 = vmatmul.bf16.gmra.mxu0 %v1655
      %v7254 = vpop.f32.mrf.mxu0
      %v7255 = vadd.f32 %v7206, %v7254
      %v7256 = vpop.f32.mrf.mxu0
      %v7257 = vadd.f32 %v7208, %v7256
      %7258 = vmatmul.bf16.gmra.mxu0 %v1719
      %v7259 = vpop.f32.mrf.mxu0
      %v7260 = vadd.f32 %v7211, %v7259
      %v7261 = vpop.f32.mrf.mxu0
      %v7262 = vadd.f32 %v7213, %v7261
      %7263 = vmatmul.bf16.gmra.mxu0 %v1783
      %v7264 = vpop.f32.mrf.mxu0
      %v7265 = vadd.f32 %v7216, %v7264
      %v7266 = vpop.f32.mrf.mxu0
      %v7267 = vadd.f32 %v7218, %v7266
      %7268 = vdwg.mxu0
      %7269 = vmatpush.bf16.msra.mxu0 %v5117
      %7270 = vmatpush.bf16.msra.mxu0 %v5116
      %7271 = vmatpush.bf16.msra.mxu0 %v5115
      %7272 = vmatpush.bf16.msra.mxu0 %v5114
      %7273 = vmatpush.bf16.msra.mxu0 %v5113
      %7274 = vmatpush.bf16.msra.mxu0 %v5112
      %7275 = vmatpush.bf16.msra.mxu0 %v5111
      %7276 = vmatpush.bf16.msra.mxu0 %v5110
      %7277 = vmatmul.bf16.gmra.mxu0 %v1336
      %v7278 = vpop.f32.mrf.mxu0
      %v7279 = vadd.f32 %v7230, %v7278
      %v7280 = vpop.f32.mrf.mxu0
      %v7281 = vadd.f32 %v7232, %v7280
      %7282 = vmatmul.bf16.gmra.mxu0 %v1400
      %v7283 = vpop.f32.mrf.mxu0
      %v7284 = vadd.f32 %v7235, %v7283
      %v7285 = vpop.f32.mrf.mxu0
      %v7286 = vadd.f32 %v7237, %v7285
      %7287 = vmatmul.bf16.gmra.mxu0 %v1464
      %v7288 = vpop.f32.mrf.mxu0
      %v7289 = vadd.f32 %v7240, %v7288
      %v7290 = vpop.f32.mrf.mxu0
      %v7291 = vadd.f32 %v7242, %v7290
      %7292 = vmatmul.bf16.gmra.mxu0 %v1528
      %v7293 = vpop.f32.mrf.mxu0
      %v7294 = vadd.f32 %v7245, %v7293
      %v7295 = vpop.f32.mrf.mxu0
      %v7296 = vadd.f32 %v7247, %v7295
      %7297 = vmatmul.bf16.gmra.mxu0 %v1592
      %v7298 = vpop.f32.mrf.mxu0
      %v7299 = vadd.f32 %v7250, %v7298
      %v7300 = vpop.f32.mrf.mxu0
      %v7301 = vadd.f32 %v7252, %v7300
      %7302 = vmatmul.bf16.gmra.mxu0 %v1656
      %v7303 = vpop.f32.mrf.mxu0
      %v7304 = vadd.f32 %v7255, %v7303
      %v7305 = vpop.f32.mrf.mxu0
      %v7306 = vadd.f32 %v7257, %v7305
      %7307 = vmatmul.bf16.gmra.mxu0 %v1720
      %v7308 = vpop.f32.mrf.mxu0
      %v7309 = vadd.f32 %v7260, %v7308
      %v7310 = vpop.f32.mrf.mxu0
      %v7311 = vadd.f32 %v7262, %v7310
      %7312 = vmatmul.bf16.gmra.mxu0 %v1784
      %v7313 = vpop.f32.mrf.mxu0
      %v7314 = vadd.f32 %v7265, %v7313
      %v7315 = vpop.f32.mrf.mxu0
      %v7316 = vadd.f32 %v7267, %v7315
      %7317 = vdwg.mxu0
      %7318 = vmatpush.bf16.msra.mxu0 %v5125
      %7319 = vmatpush.bf16.msra.mxu0 %v5124
      %7320 = vmatpush.bf16.msra.mxu0 %v5123
      %7321 = vmatpush.bf16.msra.mxu0 %v5122
      %7322 = vmatpush.bf16.msra.mxu0 %v5121
      %7323 = vmatpush.bf16.msra.mxu0 %v5120
      %7324 = vmatpush.bf16.msra.mxu0 %v5119
      %7325 = vmatpush.bf16.msra.mxu0 %v5118
      %7326 = vmatmul.bf16.gmra.mxu0 %v1337
      %v7327 = vpop.f32.mrf.mxu0
      %v7328 = vadd.f32 %v7279, %v7327
      %v7329 = vpop.f32.mrf.mxu0
      %v7330 = vadd.f32 %v7281, %v7329
      %7331 = vmatmul.bf16.gmra.mxu0 %v1401
      %v7332 = vpop.f32.mrf.mxu0
      %v7333 = vadd.f32 %v7284, %v7332
      %v7334 = vpop.f32.mrf.mxu0
      %v7335 = vadd.f32 %v7286, %v7334
      %7336 = vmatmul.bf16.gmra.mxu0 %v1465
      %v7337 = vpop.f32.mrf.mxu0
      %v7338 = vadd.f32 %v7289, %v7337
      %v7339 = vpop.f32.mrf.mxu0
      %v7340 = vadd.f32 %v7291, %v7339
      %7341 = vmatmul.bf16.gmra.mxu0 %v1529
      %v7342 = vpop.f32.mrf.mxu0
      %v7343 = vadd.f32 %v7294, %v7342
      %v7344 = vpop.f32.mrf.mxu0
      %v7345 = vadd.f32 %v7296, %v7344
      %7346 = vmatmul.bf16.gmra.mxu0 %v1593
      %v7347 = vpop.f32.mrf.mxu0
      %v7348 = vadd.f32 %v7299, %v7347
      %v7349 = vpop.f32.mrf.mxu0
      %v7350 = vadd.f32 %v7301, %v7349
      %7351 = vmatmul.bf16.gmra.mxu0 %v1657
      %v7352 = vpop.f32.mrf.mxu0
      %v7353 = vadd.f32 %v7304, %v7352
      %v7354 = vpop.f32.mrf.mxu0
      %v7355 = vadd.f32 %v7306, %v7354
      %7356 = vmatmul.bf16.gmra.mxu0 %v1721
      %v7357 = vpop.f32.mrf.mxu0
      %v7358 = vadd.f32 %v7309, %v7357
      %v7359 = vpop.f32.mrf.mxu0
      %v7360 = vadd.f32 %v7311, %v7359
      %7361 = vmatmul.bf16.gmra.mxu0 %v1785
      %v7362 = vpop.f32.mrf.mxu0
      %v7363 = vadd.f32 %v7314, %v7362
      %v7364 = vpop.f32.mrf.mxu0
      %v7365 = vadd.f32 %v7316, %v7364
      %7366 = vdwg.mxu0
      %7367 = vmatpush.bf16.msra.mxu0 %v5133
      %7368 = vmatpush.bf16.msra.mxu0 %v5132
      %7369 = vmatpush.bf16.msra.mxu0 %v5131
      %7370 = vmatpush.bf16.msra.mxu0 %v5130
      %7371 = vmatpush.bf16.msra.mxu0 %v5129
      %7372 = vmatpush.bf16.msra.mxu0 %v5128
      %7373 = vmatpush.bf16.msra.mxu0 %v5127
      %7374 = vmatpush.bf16.msra.mxu0 %v5126
      %7375 = vmatmul.bf16.gmra.mxu0 %v1338
      %v7376 = vpop.f32.mrf.mxu0
      %v7377 = vadd.f32 %v7328, %v7376
      %v7378 = vpop.f32.mrf.mxu0
      %v7379 = vadd.f32 %v7330, %v7378
      %7380 = vmatmul.bf16.gmra.mxu0 %v1402
      %v7381 = vpop.f32.mrf.mxu0
      %v7382 = vadd.f32 %v7333, %v7381
      %v7383 = vpop.f32.mrf.mxu0
      %v7384 = vadd.f32 %v7335, %v7383
      %7385 = vmatmul.bf16.gmra.mxu0 %v1466
      %v7386 = vpop.f32.mrf.mxu0
      %v7387 = vadd.f32 %v7338, %v7386
      %v7388 = vpop.f32.mrf.mxu0
      %v7389 = vadd.f32 %v7340, %v7388
      %7390 = vmatmul.bf16.gmra.mxu0 %v1530
      %v7391 = vpop.f32.mrf.mxu0
      %v7392 = vadd.f32 %v7343, %v7391
      %v7393 = vpop.f32.mrf.mxu0
      %v7394 = vadd.f32 %v7345, %v7393
      %7395 = vmatmul.bf16.gmra.mxu0 %v1594
      %v7396 = vpop.f32.mrf.mxu0
      %v7397 = vadd.f32 %v7348, %v7396
      %v7398 = vpop.f32.mrf.mxu0
      %v7399 = vadd.f32 %v7350, %v7398
      %7400 = vmatmul.bf16.gmra.mxu0 %v1658
      %v7401 = vpop.f32.mrf.mxu0
      %v7402 = vadd.f32 %v7353, %v7401
      %v7403 = vpop.f32.mrf.mxu0
      %v7404 = vadd.f32 %v7355, %v7403
      %7405 = vmatmul.bf16.gmra.mxu0 %v1722
      %v7406 = vpop.f32.mrf.mxu0
      %v7407 = vadd.f32 %v7358, %v7406
      %v7408 = vpop.f32.mrf.mxu0
      %v7409 = vadd.f32 %v7360, %v7408
      %7410 = vmatmul.bf16.gmra.mxu0 %v1786
      %v7411 = vpop.f32.mrf.mxu0
      %v7412 = vadd.f32 %v7363, %v7411
      %v7413 = vpop.f32.mrf.mxu0
      %v7414 = vadd.f32 %v7365, %v7413
      %7415 = vdwg.mxu0
      %7416 = vmatpush.bf16.msra.mxu0 %v5141
      %7417 = vmatpush.bf16.msra.mxu0 %v5140
      %7418 = vmatpush.bf16.msra.mxu0 %v5139
      %7419 = vmatpush.bf16.msra.mxu0 %v5138
      %7420 = vmatpush.bf16.msra.mxu0 %v5137
      %7421 = vmatpush.bf16.msra.mxu0 %v5136
      %7422 = vmatpush.bf16.msra.mxu0 %v5135
      %7423 = vmatpush.bf16.msra.mxu0 %v5134
      %7424 = vmatmul.bf16.gmra.mxu0 %v1339
      %v7425 = vpop.f32.mrf.mxu0
      %v7426 = vadd.f32 %v7377, %v7425
      %v7427 = vpop.f32.mrf.mxu0
      %v7428 = vadd.f32 %v7379, %v7427
      %7429 = vmatmul.bf16.gmra.mxu0 %v1403
      %v7430 = vpop.f32.mrf.mxu0
      %v7431 = vadd.f32 %v7382, %v7430
      %v7432 = vpop.f32.mrf.mxu0
      %v7433 = vadd.f32 %v7384, %v7432
      %7434 = vmatmul.bf16.gmra.mxu0 %v1467
      %v7435 = vpop.f32.mrf.mxu0
      %v7436 = vadd.f32 %v7387, %v7435
      %v7437 = vpop.f32.mrf.mxu0
      %v7438 = vadd.f32 %v7389, %v7437
      %7439 = vmatmul.bf16.gmra.mxu0 %v1531
      %v7440 = vpop.f32.mrf.mxu0
      %v7441 = vadd.f32 %v7392, %v7440
      %v7442 = vpop.f32.mrf.mxu0
      %v7443 = vadd.f32 %v7394, %v7442
      %7444 = vmatmul.bf16.gmra.mxu0 %v1595
      %v7445 = vpop.f32.mrf.mxu0
      %v7446 = vadd.f32 %v7397, %v7445
      %v7447 = vpop.f32.mrf.mxu0
      %v7448 = vadd.f32 %v7399, %v7447
      %7449 = vmatmul.bf16.gmra.mxu0 %v1659
      %v7450 = vpop.f32.mrf.mxu0
      %v7451 = vadd.f32 %v7402, %v7450
      %v7452 = vpop.f32.mrf.mxu0
      %v7453 = vadd.f32 %v7404, %v7452
      %7454 = vmatmul.bf16.gmra.mxu0 %v1723
      %v7455 = vpop.f32.mrf.mxu0
      %v7456 = vadd.f32 %v7407, %v7455
      %v7457 = vpop.f32.mrf.mxu0
      %v7458 = vadd.f32 %v7409, %v7457
      %7459 = vmatmul.bf16.gmra.mxu0 %v1787
      %v7460 = vpop.f32.mrf.mxu0
      %v7461 = vadd.f32 %v7412, %v7460
      %v7462 = vpop.f32.mrf.mxu0
      %v7463 = vadd.f32 %v7414, %v7462
      %7464 = vdwg.mxu0
      %7465 = vmatpush.bf16.msra.mxu0 %v5149
      %7466 = vmatpush.bf16.msra.mxu0 %v5148
      %7467 = vmatpush.bf16.msra.mxu0 %v5147
      %7468 = vmatpush.bf16.msra.mxu0 %v5146
      %7469 = vmatpush.bf16.msra.mxu0 %v5145
      %7470 = vmatpush.bf16.msra.mxu0 %v5144
      %7471 = vmatpush.bf16.msra.mxu0 %v5143
      %7472 = vmatpush.bf16.msra.mxu0 %v5142
      %7473 = vmatmul.bf16.gmra.mxu0 %v1340
      %v7474 = vpop.f32.mrf.mxu0
      %v7475 = vadd.f32 %v7426, %v7474
      %v7476 = vpop.f32.mrf.mxu0
      %v7477 = vadd.f32 %v7428, %v7476
      %7478 = vmatmul.bf16.gmra.mxu0 %v1404
      %v7479 = vpop.f32.mrf.mxu0
      %v7480 = vadd.f32 %v7431, %v7479
      %v7481 = vpop.f32.mrf.mxu0
      %v7482 = vadd.f32 %v7433, %v7481
      %7483 = vmatmul.bf16.gmra.mxu0 %v1468
      %v7484 = vpop.f32.mrf.mxu0
      %v7485 = vadd.f32 %v7436, %v7484
      %v7486 = vpop.f32.mrf.mxu0
      %v7487 = vadd.f32 %v7438, %v7486
      %7488 = vmatmul.bf16.gmra.mxu0 %v1532
      %v7489 = vpop.f32.mrf.mxu0
      %v7490 = vadd.f32 %v7441, %v7489
      %v7491 = vpop.f32.mrf.mxu0
      %v7492 = vadd.f32 %v7443, %v7491
      %7493 = vmatmul.bf16.gmra.mxu0 %v1596
      %v7494 = vpop.f32.mrf.mxu0
      %v7495 = vadd.f32 %v7446, %v7494
      %v7496 = vpop.f32.mrf.mxu0
      %v7497 = vadd.f32 %v7448, %v7496
      %7498 = vmatmul.bf16.gmra.mxu0 %v1660
      %v7499 = vpop.f32.mrf.mxu0
      %v7500 = vadd.f32 %v7451, %v7499
      %v7501 = vpop.f32.mrf.mxu0
      %v7502 = vadd.f32 %v7453, %v7501
      %7503 = vmatmul.bf16.gmra.mxu0 %v1724
      %v7504 = vpop.f32.mrf.mxu0
      %v7505 = vadd.f32 %v7456, %v7504
      %v7506 = vpop.f32.mrf.mxu0
      %v7507 = vadd.f32 %v7458, %v7506
      %7508 = vmatmul.bf16.gmra.mxu0 %v1788
      %v7509 = vpop.f32.mrf.mxu0
      %v7510 = vadd.f32 %v7461, %v7509
      %v7511 = vpop.f32.mrf.mxu0
      %v7512 = vadd.f32 %v7463, %v7511
      %7513 = vdwg.mxu0
      %7514 = vmatpush.bf16.msra.mxu0 %v5157
      %7515 = vmatpush.bf16.msra.mxu0 %v5156
      %7516 = vmatpush.bf16.msra.mxu0 %v5155
      %7517 = vmatpush.bf16.msra.mxu0 %v5154
      %7518 = vmatpush.bf16.msra.mxu0 %v5153
      %7519 = vmatpush.bf16.msra.mxu0 %v5152
      %7520 = vmatpush.bf16.msra.mxu0 %v5151
      %7521 = vmatpush.bf16.msra.mxu0 %v5150
      %7522 = vmatmul.bf16.gmra.mxu0 %v1341
      %v7523 = vpop.f32.mrf.mxu0
      %v7524 = vadd.f32 %v7475, %v7523
      %v7525 = vpop.f32.mrf.mxu0
      %v7526 = vadd.f32 %v7477, %v7525
      %7527 = vmatmul.bf16.gmra.mxu0 %v1405
      %v7528 = vpop.f32.mrf.mxu0
      %v7529 = vadd.f32 %v7480, %v7528
      %v7530 = vpop.f32.mrf.mxu0
      %v7531 = vadd.f32 %v7482, %v7530
      %7532 = vmatmul.bf16.gmra.mxu0 %v1469
      %v7533 = vpop.f32.mrf.mxu0
      %v7534 = vadd.f32 %v7485, %v7533
      %v7535 = vpop.f32.mrf.mxu0
      %v7536 = vadd.f32 %v7487, %v7535
      %7537 = vmatmul.bf16.gmra.mxu0 %v1533
      %v7538 = vpop.f32.mrf.mxu0
      %v7539 = vadd.f32 %v7490, %v7538
      %v7540 = vpop.f32.mrf.mxu0
      %v7541 = vadd.f32 %v7492, %v7540
      %7542 = vmatmul.bf16.gmra.mxu0 %v1597
      %v7543 = vpop.f32.mrf.mxu0
      %v7544 = vadd.f32 %v7495, %v7543
      %v7545 = vpop.f32.mrf.mxu0
      %v7546 = vadd.f32 %v7497, %v7545
      %7547 = vmatmul.bf16.gmra.mxu0 %v1661
      %v7548 = vpop.f32.mrf.mxu0
      %v7549 = vadd.f32 %v7500, %v7548
      %v7550 = vpop.f32.mrf.mxu0
      %v7551 = vadd.f32 %v7502, %v7550
      %7552 = vmatmul.bf16.gmra.mxu0 %v1725
      %v7553 = vpop.f32.mrf.mxu0
      %v7554 = vadd.f32 %v7505, %v7553
      %v7555 = vpop.f32.mrf.mxu0
      %v7556 = vadd.f32 %v7507, %v7555
      %7557 = vmatmul.bf16.gmra.mxu0 %v1789
      %v7558 = vpop.f32.mrf.mxu0
      %v7559 = vadd.f32 %v7510, %v7558
      %v7560 = vpop.f32.mrf.mxu0
      %v7561 = vadd.f32 %v7512, %v7560
      %7562 = vdwg.mxu0
      %7563 = vmatpush.bf16.msra.mxu0 %v5165
      %7564 = vmatpush.bf16.msra.mxu0 %v5164
      %7565 = vmatpush.bf16.msra.mxu0 %v5163
      %7566 = vmatpush.bf16.msra.mxu0 %v5162
      %7567 = vmatpush.bf16.msra.mxu0 %v5161
      %7568 = vmatpush.bf16.msra.mxu0 %v5160
      %7569 = vmatpush.bf16.msra.mxu0 %v5159
      %7570 = vmatpush.bf16.msra.mxu0 %v5158
      %7571 = vmatmul.bf16.gmra.mxu0 %v1342
      %v7572 = vpop.f32.mrf.mxu0
      %v7573 = vadd.f32 %v7524, %v7572
      %v7574 = vpop.f32.mrf.mxu0
      %v7575 = vadd.f32 %v7526, %v7574
      %7576 = vmatmul.bf16.gmra.mxu0 %v1406
      %v7577 = vpop.f32.mrf.mxu0
      %v7578 = vadd.f32 %v7529, %v7577
      %v7579 = vpop.f32.mrf.mxu0
      %v7580 = vadd.f32 %v7531, %v7579
      %7581 = vmatmul.bf16.gmra.mxu0 %v1470
      %v7582 = vpop.f32.mrf.mxu0
      %v7583 = vadd.f32 %v7534, %v7582
      %v7584 = vpop.f32.mrf.mxu0
      %v7585 = vadd.f32 %v7536, %v7584
      %7586 = vmatmul.bf16.gmra.mxu0 %v1534
      %v7587 = vpop.f32.mrf.mxu0
      %v7588 = vadd.f32 %v7539, %v7587
      %v7589 = vpop.f32.mrf.mxu0
      %v7590 = vadd.f32 %v7541, %v7589
      %7591 = vmatmul.bf16.gmra.mxu0 %v1598
      %v7592 = vpop.f32.mrf.mxu0
      %v7593 = vadd.f32 %v7544, %v7592
      %v7594 = vpop.f32.mrf.mxu0
      %v7595 = vadd.f32 %v7546, %v7594
      %7596 = vmatmul.bf16.gmra.mxu0 %v1662
      %v7597 = vpop.f32.mrf.mxu0
      %v7598 = vadd.f32 %v7549, %v7597
      %v7599 = vpop.f32.mrf.mxu0
      %v7600 = vadd.f32 %v7551, %v7599
      %7601 = vmatmul.bf16.gmra.mxu0 %v1726
      %v7602 = vpop.f32.mrf.mxu0
      %v7603 = vadd.f32 %v7554, %v7602
      %v7604 = vpop.f32.mrf.mxu0
      %v7605 = vadd.f32 %v7556, %v7604
      %7606 = vmatmul.bf16.gmra.mxu0 %v1790
      %v7607 = vpop.f32.mrf.mxu0
      %v7608 = vadd.f32 %v7559, %v7607
      %v7609 = vpop.f32.mrf.mxu0
      %v7610 = vadd.f32 %v7561, %v7609
      %7611 = vdwg.mxu0
      %7612 = vmatpush.bf16.msra.mxu0 %v5173
      %7613 = vmatpush.bf16.msra.mxu0 %v5172
      %7614 = vmatpush.bf16.msra.mxu0 %v5171
      %7615 = vmatpush.bf16.msra.mxu0 %v5170
      %7616 = vmatpush.bf16.msra.mxu0 %v5169
      %7617 = vmatpush.bf16.msra.mxu0 %v5168
      %7618 = vmatpush.bf16.msra.mxu0 %v5167
      %7619 = vmatpush.bf16.msra.mxu0 %v5166
      %7620 = vmatmul.bf16.gmra.mxu0 %v1343
      %v7621 = vpop.f32.mrf.mxu0
      %v7622 = vadd.f32 %v7573, %v7621
      %v7623 = vpop.f32.mrf.mxu0
      %v7624 = vadd.f32 %v7575, %v7623
      %7625 = vmatmul.bf16.gmra.mxu0 %v1407
      %v7626 = vpop.f32.mrf.mxu0
      %v7627 = vadd.f32 %v7578, %v7626
      %v7628 = vpop.f32.mrf.mxu0
      %v7629 = vadd.f32 %v7580, %v7628
      %7630 = vmatmul.bf16.gmra.mxu0 %v1471
      %v7631 = vpop.f32.mrf.mxu0
      %v7632 = vadd.f32 %v7583, %v7631
      %v7633 = vpop.f32.mrf.mxu0
      %v7634 = vadd.f32 %v7585, %v7633
      %7635 = vmatmul.bf16.gmra.mxu0 %v1535
      %v7636 = vpop.f32.mrf.mxu0
      %v7637 = vadd.f32 %v7588, %v7636
      %v7638 = vpop.f32.mrf.mxu0
      %v7639 = vadd.f32 %v7590, %v7638
      %7640 = vmatmul.bf16.gmra.mxu0 %v1599
      %v7641 = vpop.f32.mrf.mxu0
      %v7642 = vadd.f32 %v7593, %v7641
      %v7643 = vpop.f32.mrf.mxu0
      %v7644 = vadd.f32 %v7595, %v7643
      %7645 = vmatmul.bf16.gmra.mxu0 %v1663
      %v7646 = vpop.f32.mrf.mxu0
      %v7647 = vadd.f32 %v7598, %v7646
      %v7648 = vpop.f32.mrf.mxu0
      %v7649 = vadd.f32 %v7600, %v7648
      %7650 = vmatmul.bf16.gmra.mxu0 %v1727
      %v7651 = vpop.f32.mrf.mxu0
      %v7652 = vadd.f32 %v7603, %v7651
      %v7653 = vpop.f32.mrf.mxu0
      %v7654 = vadd.f32 %v7605, %v7653
      %7655 = vmatmul.bf16.gmra.mxu0 %v1791
      %v7656 = vpop.f32.mrf.mxu0
      %v7657 = vadd.f32 %v7608, %v7656
      %v7658 = vpop.f32.mrf.mxu0
      %v7659 = vadd.f32 %v7610, %v7658
      %7660 = vdwg.mxu0
      %7661 = vmatpush.bf16.msra.mxu0 %v5181
      %7662 = vmatpush.bf16.msra.mxu0 %v5180
      %7663 = vmatpush.bf16.msra.mxu0 %v5179
      %7664 = vmatpush.bf16.msra.mxu0 %v5178
      %7665 = vmatpush.bf16.msra.mxu0 %v5177
      %7666 = vmatpush.bf16.msra.mxu0 %v5176
      %7667 = vmatpush.bf16.msra.mxu0 %v5175
      %7668 = vmatpush.bf16.msra.mxu0 %v5174
      %7669 = vmatmul.bf16.gmra.mxu0 %v1344
      %v7670 = vpop.f32.mrf.mxu0
      %v7671 = vadd.f32 %v7622, %v7670
      %v7672 = vpop.f32.mrf.mxu0
      %v7673 = vadd.f32 %v7624, %v7672
      %7674 = vmatmul.bf16.gmra.mxu0 %v1408
      %v7675 = vpop.f32.mrf.mxu0
      %v7676 = vadd.f32 %v7627, %v7675
      %v7677 = vpop.f32.mrf.mxu0
      %v7678 = vadd.f32 %v7629, %v7677
      %7679 = vmatmul.bf16.gmra.mxu0 %v1472
      %v7680 = vpop.f32.mrf.mxu0
      %v7681 = vadd.f32 %v7632, %v7680
      %v7682 = vpop.f32.mrf.mxu0
      %v7683 = vadd.f32 %v7634, %v7682
      %7684 = vmatmul.bf16.gmra.mxu0 %v1536
      %v7685 = vpop.f32.mrf.mxu0
      %v7686 = vadd.f32 %v7637, %v7685
      %v7687 = vpop.f32.mrf.mxu0
      %v7688 = vadd.f32 %v7639, %v7687
      %7689 = vmatmul.bf16.gmra.mxu0 %v1600
      %v7690 = vpop.f32.mrf.mxu0
      %v7691 = vadd.f32 %v7642, %v7690
      %v7692 = vpop.f32.mrf.mxu0
      %v7693 = vadd.f32 %v7644, %v7692
      %7694 = vmatmul.bf16.gmra.mxu0 %v1664
      %v7695 = vpop.f32.mrf.mxu0
      %v7696 = vadd.f32 %v7647, %v7695
      %v7697 = vpop.f32.mrf.mxu0
      %v7698 = vadd.f32 %v7649, %v7697
      %7699 = vmatmul.bf16.gmra.mxu0 %v1728
      %v7700 = vpop.f32.mrf.mxu0
      %v7701 = vadd.f32 %v7652, %v7700
      %v7702 = vpop.f32.mrf.mxu0
      %v7703 = vadd.f32 %v7654, %v7702
      %7704 = vmatmul.bf16.gmra.mxu0 %v1792
      %v7705 = vpop.f32.mrf.mxu0
      %v7706 = vadd.f32 %v7657, %v7705
      %v7707 = vpop.f32.mrf.mxu0
      %v7708 = vadd.f32 %v7659, %v7707
      %7709 = vdwg.mxu0
      %7710 = vmatpush.bf16.msra.mxu0 %v5189
      %7711 = vmatpush.bf16.msra.mxu0 %v5188
      %7712 = vmatpush.bf16.msra.mxu0 %v5187
      %7713 = vmatpush.bf16.msra.mxu0 %v5186
      %7714 = vmatpush.bf16.msra.mxu0 %v5185
      %7715 = vmatpush.bf16.msra.mxu0 %v5184
      %7716 = vmatpush.bf16.msra.mxu0 %v5183
      %7717 = vmatpush.bf16.msra.mxu0 %v5182
      %7718 = vmatmul.bf16.gmra.mxu0 %v1345
      %v7719 = vpop.f32.mrf.mxu0
      %v7720 = vadd.f32 %v7671, %v7719
      %v7721 = vpop.f32.mrf.mxu0
      %v7722 = vadd.f32 %v7673, %v7721
      %7723 = vmatmul.bf16.gmra.mxu0 %v1409
      %v7724 = vpop.f32.mrf.mxu0
      %v7725 = vadd.f32 %v7676, %v7724
      %v7726 = vpop.f32.mrf.mxu0
      %v7727 = vadd.f32 %v7678, %v7726
      %7728 = vmatmul.bf16.gmra.mxu0 %v1473
      %v7729 = vpop.f32.mrf.mxu0
      %v7730 = vadd.f32 %v7681, %v7729
      %v7731 = vpop.f32.mrf.mxu0
      %v7732 = vadd.f32 %v7683, %v7731
      %7733 = vmatmul.bf16.gmra.mxu0 %v1537
      %v7734 = vpop.f32.mrf.mxu0
      %v7735 = vadd.f32 %v7686, %v7734
      %v7736 = vpop.f32.mrf.mxu0
      %v7737 = vadd.f32 %v7688, %v7736
      %7738 = vmatmul.bf16.gmra.mxu0 %v1601
      %v7739 = vpop.f32.mrf.mxu0
      %v7740 = vadd.f32 %v7691, %v7739
      %v7741 = vpop.f32.mrf.mxu0
      %v7742 = vadd.f32 %v7693, %v7741
      %7743 = vmatmul.bf16.gmra.mxu0 %v1665
      %v7744 = vpop.f32.mrf.mxu0
      %v7745 = vadd.f32 %v7696, %v7744
      %v7746 = vpop.f32.mrf.mxu0
      %v7747 = vadd.f32 %v7698, %v7746
      %7748 = vmatmul.bf16.gmra.mxu0 %v1729
      %v7749 = vpop.f32.mrf.mxu0
      %v7750 = vadd.f32 %v7701, %v7749
      %v7751 = vpop.f32.mrf.mxu0
      %v7752 = vadd.f32 %v7703, %v7751
      %7753 = vmatmul.bf16.gmra.mxu0 %v1793
      %v7754 = vpop.f32.mrf.mxu0
      %v7755 = vadd.f32 %v7706, %v7754
      %v7756 = vpop.f32.mrf.mxu0
      %v7757 = vadd.f32 %v7708, %v7756
      %7758 = vdwg.mxu0
      %7759 = vmatpush.bf16.msra.mxu0 %v5197
      %7760 = vmatpush.bf16.msra.mxu0 %v5196
      %7761 = vmatpush.bf16.msra.mxu0 %v5195
      %7762 = vmatpush.bf16.msra.mxu0 %v5194
      %7763 = vmatpush.bf16.msra.mxu0 %v5193
      %7764 = vmatpush.bf16.msra.mxu0 %v5192
      %7765 = vmatpush.bf16.msra.mxu0 %v5191
      %7766 = vmatpush.bf16.msra.mxu0 %v5190
      %7767 = vmatmul.bf16.gmra.mxu0 %v1346
      %v7768 = vpop.f32.mrf.mxu0
      %v7769 = vadd.f32 %v7720, %v7768
      %v7770 = vpop.f32.mrf.mxu0
      %v7771 = vadd.f32 %v7722, %v7770
      %7772 = vmatmul.bf16.gmra.mxu0 %v1410
      %v7773 = vpop.f32.mrf.mxu0
      %v7774 = vadd.f32 %v7725, %v7773
      %v7775 = vpop.f32.mrf.mxu0
      %v7776 = vadd.f32 %v7727, %v7775
      %7777 = vmatmul.bf16.gmra.mxu0 %v1474
      %v7778 = vpop.f32.mrf.mxu0
      %v7779 = vadd.f32 %v7730, %v7778
      %v7780 = vpop.f32.mrf.mxu0
      %v7781 = vadd.f32 %v7732, %v7780
      %7782 = vmatmul.bf16.gmra.mxu0 %v1538
      %v7783 = vpop.f32.mrf.mxu0
      %v7784 = vadd.f32 %v7735, %v7783
      %v7785 = vpop.f32.mrf.mxu0
      %v7786 = vadd.f32 %v7737, %v7785
      %7787 = vmatmul.bf16.gmra.mxu0 %v1602
      %v7788 = vpop.f32.mrf.mxu0
      %v7789 = vadd.f32 %v7740, %v7788
      %v7790 = vpop.f32.mrf.mxu0
      %v7791 = vadd.f32 %v7742, %v7790
      %7792 = vmatmul.bf16.gmra.mxu0 %v1666
      %v7793 = vpop.f32.mrf.mxu0
      %v7794 = vadd.f32 %v7745, %v7793
      %v7795 = vpop.f32.mrf.mxu0
      %v7796 = vadd.f32 %v7747, %v7795
      %7797 = vmatmul.bf16.gmra.mxu0 %v1730
      %v7798 = vpop.f32.mrf.mxu0
      %v7799 = vadd.f32 %v7750, %v7798
      %v7800 = vpop.f32.mrf.mxu0
      %v7801 = vadd.f32 %v7752, %v7800
      %7802 = vmatmul.bf16.gmra.mxu0 %v1794
      %v7803 = vpop.f32.mrf.mxu0
      %v7804 = vadd.f32 %v7755, %v7803
      %v7805 = vpop.f32.mrf.mxu0
      %v7806 = vadd.f32 %v7757, %v7805
      %7807 = vdwg.mxu0
      %7808 = vmatpush.bf16.msra.mxu0 %v5205
      %7809 = vmatpush.bf16.msra.mxu0 %v5204
      %7810 = vmatpush.bf16.msra.mxu0 %v5203
      %7811 = vmatpush.bf16.msra.mxu0 %v5202
      %7812 = vmatpush.bf16.msra.mxu0 %v5201
      %7813 = vmatpush.bf16.msra.mxu0 %v5200
      %7814 = vmatpush.bf16.msra.mxu0 %v5199
      %7815 = vmatpush.bf16.msra.mxu0 %v5198
      %7816 = vmatmul.bf16.gmra.mxu0 %v1347
      %v7817 = vpop.f32.mrf.mxu0
      %v7818 = vadd.f32 %v7769, %v7817
      %v7819 = vpop.f32.mrf.mxu0
      %v7820 = vadd.f32 %v7771, %v7819
      %7821 = vmatmul.bf16.gmra.mxu0 %v1411
      %v7822 = vpop.f32.mrf.mxu0
      %v7823 = vadd.f32 %v7774, %v7822
      %v7824 = vpop.f32.mrf.mxu0
      %v7825 = vadd.f32 %v7776, %v7824
      %7826 = vmatmul.bf16.gmra.mxu0 %v1475
      %v7827 = vpop.f32.mrf.mxu0
      %v7828 = vadd.f32 %v7779, %v7827
      %v7829 = vpop.f32.mrf.mxu0
      %v7830 = vadd.f32 %v7781, %v7829
      %7831 = vmatmul.bf16.gmra.mxu0 %v1539
      %v7832 = vpop.f32.mrf.mxu0
      %v7833 = vadd.f32 %v7784, %v7832
      %v7834 = vpop.f32.mrf.mxu0
      %v7835 = vadd.f32 %v7786, %v7834
      %7836 = vmatmul.bf16.gmra.mxu0 %v1603
      %v7837 = vpop.f32.mrf.mxu0
      %v7838 = vadd.f32 %v7789, %v7837
      %v7839 = vpop.f32.mrf.mxu0
      %v7840 = vadd.f32 %v7791, %v7839
      %7841 = vmatmul.bf16.gmra.mxu0 %v1667
      %v7842 = vpop.f32.mrf.mxu0
      %v7843 = vadd.f32 %v7794, %v7842
      %v7844 = vpop.f32.mrf.mxu0
      %v7845 = vadd.f32 %v7796, %v7844
      %7846 = vmatmul.bf16.gmra.mxu0 %v1731
      %v7847 = vpop.f32.mrf.mxu0
      %v7848 = vadd.f32 %v7799, %v7847
      %v7849 = vpop.f32.mrf.mxu0
      %v7850 = vadd.f32 %v7801, %v7849
      %7851 = vmatmul.bf16.gmra.mxu0 %v1795
      %v7852 = vpop.f32.mrf.mxu0
      %v7853 = vadd.f32 %v7804, %v7852
      %v7854 = vpop.f32.mrf.mxu0
      %v7855 = vadd.f32 %v7806, %v7854
      %7856 = vdwg.mxu0
      %7857 = vmatpush.bf16.msra.mxu0 %v5213
      %7858 = vmatpush.bf16.msra.mxu0 %v5212
      %7859 = vmatpush.bf16.msra.mxu0 %v5211
      %7860 = vmatpush.bf16.msra.mxu0 %v5210
      %7861 = vmatpush.bf16.msra.mxu0 %v5209
      %7862 = vmatpush.bf16.msra.mxu0 %v5208
      %7863 = vmatpush.bf16.msra.mxu0 %v5207
      %7864 = vmatpush.bf16.msra.mxu0 %v5206
      %7865 = vmatmul.bf16.gmra.mxu0 %v1348
      %v7866 = vpop.f32.mrf.mxu0
      %v7867 = vadd.f32 %v7818, %v7866
      %v7868 = vpop.f32.mrf.mxu0
      %v7869 = vadd.f32 %v7820, %v7868
      %7870 = vmatmul.bf16.gmra.mxu0 %v1412
      %v7871 = vpop.f32.mrf.mxu0
      %v7872 = vadd.f32 %v7823, %v7871
      %v7873 = vpop.f32.mrf.mxu0
      %v7874 = vadd.f32 %v7825, %v7873
      %7875 = vmatmul.bf16.gmra.mxu0 %v1476
      %v7876 = vpop.f32.mrf.mxu0
      %v7877 = vadd.f32 %v7828, %v7876
      %v7878 = vpop.f32.mrf.mxu0
      %v7879 = vadd.f32 %v7830, %v7878
      %7880 = vmatmul.bf16.gmra.mxu0 %v1540
      %v7881 = vpop.f32.mrf.mxu0
      %v7882 = vadd.f32 %v7833, %v7881
      %v7883 = vpop.f32.mrf.mxu0
      %v7884 = vadd.f32 %v7835, %v7883
      %7885 = vmatmul.bf16.gmra.mxu0 %v1604
      %v7886 = vpop.f32.mrf.mxu0
      %v7887 = vadd.f32 %v7838, %v7886
      %v7888 = vpop.f32.mrf.mxu0
      %v7889 = vadd.f32 %v7840, %v7888
      %7890 = vmatmul.bf16.gmra.mxu0 %v1668
      %v7891 = vpop.f32.mrf.mxu0
      %v7892 = vadd.f32 %v7843, %v7891
      %v7893 = vpop.f32.mrf.mxu0
      %v7894 = vadd.f32 %v7845, %v7893
      %7895 = vmatmul.bf16.gmra.mxu0 %v1732
      %v7896 = vpop.f32.mrf.mxu0
      %v7897 = vadd.f32 %v7848, %v7896
      %v7898 = vpop.f32.mrf.mxu0
      %v7899 = vadd.f32 %v7850, %v7898
      %7900 = vmatmul.bf16.gmra.mxu0 %v1796
      %v7901 = vpop.f32.mrf.mxu0
      %v7902 = vadd.f32 %v7853, %v7901
      %v7903 = vpop.f32.mrf.mxu0
      %v7904 = vadd.f32 %v7855, %v7903
      %7905 = vdwg.mxu0
      %7906 = vmatpush.bf16.msra.mxu0 %v5221
      %7907 = vmatpush.bf16.msra.mxu0 %v5220
      %7908 = vmatpush.bf16.msra.mxu0 %v5219
      %7909 = vmatpush.bf16.msra.mxu0 %v5218
      %7910 = vmatpush.bf16.msra.mxu0 %v5217
      %7911 = vmatpush.bf16.msra.mxu0 %v5216
      %7912 = vmatpush.bf16.msra.mxu0 %v5215
      %7913 = vmatpush.bf16.msra.mxu0 %v5214
      %7914 = vmatmul.bf16.gmra.mxu0 %v1349
      %v7915 = vpop.f32.mrf.mxu0
      %v7916 = vadd.f32 %v7867, %v7915
      %v7917 = vpop.f32.mrf.mxu0
      %v7918 = vadd.f32 %v7869, %v7917
      %7919 = vmatmul.bf16.gmra.mxu0 %v1413
      %v7920 = vpop.f32.mrf.mxu0
      %v7921 = vadd.f32 %v7872, %v7920
      %v7922 = vpop.f32.mrf.mxu0
      %v7923 = vadd.f32 %v7874, %v7922
      %7924 = vmatmul.bf16.gmra.mxu0 %v1477
      %v7925 = vpop.f32.mrf.mxu0
      %v7926 = vadd.f32 %v7877, %v7925
      %v7927 = vpop.f32.mrf.mxu0
      %v7928 = vadd.f32 %v7879, %v7927
      %7929 = vmatmul.bf16.gmra.mxu0 %v1541
      %v7930 = vpop.f32.mrf.mxu0
      %v7931 = vadd.f32 %v7882, %v7930
      %v7932 = vpop.f32.mrf.mxu0
      %v7933 = vadd.f32 %v7884, %v7932
      %7934 = vmatmul.bf16.gmra.mxu0 %v1605
      %v7935 = vpop.f32.mrf.mxu0
      %v7936 = vadd.f32 %v7887, %v7935
      %v7937 = vpop.f32.mrf.mxu0
      %v7938 = vadd.f32 %v7889, %v7937
      %7939 = vmatmul.bf16.gmra.mxu0 %v1669
      %v7940 = vpop.f32.mrf.mxu0
      %v7941 = vadd.f32 %v7892, %v7940
      %v7942 = vpop.f32.mrf.mxu0
      %v7943 = vadd.f32 %v7894, %v7942
      %7944 = vmatmul.bf16.gmra.mxu0 %v1733
      %v7945 = vpop.f32.mrf.mxu0
      %v7946 = vadd.f32 %v7897, %v7945
      %v7947 = vpop.f32.mrf.mxu0
      %v7948 = vadd.f32 %v7899, %v7947
      %7949 = vmatmul.bf16.gmra.mxu0 %v1797
      %v7950 = vpop.f32.mrf.mxu0
      %v7951 = vadd.f32 %v7902, %v7950
      %v7952 = vpop.f32.mrf.mxu0
      %v7953 = vadd.f32 %v7904, %v7952
      %7954 = vdwg.mxu0
      %7955 = vmatpush.bf16.msra.mxu0 %v5229
      %7956 = vmatpush.bf16.msra.mxu0 %v5228
      %7957 = vmatpush.bf16.msra.mxu0 %v5227
      %7958 = vmatpush.bf16.msra.mxu0 %v5226
      %7959 = vmatpush.bf16.msra.mxu0 %v5225
      %7960 = vmatpush.bf16.msra.mxu0 %v5224
      %7961 = vmatpush.bf16.msra.mxu0 %v5223
      %7962 = vmatpush.bf16.msra.mxu0 %v5222
      %7963 = vmatmul.bf16.gmra.mxu0 %v1350
      %v7964 = vpop.f32.mrf.mxu0
      %v7965 = vadd.f32 %v7916, %v7964
      %v7966 = vpop.f32.mrf.mxu0
      %v7967 = vadd.f32 %v7918, %v7966
      %7968 = vmatmul.bf16.gmra.mxu0 %v1414
      %v7969 = vpop.f32.mrf.mxu0
      %v7970 = vadd.f32 %v7921, %v7969
      %v7971 = vpop.f32.mrf.mxu0
      %v7972 = vadd.f32 %v7923, %v7971
      %7973 = vmatmul.bf16.gmra.mxu0 %v1478
      %v7974 = vpop.f32.mrf.mxu0
      %v7975 = vadd.f32 %v7926, %v7974
      %v7976 = vpop.f32.mrf.mxu0
      %v7977 = vadd.f32 %v7928, %v7976
      %7978 = vmatmul.bf16.gmra.mxu0 %v1542
      %v7979 = vpop.f32.mrf.mxu0
      %v7980 = vadd.f32 %v7931, %v7979
      %v7981 = vpop.f32.mrf.mxu0
      %v7982 = vadd.f32 %v7933, %v7981
      %7983 = vmatmul.bf16.gmra.mxu0 %v1606
      %v7984 = vpop.f32.mrf.mxu0
      %v7985 = vadd.f32 %v7936, %v7984
      %v7986 = vpop.f32.mrf.mxu0
      %v7987 = vadd.f32 %v7938, %v7986
      %7988 = vmatmul.bf16.gmra.mxu0 %v1670
      %v7989 = vpop.f32.mrf.mxu0
      %v7990 = vadd.f32 %v7941, %v7989
      %v7991 = vpop.f32.mrf.mxu0
      %v7992 = vadd.f32 %v7943, %v7991
      %7993 = vmatmul.bf16.gmra.mxu0 %v1734
      %v7994 = vpop.f32.mrf.mxu0
      %v7995 = vadd.f32 %v7946, %v7994
      %v7996 = vpop.f32.mrf.mxu0
      %v7997 = vadd.f32 %v7948, %v7996
      %7998 = vmatmul.bf16.gmra.mxu0 %v1798
      %v7999 = vpop.f32.mrf.mxu0
      %v8000 = vadd.f32 %v7951, %v7999
      %v8001 = vpop.f32.mrf.mxu0
      %v8002 = vadd.f32 %v7953, %v8001
      %8003 = vdwg.mxu0
      %8004 = vmatpush.bf16.msra.mxu0 %v5237
      %8005 = vmatpush.bf16.msra.mxu0 %v5236
      %8006 = vmatpush.bf16.msra.mxu0 %v5235
      %8007 = vmatpush.bf16.msra.mxu0 %v5234
      %8008 = vmatpush.bf16.msra.mxu0 %v5233
      %8009 = vmatpush.bf16.msra.mxu0 %v5232
      %8010 = vmatpush.bf16.msra.mxu0 %v5231
      %8011 = vmatpush.bf16.msra.mxu0 %v5230
      %8012 = vmatmul.bf16.gmra.mxu0 %v1351
      %v8013 = vpop.f32.mrf.mxu0
      %v8014 = vadd.f32 %v7965, %v8013
      %v8015 = vpop.f32.mrf.mxu0
      %v8016 = vadd.f32 %v7967, %v8015
      %8017 = vmatmul.bf16.gmra.mxu0 %v1415
      %v8018 = vpop.f32.mrf.mxu0
      %v8019 = vadd.f32 %v7970, %v8018
      %v8020 = vpop.f32.mrf.mxu0
      %v8021 = vadd.f32 %v7972, %v8020
      %8022 = vmatmul.bf16.gmra.mxu0 %v1479
      %v8023 = vpop.f32.mrf.mxu0
      %v8024 = vadd.f32 %v7975, %v8023
      %v8025 = vpop.f32.mrf.mxu0
      %v8026 = vadd.f32 %v7977, %v8025
      %8027 = vmatmul.bf16.gmra.mxu0 %v1543
      %v8028 = vpop.f32.mrf.mxu0
      %v8029 = vadd.f32 %v7980, %v8028
      %v8030 = vpop.f32.mrf.mxu0
      %v8031 = vadd.f32 %v7982, %v8030
      %8032 = vmatmul.bf16.gmra.mxu0 %v1607
      %v8033 = vpop.f32.mrf.mxu0
      %v8034 = vadd.f32 %v7985, %v8033
      %v8035 = vpop.f32.mrf.mxu0
      %v8036 = vadd.f32 %v7987, %v8035
      %8037 = vmatmul.bf16.gmra.mxu0 %v1671
      %v8038 = vpop.f32.mrf.mxu0
      %v8039 = vadd.f32 %v7990, %v8038
      %v8040 = vpop.f32.mrf.mxu0
      %v8041 = vadd.f32 %v7992, %v8040
      %8042 = vmatmul.bf16.gmra.mxu0 %v1735
      %v8043 = vpop.f32.mrf.mxu0
      %v8044 = vadd.f32 %v7995, %v8043
      %v8045 = vpop.f32.mrf.mxu0
      %v8046 = vadd.f32 %v7997, %v8045
      %8047 = vmatmul.bf16.gmra.mxu0 %v1799
      %v8048 = vpop.f32.mrf.mxu0
      %v8049 = vadd.f32 %v8000, %v8048
      %v8050 = vpop.f32.mrf.mxu0
      %v8051 = vadd.f32 %v8002, %v8050
      %8052 = vdwg.mxu0
      %8053 = vmatpush.bf16.msra.mxu0 %v5245
      %8054 = vmatpush.bf16.msra.mxu0 %v5244
      %8055 = vmatpush.bf16.msra.mxu0 %v5243
      %8056 = vmatpush.bf16.msra.mxu0 %v5242
      %8057 = vmatpush.bf16.msra.mxu0 %v5241
      %8058 = vmatpush.bf16.msra.mxu0 %v5240
      %8059 = vmatpush.bf16.msra.mxu0 %v5239
      %8060 = vmatpush.bf16.msra.mxu0 %v5238
      %8061 = vmatmul.bf16.gmra.mxu0 %v1352
      %v8062 = vpop.f32.mrf.mxu0
      %v8063 = vadd.f32 %v8014, %v8062
      %v8064 = vpop.f32.mrf.mxu0
      %v8065 = vadd.f32 %v8016, %v8064
      %8066 = vmatmul.bf16.gmra.mxu0 %v1416
      %v8067 = vpop.f32.mrf.mxu0
      %v8068 = vadd.f32 %v8019, %v8067
      %v8069 = vpop.f32.mrf.mxu0
      %v8070 = vadd.f32 %v8021, %v8069
      %8071 = vmatmul.bf16.gmra.mxu0 %v1480
      %v8072 = vpop.f32.mrf.mxu0
      %v8073 = vadd.f32 %v8024, %v8072
      %v8074 = vpop.f32.mrf.mxu0
      %v8075 = vadd.f32 %v8026, %v8074
      %8076 = vmatmul.bf16.gmra.mxu0 %v1544
      %v8077 = vpop.f32.mrf.mxu0
      %v8078 = vadd.f32 %v8029, %v8077
      %v8079 = vpop.f32.mrf.mxu0
      %v8080 = vadd.f32 %v8031, %v8079
      %8081 = vmatmul.bf16.gmra.mxu0 %v1608
      %v8082 = vpop.f32.mrf.mxu0
      %v8083 = vadd.f32 %v8034, %v8082
      %v8084 = vpop.f32.mrf.mxu0
      %v8085 = vadd.f32 %v8036, %v8084
      %8086 = vmatmul.bf16.gmra.mxu0 %v1672
      %v8087 = vpop.f32.mrf.mxu0
      %v8088 = vadd.f32 %v8039, %v8087
      %v8089 = vpop.f32.mrf.mxu0
      %v8090 = vadd.f32 %v8041, %v8089
      %8091 = vmatmul.bf16.gmra.mxu0 %v1736
      %v8092 = vpop.f32.mrf.mxu0
      %v8093 = vadd.f32 %v8044, %v8092
      %v8094 = vpop.f32.mrf.mxu0
      %v8095 = vadd.f32 %v8046, %v8094
      %8096 = vmatmul.bf16.gmra.mxu0 %v1800
      %v8097 = vpop.f32.mrf.mxu0
      %v8098 = vadd.f32 %v8049, %v8097
      %v8099 = vpop.f32.mrf.mxu0
      %v8100 = vadd.f32 %v8051, %v8099
      %8101 = vdwg.mxu0
      %8102 = vmatpush.bf16.msra.mxu0 %v5253
      %8103 = vmatpush.bf16.msra.mxu0 %v5252
      %8104 = vmatpush.bf16.msra.mxu0 %v5251
      %8105 = vmatpush.bf16.msra.mxu0 %v5250
      %8106 = vmatpush.bf16.msra.mxu0 %v5249
      %8107 = vmatpush.bf16.msra.mxu0 %v5248
      %8108 = vmatpush.bf16.msra.mxu0 %v5247
      %8109 = vmatpush.bf16.msra.mxu0 %v5246
      %8110 = vmatmul.bf16.gmra.mxu0 %v1353
      %v8111 = vpop.f32.mrf.mxu0
      %v8112 = vadd.f32 %v8063, %v8111
      %v8113 = vpop.f32.mrf.mxu0
      %v8114 = vadd.f32 %v8065, %v8113
      %8115 = vmatmul.bf16.gmra.mxu0 %v1417
      %v8116 = vpop.f32.mrf.mxu0
      %v8117 = vadd.f32 %v8068, %v8116
      %v8118 = vpop.f32.mrf.mxu0
      %v8119 = vadd.f32 %v8070, %v8118
      %8120 = vmatmul.bf16.gmra.mxu0 %v1481
      %v8121 = vpop.f32.mrf.mxu0
      %v8122 = vadd.f32 %v8073, %v8121
      %v8123 = vpop.f32.mrf.mxu0
      %v8124 = vadd.f32 %v8075, %v8123
      %8125 = vmatmul.bf16.gmra.mxu0 %v1545
      %v8126 = vpop.f32.mrf.mxu0
      %v8127 = vadd.f32 %v8078, %v8126
      %v8128 = vpop.f32.mrf.mxu0
      %v8129 = vadd.f32 %v8080, %v8128
      %8130 = vmatmul.bf16.gmra.mxu0 %v1609
      %v8131 = vpop.f32.mrf.mxu0
      %v8132 = vadd.f32 %v8083, %v8131
      %v8133 = vpop.f32.mrf.mxu0
      %v8134 = vadd.f32 %v8085, %v8133
      %8135 = vmatmul.bf16.gmra.mxu0 %v1673
      %v8136 = vpop.f32.mrf.mxu0
      %v8137 = vadd.f32 %v8088, %v8136
      %v8138 = vpop.f32.mrf.mxu0
      %v8139 = vadd.f32 %v8090, %v8138
      %8140 = vmatmul.bf16.gmra.mxu0 %v1737
      %v8141 = vpop.f32.mrf.mxu0
      %v8142 = vadd.f32 %v8093, %v8141
      %v8143 = vpop.f32.mrf.mxu0
      %v8144 = vadd.f32 %v8095, %v8143
      %8145 = vmatmul.bf16.gmra.mxu0 %v1801
      %v8146 = vpop.f32.mrf.mxu0
      %v8147 = vadd.f32 %v8098, %v8146
      %v8148 = vpop.f32.mrf.mxu0
      %v8149 = vadd.f32 %v8100, %v8148
      %8150 = vdwg.mxu0
      %8151 = vmatpush.bf16.msra.mxu0 %v5261
      %8152 = vmatpush.bf16.msra.mxu0 %v5260
      %8153 = vmatpush.bf16.msra.mxu0 %v5259
      %8154 = vmatpush.bf16.msra.mxu0 %v5258
      %8155 = vmatpush.bf16.msra.mxu0 %v5257
      %8156 = vmatpush.bf16.msra.mxu0 %v5256
      %8157 = vmatpush.bf16.msra.mxu0 %v5255
      %8158 = vmatpush.bf16.msra.mxu0 %v5254
      %8159 = vmatmul.bf16.gmra.mxu0 %v1354
      %v8160 = vpop.f32.mrf.mxu0
      %v8161 = vadd.f32 %v8112, %v8160
      %v8162 = vpop.f32.mrf.mxu0
      %v8163 = vadd.f32 %v8114, %v8162
      %8164 = vmatmul.bf16.gmra.mxu0 %v1418
      %v8165 = vpop.f32.mrf.mxu0
      %v8166 = vadd.f32 %v8117, %v8165
      %v8167 = vpop.f32.mrf.mxu0
      %v8168 = vadd.f32 %v8119, %v8167
      %8169 = vmatmul.bf16.gmra.mxu0 %v1482
      %v8170 = vpop.f32.mrf.mxu0
      %v8171 = vadd.f32 %v8122, %v8170
      %v8172 = vpop.f32.mrf.mxu0
      %v8173 = vadd.f32 %v8124, %v8172
      %8174 = vmatmul.bf16.gmra.mxu0 %v1546
      %v8175 = vpop.f32.mrf.mxu0
      %v8176 = vadd.f32 %v8127, %v8175
      %v8177 = vpop.f32.mrf.mxu0
      %v8178 = vadd.f32 %v8129, %v8177
      %8179 = vmatmul.bf16.gmra.mxu0 %v1610
      %v8180 = vpop.f32.mrf.mxu0
      %v8181 = vadd.f32 %v8132, %v8180
      %v8182 = vpop.f32.mrf.mxu0
      %v8183 = vadd.f32 %v8134, %v8182
      %8184 = vmatmul.bf16.gmra.mxu0 %v1674
      %v8185 = vpop.f32.mrf.mxu0
      %v8186 = vadd.f32 %v8137, %v8185
      %v8187 = vpop.f32.mrf.mxu0
      %v8188 = vadd.f32 %v8139, %v8187
      %8189 = vmatmul.bf16.gmra.mxu0 %v1738
      %v8190 = vpop.f32.mrf.mxu0
      %v8191 = vadd.f32 %v8142, %v8190
      %v8192 = vpop.f32.mrf.mxu0
      %v8193 = vadd.f32 %v8144, %v8192
      %8194 = vmatmul.bf16.gmra.mxu0 %v1802
      %v8195 = vpop.f32.mrf.mxu0
      %v8196 = vadd.f32 %v8147, %v8195
      %v8197 = vpop.f32.mrf.mxu0
      %v8198 = vadd.f32 %v8149, %v8197
      %8199 = vdwg.mxu0
      %8200 = vmatpush.bf16.msra.mxu0 %v5269
      %8201 = vmatpush.bf16.msra.mxu0 %v5268
      %8202 = vmatpush.bf16.msra.mxu0 %v5267
      %8203 = vmatpush.bf16.msra.mxu0 %v5266
      %8204 = vmatpush.bf16.msra.mxu0 %v5265
      %8205 = vmatpush.bf16.msra.mxu0 %v5264
      %8206 = vmatpush.bf16.msra.mxu0 %v5263
      %8207 = vmatpush.bf16.msra.mxu0 %v5262
      %8208 = vmatmul.bf16.gmra.mxu0 %v1355
      %v8209 = vpop.f32.mrf.mxu0
      %v8210 = vadd.f32 %v8161, %v8209
      %v8211 = vpop.f32.mrf.mxu0
      %v8212 = vadd.f32 %v8163, %v8211
      %8213 = vmatmul.bf16.gmra.mxu0 %v1419
      %v8214 = vpop.f32.mrf.mxu0
      %v8215 = vadd.f32 %v8166, %v8214
      %v8216 = vpop.f32.mrf.mxu0
      %v8217 = vadd.f32 %v8168, %v8216
      %8218 = vmatmul.bf16.gmra.mxu0 %v1483
      %v8219 = vpop.f32.mrf.mxu0
      %v8220 = vadd.f32 %v8171, %v8219
      %v8221 = vpop.f32.mrf.mxu0
      %v8222 = vadd.f32 %v8173, %v8221
      %8223 = vmatmul.bf16.gmra.mxu0 %v1547
      %v8224 = vpop.f32.mrf.mxu0
      %v8225 = vadd.f32 %v8176, %v8224
      %v8226 = vpop.f32.mrf.mxu0
      %v8227 = vadd.f32 %v8178, %v8226
      %8228 = vmatmul.bf16.gmra.mxu0 %v1611
      %v8229 = vpop.f32.mrf.mxu0
      %v8230 = vadd.f32 %v8181, %v8229
      %v8231 = vpop.f32.mrf.mxu0
      %v8232 = vadd.f32 %v8183, %v8231
      %8233 = vmatmul.bf16.gmra.mxu0 %v1675
      %v8234 = vpop.f32.mrf.mxu0
      %v8235 = vadd.f32 %v8186, %v8234
      %v8236 = vpop.f32.mrf.mxu0
      %v8237 = vadd.f32 %v8188, %v8236
      %8238 = vmatmul.bf16.gmra.mxu0 %v1739
      %v8239 = vpop.f32.mrf.mxu0
      %v8240 = vadd.f32 %v8191, %v8239
      %v8241 = vpop.f32.mrf.mxu0
      %v8242 = vadd.f32 %v8193, %v8241
      %8243 = vmatmul.bf16.gmra.mxu0 %v1803
      %v8244 = vpop.f32.mrf.mxu0
      %v8245 = vadd.f32 %v8196, %v8244
      %v8246 = vpop.f32.mrf.mxu0
      %v8247 = vadd.f32 %v8198, %v8246
      %8248 = vdwg.mxu0
      %8249 = vmatpush.bf16.msra.mxu0 %v5277
      %8250 = vmatpush.bf16.msra.mxu0 %v5276
      %8251 = vmatpush.bf16.msra.mxu0 %v5275
      %8252 = vmatpush.bf16.msra.mxu0 %v5274
      %8253 = vmatpush.bf16.msra.mxu0 %v5273
      %8254 = vmatpush.bf16.msra.mxu0 %v5272
      %8255 = vmatpush.bf16.msra.mxu0 %v5271
      %8256 = vmatpush.bf16.msra.mxu0 %v5270
      %8257 = vmatmul.bf16.gmra.mxu0 %v1356
      %v8258 = vpop.f32.mrf.mxu0
      %v8259 = vadd.f32 %v8210, %v8258
      %v8260 = vpop.f32.mrf.mxu0
      %v8261 = vadd.f32 %v8212, %v8260
      %8262 = vmatmul.bf16.gmra.mxu0 %v1420
      %v8263 = vpop.f32.mrf.mxu0
      %v8264 = vadd.f32 %v8215, %v8263
      %v8265 = vpop.f32.mrf.mxu0
      %v8266 = vadd.f32 %v8217, %v8265
      %8267 = vmatmul.bf16.gmra.mxu0 %v1484
      %v8268 = vpop.f32.mrf.mxu0
      %v8269 = vadd.f32 %v8220, %v8268
      %v8270 = vpop.f32.mrf.mxu0
      %v8271 = vadd.f32 %v8222, %v8270
      %8272 = vmatmul.bf16.gmra.mxu0 %v1548
      %v8273 = vpop.f32.mrf.mxu0
      %v8274 = vadd.f32 %v8225, %v8273
      %v8275 = vpop.f32.mrf.mxu0
      %v8276 = vadd.f32 %v8227, %v8275
      %8277 = vmatmul.bf16.gmra.mxu0 %v1612
      %v8278 = vpop.f32.mrf.mxu0
      %v8279 = vadd.f32 %v8230, %v8278
      %v8280 = vpop.f32.mrf.mxu0
      %v8281 = vadd.f32 %v8232, %v8280
      %8282 = vmatmul.bf16.gmra.mxu0 %v1676
      %v8283 = vpop.f32.mrf.mxu0
      %v8284 = vadd.f32 %v8235, %v8283
      %v8285 = vpop.f32.mrf.mxu0
      %v8286 = vadd.f32 %v8237, %v8285
      %8287 = vmatmul.bf16.gmra.mxu0 %v1740
      %v8288 = vpop.f32.mrf.mxu0
      %v8289 = vadd.f32 %v8240, %v8288
      %v8290 = vpop.f32.mrf.mxu0
      %v8291 = vadd.f32 %v8242, %v8290
      %8292 = vmatmul.bf16.gmra.mxu0 %v1804
      %v8293 = vpop.f32.mrf.mxu0
      %v8294 = vadd.f32 %v8245, %v8293
      %v8295 = vpop.f32.mrf.mxu0
      %v8296 = vadd.f32 %v8247, %v8295
      %8297 = vdwg.mxu0
      %8298 = vmatpush.bf16.msra.mxu0 %v5285
      %8299 = vmatpush.bf16.msra.mxu0 %v5284
      %8300 = vmatpush.bf16.msra.mxu0 %v5283
      %8301 = vmatpush.bf16.msra.mxu0 %v5282
      %8302 = vmatpush.bf16.msra.mxu0 %v5281
      %8303 = vmatpush.bf16.msra.mxu0 %v5280
      %8304 = vmatpush.bf16.msra.mxu0 %v5279
      %8305 = vmatpush.bf16.msra.mxu0 %v5278
      %8306 = vmatmul.bf16.gmra.mxu0 %v1357
      %v8307 = vpop.f32.mrf.mxu0
      %v8308 = vadd.f32 %v8259, %v8307
      %v8309 = vpop.f32.mrf.mxu0
      %v8310 = vadd.f32 %v8261, %v8309
      %8311 = vmatmul.bf16.gmra.mxu0 %v1421
      %v8312 = vpop.f32.mrf.mxu0
      %v8313 = vadd.f32 %v8264, %v8312
      %v8314 = vpop.f32.mrf.mxu0
      %v8315 = vadd.f32 %v8266, %v8314
      %8316 = vmatmul.bf16.gmra.mxu0 %v1485
      %v8317 = vpop.f32.mrf.mxu0
      %v8318 = vadd.f32 %v8269, %v8317
      %v8319 = vpop.f32.mrf.mxu0
      %v8320 = vadd.f32 %v8271, %v8319
      %8321 = vmatmul.bf16.gmra.mxu0 %v1549
      %v8322 = vpop.f32.mrf.mxu0
      %v8323 = vadd.f32 %v8274, %v8322
      %v8324 = vpop.f32.mrf.mxu0
      %v8325 = vadd.f32 %v8276, %v8324
      %8326 = vmatmul.bf16.gmra.mxu0 %v1613
      %v8327 = vpop.f32.mrf.mxu0
      %v8328 = vadd.f32 %v8279, %v8327
      %v8329 = vpop.f32.mrf.mxu0
      %v8330 = vadd.f32 %v8281, %v8329
      %8331 = vmatmul.bf16.gmra.mxu0 %v1677
      %v8332 = vpop.f32.mrf.mxu0
      %v8333 = vadd.f32 %v8284, %v8332
      %v8334 = vpop.f32.mrf.mxu0
      %v8335 = vadd.f32 %v8286, %v8334
      %8336 = vmatmul.bf16.gmra.mxu0 %v1741
      %v8337 = vpop.f32.mrf.mxu0
      %v8338 = vadd.f32 %v8289, %v8337
      %v8339 = vpop.f32.mrf.mxu0
      %v8340 = vadd.f32 %v8291, %v8339
      %8341 = vmatmul.bf16.gmra.mxu0 %v1805
      %v8342 = vpop.f32.mrf.mxu0
      %v8343 = vadd.f32 %v8294, %v8342
      %v8344 = vpop.f32.mrf.mxu0
      %v8345 = vadd.f32 %v8296, %v8344
      %8346 = vdwg.mxu0
      %8347 = vmatpush.bf16.msra.mxu0 %v5293
      %8348 = vmatpush.bf16.msra.mxu0 %v5292
      %8349 = vmatpush.bf16.msra.mxu0 %v5291
      %8350 = vmatpush.bf16.msra.mxu0 %v5290
      %8351 = vmatpush.bf16.msra.mxu0 %v5289
      %8352 = vmatpush.bf16.msra.mxu0 %v5288
      %8353 = vmatpush.bf16.msra.mxu0 %v5287
      %8354 = vmatpush.bf16.msra.mxu0 %v5286
      %8355 = vmatmul.bf16.gmra.mxu0 %v1358
      %v8356 = vpop.f32.mrf.mxu0
      %v8357 = vadd.f32 %v8308, %v8356
      %v8358 = vpop.f32.mrf.mxu0
      %v8359 = vadd.f32 %v8310, %v8358
      %8360 = vmatmul.bf16.gmra.mxu0 %v1422
      %v8361 = vpop.f32.mrf.mxu0
      %v8362 = vadd.f32 %v8313, %v8361
      %v8363 = vpop.f32.mrf.mxu0
      %v8364 = vadd.f32 %v8315, %v8363
      %8365 = vmatmul.bf16.gmra.mxu0 %v1486
      %v8366 = vpop.f32.mrf.mxu0
      %v8367 = vadd.f32 %v8318, %v8366
      %v8368 = vpop.f32.mrf.mxu0
      %v8369 = vadd.f32 %v8320, %v8368
      %8370 = vmatmul.bf16.gmra.mxu0 %v1550
      %v8371 = vpop.f32.mrf.mxu0
      %v8372 = vadd.f32 %v8323, %v8371
      %v8373 = vpop.f32.mrf.mxu0
      %v8374 = vadd.f32 %v8325, %v8373
      %8375 = vmatmul.bf16.gmra.mxu0 %v1614
      %v8376 = vpop.f32.mrf.mxu0
      %v8377 = vadd.f32 %v8328, %v8376
      %v8378 = vpop.f32.mrf.mxu0
      %v8379 = vadd.f32 %v8330, %v8378
      %8380 = vmatmul.bf16.gmra.mxu0 %v1678
      %v8381 = vpop.f32.mrf.mxu0
      %v8382 = vadd.f32 %v8333, %v8381
      %v8383 = vpop.f32.mrf.mxu0
      %v8384 = vadd.f32 %v8335, %v8383
      %8385 = vmatmul.bf16.gmra.mxu0 %v1742
      %v8386 = vpop.f32.mrf.mxu0
      %v8387 = vadd.f32 %v8338, %v8386
      %v8388 = vpop.f32.mrf.mxu0
      %v8389 = vadd.f32 %v8340, %v8388
      %8390 = vmatmul.bf16.gmra.mxu0 %v1806
      %v8391 = vpop.f32.mrf.mxu0
      %v8392 = vadd.f32 %v8343, %v8391
      %v8393 = vpop.f32.mrf.mxu0
      %v8394 = vadd.f32 %v8345, %v8393
      %8395 = vdwg.mxu0
      %8396 = vmatpush.bf16.msra.mxu0 %v5301
      %8397 = vmatpush.bf16.msra.mxu0 %v5300
      %8398 = vmatpush.bf16.msra.mxu0 %v5299
      %8399 = vmatpush.bf16.msra.mxu0 %v5298
      %8400 = vmatpush.bf16.msra.mxu0 %v5297
      %8401 = vmatpush.bf16.msra.mxu0 %v5296
      %8402 = vmatpush.bf16.msra.mxu0 %v5295
      %8403 = vmatpush.bf16.msra.mxu0 %v5294
      %8404 = vmatmul.bf16.gmra.mxu0 %v1359
      %v8405 = vpop.f32.mrf.mxu0
      %v8406 = vadd.f32 %v8357, %v8405
      %v8407 = vpop.f32.mrf.mxu0
      %v8408 = vadd.f32 %v8359, %v8407
      %8409 = vmatmul.bf16.gmra.mxu0 %v1423
      %v8410 = vpop.f32.mrf.mxu0
      %v8411 = vadd.f32 %v8362, %v8410
      %v8412 = vpop.f32.mrf.mxu0
      %v8413 = vadd.f32 %v8364, %v8412
      %8414 = vmatmul.bf16.gmra.mxu0 %v1487
      %v8415 = vpop.f32.mrf.mxu0
      %v8416 = vadd.f32 %v8367, %v8415
      %v8417 = vpop.f32.mrf.mxu0
      %v8418 = vadd.f32 %v8369, %v8417
      %8419 = vmatmul.bf16.gmra.mxu0 %v1551
      %v8420 = vpop.f32.mrf.mxu0
      %v8421 = vadd.f32 %v8372, %v8420
      %v8422 = vpop.f32.mrf.mxu0
      %v8423 = vadd.f32 %v8374, %v8422
      %8424 = vmatmul.bf16.gmra.mxu0 %v1615
      %v8425 = vpop.f32.mrf.mxu0
      %v8426 = vadd.f32 %v8377, %v8425
      %v8427 = vpop.f32.mrf.mxu0
      %v8428 = vadd.f32 %v8379, %v8427
      %8429 = vmatmul.bf16.gmra.mxu0 %v1679
      %v8430 = vpop.f32.mrf.mxu0
      %v8431 = vadd.f32 %v8382, %v8430
      %v8432 = vpop.f32.mrf.mxu0
      %v8433 = vadd.f32 %v8384, %v8432
      %8434 = vmatmul.bf16.gmra.mxu0 %v1743
      %v8435 = vpop.f32.mrf.mxu0
      %v8436 = vadd.f32 %v8387, %v8435
      %v8437 = vpop.f32.mrf.mxu0
      %v8438 = vadd.f32 %v8389, %v8437
      %8439 = vmatmul.bf16.gmra.mxu0 %v1807
      %v8440 = vpop.f32.mrf.mxu0
      %v8441 = vadd.f32 %v8392, %v8440
      %v8442 = vpop.f32.mrf.mxu0
      %v8443 = vadd.f32 %v8394, %v8442
      %8444 = vdwg.mxu0
      %8445 = vmatpush.bf16.msra.mxu0 %v5309
      %8446 = vmatpush.bf16.msra.mxu0 %v5308
      %8447 = vmatpush.bf16.msra.mxu0 %v5307
      %8448 = vmatpush.bf16.msra.mxu0 %v5306
      %8449 = vmatpush.bf16.msra.mxu0 %v5305
      %8450 = vmatpush.bf16.msra.mxu0 %v5304
      %8451 = vmatpush.bf16.msra.mxu0 %v5303
      %8452 = vmatpush.bf16.msra.mxu0 %v5302
      %8453 = vmatmul.bf16.gmra.mxu0 %v1360
      %v8454 = vpop.f32.mrf.mxu0
      %v8455 = vadd.f32 %v8406, %v8454
      %v8456 = vpop.f32.mrf.mxu0
      %v8457 = vadd.f32 %v8408, %v8456
      %8458 = vmatmul.bf16.gmra.mxu0 %v1424
      %v8459 = vpop.f32.mrf.mxu0
      %v8460 = vadd.f32 %v8411, %v8459
      %v8461 = vpop.f32.mrf.mxu0
      %v8462 = vadd.f32 %v8413, %v8461
      %8463 = vmatmul.bf16.gmra.mxu0 %v1488
      %v8464 = vpop.f32.mrf.mxu0
      %v8465 = vadd.f32 %v8416, %v8464
      %v8466 = vpop.f32.mrf.mxu0
      %v8467 = vadd.f32 %v8418, %v8466
      %8468 = vmatmul.bf16.gmra.mxu0 %v1552
      %v8469 = vpop.f32.mrf.mxu0
      %v8470 = vadd.f32 %v8421, %v8469
      %v8471 = vpop.f32.mrf.mxu0
      %v8472 = vadd.f32 %v8423, %v8471
      %8473 = vmatmul.bf16.gmra.mxu0 %v1616
      %v8474 = vpop.f32.mrf.mxu0
      %v8475 = vadd.f32 %v8426, %v8474
      %v8476 = vpop.f32.mrf.mxu0
      %v8477 = vadd.f32 %v8428, %v8476
      %8478 = vmatmul.bf16.gmra.mxu0 %v1680
      %v8479 = vpop.f32.mrf.mxu0
      %v8480 = vadd.f32 %v8431, %v8479
      %v8481 = vpop.f32.mrf.mxu0
      %v8482 = vadd.f32 %v8433, %v8481
      %8483 = vmatmul.bf16.gmra.mxu0 %v1744
      %v8484 = vpop.f32.mrf.mxu0
      %v8485 = vadd.f32 %v8436, %v8484
      %v8486 = vpop.f32.mrf.mxu0
      %v8487 = vadd.f32 %v8438, %v8486
      %8488 = vmatmul.bf16.gmra.mxu0 %v1808
      %v8489 = vpop.f32.mrf.mxu0
      %v8490 = vadd.f32 %v8441, %v8489
      %v8491 = vpop.f32.mrf.mxu0
      %v8492 = vadd.f32 %v8443, %v8491
      %8493 = vdwg.mxu0
      %8494 = vmatpush.bf16.msra.mxu0 %v5317
      %8495 = vmatpush.bf16.msra.mxu0 %v5316
      %8496 = vmatpush.bf16.msra.mxu0 %v5315
      %8497 = vmatpush.bf16.msra.mxu0 %v5314
      %8498 = vmatpush.bf16.msra.mxu0 %v5313
      %8499 = vmatpush.bf16.msra.mxu0 %v5312
      %8500 = vmatpush.bf16.msra.mxu0 %v5311
      %8501 = vmatpush.bf16.msra.mxu0 %v5310
      %8502 = vmatmul.bf16.gmra.mxu0 %v1361
      %v8503 = vpop.f32.mrf.mxu0
      %v8504 = vadd.f32 %v8455, %v8503
      %v8505 = vpop.f32.mrf.mxu0
      %v8506 = vadd.f32 %v8457, %v8505
      %8507 = vmatmul.bf16.gmra.mxu0 %v1425
      %v8508 = vpop.f32.mrf.mxu0
      %v8509 = vadd.f32 %v8460, %v8508
      %v8510 = vpop.f32.mrf.mxu0
      %v8511 = vadd.f32 %v8462, %v8510
      %8512 = vmatmul.bf16.gmra.mxu0 %v1489
      %v8513 = vpop.f32.mrf.mxu0
      %v8514 = vadd.f32 %v8465, %v8513
      %v8515 = vpop.f32.mrf.mxu0
      %v8516 = vadd.f32 %v8467, %v8515
      %8517 = vmatmul.bf16.gmra.mxu0 %v1553
      %v8518 = vpop.f32.mrf.mxu0
      %v8519 = vadd.f32 %v8470, %v8518
      %v8520 = vpop.f32.mrf.mxu0
      %v8521 = vadd.f32 %v8472, %v8520
      %8522 = vmatmul.bf16.gmra.mxu0 %v1617
      %v8523 = vpop.f32.mrf.mxu0
      %v8524 = vadd.f32 %v8475, %v8523
      %v8525 = vpop.f32.mrf.mxu0
      %v8526 = vadd.f32 %v8477, %v8525
      %8527 = vmatmul.bf16.gmra.mxu0 %v1681
      %v8528 = vpop.f32.mrf.mxu0
      %v8529 = vadd.f32 %v8480, %v8528
      %v8530 = vpop.f32.mrf.mxu0
      %v8531 = vadd.f32 %v8482, %v8530
      %8532 = vmatmul.bf16.gmra.mxu0 %v1745
      %v8533 = vpop.f32.mrf.mxu0
      %v8534 = vadd.f32 %v8485, %v8533
      %v8535 = vpop.f32.mrf.mxu0
      %v8536 = vadd.f32 %v8487, %v8535
      %8537 = vmatmul.bf16.gmra.mxu0 %v1809
      %v8538 = vpop.f32.mrf.mxu0
      %v8539 = vadd.f32 %v8490, %v8538
      %v8540 = vpop.f32.mrf.mxu0
      %v8541 = vadd.f32 %v8492, %v8540
      %8542 = vdwg.mxu0
      %8543 = vmatpush.bf16.msra.mxu0 %v5325
      %8544 = vmatpush.bf16.msra.mxu0 %v5324
      %8545 = vmatpush.bf16.msra.mxu0 %v5323
      %8546 = vmatpush.bf16.msra.mxu0 %v5322
      %8547 = vmatpush.bf16.msra.mxu0 %v5321
      %8548 = vmatpush.bf16.msra.mxu0 %v5320
      %8549 = vmatpush.bf16.msra.mxu0 %v5319
      %8550 = vmatpush.bf16.msra.mxu0 %v5318
      %8551 = vmatmul.bf16.gmra.mxu0 %v1362
      %v8552 = vpop.f32.mrf.mxu0
      %v8553 = vadd.f32 %v8504, %v8552
      %v8554 = vpop.f32.mrf.mxu0
      %v8555 = vadd.f32 %v8506, %v8554
      %8556 = vmatmul.bf16.gmra.mxu0 %v1426
      %v8557 = vpop.f32.mrf.mxu0
      %v8558 = vadd.f32 %v8509, %v8557
      %v8559 = vpop.f32.mrf.mxu0
      %v8560 = vadd.f32 %v8511, %v8559
      %8561 = vmatmul.bf16.gmra.mxu0 %v1490
      %v8562 = vpop.f32.mrf.mxu0
      %v8563 = vadd.f32 %v8514, %v8562
      %v8564 = vpop.f32.mrf.mxu0
      %v8565 = vadd.f32 %v8516, %v8564
      %8566 = vmatmul.bf16.gmra.mxu0 %v1554
      %v8567 = vpop.f32.mrf.mxu0
      %v8568 = vadd.f32 %v8519, %v8567
      %v8569 = vpop.f32.mrf.mxu0
      %v8570 = vadd.f32 %v8521, %v8569
      %8571 = vmatmul.bf16.gmra.mxu0 %v1618
      %v8572 = vpop.f32.mrf.mxu0
      %v8573 = vadd.f32 %v8524, %v8572
      %v8574 = vpop.f32.mrf.mxu0
      %v8575 = vadd.f32 %v8526, %v8574
      %8576 = vmatmul.bf16.gmra.mxu0 %v1682
      %v8577 = vpop.f32.mrf.mxu0
      %v8578 = vadd.f32 %v8529, %v8577
      %v8579 = vpop.f32.mrf.mxu0
      %v8580 = vadd.f32 %v8531, %v8579
      %8581 = vmatmul.bf16.gmra.mxu0 %v1746
      %v8582 = vpop.f32.mrf.mxu0
      %v8583 = vadd.f32 %v8534, %v8582
      %v8584 = vpop.f32.mrf.mxu0
      %v8585 = vadd.f32 %v8536, %v8584
      %8586 = vmatmul.bf16.gmra.mxu0 %v1810
      %v8587 = vpop.f32.mrf.mxu0
      %v8588 = vadd.f32 %v8539, %v8587
      %v8589 = vpop.f32.mrf.mxu0
      %v8590 = vadd.f32 %v8541, %v8589
      %8591 = vdwg.mxu0
      %8592 = vmatpush.bf16.msra.mxu0 %v5333
      %8593 = vmatpush.bf16.msra.mxu0 %v5332
      %8594 = vmatpush.bf16.msra.mxu0 %v5331
      %8595 = vmatpush.bf16.msra.mxu0 %v5330
      %8596 = vmatpush.bf16.msra.mxu0 %v5329
      %8597 = vmatpush.bf16.msra.mxu0 %v5328
      %8598 = vmatpush.bf16.msra.mxu0 %v5327
      %8599 = vmatpush.bf16.msra.mxu0 %v5326
      %8600 = vmatmul.bf16.gmra.mxu0 %v1363
      %v8601 = vpop.f32.mrf.mxu0
      %v8602 = vadd.f32 %v8553, %v8601
      %v8603 = vpop.f32.mrf.mxu0
      %v8604 = vadd.f32 %v8555, %v8603
      %8605 = vmatmul.bf16.gmra.mxu0 %v1427
      %v8606 = vpop.f32.mrf.mxu0
      %v8607 = vadd.f32 %v8558, %v8606
      %v8608 = vpop.f32.mrf.mxu0
      %v8609 = vadd.f32 %v8560, %v8608
      %8610 = vmatmul.bf16.gmra.mxu0 %v1491
      %v8611 = vpop.f32.mrf.mxu0
      %v8612 = vadd.f32 %v8563, %v8611
      %v8613 = vpop.f32.mrf.mxu0
      %v8614 = vadd.f32 %v8565, %v8613
      %8615 = vmatmul.bf16.gmra.mxu0 %v1555
      %v8616 = vpop.f32.mrf.mxu0
      %v8617 = vadd.f32 %v8568, %v8616
      %v8618 = vpop.f32.mrf.mxu0
      %v8619 = vadd.f32 %v8570, %v8618
      %8620 = vmatmul.bf16.gmra.mxu0 %v1619
      %v8621 = vpop.f32.mrf.mxu0
      %v8622 = vadd.f32 %v8573, %v8621
      %v8623 = vpop.f32.mrf.mxu0
      %v8624 = vadd.f32 %v8575, %v8623
      %8625 = vmatmul.bf16.gmra.mxu0 %v1683
      %v8626 = vpop.f32.mrf.mxu0
      %v8627 = vadd.f32 %v8578, %v8626
      %v8628 = vpop.f32.mrf.mxu0
      %v8629 = vadd.f32 %v8580, %v8628
      %8630 = vmatmul.bf16.gmra.mxu0 %v1747
      %v8631 = vpop.f32.mrf.mxu0
      %v8632 = vadd.f32 %v8583, %v8631
      %v8633 = vpop.f32.mrf.mxu0
      %v8634 = vadd.f32 %v8585, %v8633
      %8635 = vmatmul.bf16.gmra.mxu0 %v1811
      %v8636 = vpop.f32.mrf.mxu0
      %v8637 = vadd.f32 %v8588, %v8636
      %v8638 = vpop.f32.mrf.mxu0
      %v8639 = vadd.f32 %v8590, %v8638
      %8640 = vdwg.mxu0
      %8641 = vmatpush.bf16.msra.mxu0 %v5341
      %8642 = vmatpush.bf16.msra.mxu0 %v5340
      %8643 = vmatpush.bf16.msra.mxu0 %v5339
      %8644 = vmatpush.bf16.msra.mxu0 %v5338
      %8645 = vmatpush.bf16.msra.mxu0 %v5337
      %8646 = vmatpush.bf16.msra.mxu0 %v5336
      %8647 = vmatpush.bf16.msra.mxu0 %v5335
      %8648 = vmatpush.bf16.msra.mxu0 %v5334
      %8649 = vmatmul.bf16.gmra.mxu0 %v1364
      %v8650 = vpop.f32.mrf.mxu0
      %v8651 = vadd.f32 %v8602, %v8650
      %v8652 = vpop.f32.mrf.mxu0
      %v8653 = vadd.f32 %v8604, %v8652
      %8654 = vmatmul.bf16.gmra.mxu0 %v1428
      %v8655 = vpop.f32.mrf.mxu0
      %v8656 = vadd.f32 %v8607, %v8655
      %v8657 = vpop.f32.mrf.mxu0
      %v8658 = vadd.f32 %v8609, %v8657
      %8659 = vmatmul.bf16.gmra.mxu0 %v1492
      %v8660 = vpop.f32.mrf.mxu0
      %v8661 = vadd.f32 %v8612, %v8660
      %v8662 = vpop.f32.mrf.mxu0
      %v8663 = vadd.f32 %v8614, %v8662
      %8664 = vmatmul.bf16.gmra.mxu0 %v1556
      %v8665 = vpop.f32.mrf.mxu0
      %v8666 = vadd.f32 %v8617, %v8665
      %v8667 = vpop.f32.mrf.mxu0
      %v8668 = vadd.f32 %v8619, %v8667
      %8669 = vmatmul.bf16.gmra.mxu0 %v1620
      %v8670 = vpop.f32.mrf.mxu0
      %v8671 = vadd.f32 %v8622, %v8670
      %v8672 = vpop.f32.mrf.mxu0
      %v8673 = vadd.f32 %v8624, %v8672
      %8674 = vmatmul.bf16.gmra.mxu0 %v1684
      %v8675 = vpop.f32.mrf.mxu0
      %v8676 = vadd.f32 %v8627, %v8675
      %v8677 = vpop.f32.mrf.mxu0
      %v8678 = vadd.f32 %v8629, %v8677
      %8679 = vmatmul.bf16.gmra.mxu0 %v1748
      %v8680 = vpop.f32.mrf.mxu0
      %v8681 = vadd.f32 %v8632, %v8680
      %v8682 = vpop.f32.mrf.mxu0
      %v8683 = vadd.f32 %v8634, %v8682
      %8684 = vmatmul.bf16.gmra.mxu0 %v1812
      %v8685 = vpop.f32.mrf.mxu0
      %v8686 = vadd.f32 %v8637, %v8685
      %v8687 = vpop.f32.mrf.mxu0
      %v8688 = vadd.f32 %v8639, %v8687
      %8689 = vdwg.mxu0
      %8690 = vmatpush.bf16.msra.mxu0 %v5349
      %8691 = vmatpush.bf16.msra.mxu0 %v5348
      %8692 = vmatpush.bf16.msra.mxu0 %v5347
      %8693 = vmatpush.bf16.msra.mxu0 %v5346
      %8694 = vmatpush.bf16.msra.mxu0 %v5345
      %8695 = vmatpush.bf16.msra.mxu0 %v5344
      %8696 = vmatpush.bf16.msra.mxu0 %v5343
      %8697 = vmatpush.bf16.msra.mxu0 %v5342
      %8698 = vmatmul.bf16.gmra.mxu0 %v1365
      %v8699 = vpop.f32.mrf.mxu0
      %v8700 = vadd.f32 %v8651, %v8699
      %v8701 = vpop.f32.mrf.mxu0
      %v8702 = vadd.f32 %v8653, %v8701
      %8703 = vmatmul.bf16.gmra.mxu0 %v1429
      %v8704 = vpop.f32.mrf.mxu0
      %v8705 = vadd.f32 %v8656, %v8704
      %v8706 = vpop.f32.mrf.mxu0
      %v8707 = vadd.f32 %v8658, %v8706
      %8708 = vmatmul.bf16.gmra.mxu0 %v1493
      %v8709 = vpop.f32.mrf.mxu0
      %v8710 = vadd.f32 %v8661, %v8709
      %v8711 = vpop.f32.mrf.mxu0
      %v8712 = vadd.f32 %v8663, %v8711
      %8713 = vmatmul.bf16.gmra.mxu0 %v1557
      %v8714 = vpop.f32.mrf.mxu0
      %v8715 = vadd.f32 %v8666, %v8714
      %v8716 = vpop.f32.mrf.mxu0
      %v8717 = vadd.f32 %v8668, %v8716
      %8718 = vmatmul.bf16.gmra.mxu0 %v1621
      %v8719 = vpop.f32.mrf.mxu0
      %v8720 = vadd.f32 %v8671, %v8719
      %v8721 = vpop.f32.mrf.mxu0
      %v8722 = vadd.f32 %v8673, %v8721
      %8723 = vmatmul.bf16.gmra.mxu0 %v1685
      %v8724 = vpop.f32.mrf.mxu0
      %v8725 = vadd.f32 %v8676, %v8724
      %v8726 = vpop.f32.mrf.mxu0
      %v8727 = vadd.f32 %v8678, %v8726
      %8728 = vmatmul.bf16.gmra.mxu0 %v1749
      %v8729 = vpop.f32.mrf.mxu0
      %v8730 = vadd.f32 %v8681, %v8729
      %v8731 = vpop.f32.mrf.mxu0
      %v8732 = vadd.f32 %v8683, %v8731
      %8733 = vmatmul.bf16.gmra.mxu0 %v1813
      %v8734 = vpop.f32.mrf.mxu0
      %v8735 = vadd.f32 %v8686, %v8734
      %v8736 = vpop.f32.mrf.mxu0
      %v8737 = vadd.f32 %v8688, %v8736
      %8738 = vdwg.mxu0
      %8739 = vmatpush.bf16.msra.mxu0 %v5357
      %8740 = vmatpush.bf16.msra.mxu0 %v5356
      %8741 = vmatpush.bf16.msra.mxu0 %v5355
      %8742 = vmatpush.bf16.msra.mxu0 %v5354
      %8743 = vmatpush.bf16.msra.mxu0 %v5353
      %8744 = vmatpush.bf16.msra.mxu0 %v5352
      %8745 = vmatpush.bf16.msra.mxu0 %v5351
      %8746 = vmatpush.bf16.msra.mxu0 %v5350
      %8747 = vmatmul.bf16.gmra.mxu0 %v1366
      %v8748 = vpop.f32.mrf.mxu0
      %v8749 = vadd.f32 %v8700, %v8748
      %v8750 = vpop.f32.mrf.mxu0
      %v8751 = vadd.f32 %v8702, %v8750
      %8752 = vmatmul.bf16.gmra.mxu0 %v1430
      %v8753 = vpop.f32.mrf.mxu0
      %v8754 = vadd.f32 %v8705, %v8753
      %v8755 = vpop.f32.mrf.mxu0
      %v8756 = vadd.f32 %v8707, %v8755
      %8757 = vmatmul.bf16.gmra.mxu0 %v1494
      %v8758 = vpop.f32.mrf.mxu0
      %v8759 = vadd.f32 %v8710, %v8758
      %v8760 = vpop.f32.mrf.mxu0
      %v8761 = vadd.f32 %v8712, %v8760
      %8762 = vmatmul.bf16.gmra.mxu0 %v1558
      %v8763 = vpop.f32.mrf.mxu0
      %v8764 = vadd.f32 %v8715, %v8763
      %v8765 = vpop.f32.mrf.mxu0
      %v8766 = vadd.f32 %v8717, %v8765
      %8767 = vmatmul.bf16.gmra.mxu0 %v1622
      %v8768 = vpop.f32.mrf.mxu0
      %v8769 = vadd.f32 %v8720, %v8768
      %v8770 = vpop.f32.mrf.mxu0
      %v8771 = vadd.f32 %v8722, %v8770
      %8772 = vmatmul.bf16.gmra.mxu0 %v1686
      %v8773 = vpop.f32.mrf.mxu0
      %v8774 = vadd.f32 %v8725, %v8773
      %v8775 = vpop.f32.mrf.mxu0
      %v8776 = vadd.f32 %v8727, %v8775
      %8777 = vmatmul.bf16.gmra.mxu0 %v1750
      %v8778 = vpop.f32.mrf.mxu0
      %v8779 = vadd.f32 %v8730, %v8778
      %v8780 = vpop.f32.mrf.mxu0
      %v8781 = vadd.f32 %v8732, %v8780
      %8782 = vmatmul.bf16.gmra.mxu0 %v1814
      %v8783 = vpop.f32.mrf.mxu0
      %v8784 = vadd.f32 %v8735, %v8783
      %v8785 = vpop.f32.mrf.mxu0
      %v8786 = vadd.f32 %v8737, %v8785
      %8787 = vdwg.mxu0
      %8788 = vmatpush.bf16.msra.mxu0 %v5365
      %8789 = vmatpush.bf16.msra.mxu0 %v5364
      %8790 = vmatpush.bf16.msra.mxu0 %v5363
      %8791 = vmatpush.bf16.msra.mxu0 %v5362
      %8792 = vmatpush.bf16.msra.mxu0 %v5361
      %8793 = vmatpush.bf16.msra.mxu0 %v5360
      %8794 = vmatpush.bf16.msra.mxu0 %v5359
      %8795 = vmatpush.bf16.msra.mxu0 %v5358
      %8796 = vmatmul.bf16.gmra.mxu0 %v1367
      %v8797 = vpop.f32.mrf.mxu0
      %v8798 = vadd.f32 %v8749, %v8797
      %v8799 = vpop.f32.mrf.mxu0
      %v8800 = vadd.f32 %v8751, %v8799
      %8801 = vmatmul.bf16.gmra.mxu0 %v1431
      %v8802 = vpop.f32.mrf.mxu0
      %v8803 = vadd.f32 %v8754, %v8802
      %v8804 = vpop.f32.mrf.mxu0
      %v8805 = vadd.f32 %v8756, %v8804
      %8806 = vmatmul.bf16.gmra.mxu0 %v1495
      %v8807 = vpop.f32.mrf.mxu0
      %v8808 = vadd.f32 %v8759, %v8807
      %v8809 = vpop.f32.mrf.mxu0
      %v8810 = vadd.f32 %v8761, %v8809
      %8811 = vmatmul.bf16.gmra.mxu0 %v1559
      %v8812 = vpop.f32.mrf.mxu0
      %v8813 = vadd.f32 %v8764, %v8812
      %v8814 = vpop.f32.mrf.mxu0
      %v8815 = vadd.f32 %v8766, %v8814
      %8816 = vmatmul.bf16.gmra.mxu0 %v1623
      %v8817 = vpop.f32.mrf.mxu0
      %v8818 = vadd.f32 %v8769, %v8817
      %v8819 = vpop.f32.mrf.mxu0
      %v8820 = vadd.f32 %v8771, %v8819
      %8821 = vmatmul.bf16.gmra.mxu0 %v1687
      %v8822 = vpop.f32.mrf.mxu0
      %v8823 = vadd.f32 %v8774, %v8822
      %v8824 = vpop.f32.mrf.mxu0
      %v8825 = vadd.f32 %v8776, %v8824
      %8826 = vmatmul.bf16.gmra.mxu0 %v1751
      %v8827 = vpop.f32.mrf.mxu0
      %v8828 = vadd.f32 %v8779, %v8827
      %v8829 = vpop.f32.mrf.mxu0
      %v8830 = vadd.f32 %v8781, %v8829
      %8831 = vmatmul.bf16.gmra.mxu0 %v1815
      %v8832 = vpop.f32.mrf.mxu0
      %v8833 = vadd.f32 %v8784, %v8832
      %v8834 = vpop.f32.mrf.mxu0
      %v8835 = vadd.f32 %v8786, %v8834
      %8836 = vdwg.mxu0
      %8837 = vmatpush.bf16.msra.mxu0 %v5373
      %8838 = vmatpush.bf16.msra.mxu0 %v5372
      %8839 = vmatpush.bf16.msra.mxu0 %v5371
      %8840 = vmatpush.bf16.msra.mxu0 %v5370
      %8841 = vmatpush.bf16.msra.mxu0 %v5369
      %8842 = vmatpush.bf16.msra.mxu0 %v5368
      %8843 = vmatpush.bf16.msra.mxu0 %v5367
      %8844 = vmatpush.bf16.msra.mxu0 %v5366
      %8845 = vmatmul.bf16.gmra.mxu0 %v1368
      %v8846 = vpop.f32.mrf.mxu0
      %v8847 = vadd.f32 %v8798, %v8846
      %v8848 = vpop.f32.mrf.mxu0
      %v8849 = vadd.f32 %v8800, %v8848
      %8850 = vmatmul.bf16.gmra.mxu0 %v1432
      %v8851 = vpop.f32.mrf.mxu0
      %v8852 = vadd.f32 %v8803, %v8851
      %v8853 = vpop.f32.mrf.mxu0
      %v8854 = vadd.f32 %v8805, %v8853
      %8855 = vmatmul.bf16.gmra.mxu0 %v1496
      %v8856 = vpop.f32.mrf.mxu0
      %v8857 = vadd.f32 %v8808, %v8856
      %v8858 = vpop.f32.mrf.mxu0
      %v8859 = vadd.f32 %v8810, %v8858
      %8860 = vmatmul.bf16.gmra.mxu0 %v1560
      %v8861 = vpop.f32.mrf.mxu0
      %v8862 = vadd.f32 %v8813, %v8861
      %v8863 = vpop.f32.mrf.mxu0
      %v8864 = vadd.f32 %v8815, %v8863
      %8865 = vmatmul.bf16.gmra.mxu0 %v1624
      %v8866 = vpop.f32.mrf.mxu0
      %v8867 = vadd.f32 %v8818, %v8866
      %v8868 = vpop.f32.mrf.mxu0
      %v8869 = vadd.f32 %v8820, %v8868
      %8870 = vmatmul.bf16.gmra.mxu0 %v1688
      %v8871 = vpop.f32.mrf.mxu0
      %v8872 = vadd.f32 %v8823, %v8871
      %v8873 = vpop.f32.mrf.mxu0
      %v8874 = vadd.f32 %v8825, %v8873
      %8875 = vmatmul.bf16.gmra.mxu0 %v1752
      %v8876 = vpop.f32.mrf.mxu0
      %v8877 = vadd.f32 %v8828, %v8876
      %v8878 = vpop.f32.mrf.mxu0
      %v8879 = vadd.f32 %v8830, %v8878
      %8880 = vmatmul.bf16.gmra.mxu0 %v1816
      %v8881 = vpop.f32.mrf.mxu0
      %v8882 = vadd.f32 %v8833, %v8881
      %v8883 = vpop.f32.mrf.mxu0
      %v8884 = vadd.f32 %v8835, %v8883
      %8885 = vdwg.mxu0
      %8886 = vmatpush.bf16.msra.mxu0 %v5381
      %8887 = vmatpush.bf16.msra.mxu0 %v5380
      %8888 = vmatpush.bf16.msra.mxu0 %v5379
      %8889 = vmatpush.bf16.msra.mxu0 %v5378
      %8890 = vmatpush.bf16.msra.mxu0 %v5377
      %8891 = vmatpush.bf16.msra.mxu0 %v5376
      %8892 = vmatpush.bf16.msra.mxu0 %v5375
      %8893 = vmatpush.bf16.msra.mxu0 %v5374
      %8894 = vmatmul.bf16.gmra.mxu0 %v1369
      %v8895 = vpop.f32.mrf.mxu0
      %v8896 = vadd.f32 %v8847, %v8895
      %v8897 = vpop.f32.mrf.mxu0
      %v8898 = vadd.f32 %v8849, %v8897
      %8899 = vmatmul.bf16.gmra.mxu0 %v1433
      %v8900 = vpop.f32.mrf.mxu0
      %v8901 = vadd.f32 %v8852, %v8900
      %v8902 = vpop.f32.mrf.mxu0
      %v8903 = vadd.f32 %v8854, %v8902
      %8904 = vmatmul.bf16.gmra.mxu0 %v1497
      %v8905 = vpop.f32.mrf.mxu0
      %v8906 = vadd.f32 %v8857, %v8905
      %v8907 = vpop.f32.mrf.mxu0
      %v8908 = vadd.f32 %v8859, %v8907
      %8909 = vmatmul.bf16.gmra.mxu0 %v1561
      %v8910 = vpop.f32.mrf.mxu0
      %v8911 = vadd.f32 %v8862, %v8910
      %v8912 = vpop.f32.mrf.mxu0
      %v8913 = vadd.f32 %v8864, %v8912
      %8914 = vmatmul.bf16.gmra.mxu0 %v1625
      %v8915 = vpop.f32.mrf.mxu0
      %v8916 = vadd.f32 %v8867, %v8915
      %v8917 = vpop.f32.mrf.mxu0
      %v8918 = vadd.f32 %v8869, %v8917
      %8919 = vmatmul.bf16.gmra.mxu0 %v1689
      %v8920 = vpop.f32.mrf.mxu0
      %v8921 = vadd.f32 %v8872, %v8920
      %v8922 = vpop.f32.mrf.mxu0
      %v8923 = vadd.f32 %v8874, %v8922
      %8924 = vmatmul.bf16.gmra.mxu0 %v1753
      %v8925 = vpop.f32.mrf.mxu0
      %v8926 = vadd.f32 %v8877, %v8925
      %v8927 = vpop.f32.mrf.mxu0
      %v8928 = vadd.f32 %v8879, %v8927
      %8929 = vmatmul.bf16.gmra.mxu0 %v1817
      %v8930 = vpop.f32.mrf.mxu0
      %v8931 = vadd.f32 %v8882, %v8930
      %v8932 = vpop.f32.mrf.mxu0
      %v8933 = vadd.f32 %v8884, %v8932
      %8934 = vdwg.mxu0
      %8935 = vmatpush.bf16.msra.mxu0 %v5389
      %8936 = vmatpush.bf16.msra.mxu0 %v5388
      %8937 = vmatpush.bf16.msra.mxu0 %v5387
      %8938 = vmatpush.bf16.msra.mxu0 %v5386
      %8939 = vmatpush.bf16.msra.mxu0 %v5385
      %8940 = vmatpush.bf16.msra.mxu0 %v5384
      %8941 = vmatpush.bf16.msra.mxu0 %v5383
      %8942 = vmatpush.bf16.msra.mxu0 %v5382
      %8943 = vmatmul.bf16.gmra.mxu0 %v1370
      %v8944 = vpop.f32.mrf.mxu0
      %v8945 = vadd.f32 %v8896, %v8944
      %v8946 = vpop.f32.mrf.mxu0
      %v8947 = vadd.f32 %v8898, %v8946
      %8948 = vmatmul.bf16.gmra.mxu0 %v1434
      %v8949 = vpop.f32.mrf.mxu0
      %v8950 = vadd.f32 %v8901, %v8949
      %v8951 = vpop.f32.mrf.mxu0
      %v8952 = vadd.f32 %v8903, %v8951
      %8953 = vmatmul.bf16.gmra.mxu0 %v1498
      %v8954 = vpop.f32.mrf.mxu0
      %v8955 = vadd.f32 %v8906, %v8954
      %v8956 = vpop.f32.mrf.mxu0
      %v8957 = vadd.f32 %v8908, %v8956
      %8958 = vmatmul.bf16.gmra.mxu0 %v1562
      %v8959 = vpop.f32.mrf.mxu0
      %v8960 = vadd.f32 %v8911, %v8959
      %v8961 = vpop.f32.mrf.mxu0
      %v8962 = vadd.f32 %v8913, %v8961
      %8963 = vmatmul.bf16.gmra.mxu0 %v1626
      %v8964 = vpop.f32.mrf.mxu0
      %v8965 = vadd.f32 %v8916, %v8964
      %v8966 = vpop.f32.mrf.mxu0
      %v8967 = vadd.f32 %v8918, %v8966
      %8968 = vmatmul.bf16.gmra.mxu0 %v1690
      %v8969 = vpop.f32.mrf.mxu0
      %v8970 = vadd.f32 %v8921, %v8969
      %v8971 = vpop.f32.mrf.mxu0
      %v8972 = vadd.f32 %v8923, %v8971
      %8973 = vmatmul.bf16.gmra.mxu0 %v1754
      %v8974 = vpop.f32.mrf.mxu0
      %v8975 = vadd.f32 %v8926, %v8974
      %v8976 = vpop.f32.mrf.mxu0
      %v8977 = vadd.f32 %v8928, %v8976
      %8978 = vmatmul.bf16.gmra.mxu0 %v1818
      %v8979 = vpop.f32.mrf.mxu0
      %v8980 = vadd.f32 %v8931, %v8979
      %v8981 = vpop.f32.mrf.mxu0
      %v8982 = vadd.f32 %v8933, %v8981
      %8983 = vdwg.mxu0
      %8984 = vmatpush.bf16.msra.mxu0 %v5397
      %8985 = vmatpush.bf16.msra.mxu0 %v5396
      %8986 = vmatpush.bf16.msra.mxu0 %v5395
      %8987 = vmatpush.bf16.msra.mxu0 %v5394
      %8988 = vmatpush.bf16.msra.mxu0 %v5393
      %8989 = vmatpush.bf16.msra.mxu0 %v5392
      %8990 = vmatpush.bf16.msra.mxu0 %v5391
      %8991 = vmatpush.bf16.msra.mxu0 %v5390
      %8992 = vmatmul.bf16.gmra.mxu0 %v1371
      %v8993 = vpop.f32.mrf.mxu0
      %v8994 = vadd.f32 %v8945, %v8993
      %v8995 = vpop.f32.mrf.mxu0
      %v8996 = vadd.f32 %v8947, %v8995
      %8997 = vmatmul.bf16.gmra.mxu0 %v1435
      %v8998 = vpop.f32.mrf.mxu0
      %v8999 = vadd.f32 %v8950, %v8998
      %v9000 = vpop.f32.mrf.mxu0
      %v9001 = vadd.f32 %v8952, %v9000
      %9002 = vmatmul.bf16.gmra.mxu0 %v1499
      %v9003 = vpop.f32.mrf.mxu0
      %v9004 = vadd.f32 %v8955, %v9003
      %v9005 = vpop.f32.mrf.mxu0
      %v9006 = vadd.f32 %v8957, %v9005
      %9007 = vmatmul.bf16.gmra.mxu0 %v1563
      %v9008 = vpop.f32.mrf.mxu0
      %v9009 = vadd.f32 %v8960, %v9008
      %v9010 = vpop.f32.mrf.mxu0
      %v9011 = vadd.f32 %v8962, %v9010
      %9012 = vmatmul.bf16.gmra.mxu0 %v1627
      %v9013 = vpop.f32.mrf.mxu0
      %v9014 = vadd.f32 %v8965, %v9013
      %v9015 = vpop.f32.mrf.mxu0
      %v9016 = vadd.f32 %v8967, %v9015
      %9017 = vmatmul.bf16.gmra.mxu0 %v1691
      %v9018 = vpop.f32.mrf.mxu0
      %v9019 = vadd.f32 %v8970, %v9018
      %v9020 = vpop.f32.mrf.mxu0
      %v9021 = vadd.f32 %v8972, %v9020
      %9022 = vmatmul.bf16.gmra.mxu0 %v1755
      %v9023 = vpop.f32.mrf.mxu0
      %v9024 = vadd.f32 %v8975, %v9023
      %v9025 = vpop.f32.mrf.mxu0
      %v9026 = vadd.f32 %v8977, %v9025
      %9027 = vmatmul.bf16.gmra.mxu0 %v1819
      %v9028 = vpop.f32.mrf.mxu0
      %v9029 = vadd.f32 %v8980, %v9028
      %v9030 = vpop.f32.mrf.mxu0
      %v9031 = vadd.f32 %v8982, %v9030
      %9032 = vdwg.mxu0
      %9033 = vmatpush.bf16.msra.mxu0 %v5944
      %9034 = vmatpush.bf16.msra.mxu0 %v5404
      %9035 = vmatpush.bf16.msra.mxu0 %v5403
      %9036 = vmatpush.bf16.msra.mxu0 %v5402
      %9037 = vmatpush.bf16.msra.mxu0 %v5401
      %9038 = vmatpush.bf16.msra.mxu0 %v5400
      %9039 = vmatpush.bf16.msra.mxu0 %v5399
      %9040 = vmatpush.bf16.msra.mxu0 %v5398
      %9041 = vmatmul.bf16.gmra.mxu0 %v5919
      %v9042 = vpop.f32.mrf.mxu0
      %v9043 = vadd.f32 %v8994, %v9042
      %v9044 = vpop.f32.mrf.mxu0
      %v9045 = vadd.f32 %v8996, %v9044
      %9046 = vmatmul.bf16.gmra.mxu0 %v5922
      %v9047 = vpop.f32.mrf.mxu0
      %v9048 = vadd.f32 %v8999, %v9047
      %v9049 = vpop.f32.mrf.mxu0
      %v9050 = vadd.f32 %v9001, %v9049
      %9051 = vmatmul.bf16.gmra.mxu0 %v5925
      %v9052 = vpop.f32.mrf.mxu0
      %v9053 = vadd.f32 %v9004, %v9052
      %v9054 = vpop.f32.mrf.mxu0
      %v9055 = vadd.f32 %v9006, %v9054
      %9056 = vmatmul.bf16.gmra.mxu0 %v5928
      %v9057 = vpop.f32.mrf.mxu0
      %v9058 = vadd.f32 %v9009, %v9057
      %v9059 = vpop.f32.mrf.mxu0
      %v9060 = vadd.f32 %v9011, %v9059
      %9061 = vmatmul.bf16.gmra.mxu0 %v5931
      %v9062 = vpop.f32.mrf.mxu0
      %v9063 = vadd.f32 %v9014, %v9062
      %v9064 = vpop.f32.mrf.mxu0
      %v9065 = vadd.f32 %v9016, %v9064
      %9066 = vmatmul.bf16.gmra.mxu0 %v5934
      %v9067 = vpop.f32.mrf.mxu0
      %v9068 = vadd.f32 %v9019, %v9067
      %v9069 = vpop.f32.mrf.mxu0
      %v9070 = vadd.f32 %v9021, %v9069
      %9071 = vmatmul.bf16.gmra.mxu0 %v5937
      %v9072 = vpop.f32.mrf.mxu0
      %v9073 = vadd.f32 %v9024, %v9072
      %v9074 = vpop.f32.mrf.mxu0
      %v9075 = vadd.f32 %v9026, %v9074
      %9076 = vmatmul.bf16.gmra.mxu0 %v5940
      %v9077 = vpop.f32.mrf.mxu0
      %v9078 = vadd.f32 %v9029, %v9077
      %v9079 = vpop.f32.mrf.mxu0
      %v9080 = vadd.f32 %v9031, %v9079
      %9081 = vdwg.mxu0
      %v9082 = vmax.f32 %v9043, 0.0
      %v9083 = vmax.f32 %v9045, 0.0
      %v9084 = vmax.f32 %v9048, 0.0
      %v9085 = vmax.f32 %v9050, 0.0
      %v9086 = vmax.f32 %v9053, 0.0
      %v9087 = vmax.f32 %v9055, 0.0
      %v9088 = vmax.f32 %v9058, 0.0
      %v9089 = vmax.f32 %v9060, 0.0
      %v9090 = vmax.f32 %v9063, 0.0
      %v9091 = vmax.f32 %v9065, 0.0
      %v9092 = vmax.f32 %v9068, 0.0
      %v9093 = vmax.f32 %v9070, 0.0
      %v9094 = vmax.f32 %v9073, 0.0
      %v9095 = vmax.f32 %v9075, 0.0
      %v9096 = vmax.f32 %v9078, 0.0
      %v9097 = vmax.f32 %v9080, 0.0
      %v9098 = vpack.c.bf16 %v9083, %v9082
      %v9099 = vpack.c.bf16 %v9085, %v9084
      %v9100 = vpack.c.bf16 %v9087, %v9086
      %v9101 = vpack.c.bf16 %v9089, %v9088
      %v9102 = vpack.c.bf16 %v9091, %v9090
      %v9103 = vpack.c.bf16 %v9093, %v9092
      %v9104 = vpack.c.bf16 %v9095, %v9094
      %v9105 = vpack.c.bf16 %v9097, %v9096
      %v9106 = vld [vmem:[%s3] sm:$0xf]
      %v9107 = vld [vmem:[%s3 + $0x4] sm:$0xf]
      %v9108 = vld [vmem:[%s3 + $0x8] sm:$0xf]
      %v9109 = vld [vmem:[%s3 + $0xc] sm:$0xf]
      %v9110 = vld [vmem:[%s3 + $0x10] sm:$0xf]
      %v9111 = vld [vmem:[%s3 + $0x14] sm:$0xf]
      %v9112 = vld [vmem:[%s3 + $0x18] sm:$0xf]
      %v9113 = vld [vmem:[%s3 + $0x1c] sm:$0xf]
      %v9114 = vld [vmem:[%s3 + $0x20] sm:$0xf]
      %v9115 = vld [vmem:[%s3 + $0x24] sm:$0xf]
      %v9116 = vld [vmem:[%s3 + $0x28] sm:$0xf]
      %v9117 = vld [vmem:[%s3 + $0x2c] sm:$0xf]
      %v9118 = vld [vmem:[%s3 + $0x30] sm:$0xf]
      %v9119 = vld [vmem:[%s3 + $0x34] sm:$0xf]
      %v9120 = vld [vmem:[%s3 + $0x38] sm:$0xf]
      %v9121 = vld [vmem:[%s3 + $0x3c] sm:$0xf]
      %v9122 = vld [vmem:[%s4] sm:$0x1]
      %v9124 = vperm.slane %v9122, 0
      %v9142 = vunpack.c.l.b16 %v9106
      %v9143 = vunpack.c.l.b16 %v9107
      %v9144 = vunpack.c.l.b16 %v9108
      %v9145 = vunpack.c.l.b16 %v9109
      %v9146 = vunpack.c.l.b16 %v9110
      %v9147 = vunpack.c.l.b16 %v9111
      %v9148 = vunpack.c.l.b16 %v9112
      %v9149 = vunpack.c.l.b16 %v9113
      %v9150 = vunpack.c.l.b16 %v9114
      %v9151 = vunpack.c.l.b16 %v9115
      %v9152 = vunpack.c.l.b16 %v9116
      %v9153 = vunpack.c.l.b16 %v9117
      %v9154 = vunpack.c.l.b16 %v9118
      %v9155 = vunpack.c.l.b16 %v9119
      %v9156 = vunpack.c.l.b16 %v9120
      %v9157 = vunpack.c.l.b16 %v9121
      %v9158 = vpack.c.b16 %v9143, %v9142
      %v9159 = vpack.c.b16 %v9145, %v9144
      %v9160 = vpack.c.b16 %v9147, %v9146
      %v9161 = vpack.c.b16 %v9149, %v9148
      %v9162 = vpack.c.b16 %v9151, %v9150
      %v9163 = vpack.c.b16 %v9153, %v9152
      %v9164 = vpack.c.b16 %v9155, %v9154
      %v9165 = vpack.c.b16 %v9157, %v9156
      %9174 = vmatpush.bf16.msra.mxu0 %v9165
      %9175 = vmatpush.bf16.msra.mxu0 %v9164
      %9176 = vmatpush.bf16.msra.mxu0 %v9163
      %9177 = vmatpush.bf16.msra.mxu0 %v9162
      %9178 = vmatpush.bf16.msra.mxu0 %v9161
      %9179 = vmatpush.bf16.msra.mxu0 %v9160
      %9180 = vmatpush.bf16.msra.mxu0 %v9159
      %9181 = vmatpush.bf16.msra.mxu0 %v9158
      %9182 = vmatmul.bf16.gmra.mxu0 %v9098
      %v9183 = vpop.f32.mrf.mxu0
      %v9184 = vadd.f32 %v9124, %v9183
      %v9185 = vpop.f32.mrf.mxu0
      %v9186 = vadd.f32 %v9124, %v9185
      %9187 = vmatmul.bf16.gmra.mxu0 %v9099
      %v9188 = vpop.f32.mrf.mxu0
      %v9189 = vadd.f32 %v9124, %v9188
      %v9190 = vpop.f32.mrf.mxu0
      %v9191 = vadd.f32 %v9124, %v9190
      %9192 = vmatmul.bf16.gmra.mxu0 %v9100
      %v9193 = vpop.f32.mrf.mxu0
      %v9194 = vadd.f32 %v9124, %v9193
      %v9195 = vpop.f32.mrf.mxu0
      %v9196 = vadd.f32 %v9124, %v9195
      %9197 = vmatmul.bf16.gmra.mxu0 %v9101
      %v9198 = vpop.f32.mrf.mxu0
      %v9199 = vadd.f32 %v9124, %v9198
      %v9200 = vpop.f32.mrf.mxu0
      %v9201 = vadd.f32 %v9124, %v9200
      %9202 = vmatmul.bf16.gmra.mxu0 %v9102
      %v9203 = vpop.f32.mrf.mxu0
      %v9204 = vadd.f32 %v9124, %v9203
      %v9205 = vpop.f32.mrf.mxu0
      %v9206 = vadd.f32 %v9124, %v9205
      %9207 = vmatmul.bf16.gmra.mxu0 %v9103
      %v9208 = vpop.f32.mrf.mxu0
      %v9209 = vadd.f32 %v9124, %v9208
      %v9210 = vpop.f32.mrf.mxu0
      %v9211 = vadd.f32 %v9124, %v9210
      %9212 = vmatmul.bf16.gmra.mxu0 %v9104
      %v9213 = vpop.f32.mrf.mxu0
      %v9214 = vadd.f32 %v9124, %v9213
      %v9215 = vpop.f32.mrf.mxu0
      %v9216 = vadd.f32 %v9124, %v9215
      %9217 = vmatmul.bf16.gmra.mxu0 %v9105
      %v9218 = vpop.f32.mrf.mxu0
      %v9219 = vadd.f32 %v9124, %v9218
      %v9220 = vpop.f32.mrf.mxu0
      %v9221 = vadd.f32 %v9124, %v9220
      %9222 = vdwg.mxu0
      %v9223 = vmax.f32 %v9184, 0.0
      %v9224 = vmax.f32 %v9186, 0.0
      %v9225 = vmax.f32 %v9189, 0.0
      %v9226 = vmax.f32 %v9191, 0.0
      %v9227 = vmax.f32 %v9194, 0.0
      %v9228 = vmax.f32 %v9196, 0.0
      %v9229 = vmax.f32 %v9199, 0.0
      %v9230 = vmax.f32 %v9201, 0.0
      %v9231 = vmax.f32 %v9204, 0.0
      %v9232 = vmax.f32 %v9206, 0.0
      %v9233 = vmax.f32 %v9209, 0.0
      %v9234 = vmax.f32 %v9211, 0.0
      %v9235 = vmax.f32 %v9214, 0.0
      %v9236 = vmax.f32 %v9216, 0.0
      %v9237 = vmax.f32 %v9219, 0.0
      %v9238 = vmax.f32 %v9221, 0.0
      %v9239 = vpack.c.bf16 %v9224, %v9223
      %v9240 = vpack.c.bf16 %v9226, %v9225
      %v9241 = vpack.c.bf16 %v9228, %v9227
      %v9242 = vpack.c.bf16 %v9230, %v9229
      %v9243 = vpack.c.bf16 %v9232, %v9231
      %v9244 = vpack.c.bf16 %v9234, %v9233
      %v9245 = vpack.c.bf16 %v9236, %v9235
      %v9246 = vpack.c.bf16 %v9238, %v9237
      %v9247 = vld [vmem:[%s5] sm:$0xf]
      %v9248 = vld [vmem:[%s5 + $0x4] sm:$0xf]
      %v9249 = vld [vmem:[%s5 + $0x8] sm:$0xf]
      %v9250 = vld [vmem:[%s5 + $0xc] sm:$0xf]
      %v9251 = vld [vmem:[%s5 + $0x10] sm:$0xf]
      %v9252 = vld [vmem:[%s5 + $0x14] sm:$0xf]
      %v9253 = vld [vmem:[%s5 + $0x18] sm:$0xf]
      %v9254 = vld [vmem:[%s5 + $0x1c] sm:$0xf]
      %v9255 = vld [vmem:[%s5 + $0x20] sm:$0xf]
      %v9256 = vld [vmem:[%s5 + $0x24] sm:$0xf]
      %v9257 = vld [vmem:[%s5 + $0x28] sm:$0xf]
      %v9258 = vld [vmem:[%s5 + $0x2c] sm:$0xf]
      %v9259 = vld [vmem:[%s5 + $0x30] sm:$0xf]
      %v9260 = vld [vmem:[%s5 + $0x34] sm:$0xf]
      %v9261 = vld [vmem:[%s5 + $0x38] sm:$0xf]
      %v9262 = vld [vmem:[%s5 + $0x3c] sm:$0xf]
      %v9263 = vld [vmem:[%s6] sm:$0x1]
      %v9265 = vperm.slane %v9263, 0
      %v9283 = vunpack.c.l.b16 %v9247
      %v9284 = vunpack.c.l.b16 %v9248
      %v9285 = vunpack.c.l.b16 %v9249
      %v9286 = vunpack.c.l.b16 %v9250
      %v9287 = vunpack.c.l.b16 %v9251
      %v9288 = vunpack.c.l.b16 %v9252
      %v9289 = vunpack.c.l.b16 %v9253
      %v9290 = vunpack.c.l.b16 %v9254
      %v9291 = vunpack.c.l.b16 %v9255
      %v9292 = vunpack.c.l.b16 %v9256
      %v9293 = vunpack.c.l.b16 %v9257
      %v9294 = vunpack.c.l.b16 %v9258
      %v9295 = vunpack.c.l.b16 %v9259
      %v9296 = vunpack.c.l.b16 %v9260
      %v9297 = vunpack.c.l.b16 %v9261
      %v9298 = vunpack.c.l.b16 %v9262
      %v9299 = vpack.c.b16 %v9284, %v9283
      %v9300 = vpack.c.b16 %v9286, %v9285
      %v9301 = vpack.c.b16 %v9288, %v9287
      %v9302 = vpack.c.b16 %v9290, %v9289
      %v9303 = vpack.c.b16 %v9292, %v9291
      %v9304 = vpack.c.b16 %v9294, %v9293
      %v9305 = vpack.c.b16 %v9296, %v9295
      %v9306 = vpack.c.b16 %v9298, %v9297
      %9315 = vmatpush.bf16.msra.mxu0 %v9306
      %9316 = vmatpush.bf16.msra.mxu0 %v9305
      %9317 = vmatpush.bf16.msra.mxu0 %v9304
      %9318 = vmatpush.bf16.msra.mxu0 %v9303
      %9319 = vmatpush.bf16.msra.mxu0 %v9302
      %9320 = vmatpush.bf16.msra.mxu0 %v9301
      %9321 = vmatpush.bf16.msra.mxu0 %v9300
      %9322 = vmatpush.bf16.msra.mxu0 %v9299
      %9323 = vmatmul.bf16.gmra.mxu0 %v9239
      %v9324 = vpop.f32.mrf.mxu0
      %v9325 = vadd.f32 %v9265, %v9324
      %v9326 = vpop.f32.mrf.mxu0
      %v9327 = vadd.f32 %v9265, %v9326
      %9328 = vmatmul.bf16.gmra.mxu0 %v9240
      %v9329 = vpop.f32.mrf.mxu0
      %v9330 = vadd.f32 %v9265, %v9329
      %v9331 = vpop.f32.mrf.mxu0
      %v9332 = vadd.f32 %v9265, %v9331
      %9333 = vmatmul.bf16.gmra.mxu0 %v9241
      %v9334 = vpop.f32.mrf.mxu0
      %v9335 = vadd.f32 %v9265, %v9334
      %v9336 = vpop.f32.mrf.mxu0
      %v9337 = vadd.f32 %v9265, %v9336
      %9338 = vmatmul.bf16.gmra.mxu0 %v9242
      %v9339 = vpop.f32.mrf.mxu0
      %v9340 = vadd.f32 %v9265, %v9339
      %v9341 = vpop.f32.mrf.mxu0
      %v9342 = vadd.f32 %v9265, %v9341
      %9343 = vmatmul.bf16.gmra.mxu0 %v9243
      %v9344 = vpop.f32.mrf.mxu0
      %v9345 = vadd.f32 %v9265, %v9344
      %v9346 = vpop.f32.mrf.mxu0
      %v9347 = vadd.f32 %v9265, %v9346
      %9348 = vmatmul.bf16.gmra.mxu0 %v9244
      %v9349 = vpop.f32.mrf.mxu0
      %v9350 = vadd.f32 %v9265, %v9349
      %v9351 = vpop.f32.mrf.mxu0
      %v9352 = vadd.f32 %v9265, %v9351
      %9353 = vmatmul.bf16.gmra.mxu0 %v9245
      %v9354 = vpop.f32.mrf.mxu0
      %v9355 = vadd.f32 %v9265, %v9354
      %v9356 = vpop.f32.mrf.mxu0
      %v9357 = vadd.f32 %v9265, %v9356
      %9358 = vmatmul.bf16.gmra.mxu0 %v9246
      %v9359 = vpop.f32.mrf.mxu0
      %v9360 = vadd.f32 %v9265, %v9359
      %v9361 = vpop.f32.mrf.mxu0
      %v9362 = vadd.f32 %v9265, %v9361
      %9363 = vdwg.mxu0
      %v9364 = vpack.c.bf16 %v9325, %v9325
      %v9365 = vpack.c.bf16 %v9327, %v9327
      %v9366 = vpack.c.bf16 %v9330, %v9330
      %v9367 = vpack.c.bf16 %v9332, %v9332
      %v9368 = vpack.c.bf16 %v9335, %v9335
      %v9369 = vpack.c.bf16 %v9337, %v9337
      %v9370 = vpack.c.bf16 %v9340, %v9340
      %v9371 = vpack.c.bf16 %v9342, %v9342
      %v9372 = vpack.c.bf16 %v9345, %v9345
      %v9373 = vpack.c.bf16 %v9347, %v9347
      %v9374 = vpack.c.bf16 %v9350, %v9350
      %v9375 = vpack.c.bf16 %v9352, %v9352
      %v9376 = vpack.c.bf16 %v9355, %v9355
      %v9377 = vpack.c.bf16 %v9357, %v9357
      %v9378 = vpack.c.bf16 %v9360, %v9360
      %v9379 = vpack.c.bf16 %v9362, %v9362
      %9380 = vst [vmem:[%s283] sm:$0xf] %v9364
      %9381 = vst [vmem:[%s283 + $0x4] sm:$0xf] %v9365
      %9382 = vst [vmem:[%s283 + $0x8] sm:$0xf] %v9366
      %9383 = vst [vmem:[%s283 + $0xc] sm:$0xf] %v9367
      %9384 = vst [vmem:[%s283 + $0x10] sm:$0xf] %v9368
      %9385 = vst [vmem:[%s283 + $0x14] sm:$0xf] %v9369
      %9386 = vst [vmem:[%s283 + $0x18] sm:$0xf] %v9370
      %9387 = vst [vmem:[%s283 + $0x1c] sm:$0xf] %v9371
      %9388 = vst [vmem:[%s283 + $0x20] sm:$0xf] %v9372
      %9389 = vst [vmem:[%s283 + $0x24] sm:$0xf] %v9373
      %9390 = vst [vmem:[%s283 + $0x28] sm:$0xf] %v9374
      %9391 = vst [vmem:[%s283 + $0x2c] sm:$0xf] %v9375
      %9392 = vst [vmem:[%s283 + $0x30] sm:$0xf] %v9376
      %9393 = vst [vmem:[%s283 + $0x34] sm:$0xf] %v9377
      %9394 = vst [vmem:[%s283 + $0x38] sm:$0xf] %v9378
      %9395 = vst [vmem:[%s283 + $0x3c] sm:$0xf] %v9379
      %s9396 = smul.u32 16, %s18
      %p9397 = scmp.lt.s32.totalorder %s9396, 31
      %s9398 = scalar_select %p9397, %s9396, 31
      %s9399 = smul.addr %s9398, 4
      %s9400 = scalar_lea.vmem %s7, %s9399
      // Predicated region
      $region49: #{criteo_bottom_forward.1} parent=47 // pred_check
        %p9401 = pneg %p188
      $region50: #{criteo_bottom_forward.1} parent=47 // pred_check_branch
        %9403 = sbr.rel (%p9401) target = $region52
      $region51: #{criteo_bottom_forward.1} parent=47 // pred_region
        %s9404 = smul.u32 16, %s18
      $region52: #{criteo_bottom_forward.1} parent=47 // pred_fallthru
        _
    $region48: #{criteo_bottom_forward.1} parent=5 // pred_fallthru
      _
    %p9405 = scmp.le.s32.totalorder 2, %s13
    // Predicated region
    $region53: #{criteo_bottom_forward.1} parent=5 // pred_check
      %p9406 = pneg %p9405
    $region54: #{criteo_bottom_forward.1} parent=5 // pred_check_branch
      %9408 = sbr.rel (%p9406) target = $region56
    $region55: #{criteo_bottom_forward.1} parent=5 // pred_region
      %s9409 = ssub.s32 %s13, 2
      // Predicated region
      $region57: #{criteo_bottom_forward.1} parent=55 // pred_check
        %p9410 = pneg %p194
      $region58: #{criteo_bottom_forward.1} parent=55 // pred_check_branch
        %9412 = sbr.rel (%p9410) target = $region60
      $region59: #{criteo_bottom_forward.1} parent=55 // pred_region
        %s9413 = smul.u32 16, %s19
        %p9414 = scmp.lt.s32.totalorder %s9413, 31
        %s9415 = scalar_select %p9414, %s9413, 31
        %s9416 = smul.addr %s9415, 4
        %s9417 = scalar_lea.vmem %s7, %s9416
      $region60: #{criteo_bottom_forward.1} parent=55 // pred_fallthru
        _
    $region56: #{criteo_bottom_forward.1} parent=5 // pred_fallthru
      _
  $region6: #{criteo_bottom_forward.1} parent=0 // loop_footer
    %s17 = sadd.s32 1, %s13
  $region7: #{criteo_bottom_forward.1} parent=0 // loop_footer_branch
    %12 = sbr.rel target = $region3
  $region8: #{criteo_bottom_forward.1} parent=0 // loop_exit
    _

</llo_original>
